<compile_context>
chip_gen: v7x
topology: tpu7x:2x2x1
jax: 0.10.0
libtpu: 0.0.40
codegen_flags: <defaults>
</compile_context>

<pallas_src>
import functools

import jax
import jax.numpy as jnp
from jax.experimental import pallas as pl
from jax.experimental.pallas import tpu as pltpu


# ----------------------------------------------------------------------------
# The single fused Pallas kernel (all operands VMEM-resident; no grid)
# ----------------------------------------------------------------------------
def _fused_graph_model_kernel(n1, k, x_ref, ain_ref, aout_ref,
                              wc1_ref, b1_ref, wc2_ref, b2_ref, wc3_ref, b3_ref,
                              wfl_ref, bf_ref, gt_ref, o_ref):
    """Whole GraphModel forward for the stacked graph [x1; x2].

    All matmuls take bf16 operands and accumulate in f32 on the MXU; everything
    else (bias / relu / selection / softmax) stays in f32 on the VPU/EUP."""
    a_in = ain_ref[...]       # [N, N] bf16 block-diag mean-aggregation (in-edges)
    a_out = aout_ref[...]     # [N, N] bf16 (out-edges)

    def relconv(h, wc_ref, b_ref):
        # One MXU push per layer: h @ [W1 | Wroot | W2 | Wf_seg].
        # m_in (lane 0) and m_out (lane 128) — the MXU-feeding slices — are
        # vreg-aligned; root / fin slices only feed VPU adds.
        c = b_ref.shape[-1]
        hw = jnp.dot(h, wc_ref[...], preferred_element_type=jnp.float32)
        m_in = hw[:, :c].astype(jnp.bfloat16)
        root = hw[:, c:2 * c] + b_ref[...]
        m_out = hw[:, 2 * c:3 * c].astype(jnp.bfloat16)
        fin = hw[:, 3 * c:]                      # this layer's W_final contribution
        agg = (jnp.dot(a_in, m_in, preferred_element_type=jnp.float32)
               + jnp.dot(a_out, m_out, preferred_element_type=jnp.float32))
        # TODO(synk): F.dropout(p=0.2, training=True) is stochastic; treated as
        # identity (eval-mode semantics) to keep the kernel deterministic.
        return jnp.maximum(root + agg, 0.0).astype(jnp.bfloat16), fin

    x = x_ref[...]                               # [N1+N2, C_in] bf16
    h1, f0 = relconv(x, wc1_ref, b1_ref)
    h2, f1 = relconv(h1, wc2_ref, b2_ref)
    h3, f2 = relconv(h2, wc3_ref, b3_ref)

    # final Linear over cat([x, h1, h2, h3]): x/h1/h2 segments were folded into the
    # fused layer matmuls above; only h3's segment needs its own dot.
    h = (f0 + f1 + f2
         + jnp.dot(h3, wfl_ref[...], preferred_element_type=jnp.float32)
         + bf_ref[...])                          # [N1+N2, C_out] f32

    # Similarity S[i, j] = <h_s[i], h_t[j]>  (contract channels; no in-kernel .T).
    h_s = h[:n1].astype(jnp.bfloat16)
    h_t = h[n1:].astype(jnp.bfloat16)
    s = jax.lax.dot_general(h_s, h_t, (((1,), (1,)), ((), ())),
                            preferred_element_type=jnp.float32)       # [N1, N2]

    # ---- top-k selection via parallel rank computation (no serialized loop) -------
    # rank[i, j] = #{j' : s[i,j'] > s[i,j]}  +  #{j' < j : s[i,j'] == s[i,j]}
    n2 = s.shape[1]
    s_j = s[:, :, None]                          # [N1, N2, 1]   candidate column j
    s_jp = s[:, None, :]                         # [N1, 1, N2]   comparator column j'
    j_idx = jax.lax.broadcasted_iota(jnp.int32, (n2, n2), 0)    # j
    jp_idx = jax.lax.broadcasted_iota(jnp.int32, (n2, n2), 1)   # j'
    tie_prior = (jp_idx < j_idx)[None, :, :]
    before = jnp.where((s_jp > s_j) | ((s_jp == s_j) & tie_prior), 1.0, 0.0)
    rank = jnp.sum(before, axis=-1)              # [N1, N2], exact small integers in f32
    sel = (rank < k).astype(jnp.float32)         # top-k mask
    last = (rank == (k - 1)).astype(jnp.float32) # one-hot of the k-th largest column

    # ---- include ground-truth pairs (DGMC.__include_gt__, batch=None) -------------
    # For every GT pair (r, c) not already selected, drop row r's k-th top-k column
    # and select column c instead.
    # TODO(synk): if a source row has several *missing* GT columns this keeps all of
    # them, whereas torch's vectorised scatter keeps exactly one (nondeterministic).
    missing = gt_ref[...] * (1.0 - sel)
    row_fix = jnp.max(missing, axis=-1, keepdims=True) > 0.0
    sel = jnp.where(row_fix & (last > 0.0), 0.0, sel)
    sel = jnp.maximum(sel, missing)

    # ---- softmax over the selected entries, densified straight into the output ----
    s_sel = jnp.where(sel > 0.0, s, jnp.float32(-1e30))
    m = jnp.max(s_sel, axis=-1, keepdims=True)
    p = jnp.exp(s_sel - m) * sel
    denom = jnp.sum(p, axis=-1, keepdims=True)
    o_ref[...] = p * pl.reciprocal(denom, approx=False)   # EUP reciprocal, exact


def _vmem_spec():
    return pl.BlockSpec(memory_space=pltpu.MemorySpace.VMEM)


def graph_model_forward(packed, x1, x2, a_in, a_out, gt_mask, *, k=25):
    """Jitted hot path: one fused Pallas kernel.  Adjacency operators, the GT mask
    and the packed (pre-concatenated, bf16) weights are prepared outside."""
    n1, n2 = gt_mask.shape
    x = jnp.concatenate([x1, x2], axis=0).astype(jnp.bfloat16)   # [N1+N2, C_in]

    operands = [x, a_in, a_out]
    for conv in packed["convs"]:
        operands += [conv["w_cat"], conv["b"]]
    operands += [packed["wf_last"], packed["bf"], gt_mask]

    # TODO(synk): at production graph sizes, tile the aggregation matmuls and the
    # S / top-k / softmax stage over node blocks (grid + dimension_semantics) instead
    # of keeping everything whole-array VMEM-resident (v7x has only 64 MiB VMEM and a
    # second TensorCore that this grid-less call leaves idle).
    return pl.pallas_call(
        functools.partial(_fused_graph_model_kernel, n1, k),
        out_shape=jax.ShapeDtypeStruct((n1, n2), jnp.float32),
        in_specs=[_vmem_spec() for _ in operands],
        out_specs=_vmem_spec(),
    )(*operands)


# ----------------------------------------------------------------------------
# Host-side preprocessing (off the jitted critical path)
# ----------------------------------------------------------------------------
def build_norm_adj(edge_index, num_nodes):
    """Dense mean-aggregation operators from a [2, E] edge_index (PyG scatter_mean).

    A_in[i, j]  = (#edges j->i) / max(in_deg(i), 1)    ('source_to_target' flow)
    A_out[i, j] = (#edges i->j) / max(out_deg(i), 1)   ('target_to_source' flow)
    """
    src, dst = edge_index[0], edge_index[1]
    counts = jnp.zeros((num_nodes, num_nodes), jnp.float32).at[dst, src].add(1.0)
    a_in = counts / jnp.maximum(counts.sum(axis=1, keepdims=True), 1.0)
    counts_t = counts.T
    a_out = counts_t / jnp.maximum(counts_t.sum(axis=1, keepdims=True), 1.0)
    return a_in, a_out


def block_diag(a, b):
    # TODO(synk): at large N, switch to per-graph aggregation dots — half of this
    # block-diagonal operator's MACs multiply structural zeros.
    n1, n2 = a.shape[0], b.shape[0]
    z = jnp.zeros((n1 + n2, n1 + n2), jnp.float32)
    return z.at[:n1, :n1].set(a).at[n1:, n1:].set(b)


def build_gt_mask(y, n1, n2):
    return jnp.zeros((n1, n2), jnp.float32).at[y[0], y[1]].set(1.0)


def pack_params(params, in_channels, out_channels):
    """One-time bf16 packing: each layer's weights become [C_in, 4*C_out] =
    [W1 | Wroot | W2 | Wf_seg], where Wf_seg is the final-linear segment multiplying
    this layer's *input* activation; h3's final segment stays a separate matrix."""
    psi = params["psi_1"]
    wf = psi["final"]["w"]
    convs, off = [], 0
    for c in psi["convs"]:
        c_in = c["w1"].shape[0]
        wf_seg = wf[off:off + c_in]
        off += c_in
        w_cat = jnp.concatenate([c["w1"], c["w_root"], c["w2"], wf_seg],
                                axis=1).astype(jnp.bfloat16)
        convs.append({"w_cat": w_cat, "b": c["b_root"]})
    wf_last = wf[off:].astype(jnp.bfloat16)
    assert wf_last.shape[0] == out_channels
    return {"convs": convs, "wf_last": wf_last, "bf": psi["final"]["b"]}


# ----------------------------------------------------------------------------
# Parameter init (matches torch.nn.Linear default init shapes/semantics)
# ----------------------------------------------------------------------------
def _lin_init(key, fan_in, fan_out, bias=True):
    kw, kb = jax.random.split(key)
    bound = 1.0 / float(fan_in) ** 0.5
    w = jax.random.uniform(kw, (fan_in, fan_out), jnp.float32, -bound, bound)
    if bias:
        b = jax.random.uniform(kb, (1, fan_out), jnp.float32, -bound, bound)
        return w, b
    return w, None


def init_relcnn_params(key, in_channels, out_channels, num_layers):
    params = {"convs": []}
    c_in = in_channels
    keys = jax.random.split(key, num_layers + 1)
    for layer in range(num_layers):
        k1, k2, k3 = jax.random.split(keys[layer], 3)
        w1, _ = _lin_init(k1, c_in, out_channels, bias=False)
        w2, _ = _lin_init(k2, c_in, out_channels, bias=False)
        wr, br = _lin_init(k3, c_in, out_channels, bias=True)
        params["convs"].append({"w1": w1, "w2": w2, "w_root": wr, "b_root": br})
        c_in = out_channels
    cat_dim = in_channels + num_layers * out_channels
    wf, bf = _lin_init(keys[-1], cat_dim, out_channels, bias=True)
    params["final"] = {"w": wf, "b": bf}
    return params


# ----------------------------------------------------------------------------
# Pure-JAX reference (unfused, original dataflow; same bf16-in/f32-acc matmuls)
# ----------------------------------------------------------------------------
def reference_forward(params, x1, x2, edge1_list, edge2_list, y, *, k=25):
    edge1 = jnp.concatenate(edge1_list, axis=1)
    edge2 = jnp.concatenate(edge2_list, axis=1)
    a1_in, a1_out = build_norm_adj(edge1, x1.shape[0])
    a2_in, a2_out = build_norm_adj(edge2, x2.shape[0])
    psi = params["psi_1"]

    def bdot(a, b):   # mirror the kernel's bf16 operands / f32 accumulation
        return jnp.dot(a.astype(jnp.bfloat16), b.astype(jnp.bfloat16),
                       preferred_element_type=jnp.float32)

    def relcnn(x, a_in, a_out):
        xs, h = [x], x
        for c in psi["convs"]:
            root = bdot(h, c["w_root"]) + c["b_root"]
            agg = bdot(a_in, bdot(h, c["w1"])) + bdot(a_out, bdot(h, c["w2"]))
            h = jax.nn.relu(root + agg)
            xs.append(h)
        wf, out, off = psi["final"]["w"], psi["final"]["b"], 0
        for xi in xs:
            out = out + bdot(xi, wf[off:off + xi.shape[-1]])
            off += xi.shape[-1]
        return out

    h_s = relcnn(x1, a1_in, a1_out)
    h_t = relcnn(x2, a2_in, a2_out)
    s = bdot(h_s, h_t.T)
    _, s_idx = jax.lax.top_k(s, k)
    row, col = y[0], y[1]
    present = (s_idx[row] == col[:, None]).any(axis=-1)
    s_idx = s_idx.at[row, -1].set(jnp.where(present, s_idx[row, -1], col))
    s_hat = jnp.take_along_axis(s, s_idx, axis=-1)
    s_l = jax.nn.softmax(s_hat, axis=-1)
    rows = jnp.broadcast_to(jnp.arange(s.shape[0])[:, None], s_idx.shape)
    return jnp.zeros_like(s).at[rows, s_idx].set(s_l)


# ----------------------------------------------------------------------------
if __name__ == "__main__":
    key = jax.random.PRNGKey(0)
    N1, N2 = 32, 32          # nodes in source / target graph
    IN_CH, OUT_CH = 32, 64   # GraphModel(in_channels=32, out_channels=64)
    K = 25                   # DGMC k
    NUM_LAYERS = 3

    (k_param, k_x1, k_x2, k_e1a, k_e1b, k_e2a, k_e2b) = jax.random.split(key, 7)

    params = {"psi_1": init_relcnn_params(k_param, IN_CH, OUT_CH, NUM_LAYERS)}
    # psi_2 = RelCNN(64, 64) and the DGMC consensus MLP only matter for
    # num_steps > 0, which never runs here, so they are not materialized.

    x1 = jax.random.normal(k_x1, (N1, IN_CH), jnp.float32)
    x2 = jax.random.normal(k_x2, (N2, IN_CH), jnp.float32)

    # edge1 / edge2 are tuples of [2, E] relation edge-index tensors.
    edge1_list = (jax.random.randint(k_e1a, (2, 64), 0, N1, jnp.int32),
                  jax.random.randint(k_e1b, (2, 64), 0, N1, jnp.int32))
    edge2_list = (jax.random.randint(k_e2a, (2, 64), 0, N2, jnp.int32),
                  jax.random.randint(k_e2b, (2, 64), 0, N2, jnp.int32))

    # Ground-truth correspondences y = [2, M] (source node, target node).
    M = 16
    y = jnp.stack([jnp.arange(M, dtype=jnp.int32),
                   jnp.arange(M, dtype=jnp.int32)], axis=0)

    # ---- graph-only / parameter-only preprocessing, hoisted out of the jit ----
    edge1 = jnp.concatenate(edge1_list, axis=1)
    edge2 = jnp.concatenate(edge2_list, axis=1)
    a1_in, a1_out = build_norm_adj(edge1, N1)
    a2_in, a2_out = build_norm_adj(edge2, N2)
    a_in = block_diag(a1_in, a2_in).astype(jnp.bfloat16)    # [N1+N2, N1+N2]
    a_out = block_diag(a1_out, a2_out).astype(jnp.bfloat16)
    gt_mask = build_gt_mask(y, N1, N2)                      # hoisted GT scatter
    packed = pack_params(params, IN_CH, OUT_CH)

    fwd = jax.jit(functools.partial(graph_model_forward, k=K))
    s_dense = fwd(packed, x1, x2, a_in, a_out, gt_mask)
    jax.block_until_ready(s_dense)

    # ---- validation against the unfused pure-JAX reference ----
    s_ref = reference_forward(params, x1, x2, edge1_list, edge2_list, y, k=K)
    assert s_dense.shape == (N1, N2)
    # each row of S_L is a softmax over its k sparse entries -> sums to 1
    assert bool(jnp.allclose(s_dense.sum(axis=-1), 1.0, atol=1e-4))
    assert bool(jnp.allclose(s_dense, s_ref, atol=1e-3, rtol=1e-3))
    print("KERNEL_OK")
</pallas_src>

<mosaic_0001>
module attributes {stable_mosaic.version = 11 : i64} {
  func.func @_fused_graph_model_kernel(%arg0: memref<64x32xbf16, #tpu.memory_space<vmem>>, %arg1: memref<64x64xbf16, #tpu.memory_space<vmem>>, %arg2: memref<64x64xbf16, #tpu.memory_space<vmem>>, %arg3: memref<32x256xbf16, #tpu.memory_space<vmem>>, %arg4: memref<1x64xf32, #tpu.memory_space<vmem>>, %arg5: memref<64x256xbf16, #tpu.memory_space<vmem>>, %arg6: memref<1x64xf32, #tpu.memory_space<vmem>>, %arg7: memref<64x256xbf16, #tpu.memory_space<vmem>>, %arg8: memref<1x64xf32, #tpu.memory_space<vmem>>, %arg9: memref<64x64xbf16, #tpu.memory_space<vmem>>, %arg10: memref<1x64xf32, #tpu.memory_space<vmem>>, %arg11: memref<32x32xf32, #tpu.memory_space<vmem>>, %arg12: memref<32x32xf32, #tpu.memory_space<vmem>>) attributes {dimension_semantics = [], scalar_prefetch = 0 : i64, scratch_operands = 0 : i64, tpu.core_type = #tpu.core_type<tc>} {
    %c0 = arith.constant 0 : index
    %c0_0 = arith.constant 0 : index
    %0 = vector.load %arg1[%c0, %c0_0] : memref<64x64xbf16, #tpu.memory_space<vmem>>, vector<64x64xbf16>
    %c0_1 = arith.constant 0 : index
    %c0_2 = arith.constant 0 : index
    %1 = vector.load %arg2[%c0_1, %c0_2] : memref<64x64xbf16, #tpu.memory_space<vmem>>, vector<64x64xbf16>
    %c0_3 = arith.constant 0 : index
    %c0_4 = arith.constant 0 : index
    %2 = vector.load %arg0[%c0_3, %c0_4] : memref<64x32xbf16, #tpu.memory_space<vmem>>, vector<64x32xbf16>
    %c0_5 = arith.constant 0 : index
    %c0_6 = arith.constant 0 : index
    %3 = vector.load %arg3[%c0_5, %c0_6] : memref<32x256xbf16, #tpu.memory_space<vmem>>, vector<32x256xbf16>
    %cst = arith.constant dense<0.000000e+00> : vector<64x256xf32>
    %4 = tpu.matmul %2, %3, %cst {dimension_numbers = #tpu.dot_dimension_numbers<[1], [0], [0], [1], [0, 0, 1, 1], [], []>} : vector<64x32xbf16>, vector<32x256xbf16>, vector<64x256xf32> -> vector<64x256xf32>
    %5 = vector.extract_strided_slice %4 {offsets = [0, 0], sizes = [64, 64], strides = [1, 1]} : vector<64x256xf32> to vector<64x64xf32>
    %6 = arith.truncf %5 : vector<64x64xf32> to vector<64x64xbf16>
    %7 = vector.extract_strided_slice %4 {offsets = [0, 64], sizes = [64, 64], strides = [1, 1]} : vector<64x256xf32> to vector<64x64xf32>
    %c0_7 = arith.constant 0 : index
    %c0_8 = arith.constant 0 : index
    %8 = vector.load %arg4[%c0_7, %c0_8] : memref<1x64xf32, #tpu.memory_space<vmem>>, vector<1x64xf32>
    %9 = vector.broadcast %8 : vector<1x64xf32> to vector<64x64xf32>
    %10 = arith.addf %7, %9 : vector<64x64xf32>
    %11 = vector.extract_strided_slice %4 {offsets = [0, 128], sizes = [64, 64], strides = [1, 1]} : vector<64x256xf32> to vector<64x64xf32>
    %12 = arith.truncf %11 : vector<64x64xf32> to vector<64x64xbf16>
    %13 = vector.extract_strided_slice %4 {offsets = [0, 192], sizes = [64, 64], strides = [1, 1]} : vector<64x256xf32> to vector<64x64xf32>
    %cst_9 = arith.constant dense<0.000000e+00> : vector<64x64xf32>
    %14 = tpu.matmul %0, %6, %cst_9 {dimension_numbers = #tpu.dot_dimension_numbers<[1], [0], [0], [1], [0, 0, 1, 1], [], []>} : vector<64x64xbf16>, vector<64x64xbf16>, vector<64x64xf32> -> vector<64x64xf32>
    %cst_10 = arith.constant dense<0.000000e+00> : vector<64x64xf32>
    %15 = tpu.matmul %1, %12, %cst_10 {dimension_numbers = #tpu.dot_dimension_numbers<[1], [0], [0], [1], [0, 0, 1, 1], [], []>} : vector<64x64xbf16>, vector<64x64xbf16>, vector<64x64xf32> -> vector<64x64xf32>
    %16 = arith.addf %14, %15 : vector<64x64xf32>
    %17 = arith.addf %10, %16 : vector<64x64xf32>
    %cst_11 = arith.constant 0.000000e+00 : f32
    %18 = vector.broadcast %cst_11 : f32 to vector<64x64xf32>
    %19 = arith.maximumf %17, %18 : vector<64x64xf32>
    %20 = arith.truncf %19 : vector<64x64xf32> to vector<64x64xbf16>
    %c0_12 = arith.constant 0 : index
    %c0_13 = arith.constant 0 : index
    %21 = vector.load %arg5[%c0_12, %c0_13] : memref<64x256xbf16, #tpu.memory_space<vmem>>, vector<64x256xbf16>
    %cst_14 = arith.constant dense<0.000000e+00> : vector<64x256xf32>
    %22 = tpu.matmul %20, %21, %cst_14 {dimension_numbers = #tpu.dot_dimension_numbers<[1], [0], [0], [1], [0, 0, 1, 1], [], []>} : vector<64x64xbf16>, vector<64x256xbf16>, vector<64x256xf32> -> vector<64x256xf32>
    %23 = vector.extract_strided_slice %22 {offsets = [0, 0], sizes = [64, 64], strides = [1, 1]} : vector<64x256xf32> to vector<64x64xf32>
    %24 = arith.truncf %23 : vector<64x64xf32> to vector<64x64xbf16>
    %25 = vector.extract_strided_slice %22 {offsets = [0, 64], sizes = [64, 64], strides = [1, 1]} : vector<64x256xf32> to vector<64x64xf32>
    %c0_15 = arith.constant 0 : index
    %c0_16 = arith.constant 0 : index
    %26 = vector.load %arg6[%c0_15, %c0_16] : memref<1x64xf32, #tpu.memory_space<vmem>>, vector<1x64xf32>
    %27 = vector.broadcast %26 : vector<1x64xf32> to vector<64x64xf32>
    %28 = arith.addf %25, %27 : vector<64x64xf32>
    %29 = vector.extract_strided_slice %22 {offsets = [0, 128], sizes = [64, 64], strides = [1, 1]} : vector<64x256xf32> to vector<64x64xf32>
    %30 = arith.truncf %29 : vector<64x64xf32> to vector<64x64xbf16>
    %31 = vector.extract_strided_slice %22 {offsets = [0, 192], sizes = [64, 64], strides = [1, 1]} : vector<64x256xf32> to vector<64x64xf32>
    %cst_17 = arith.constant dense<0.000000e+00> : vector<64x64xf32>
    %32 = tpu.matmul %0, %24, %cst_17 {dimension_numbers = #tpu.dot_dimension_numbers<[1], [0], [0], [1], [0, 0, 1, 1], [], []>} : vector<64x64xbf16>, vector<64x64xbf16>, vector<64x64xf32> -> vector<64x64xf32>
    %cst_18 = arith.constant dense<0.000000e+00> : vector<64x64xf32>
    %33 = tpu.matmul %1, %30, %cst_18 {dimension_numbers = #tpu.dot_dimension_numbers<[1], [0], [0], [1], [0, 0, 1, 1], [], []>} : vector<64x64xbf16>, vector<64x64xbf16>, vector<64x64xf32> -> vector<64x64xf32>
    %34 = arith.addf %32, %33 : vector<64x64xf32>
    %35 = arith.addf %28, %34 : vector<64x64xf32>
    %cst_19 = arith.constant 0.000000e+00 : f32
    %36 = vector.broadcast %cst_19 : f32 to vector<64x64xf32>
    %37 = arith.maximumf %35, %36 : vector<64x64xf32>
    %38 = arith.truncf %37 : vector<64x64xf32> to vector<64x64xbf16>
    %c0_20 = arith.constant 0 : index
    %c0_21 = arith.constant 0 : index
    %39 = vector.load %arg7[%c0_20, %c0_21] : memref<64x256xbf16, #tpu.memory_space<vmem>>, vector<64x256xbf16>
    %cst_22 = arith.constant dense<0.000000e+00> : vector<64x256xf32>
    %40 = tpu.matmul %38, %39, %cst_22 {dimension_numbers = #tpu.dot_dimension_numbers<[1], [0], [0], [1], [0, 0, 1, 1], [], []>} : vector<64x64xbf16>, vector<64x256xbf16>, vector<64x256xf32> -> vector<64x256xf32>
    %41 = vector.extract_strided_slice %40 {offsets = [0, 0], sizes = [64, 64], strides = [1, 1]} : vector<64x256xf32> to vector<64x64xf32>
    %42 = arith.truncf %41 : vector<64x64xf32> to vector<64x64xbf16>
    %43 = vector.extract_strided_slice %40 {offsets = [0, 64], sizes = [64, 64], strides = [1, 1]} : vector<64x256xf32> to vector<64x64xf32>
    %c0_23 = arith.constant 0 : index
    %c0_24 = arith.constant 0 : index
    %44 = vector.load %arg8[%c0_23, %c0_24] : memref<1x64xf32, #tpu.memory_space<vmem>>, vector<1x64xf32>
    %45 = vector.broadcast %44 : vector<1x64xf32> to vector<64x64xf32>
    %46 = arith.addf %43, %45 : vector<64x64xf32>
    %47 = vector.extract_strided_slice %40 {offsets = [0, 128], sizes = [64, 64], strides = [1, 1]} : vector<64x256xf32> to vector<64x64xf32>
    %48 = arith.truncf %47 : vector<64x64xf32> to vector<64x64xbf16>
    %49 = vector.extract_strided_slice %40 {offsets = [0, 192], sizes = [64, 64], strides = [1, 1]} : vector<64x256xf32> to vector<64x64xf32>
    %cst_25 = arith.constant dense<0.000000e+00> : vector<64x64xf32>
    %50 = tpu.matmul %0, %42, %cst_25 {dimension_numbers = #tpu.dot_dimension_numbers<[1], [0], [0], [1], [0, 0, 1, 1], [], []>} : vector<64x64xbf16>, vector<64x64xbf16>, vector<64x64xf32> -> vector<64x64xf32>
    %cst_26 = arith.constant dense<0.000000e+00> : vector<64x64xf32>
    %51 = tpu.matmul %1, %48, %cst_26 {dimension_numbers = #tpu.dot_dimension_numbers<[1], [0], [0], [1], [0, 0, 1, 1], [], []>} : vector<64x64xbf16>, vector<64x64xbf16>, vector<64x64xf32> -> vector<64x64xf32>
    %52 = arith.addf %50, %51 : vector<64x64xf32>
    %53 = arith.addf %46, %52 : vector<64x64xf32>
    %cst_27 = arith.constant 0.000000e+00 : f32
    %54 = vector.broadcast %cst_27 : f32 to vector<64x64xf32>
    %55 = arith.maximumf %53, %54 : vector<64x64xf32>
    %56 = arith.truncf %55 : vector<64x64xf32> to vector<64x64xbf16>
    %57 = arith.addf %13, %31 : vector<64x64xf32>
    %58 = arith.addf %57, %49 : vector<64x64xf32>
    %c0_28 = arith.constant 0 : index
    %c0_29 = arith.constant 0 : index
    %59 = vector.load %arg9[%c0_28, %c0_29] : memref<64x64xbf16, #tpu.memory_space<vmem>>, vector<64x64xbf16>
    %cst_30 = arith.constant dense<0.000000e+00> : vector<64x64xf32>
    %60 = tpu.matmul %56, %59, %cst_30 {dimension_numbers = #tpu.dot_dimension_numbers<[1], [0], [0], [1], [0, 0, 1, 1], [], []>} : vector<64x64xbf16>, vector<64x64xbf16>, vector<64x64xf32> -> vector<64x64xf32>
    %61 = arith.addf %58, %60 : vector<64x64xf32>
    %c0_31 = arith.constant 0 : index
    %c0_32 = arith.constant 0 : index
    %62 = vector.load %arg10[%c0_31, %c0_32] : memref<1x64xf32, #tpu.memory_space<vmem>>, vector<1x64xf32>
    %63 = vector.broadcast %62 : vector<1x64xf32> to vector<64x64xf32>
    %64 = arith.addf %61, %63 : vector<64x64xf32>
    %65 = vector.extract_strided_slice %64 {offsets = [0, 0], sizes = [32, 64], strides = [1, 1]} : vector<64x64xf32> to vector<32x64xf32>
    %66 = arith.truncf %65 : vector<32x64xf32> to vector<32x64xbf16>
    %67 = vector.extract_strided_slice %64 {offsets = [32, 0], sizes = [32, 64], strides = [1, 1]} : vector<64x64xf32> to vector<32x64xf32>
    %68 = arith.truncf %67 : vector<32x64xf32> to vector<32x64xbf16>
    %cst_33 = arith.constant dense<0.000000e+00> : vector<32x32xf32>
    %69 = tpu.matmul %66, %68, %cst_33 {dimension_numbers = #tpu.dot_dimension_numbers<[1], [1], [0], [0], [0, 0, 1, 0], [], []>} : vector<32x64xbf16>, vector<32x64xbf16>, vector<32x32xf32> -> vector<32x32xf32>
    %70 = vector.shape_cast %69 : vector<32x32xf32> to vector<32x32x1xf32>
    %71 = vector.shape_cast %69 : vector<32x32xf32> to vector<32x1x32xf32>
    %72 = tpu.iota {dimensions = array<i32: 0>} : vector<32x32xi32>
    %73 = tpu.iota {dimensions = array<i32: 1>} : vector<32x32xi32>
    %74 = arith.cmpi slt, %73, %72 : vector<32x32xi32>
    %75 = vector.shape_cast %74 : vector<32x32xi1> to vector<1x32x32xi1>
    %76 = vector.broadcast %71 : vector<32x1x32xf32> to vector<32x32x32xf32>
    %77 = vector.broadcast %70 : vector<32x32x1xf32> to vector<32x32x32xf32>
    %78 = arith.cmpf ogt, %76, %77 : vector<32x32x32xf32>
    %79 = vector.broadcast %71 : vector<32x1x32xf32> to vector<32x32x32xf32>
    %80 = vector.broadcast %70 : vector<32x32x1xf32> to vector<32x32x32xf32>
    %81 = arith.cmpf oeq, %79, %80 : vector<32x32x32xf32>
    %82 = vector.broadcast %75 : vector<1x32x32xi1> to vector<32x32x32xi1>
    %83 = arith.andi %81, %82 : vector<32x32x32xi1>
    %84 = arith.ori %78, %83 : vector<32x32x32xi1>
    %cst_34 = arith.constant 1.000000e+00 : f32
    %cst_35 = arith.constant 0.000000e+00 : f32
    %85 = vector.broadcast %cst_34 : f32 to vector<32x32x32xf32>
    %86 = vector.broadcast %cst_35 : f32 to vector<32x32x32xf32>
    %87 = arith.select %84, %85, %86 : vector<32x32x32xi1>, vector<32x32x32xf32>
    %cst_36 = arith.constant dense<0.000000e+00> : vector<32x32xf32>
    %88 = vector.multi_reduction <add>, %87, %cst_36 [2] : vector<32x32x32xf32> to vector<32x32xf32>
    %cst_37 = arith.constant 2.500000e+01 : f32
    %89 = vector.broadcast %cst_37 : f32 to vector<32x32xf32>
    %90 = arith.cmpf olt, %88, %89 : vector<32x32xf32>
    %91 = arith.extui %90 : vector<32x32xi1> to vector<32x32xi32>
    %92 = arith.sitofp %91 : vector<32x32xi32> to vector<32x32xf32>
    %cst_38 = arith.constant 2.400000e+01 : f32
    %93 = vector.broadcast %cst_38 : f32 to vector<32x32xf32>
    %94 = arith.cmpf oeq, %88, %93 : vector<32x32xf32>
    %95 = arith.extui %94 : vector<32x32xi1> to vector<32x32xi32>
    %96 = arith.sitofp %95 : vector<32x32xi32> to vector<32x32xf32>
    %c0_39 = arith.constant 0 : index
    %c0_40 = arith.constant 0 : index
    %97 = vector.load %arg11[%c0_39, %c0_40] : memref<32x32xf32, #tpu.memory_space<vmem>>, vector<32x32xf32>
    %cst_41 = arith.constant 1.000000e+00 : f32
    %98 = vector.broadcast %cst_41 : f32 to vector<32x32xf32>
    %99 = arith.subf %98, %92 : vector<32x32xf32>
    %100 = arith.mulf %97, %99 : vector<32x32xf32>
    %cst_42 = arith.constant dense<0xFF800000> : vector<32xf32>
    %101 = vector.multi_reduction <maximumf>, %100, %cst_42 [1] : vector<32x32xf32> to vector<32xf32>
    %102 = vector.shape_cast %101 : vector<32xf32> to vector<32x1xf32>
    %cst_43 = arith.constant 0.000000e+00 : f32
    %103 = vector.broadcast %cst_43 : f32 to vector<32x1xf32>
    %104 = arith.cmpf ogt, %102, %103 : vector<32x1xf32>
    %cst_44 = arith.constant 0.000000e+00 : f32
    %105 = vector.broadcast %cst_44 : f32 to vector<32x32xf32>
    %106 = arith.cmpf ogt, %96, %105 : vector<32x32xf32>
    %107 = vector.broadcast %104 : vector<32x1xi1> to vector<32x32xi1>
    %108 = arith.andi %107, %106 : vector<32x32xi1>
    %cst_45 = arith.constant 0.000000e+00 : f32
    %109 = vector.broadcast %cst_45 : f32 to vector<32x32xf32>
    %110 = arith.select %108, %109, %92 : vector<32x32xi1>, vector<32x32xf32>
    %111 = arith.maximumf %110, %100 : vector<32x32xf32>
    %cst_46 = arith.constant 0.000000e+00 : f32
    %112 = vector.broadcast %cst_46 : f32 to vector<32x32xf32>
    %113 = arith.cmpf ogt, %111, %112 : vector<32x32xf32>
    %cst_47 = arith.constant -1.000000e+30 : f32
    %114 = vector.broadcast %cst_47 : f32 to vector<32x32xf32>
    %115 = arith.select %113, %69, %114 : vector<32x32xi1>, vector<32x32xf32>
    %cst_48 = arith.constant dense<0xFF800000> : vector<32xf32>
    %116 = vector.multi_reduction <maximumf>, %115, %cst_48 [1] : vector<32x32xf32> to vector<32xf32>
    %117 = vector.shape_cast %116 : vector<32xf32> to vector<32x1xf32>
    %118 = vector.broadcast %117 : vector<32x1xf32> to vector<32x32xf32>
    %119 = arith.subf %115, %118 : vector<32x32xf32>
    %120 = math.exp %119 : vector<32x32xf32>
    %121 = arith.mulf %120, %111 : vector<32x32xf32>
    %cst_49 = arith.constant dense<0.000000e+00> : vector<32xf32>
    %122 = vector.multi_reduction <add>, %121, %cst_49 [1] : vector<32x32xf32> to vector<32xf32>
    %123 = vector.shape_cast %122 : vector<32xf32> to vector<32x1xf32>
    %124 = tpu.reciprocal %123 : vector<32x1xf32> -> vector<32x1xf32>
    %125 = vector.broadcast %124 : vector<32x1xf32> to vector<32x32xf32>
    %126 = arith.mulf %121, %125 : vector<32x32xf32>
    %c0_50 = arith.constant 0 : index
    %c0_51 = arith.constant 0 : index
    %127 = vector.load %arg12[%c0_50, %c0_51] : memref<32x32xf32, #tpu.memory_space<vmem>>, vector<32x32xf32>
    tpu.vector_store %arg12[%c0_50, %c0_51], %126 {strides = array<i32>} : memref<32x32xf32, #tpu.memory_space<vmem>>, vector<32x32xf32>,
    return
  }
}

</mosaic_0001>

<llo_original>
// kernel: graph_model_forward.1
$region0: #{graph_model_forward.1}
  #allocation0 [shape = 'u32[]', space=smem, size = 0x4, offset = 0x4, fixed_abs, tag = 'smem constant byte address 0x4 - core index']
  #allocation1 [shape = 'u32[144,128]{1,0:T(1,128)}', space=vmem, size = 0x12000, scoped, tag = 'internal scratch']
  %s0 = inlined_call_operand.vmem [shape: bf16[64,32], index: 0, kind: input, shape index: {}]
  %s1 = inlined_call_operand.vmem [shape: bf16[64,64], index: 1, kind: input, shape index: {}]
  %s2 = inlined_call_operand.vmem [shape: bf16[64,64], index: 2, kind: input, shape index: {}]
  %s3 = inlined_call_operand.hbm [shape: bf16[32,256], index: 3, kind: input, shape index: {}]
  %s4 = inlined_call_operand.vmem [shape: f32[1,64], index: 4, kind: input, shape index: {}]
  %s5 = inlined_call_operand.vmem [shape: bf16[64,256], index: 5, kind: input, shape index: {}]
  %s6 = inlined_call_operand.vmem [shape: f32[1,64], index: 6, kind: input, shape index: {}]
  %s7 = inlined_call_operand.vmem [shape: bf16[64,256], index: 7, kind: input, shape index: {}]
  %s8 = inlined_call_operand.hbm [shape: f32[1,64], index: 8, kind: input, shape index: {}]
  %s9 = inlined_call_operand.hbm [shape: bf16[64,64], index: 9, kind: input, shape index: {}]
  %s10 = inlined_call_operand.hbm [shape: f32[1,64], index: 10, kind: input, shape index: {}]
  %s11 = inlined_call_operand.hbm [shape: f32[32,32], index: 11, kind: input, shape index: {}]
  %s12 = inlined_call_operand.hbm [shape: f32[32,32], index: 12, kind: output, shape index: {}]
  %s13 = sld [smem:[#allocation0]]
  $region78: #{graph_model_forward.1} parent=0
    _
  %s15 = ssub.s32 1, %s13
  %s16 = scalar_select 0, %s15, %s13
  $region1: #{graph_model_forward.1} parent=0
    #allocation2 [shape = 'u8[16384]{0}', space=vmem, size = 0x4000, scoped, tag = 'input window, operand 3, single buffered']
    #allocation3 [shape = 's32[1]{0}', space=sflag, size = 0x4, scoped, tag = 'scoped memory for graph_model_forward.1']
    #allocation4 [shape = 's32[1]{0}', space=sflag, size = 0x4, scoped, tag = 'scoped memory for graph_model_forward.1']
    #allocation5 [shape = 'u8[512]{0}', space=vmem, size = 0x400, scoped, tag = 'input window, operand 8, single buffered']
    #allocation6 [shape = 's32[1]{0}', space=sflag, size = 0x4, scoped, tag = 'scoped memory for graph_model_forward.1']
    #allocation7 [shape = 'u8[16384]{0}', space=vmem, size = 0x4000, scoped, tag = 'input window, operand 9, single buffered']
    #allocation8 [shape = 'u8[512]{0}', space=vmem, size = 0x400, scoped, tag = 'input window, operand 10, single buffered']
    #allocation9 [shape = 's32[1]{0}', space=sflag, size = 0x4, scoped, tag = 'scoped memory for graph_model_forward.1']
    #allocation10 [shape = 'u8[16384]{0}', space=vmem, size = 0x4000, scoped, tag = 'input window, operand 11, single buffered']
    #allocation11 [shape = 'u8[16384]{0}', space=vmem, size = 0x4000, scoped, tag = 'output window, operand 0, single buffered']
    %17 = vsyncpa [#allocation3], 0
    %18 = vsyncpa [#allocation6], 0
    %19 = vsyncpa [#allocation9], 0
    %20 = vsyncpa [#allocation4], 0
    // Predicated region
    $region2: #{graph_model_forward.1} parent=1 // pred_check
      _
    $region3: #{graph_model_forward.1} parent=1 // pred_check_branch
      %22 = sbr.rel (0) target = $region5
    $region4: #{graph_model_forward.1} parent=1 // pred_region
      _
    $region5: #{graph_model_forward.1} parent=1 // pred_fallthru
      _
    // Predicated region
    $region6: #{graph_model_forward.1} parent=1 // pred_check
      _
    $region7: #{graph_model_forward.1} parent=1 // pred_check_branch
      %24 = sbr.rel (0) target = $region9
    $region8: #{graph_model_forward.1} parent=1 // pred_region
      _
    $region9: #{graph_model_forward.1} parent=1 // pred_fallthru
      _
    // Predicated region
    $region10: #{graph_model_forward.1} parent=1 // pred_check
      _
    $region11: #{graph_model_forward.1} parent=1 // pred_check_branch
      %26 = sbr.rel (0) target = $region13
    $region12: #{graph_model_forward.1} parent=1 // pred_region
      _
    $region13: #{graph_model_forward.1} parent=1 // pred_fallthru
      _
    // Predicated region
    $region14: #{graph_model_forward.1} parent=1 // pred_check
      _
    $region15: #{graph_model_forward.1} parent=1 // pred_check_branch
      %28 = sbr.rel (0) target = $region17
    $region16: #{graph_model_forward.1} parent=1 // pred_region
      %s30 = ssub.s32 512, 512
      %31 = vsyncadd [#allocation3], %s30
      %s32 = sshll.u32 [#allocation2], 4
      %s33 = int_to_ptr.vmem [resolvable:$true] %s32
      %38 = dma.hbm_to_vmem [thread:$0]  %s3, 512, %s33, [#allocation3], 128, 128, 8
    $region17: #{graph_model_forward.1} parent=1 // pred_fallthru
      _
    // Predicated region
    $region18: #{graph_model_forward.1} parent=1 // pred_check
      _
    $region19: #{graph_model_forward.1} parent=1 // pred_check_branch
      %40 = sbr.rel (0) target = $region21
    $region20: #{graph_model_forward.1} parent=1 // pred_region
      _
    $region21: #{graph_model_forward.1} parent=1 // pred_fallthru
      _
    // Predicated region
    $region22: #{graph_model_forward.1} parent=1 // pred_check
      _
    $region23: #{graph_model_forward.1} parent=1 // pred_check_branch
      %42 = sbr.rel (0) target = $region25
    $region24: #{graph_model_forward.1} parent=1 // pred_region
      _
    $region25: #{graph_model_forward.1} parent=1 // pred_fallthru
      _
    // Predicated region
    $region26: #{graph_model_forward.1} parent=1 // pred_check
      _
    $region27: #{graph_model_forward.1} parent=1 // pred_check_branch
      %44 = sbr.rel (0) target = $region29
    $region28: #{graph_model_forward.1} parent=1 // pred_region
      _
    $region29: #{graph_model_forward.1} parent=1 // pred_fallthru
      _
    // Predicated region
    $region30: #{graph_model_forward.1} parent=1 // pred_check
      _
    $region31: #{graph_model_forward.1} parent=1 // pred_check_branch
      %46 = sbr.rel (0) target = $region33
    $region32: #{graph_model_forward.1} parent=1 // pred_region
      _
    $region33: #{graph_model_forward.1} parent=1 // pred_fallthru
      _
    // Predicated region
    $region34: #{graph_model_forward.1} parent=1 // pred_check
      _
    $region35: #{graph_model_forward.1} parent=1 // pred_check_branch
      %48 = sbr.rel (0) target = $region37
    $region36: #{graph_model_forward.1} parent=1 // pred_region
      %s50 = ssub.s32 16, 16
      %51 = vsyncadd [#allocation6], %s50
      %s53 = sshll.u32 [#allocation5], 4
      %s54 = int_to_ptr.vmem [resolvable:$true] %s53
      %56 = dma.hbm_to_vmem [thread:$0]  %s8, 16, %s54, [#allocation6]
    $region37: #{graph_model_forward.1} parent=1 // pred_fallthru
      _
    // Predicated region
    $region38: #{graph_model_forward.1} parent=1 // pred_check
      _
    $region39: #{graph_model_forward.1} parent=1 // pred_check_branch
      %58 = sbr.rel (0) target = $region41
    $region40: #{graph_model_forward.1} parent=1 // pred_region
      %s60 = ssub.s32 512, 512
      %61 = vsyncadd [#allocation6], %s60
      %s62 = sshll.u32 [#allocation7], 4
      %s63 = int_to_ptr.vmem [resolvable:$true] %s62
      %68 = dma.hbm_to_vmem [thread:$0]  %s9, 512, %s63, [#allocation6], 64, 64, 4
    $region41: #{graph_model_forward.1} parent=1 // pred_fallthru
      _
    // Predicated region
    $region42: #{graph_model_forward.1} parent=1 // pred_check
      _
    $region43: #{graph_model_forward.1} parent=1 // pred_check_branch
      %70 = sbr.rel (0) target = $region45
    $region44: #{graph_model_forward.1} parent=1 // pred_region
      %s72 = ssub.s32 16, 16
      %73 = vsyncadd [#allocation9], %s72
      %s75 = sshll.u32 [#allocation8], 4
      %s76 = int_to_ptr.vmem [resolvable:$true] %s75
      %78 = dma.hbm_to_vmem [thread:$0]  %s10, 16, %s76, [#allocation9]
    $region45: #{graph_model_forward.1} parent=1 // pred_fallthru
      _
    // Predicated region
    $region46: #{graph_model_forward.1} parent=1 // pred_check
      _
    $region47: #{graph_model_forward.1} parent=1 // pred_check_branch
      %80 = sbr.rel (0) target = $region49
    $region48: #{graph_model_forward.1} parent=1 // pred_region
      %s82 = ssub.s32 512, 512
      %83 = vsyncadd [#allocation9], %s82
      %s84 = sshll.u32 [#allocation10], 4
      %s85 = int_to_ptr.vmem [resolvable:$true] %s84
      %90 = dma.hbm_to_vmem [thread:$0]  %s11, 512, %s85, [#allocation9], 128, 128, 8
    $region49: #{graph_model_forward.1} parent=1 // pred_fallthru
      _
    // Predicated region
    $region50: #{graph_model_forward.1} parent=1 // pred_check
      _
    $region51: #{graph_model_forward.1} parent=1 // pred_check_branch
      %92 = sbr.rel (0) target = $region53
    $region52: #{graph_model_forward.1} parent=1 // pred_region
      %93 = dma.done [#allocation3], 512
    $region53: #{graph_model_forward.1} parent=1 // pred_fallthru
      _
    // Predicated region
    $region54: #{graph_model_forward.1} parent=1 // pred_check
      _
    $region55: #{graph_model_forward.1} parent=1 // pred_check_branch
      %95 = sbr.rel (0) target = $region57
    $region56: #{graph_model_forward.1} parent=1 // pred_region
      %96 = dma.done [#allocation6], 16
    $region57: #{graph_model_forward.1} parent=1 // pred_fallthru
      _
    // Predicated region
    $region58: #{graph_model_forward.1} parent=1 // pred_check
      _
    $region59: #{graph_model_forward.1} parent=1 // pred_check_branch
      %98 = sbr.rel (0) target = $region61
    $region60: #{graph_model_forward.1} parent=1 // pred_region
      %99 = dma.done [#allocation6], 512
    $region61: #{graph_model_forward.1} parent=1 // pred_fallthru
      _
    // Predicated region
    $region62: #{graph_model_forward.1} parent=1 // pred_check
      _
    $region63: #{graph_model_forward.1} parent=1 // pred_check_branch
      %101 = sbr.rel (0) target = $region65
    $region64: #{graph_model_forward.1} parent=1 // pred_region
      %102 = dma.done [#allocation9], 16
    $region65: #{graph_model_forward.1} parent=1 // pred_fallthru
      _
    // Predicated region
    $region66: #{graph_model_forward.1} parent=1 // pred_check
      _
    $region67: #{graph_model_forward.1} parent=1 // pred_check_branch
      %104 = sbr.rel (0) target = $region69
    $region68: #{graph_model_forward.1} parent=1 // pred_region
      %105 = dma.done [#allocation9], 512
    $region69: #{graph_model_forward.1} parent=1 // pred_fallthru
      _
    %v107 = vld [vmem:[%s1] sm:$0xf]
    %v108 = vld [vmem:[%s1 + $0x4] sm:$0xf]
    %v109 = vld [vmem:[%s1 + $0x8] sm:$0xf]
    %v110 = vld [vmem:[%s1 + $0xc] sm:$0xf]
    %v111 = vld [vmem:[%s1 + $0x10] sm:$0xf]
    %v112 = vld [vmem:[%s1 + $0x14] sm:$0xf]
    %v113 = vld [vmem:[%s1 + $0x18] sm:$0xf]
    %v114 = vld [vmem:[%s1 + $0x1c] sm:$0xf]
    %v115 = vld [vmem:[%s2] sm:$0xf]
    %v116 = vld [vmem:[%s2 + $0x4] sm:$0xf]
    %v117 = vld [vmem:[%s2 + $0x8] sm:$0xf]
    %v118 = vld [vmem:[%s2 + $0xc] sm:$0xf]
    %v119 = vld [vmem:[%s2 + $0x10] sm:$0xf]
    %v120 = vld [vmem:[%s2 + $0x14] sm:$0xf]
    %v121 = vld [vmem:[%s2 + $0x18] sm:$0xf]
    %v122 = vld [vmem:[%s2 + $0x1c] sm:$0xf]
    %v123 = vld [vmem:[%s0] sm:$0xf]
    %v124 = vld [vmem:[%s0 + $0x4] sm:$0xf]
    %v125 = vld [vmem:[%s0 + $0x8] sm:$0xf]
    %v126 = vld [vmem:[%s0 + $0xc] sm:$0xf]
    %v127 = vld [vmem:[%s0 + $0x10] sm:$0xf]
    %v128 = vld [vmem:[%s0 + $0x14] sm:$0xf]
    %v129 = vld [vmem:[%s0 + $0x18] sm:$0xf]
    %v130 = vld [vmem:[%s0 + $0x1c] sm:$0xf]
    %v131 = vld [vmem:[#allocation2] sm:$0xff]
    %v132 = vld [vmem:[#allocation2 + $0x8] sm:$0xff]
    %v133 = vld [vmem:[#allocation2 + $0x10] sm:$0xff]
    %v134 = vld [vmem:[#allocation2 + $0x18] sm:$0xff]
    %v143 = vunpack.c.l.b16 %v123
    %v144 = vunpack.c.l.b16 %v124
    %v145 = vunpack.c.l.b16 %v125
    %v146 = vunpack.c.l.b16 %v126
    %v147 = vunpack.c.l.b16 %v127
    %v148 = vunpack.c.l.b16 %v128
    %v149 = vunpack.c.l.b16 %v129
    %v150 = vunpack.c.l.b16 %v130
    %v151 = vpack.c.b16 %v144, %v143
    %v152 = vpack.c.b16 %v146, %v145
    %v153 = vpack.c.b16 %v148, %v147
    %v154 = vpack.c.b16 %v150, %v149
    %v159 = vunpack.c.l.b16 %v131
    %v160 = vunpack.c.h.b16 %v131
    %v161 = vunpack.c.l.b16 %v132
    %v162 = vunpack.c.h.b16 %v132
    %v163 = vunpack.c.l.b16 %v133
    %v164 = vunpack.c.h.b16 %v133
    %v165 = vunpack.c.l.b16 %v134
    %v166 = vunpack.c.h.b16 %v134
    %v167 = vpack.c.b16 %v161, %v159
    %v168 = vpack.c.b16 %v162, %v160
    %v169 = vpack.c.b16 %v165, %v163
    %v170 = vpack.c.b16 %v166, %v164
    %vm175 = vcmask 261120
    %v177 = vsel %vm175, %v151, 0
    %v180 = vsel %vm175, %v152, 0
    %v183 = vsel %vm175, %v153, 0
    %v186 = vsel %vm175, %v154, 0
    %188 = vmatprep.subr.bf16.mxu0 %v168
    %189 = vmatpush1.bf16.msra.mxu0 %v167
    %190 = vmatprep.subr.bf16.mxu0 %v170
    %191 = vmatpush1.bf16.msra.mxu0 %v169
    %192 = vmatprep.subr.bf16.mxu0 0
    %193 = vmatpush1.bf16.msra.mxu0 0
    %194 = vmatprep.subr.bf16.mxu0 0
    %195 = vmatpush1.bf16.msra.mxu0 0
    %196 = vmatprep.subr.bf16.mxu0 0
    %197 = vmatpush1.bf16.msra.mxu0 0
    %198 = vmatprep.subr.bf16.mxu0 0
    %199 = vmatpush1.bf16.msra.mxu0 0
    %200 = vmatprep.subr.bf16.mxu0 0
    %201 = vmatpush1.bf16.msra.mxu0 0
    %202 = vmatprep.subr.bf16.mxu0 0
    %203 = vmatpush1.bf16.msra.mxu0 0
    %204 = vmatprep.subr.bf16.mxu0 0
    %205 = vmatpush1.bf16.msra.mxu0 0
    %206 = vmatprep.subr.bf16.mxu0 0
    %207 = vmatpush1.bf16.msra.mxu0 0
    %208 = vmatprep.subr.bf16.mxu0 0
    %209 = vmatpush1.bf16.msra.mxu0 0
    %210 = vmatprep.subr.bf16.mxu0 0
    %211 = vmatpush1.bf16.msra.mxu0 0
    %212 = vmatprep.subr.bf16.mxu0 0
    %213 = vmatpush1.bf16.msra.mxu0 0
    %214 = vmatprep.subr.bf16.mxu0 0
    %215 = vmatpush1.bf16.msra.mxu0 0
    %216 = vmatprep.subr.bf16.mxu0 0
    %217 = vmatpush1.bf16.msra.mxu0 0
    %218 = vmatprep.subr.bf16.mxu0 0
    %219 = vmatpush1.bf16.msra.mxu0 0
    %220 = vmatprep.mubr.bf16.mxu0 0
    %221 = vmatmul.mubr.bf16.gmra.mrb[0].mxu0 %v177
    %v222 = vpop.f32.mrb[0].mxu0
    %v223 = vadd.f32 0.0, %v222
    %v224 = vpop.f32.mrb[0].mxu0
    %v225 = vadd.f32 0.0, %v224
    %v226 = vpop.f32.mrb[0].mxu0
    %v227 = vadd.f32 0.0, %v226
    %v228 = vpop.f32.mrb[0].mxu0
    %v229 = vadd.f32 0.0, %v228
    %230 = vmatprep.mubr.bf16.mxu0 0
    %231 = vmatmul.mubr.bf16.gmra.mrb[0].mxu0 %v180
    %v232 = vpop.f32.mrb[0].mxu0
    %v233 = vadd.f32 0.0, %v232
    %v234 = vpop.f32.mrb[0].mxu0
    %v235 = vadd.f32 0.0, %v234
    %v236 = vpop.f32.mrb[0].mxu0
    %v237 = vadd.f32 0.0, %v236
    %v238 = vpop.f32.mrb[0].mxu0
    %v239 = vadd.f32 0.0, %v238
    %240 = vmatprep.mubr.bf16.mxu0 0
    %241 = vmatmul.mubr.bf16.gmra.mrb[0].mxu0 %v183
    %v242 = vpop.f32.mrb[0].mxu0
    %v243 = vadd.f32 0.0, %v242
    %v244 = vpop.f32.mrb[0].mxu0
    %v245 = vadd.f32 0.0, %v244
    %v246 = vpop.f32.mrb[0].mxu0
    %v247 = vadd.f32 0.0, %v246
    %v248 = vpop.f32.mrb[0].mxu0
    %v249 = vadd.f32 0.0, %v248
    %250 = vmatprep.mubr.bf16.mxu0 0
    %251 = vmatmul.mubr.bf16.gmra.mrb[0].mxu0 %v186
    %v252 = vpop.f32.mrb[0].mxu0
    %v253 = vadd.f32 0.0, %v252
    %v254 = vpop.f32.mrb[0].mxu0
    %v255 = vadd.f32 0.0, %v254
    %v256 = vpop.f32.mrb[0].mxu0
    %v257 = vadd.f32 0.0, %v256
    %v258 = vpop.f32.mrb[0].mxu0
    %v259 = vadd.f32 0.0, %v258
    %260 = vdwg.mxu0
    %v261 = vpack.c.bf16 %v227, %v223
    %v262 = vpack.c.bf16 %v237, %v233
    %v263 = vpack.c.bf16 %v247, %v243
    %v264 = vpack.c.bf16 %v257, %v253
    %v265 = vld [vmem:[%s4] sm:$0x1]
    %v267 = vlaneseq
    %v268 = vshrl.u32 %v267, 7
    %v269 = vsub.s32 0, %v268
    %v270 = vrot.slane %v265, %v269
    %271 = vrot.lane.b32.xlu0 %v270, 64
    %v272 = vpop.permute.xlu0 %271
    %v274 = vadd.f32 %v223, %v272
    %v275 = vadd.f32 %v227, %v272
    %v276 = vadd.f32 %v233, %v272
    %v277 = vadd.f32 %v237, %v272
    %v278 = vadd.f32 %v243, %v272
    %v279 = vadd.f32 %v247, %v272
    %v280 = vadd.f32 %v253, %v272
    %v281 = vadd.f32 %v257, %v272
    %v282 = vpack.c.bf16 %v229, %v225
    %v283 = vpack.c.bf16 %v239, %v235
    %v284 = vpack.c.bf16 %v249, %v245
    %v285 = vpack.c.bf16 %v259, %v255
    %v294 = vunpack.c.l.b16 %v115
    %v295 = vunpack.c.l.b16 %v116
    %v296 = vunpack.c.l.b16 %v117
    %v297 = vunpack.c.l.b16 %v118
    %v298 = vunpack.c.l.b16 %v119
    %v299 = vunpack.c.l.b16 %v120
    %v300 = vunpack.c.l.b16 %v121
    %v301 = vunpack.c.l.b16 %v122
    %v302 = vpack.c.b16 %v295, %v294
    %v303 = vpack.c.b16 %v297, %v296
    %v304 = vpack.c.b16 %v299, %v298
    %v305 = vpack.c.b16 %v301, %v300
    %vm306 = vcmask 523264
    %v308 = vsel %vm306, %v302, 0
    %v311 = vsel %vm306, %v303, 0
    %v314 = vsel %vm306, %v304, 0
    %v317 = vsel %vm306, %v305, 0
    %319 = vmatprep.subr.bf16.mxu0 0
    %320 = vmatpush1.bf16.msra.mxu0 %v282
    %321 = vmatprep.subr.bf16.mxu0 0
    %322 = vmatpush1.bf16.msra.mxu0 %v283
    %323 = vmatprep.subr.bf16.mxu0 0
    %324 = vmatpush1.bf16.msra.mxu0 %v284
    %325 = vmatprep.subr.bf16.mxu0 0
    %326 = vmatpush1.bf16.msra.mxu0 %v285
    %327 = vmatprep.subr.bf16.mxu0 0
    %328 = vmatpush1.bf16.msra.mxu0 0
    %329 = vmatprep.subr.bf16.mxu0 0
    %330 = vmatpush1.bf16.msra.mxu0 0
    %331 = vmatprep.subr.bf16.mxu0 0
    %332 = vmatpush1.bf16.msra.mxu0 0
    %333 = vmatprep.subr.bf16.mxu0 0
    %334 = vmatpush1.bf16.msra.mxu0 0
    %335 = vmatprep.subr.bf16.mxu0 0
    %336 = vmatpush1.bf16.msra.mxu0 0
    %337 = vmatprep.subr.bf16.mxu0 0
    %338 = vmatpush1.bf16.msra.mxu0 0
    %339 = vmatprep.subr.bf16.mxu0 0
    %340 = vmatpush1.bf16.msra.mxu0 0
    %341 = vmatprep.subr.bf16.mxu0 0
    %342 = vmatpush1.bf16.msra.mxu0 0
    %343 = vmatprep.subr.bf16.mxu0 0
    %344 = vmatpush1.bf16.msra.mxu0 0
    %345 = vmatprep.subr.bf16.mxu0 0
    %346 = vmatpush1.bf16.msra.mxu0 0
    %347 = vmatprep.subr.bf16.mxu0 0
    %348 = vmatpush1.bf16.msra.mxu0 0
    %349 = vmatprep.subr.bf16.mxu0 0
    %350 = vmatpush1.bf16.msra.mxu0 0
    %351 = vmatprep.mubr.bf16.mxu0 0
    %352 = vmatmul.mubr.bf16.gmra.mrb[0].mxu0 %v308
    %v353 = vpop.f32.mrb[0].mxu0
    %v354 = vadd.f32 0.0, %v353
    %v355 = vpop.f32.mrb[0].mxu0
    %v356 = vpop.f32.mrb[0].mxu0
    %v357 = vadd.f32 0.0, %v356
    %v358 = vpop.f32.mrb[0].mxu0
    %359 = vmatprep.mubr.bf16.mxu0 0
    %360 = vmatmul.mubr.bf16.gmra.mrb[0].mxu0 %v311
    %v361 = vpop.f32.mrb[0].mxu0
    %v362 = vadd.f32 0.0, %v361
    %v363 = vpop.f32.mrb[0].mxu0
    %v364 = vpop.f32.mrb[0].mxu0
    %v365 = vadd.f32 0.0, %v364
    %v366 = vpop.f32.mrb[0].mxu0
    %367 = vmatprep.mubr.bf16.mxu0 0
    %368 = vmatmul.mubr.bf16.gmra.mrb[0].mxu0 %v314
    %v369 = vpop.f32.mrb[0].mxu0
    %v370 = vadd.f32 0.0, %v369
    %v371 = vpop.f32.mrb[0].mxu0
    %v372 = vpop.f32.mrb[0].mxu0
    %v373 = vadd.f32 0.0, %v372
    %v374 = vpop.f32.mrb[0].mxu0
    %375 = vmatprep.mubr.bf16.mxu0 0
    %376 = vmatmul.mubr.bf16.gmra.mrb[0].mxu0 %v317
    %v377 = vpop.f32.mrb[0].mxu0
    %v378 = vadd.f32 0.0, %v377
    %v379 = vpop.f32.mrb[0].mxu0
    %v380 = vpop.f32.mrb[0].mxu0
    %v381 = vadd.f32 0.0, %v380
    %v382 = vpop.f32.mrb[0].mxu0
    %383 = vdwg.mxu0
    %v392 = vunpack.c.l.b16 %v107
    %v393 = vunpack.c.l.b16 %v108
    %v394 = vunpack.c.l.b16 %v109
    %v395 = vunpack.c.l.b16 %v110
    %v396 = vunpack.c.l.b16 %v111
    %v397 = vunpack.c.l.b16 %v112
    %v398 = vunpack.c.l.b16 %v113
    %v399 = vunpack.c.l.b16 %v114
    %v400 = vpack.c.b16 %v393, %v392
    %v401 = vpack.c.b16 %v395, %v394
    %v402 = vpack.c.b16 %v397, %v396
    %v403 = vpack.c.b16 %v399, %v398
    %v405 = vsel %vm306, %v400, 0
    %v408 = vsel %vm306, %v401, 0
    %v411 = vsel %vm306, %v402, 0
    %v414 = vsel %vm306, %v403, 0
    %416 = vmatprep.subr.bf16.mxu0 0
    %417 = vmatpush1.bf16.msra.mxu0 %v261
    %418 = vmatprep.subr.bf16.mxu0 0
    %419 = vmatpush1.bf16.msra.mxu0 %v262
    %420 = vmatprep.subr.bf16.mxu0 0
    %421 = vmatpush1.bf16.msra.mxu0 %v263
    %422 = vmatprep.subr.bf16.mxu0 0
    %423 = vmatpush1.bf16.msra.mxu0 %v264
    %424 = vmatprep.subr.bf16.mxu0 0
    %425 = vmatpush1.bf16.msra.mxu0 0
    %426 = vmatprep.subr.bf16.mxu0 0
    %427 = vmatpush1.bf16.msra.mxu0 0
    %428 = vmatprep.subr.bf16.mxu0 0
    %429 = vmatpush1.bf16.msra.mxu0 0
    %430 = vmatprep.subr.bf16.mxu0 0
    %431 = vmatpush1.bf16.msra.mxu0 0
    %432 = vmatprep.subr.bf16.mxu0 0
    %433 = vmatpush1.bf16.msra.mxu0 0
    %434 = vmatprep.subr.bf16.mxu0 0
    %435 = vmatpush1.bf16.msra.mxu0 0
    %436 = vmatprep.subr.bf16.mxu0 0
    %437 = vmatpush1.bf16.msra.mxu0 0
    %438 = vmatprep.subr.bf16.mxu0 0
    %439 = vmatpush1.bf16.msra.mxu0 0
    %440 = vmatprep.subr.bf16.mxu0 0
    %441 = vmatpush1.bf16.msra.mxu0 0
    %442 = vmatprep.subr.bf16.mxu0 0
    %443 = vmatpush1.bf16.msra.mxu0 0
    %444 = vmatprep.subr.bf16.mxu0 0
    %445 = vmatpush1.bf16.msra.mxu0 0
    %446 = vmatprep.subr.bf16.mxu0 0
    %447 = vmatpush1.bf16.msra.mxu0 0
    %448 = vmatprep.mubr.bf16.mxu0 0
    %449 = vmatmul.mubr.bf16.gmra.mrb[0].mxu0 %v405
    %v450 = vpop.f32.mrb[0].mxu0
    %v451 = vadd.f32 %v354, %v450
    %v452 = vpop.f32.mrb[0].mxu0
    %v453 = vpop.f32.mrb[0].mxu0
    %v454 = vadd.f32 %v357, %v453
    %v455 = vpop.f32.mrb[0].mxu0
    %456 = vmatprep.mubr.bf16.mxu0 0
    %457 = vmatmul.mubr.bf16.gmra.mrb[0].mxu0 %v408
    %v458 = vpop.f32.mrb[0].mxu0
    %v459 = vadd.f32 %v362, %v458
    %v460 = vpop.f32.mrb[0].mxu0
    %v461 = vpop.f32.mrb[0].mxu0
    %v462 = vadd.f32 %v365, %v461
    %v463 = vpop.f32.mrb[0].mxu0
    %464 = vmatprep.mubr.bf16.mxu0 0
    %465 = vmatmul.mubr.bf16.gmra.mrb[0].mxu0 %v411
    %v466 = vpop.f32.mrb[0].mxu0
    %v467 = vadd.f32 %v370, %v466
    %v468 = vpop.f32.mrb[0].mxu0
    %v469 = vpop.f32.mrb[0].mxu0
    %v470 = vadd.f32 %v373, %v469
    %v471 = vpop.f32.mrb[0].mxu0
    %472 = vmatprep.mubr.bf16.mxu0 0
    %473 = vmatmul.mubr.bf16.gmra.mrb[0].mxu0 %v414
    %v474 = vpop.f32.mrb[0].mxu0
    %v475 = vadd.f32 %v378, %v474
    %v476 = vpop.f32.mrb[0].mxu0
    %v477 = vpop.f32.mrb[0].mxu0
    %v478 = vadd.f32 %v381, %v477
    %v479 = vpop.f32.mrb[0].mxu0
    %480 = vdwg.mxu0
    %489 = vrot.lane.b32.xlu0 %v451, 64
    %v490 = vpop.permute.xlu0 %489
    %491 = vrot.lane.b32.xlu0 %v454, 64
    %v492 = vpop.permute.xlu0 %491
    %493 = vrot.lane.b32.xlu0 %v459, 64
    %v494 = vpop.permute.xlu0 %493
    %495 = vrot.lane.b32.xlu0 %v462, 64
    %v496 = vpop.permute.xlu0 %495
    %497 = vrot.lane.b32.xlu0 %v467, 64
    %v498 = vpop.permute.xlu0 %497
    %499 = vrot.lane.b32.xlu0 %v470, 64
    %v500 = vpop.permute.xlu0 %499
    %501 = vrot.lane.b32.xlu0 %v475, 64
    %v502 = vpop.permute.xlu0 %501
    %503 = vrot.lane.b32.xlu0 %v478, 64
    %v504 = vpop.permute.xlu0 %503
    %v513 = vadd.f32 %v274, %v490
    %v514 = vadd.f32 %v275, %v492
    %v515 = vadd.f32 %v276, %v494
    %v516 = vadd.f32 %v277, %v496
    %v517 = vadd.f32 %v278, %v498
    %v518 = vadd.f32 %v279, %v500
    %v519 = vadd.f32 %v280, %v502
    %v520 = vadd.f32 %v281, %v504
    %v521 = vmax.f32 %v513, 0.0
    %v522 = vmax.f32 %v514, 0.0
    %v523 = vmax.f32 %v515, 0.0
    %v524 = vmax.f32 %v516, 0.0
    %v525 = vmax.f32 %v517, 0.0
    %v526 = vmax.f32 %v518, 0.0
    %v527 = vmax.f32 %v519, 0.0
    %v528 = vmax.f32 %v520, 0.0
    %v529 = vpack.c.bf16 %v522, %v521
    %v530 = vpack.c.bf16 %v524, %v523
    %v531 = vpack.c.bf16 %v526, %v525
    %v532 = vpack.c.bf16 %v528, %v527
    %v533 = vld [vmem:[%s5] sm:$0xff]
    %v534 = vld [vmem:[%s5 + $0x8] sm:$0xff]
    %v535 = vld [vmem:[%s5 + $0x10] sm:$0xff]
    %v536 = vld [vmem:[%s5 + $0x18] sm:$0xff]
    %v537 = vld [vmem:[%s5 + $0x20] sm:$0xff]
    %v538 = vld [vmem:[%s5 + $0x28] sm:$0xff]
    %v539 = vld [vmem:[%s5 + $0x30] sm:$0xff]
    %v540 = vld [vmem:[%s5 + $0x38] sm:$0xff]
    %545 = vrot.lane.b32.xlu0 %v529, 64
    %v546 = vpop.permute.xlu0 %545
    %547 = vrot.lane.b32.xlu0 %v530, 64
    %v548 = vpop.permute.xlu0 %547
    %549 = vrot.lane.b32.xlu0 %v531, 64
    %v550 = vpop.permute.xlu0 %549
    %551 = vrot.lane.b32.xlu0 %v532, 64
    %v552 = vpop.permute.xlu0 %551
    %v561 = vunpack.c.l.b16 %v533
    %v562 = vunpack.c.h.b16 %v533
    %v563 = vunpack.c.l.b16 %v534
    %v564 = vunpack.c.h.b16 %v534
    %v565 = vunpack.c.l.b16 %v535
    %v566 = vunpack.c.h.b16 %v535
    %v567 = vunpack.c.l.b16 %v536
    %v568 = vunpack.c.h.b16 %v536
    %v569 = vunpack.c.l.b16 %v537
    %v570 = vunpack.c.h.b16 %v537
    %v571 = vunpack.c.l.b16 %v538
    %v572 = vunpack.c.h.b16 %v538
    %v573 = vunpack.c.l.b16 %v539
    %v574 = vunpack.c.h.b16 %v539
    %v575 = vunpack.c.l.b16 %v540
    %v576 = vunpack.c.h.b16 %v540
    %v577 = vpack.c.b16 %v563, %v561
    %v578 = vpack.c.b16 %v564, %v562
    %v579 = vpack.c.b16 %v567, %v565
    %v580 = vpack.c.b16 %v568, %v566
    %v581 = vpack.c.b16 %v571, %v569
    %v582 = vpack.c.b16 %v572, %v570
    %v583 = vpack.c.b16 %v575, %v573
    %v584 = vpack.c.b16 %v576, %v574
    %v594 = vsel %vm306, %v546, 0
    %v597 = vsel %vm306, %v548, 0
    %v600 = vsel %vm306, %v550, 0
    %v603 = vsel %vm306, %v552, 0
    %605 = vmatprep.subr.bf16.mxu0 %v578
    %606 = vmatpush1.bf16.msra.mxu0 %v577
    %607 = vmatprep.subr.bf16.mxu0 %v580
    %608 = vmatpush1.bf16.msra.mxu0 %v579
    %609 = vmatprep.subr.bf16.mxu0 %v582
    %610 = vmatpush1.bf16.msra.mxu0 %v581
    %611 = vmatprep.subr.bf16.mxu0 %v584
    %612 = vmatpush1.bf16.msra.mxu0 %v583
    %613 = vmatprep.subr.bf16.mxu0 0
    %614 = vmatpush1.bf16.msra.mxu0 0
    %615 = vmatprep.subr.bf16.mxu0 0
    %616 = vmatpush1.bf16.msra.mxu0 0
    %617 = vmatprep.subr.bf16.mxu0 0
    %618 = vmatpush1.bf16.msra.mxu0 0
    %619 = vmatprep.subr.bf16.mxu0 0
    %620 = vmatpush1.bf16.msra.mxu0 0
    %621 = vmatprep.subr.bf16.mxu0 0
    %622 = vmatpush1.bf16.msra.mxu0 0
    %623 = vmatprep.subr.bf16.mxu0 0
    %624 = vmatpush1.bf16.msra.mxu0 0
    %625 = vmatprep.subr.bf16.mxu0 0
    %626 = vmatpush1.bf16.msra.mxu0 0
    %627 = vmatprep.subr.bf16.mxu0 0
    %628 = vmatpush1.bf16.msra.mxu0 0
    %629 = vmatprep.subr.bf16.mxu0 0
    %630 = vmatpush1.bf16.msra.mxu0 0
    %631 = vmatprep.subr.bf16.mxu0 0
    %632 = vmatpush1.bf16.msra.mxu0 0
    %633 = vmatprep.subr.bf16.mxu0 0
    %634 = vmatpush1.bf16.msra.mxu0 0
    %635 = vmatprep.subr.bf16.mxu0 0
    %636 = vmatpush1.bf16.msra.mxu0 0
    %637 = vmatprep.mubr.bf16.mxu0 0
    %638 = vmatmul.mubr.bf16.gmra.mrb[0].mxu0 %v594
    %v639 = vpop.f32.mrb[0].mxu0
    %v640 = vadd.f32 0.0, %v639
    %v641 = vpop.f32.mrb[0].mxu0
    %v642 = vadd.f32 0.0, %v641
    %v643 = vpop.f32.mrb[0].mxu0
    %v644 = vadd.f32 0.0, %v643
    %v645 = vpop.f32.mrb[0].mxu0
    %v646 = vadd.f32 0.0, %v645
    %647 = vmatprep.mubr.bf16.mxu0 0
    %648 = vmatmul.mubr.bf16.gmra.mrb[0].mxu0 %v597
    %v649 = vpop.f32.mrb[0].mxu0
    %v650 = vadd.f32 0.0, %v649
    %v651 = vpop.f32.mrb[0].mxu0
    %v652 = vadd.f32 0.0, %v651
    %v653 = vpop.f32.mrb[0].mxu0
    %v654 = vadd.f32 0.0, %v653
    %v655 = vpop.f32.mrb[0].mxu0
    %v656 = vadd.f32 0.0, %v655
    %657 = vmatprep.mubr.bf16.mxu0 0
    %658 = vmatmul.mubr.bf16.gmra.mrb[0].mxu0 %v600
    %v659 = vpop.f32.mrb[0].mxu0
    %v660 = vadd.f32 0.0, %v659
    %v661 = vpop.f32.mrb[0].mxu0
    %v662 = vadd.f32 0.0, %v661
    %v663 = vpop.f32.mrb[0].mxu0
    %v664 = vadd.f32 0.0, %v663
    %v665 = vpop.f32.mrb[0].mxu0
    %v666 = vadd.f32 0.0, %v665
    %667 = vmatprep.mubr.bf16.mxu0 0
    %668 = vmatmul.mubr.bf16.gmra.mrb[0].mxu0 %v603
    %v669 = vpop.f32.mrb[0].mxu0
    %v670 = vadd.f32 0.0, %v669
    %v671 = vpop.f32.mrb[0].mxu0
    %v672 = vadd.f32 0.0, %v671
    %v673 = vpop.f32.mrb[0].mxu0
    %v674 = vadd.f32 0.0, %v673
    %v675 = vpop.f32.mrb[0].mxu0
    %v676 = vadd.f32 0.0, %v675
    %677 = vdwg.mxu0
    %v678 = vpack.c.bf16 %v644, %v640
    %v679 = vpack.c.bf16 %v654, %v650
    %v680 = vpack.c.bf16 %v664, %v660
    %v681 = vpack.c.bf16 %v674, %v670
    %v682 = vld [vmem:[%s6] sm:$0x1]
    %v684 = vlaneseq
    %v685 = vshrl.u32 %v684, 7
    %v686 = vsub.s32 0, %v685
    %v687 = vrot.slane %v682, %v686
    %688 = vrot.lane.b32.xlu0 %v687, 64
    %v689 = vpop.permute.xlu0 %688
    %v691 = vadd.f32 %v640, %v689
    %v692 = vadd.f32 %v644, %v689
    %v693 = vadd.f32 %v650, %v689
    %v694 = vadd.f32 %v654, %v689
    %v695 = vadd.f32 %v660, %v689
    %v696 = vadd.f32 %v664, %v689
    %v697 = vadd.f32 %v670, %v689
    %v698 = vadd.f32 %v674, %v689
    %v699 = vpack.c.bf16 %v646, %v642
    %v700 = vpack.c.bf16 %v656, %v652
    %v701 = vpack.c.bf16 %v666, %v662
    %v702 = vpack.c.bf16 %v676, %v672
    %703 = vmatprep.subr.bf16.mxu0 0
    %704 = vmatpush1.bf16.msra.mxu0 %v699
    %705 = vmatprep.subr.bf16.mxu0 0
    %706 = vmatpush1.bf16.msra.mxu0 %v700
    %707 = vmatprep.subr.bf16.mxu0 0
    %708 = vmatpush1.bf16.msra.mxu0 %v701
    %709 = vmatprep.subr.bf16.mxu0 0
    %710 = vmatpush1.bf16.msra.mxu0 %v702
    %711 = vmatprep.subr.bf16.mxu0 0
    %712 = vmatpush1.bf16.msra.mxu0 0
    %713 = vmatprep.subr.bf16.mxu0 0
    %714 = vmatpush1.bf16.msra.mxu0 0
    %715 = vmatprep.subr.bf16.mxu0 0
    %716 = vmatpush1.bf16.msra.mxu0 0
    %717 = vmatprep.subr.bf16.mxu0 0
    %718 = vmatpush1.bf16.msra.mxu0 0
    %719 = vmatprep.subr.bf16.mxu0 0
    %720 = vmatpush1.bf16.msra.mxu0 0
    %721 = vmatprep.subr.bf16.mxu0 0
    %722 = vmatpush1.bf16.msra.mxu0 0
    %723 = vmatprep.subr.bf16.mxu0 0
    %724 = vmatpush1.bf16.msra.mxu0 0
    %725 = vmatprep.subr.bf16.mxu0 0
    %726 = vmatpush1.bf16.msra.mxu0 0
    %727 = vmatprep.subr.bf16.mxu0 0
    %728 = vmatpush1.bf16.msra.mxu0 0
    %729 = vmatprep.subr.bf16.mxu0 0
    %730 = vmatpush1.bf16.msra.mxu0 0
    %731 = vmatprep.subr.bf16.mxu0 0
    %732 = vmatpush1.bf16.msra.mxu0 0
    %733 = vmatprep.subr.bf16.mxu0 0
    %734 = vmatpush1.bf16.msra.mxu0 0
    %735 = vmatprep.mubr.bf16.mxu0 0
    %736 = vmatmul.mubr.bf16.gmra.mrb[0].mxu0 %v308
    %v737 = vpop.f32.mrb[0].mxu0
    %v738 = vadd.f32 0.0, %v737
    %v739 = vpop.f32.mrb[0].mxu0
    %v740 = vpop.f32.mrb[0].mxu0
    %v741 = vadd.f32 0.0, %v740
    %v742 = vpop.f32.mrb[0].mxu0
    %743 = vmatprep.mubr.bf16.mxu0 0
    %744 = vmatmul.mubr.bf16.gmra.mrb[0].mxu0 %v311
    %v745 = vpop.f32.mrb[0].mxu0
    %v746 = vadd.f32 0.0, %v745
    %v747 = vpop.f32.mrb[0].mxu0
    %v748 = vpop.f32.mrb[0].mxu0
    %v749 = vadd.f32 0.0, %v748
    %v750 = vpop.f32.mrb[0].mxu0
    %751 = vmatprep.mubr.bf16.mxu0 0
    %752 = vmatmul.mubr.bf16.gmra.mrb[0].mxu0 %v314
    %v753 = vpop.f32.mrb[0].mxu0
    %v754 = vadd.f32 0.0, %v753
    %v755 = vpop.f32.mrb[0].mxu0
    %v756 = vpop.f32.mrb[0].mxu0
    %v757 = vadd.f32 0.0, %v756
    %v758 = vpop.f32.mrb[0].mxu0
    %759 = vmatprep.mubr.bf16.mxu0 0
    %760 = vmatmul.mubr.bf16.gmra.mrb[0].mxu0 %v317
    %v761 = vpop.f32.mrb[0].mxu0
    %v762 = vadd.f32 0.0, %v761
    %v763 = vpop.f32.mrb[0].mxu0
    %v764 = vpop.f32.mrb[0].mxu0
    %v765 = vadd.f32 0.0, %v764
    %v766 = vpop.f32.mrb[0].mxu0
    %767 = vdwg.mxu0
    %768 = vmatprep.subr.bf16.mxu0 0
    %769 = vmatpush1.bf16.msra.mxu0 %v678
    %770 = vmatprep.subr.bf16.mxu0 0
    %771 = vmatpush1.bf16.msra.mxu0 %v679
    %772 = vmatprep.subr.bf16.mxu0 0
    %773 = vmatpush1.bf16.msra.mxu0 %v680
    %774 = vmatprep.subr.bf16.mxu0 0
    %775 = vmatpush1.bf16.msra.mxu0 %v681
    %776 = vmatprep.subr.bf16.mxu0 0
    %777 = vmatpush1.bf16.msra.mxu0 0
    %778 = vmatprep.subr.bf16.mxu0 0
    %779 = vmatpush1.bf16.msra.mxu0 0
    %780 = vmatprep.subr.bf16.mxu0 0
    %781 = vmatpush1.bf16.msra.mxu0 0
    %782 = vmatprep.subr.bf16.mxu0 0
    %783 = vmatpush1.bf16.msra.mxu0 0
    %784 = vmatprep.subr.bf16.mxu0 0
    %785 = vmatpush1.bf16.msra.mxu0 0
    %786 = vmatprep.subr.bf16.mxu0 0
    %787 = vmatpush1.bf16.msra.mxu0 0
    %788 = vmatprep.subr.bf16.mxu0 0
    %789 = vmatpush1.bf16.msra.mxu0 0
    %790 = vmatprep.subr.bf16.mxu0 0
    %791 = vmatpush1.bf16.msra.mxu0 0
    %792 = vmatprep.subr.bf16.mxu0 0
    %793 = vmatpush1.bf16.msra.mxu0 0
    %794 = vmatprep.subr.bf16.mxu0 0
    %795 = vmatpush1.bf16.msra.mxu0 0
    %796 = vmatprep.subr.bf16.mxu0 0
    %797 = vmatpush1.bf16.msra.mxu0 0
    %798 = vmatprep.subr.bf16.mxu0 0
    %799 = vmatpush1.bf16.msra.mxu0 0
    %800 = vmatprep.mubr.bf16.mxu0 0
    %801 = vmatmul.mubr.bf16.gmra.mrb[0].mxu0 %v405
    %v802 = vpop.f32.mrb[0].mxu0
    %v803 = vadd.f32 %v738, %v802
    %v804 = vpop.f32.mrb[0].mxu0
    %v805 = vpop.f32.mrb[0].mxu0
    %v806 = vadd.f32 %v741, %v805
    %v807 = vpop.f32.mrb[0].mxu0
    %808 = vmatprep.mubr.bf16.mxu0 0
    %809 = vmatmul.mubr.bf16.gmra.mrb[0].mxu0 %v408
    %v810 = vpop.f32.mrb[0].mxu0
    %v811 = vadd.f32 %v746, %v810
    %v812 = vpop.f32.mrb[0].mxu0
    %v813 = vpop.f32.mrb[0].mxu0
    %v814 = vadd.f32 %v749, %v813
    %v815 = vpop.f32.mrb[0].mxu0
    %816 = vmatprep.mubr.bf16.mxu0 0
    %817 = vmatmul.mubr.bf16.gmra.mrb[0].mxu0 %v411
    %v818 = vpop.f32.mrb[0].mxu0
    %v819 = vadd.f32 %v754, %v818
    %v820 = vpop.f32.mrb[0].mxu0
    %v821 = vpop.f32.mrb[0].mxu0
    %v822 = vadd.f32 %v757, %v821
    %v823 = vpop.f32.mrb[0].mxu0
    %824 = vmatprep.mubr.bf16.mxu0 0
    %825 = vmatmul.mubr.bf16.gmra.mrb[0].mxu0 %v414
    %v826 = vpop.f32.mrb[0].mxu0
    %v827 = vadd.f32 %v762, %v826
    %v828 = vpop.f32.mrb[0].mxu0
    %v829 = vpop.f32.mrb[0].mxu0
    %v830 = vadd.f32 %v765, %v829
    %v831 = vpop.f32.mrb[0].mxu0
    %832 = vdwg.mxu0
    %841 = vrot.lane.b32.xlu0 %v803, 64
    %v842 = vpop.permute.xlu0 %841
    %843 = vrot.lane.b32.xlu0 %v806, 64
    %v844 = vpop.permute.xlu0 %843
    %845 = vrot.lane.b32.xlu0 %v811, 64
    %v846 = vpop.permute.xlu0 %845
    %847 = vrot.lane.b32.xlu0 %v814, 64
    %v848 = vpop.permute.xlu0 %847
    %849 = vrot.lane.b32.xlu0 %v819, 64
    %v850 = vpop.permute.xlu0 %849
    %851 = vrot.lane.b32.xlu0 %v822, 64
    %v852 = vpop.permute.xlu0 %851
    %853 = vrot.lane.b32.xlu0 %v827, 64
    %v854 = vpop.permute.xlu0 %853
    %855 = vrot.lane.b32.xlu0 %v830, 64
    %v856 = vpop.permute.xlu0 %855
    %v865 = vadd.f32 %v691, %v842
    %v866 = vadd.f32 %v692, %v844
    %v867 = vadd.f32 %v693, %v846
    %v868 = vadd.f32 %v694, %v848
    %v869 = vadd.f32 %v695, %v850
    %v870 = vadd.f32 %v696, %v852
    %v871 = vadd.f32 %v697, %v854
    %v872 = vadd.f32 %v698, %v856
    %v873 = vmax.f32 %v865, 0.0
    %v874 = vmax.f32 %v866, 0.0
    %v875 = vmax.f32 %v867, 0.0
    %v876 = vmax.f32 %v868, 0.0
    %v877 = vmax.f32 %v869, 0.0
    %v878 = vmax.f32 %v870, 0.0
    %v879 = vmax.f32 %v871, 0.0
    %v880 = vmax.f32 %v872, 0.0
    %v881 = vpack.c.bf16 %v874, %v873
    %v882 = vpack.c.bf16 %v876, %v875
    %v883 = vpack.c.bf16 %v878, %v877
    %v884 = vpack.c.bf16 %v880, %v879
    %v885 = vld [vmem:[%s7] sm:$0xff]
    %v886 = vld [vmem:[%s7 + $0x8] sm:$0xff]
    %v887 = vld [vmem:[%s7 + $0x10] sm:$0xff]
    %v888 = vld [vmem:[%s7 + $0x18] sm:$0xff]
    %v889 = vld [vmem:[%s7 + $0x20] sm:$0xff]
    %v890 = vld [vmem:[%s7 + $0x28] sm:$0xff]
    %v891 = vld [vmem:[%s7 + $0x30] sm:$0xff]
    %v892 = vld [vmem:[%s7 + $0x38] sm:$0xff]
    %897 = vrot.lane.b32.xlu0 %v881, 64
    %v898 = vpop.permute.xlu0 %897
    %899 = vrot.lane.b32.xlu0 %v882, 64
    %v900 = vpop.permute.xlu0 %899
    %901 = vrot.lane.b32.xlu0 %v883, 64
    %v902 = vpop.permute.xlu0 %901
    %903 = vrot.lane.b32.xlu0 %v884, 64
    %v904 = vpop.permute.xlu0 %903
    %v913 = vunpack.c.l.b16 %v885
    %v914 = vunpack.c.h.b16 %v885
    %v915 = vunpack.c.l.b16 %v886
    %v916 = vunpack.c.h.b16 %v886
    %v917 = vunpack.c.l.b16 %v887
    %v918 = vunpack.c.h.b16 %v887
    %v919 = vunpack.c.l.b16 %v888
    %v920 = vunpack.c.h.b16 %v888
    %v921 = vunpack.c.l.b16 %v889
    %v922 = vunpack.c.h.b16 %v889
    %v923 = vunpack.c.l.b16 %v890
    %v924 = vunpack.c.h.b16 %v890
    %v925 = vunpack.c.l.b16 %v891
    %v926 = vunpack.c.h.b16 %v891
    %v927 = vunpack.c.l.b16 %v892
    %v928 = vunpack.c.h.b16 %v892
    %v929 = vpack.c.b16 %v915, %v913
    %v930 = vpack.c.b16 %v916, %v914
    %v931 = vpack.c.b16 %v919, %v917
    %v932 = vpack.c.b16 %v920, %v918
    %v933 = vpack.c.b16 %v923, %v921
    %v934 = vpack.c.b16 %v924, %v922
    %v935 = vpack.c.b16 %v927, %v925
    %v936 = vpack.c.b16 %v928, %v926
    %v946 = vsel %vm306, %v898, 0
    %v949 = vsel %vm306, %v900, 0
    %v952 = vsel %vm306, %v902, 0
    %v955 = vsel %vm306, %v904, 0
    %957 = vmatprep.subr.bf16.mxu0 %v930
    %958 = vmatpush1.bf16.msra.mxu0 %v929
    %959 = vmatprep.subr.bf16.mxu0 %v932
    %960 = vmatpush1.bf16.msra.mxu0 %v931
    %961 = vmatprep.subr.bf16.mxu0 %v934
    %962 = vmatpush1.bf16.msra.mxu0 %v933
    %963 = vmatprep.subr.bf16.mxu0 %v936
    %964 = vmatpush1.bf16.msra.mxu0 %v935
    %965 = vmatprep.subr.bf16.mxu0 0
    %966 = vmatpush1.bf16.msra.mxu0 0
    %967 = vmatprep.subr.bf16.mxu0 0
    %968 = vmatpush1.bf16.msra.mxu0 0
    %969 = vmatprep.subr.bf16.mxu0 0
    %970 = vmatpush1.bf16.msra.mxu0 0
    %971 = vmatprep.subr.bf16.mxu0 0
    %972 = vmatpush1.bf16.msra.mxu0 0
    %973 = vmatprep.subr.bf16.mxu0 0
    %974 = vmatpush1.bf16.msra.mxu0 0
    %975 = vmatprep.subr.bf16.mxu0 0
    %976 = vmatpush1.bf16.msra.mxu0 0
    %977 = vmatprep.subr.bf16.mxu0 0
    %978 = vmatpush1.bf16.msra.mxu0 0
    %979 = vmatprep.subr.bf16.mxu0 0
    %980 = vmatpush1.bf16.msra.mxu0 0
    %981 = vmatprep.subr.bf16.mxu0 0
    %982 = vmatpush1.bf16.msra.mxu0 0
    %983 = vmatprep.subr.bf16.mxu0 0
    %984 = vmatpush1.bf16.msra.mxu0 0
    %985 = vmatprep.subr.bf16.mxu0 0
    %986 = vmatpush1.bf16.msra.mxu0 0
    %987 = vmatprep.subr.bf16.mxu0 0
    %988 = vmatpush1.bf16.msra.mxu0 0
    %989 = vmatprep.mubr.bf16.mxu0 0
    %990 = vmatmul.mubr.bf16.gmra.mrb[0].mxu0 %v946
    %v991 = vpop.f32.mrb[0].mxu0
    %v992 = vadd.f32 0.0, %v991
    %v993 = vpop.f32.mrb[0].mxu0
    %v994 = vadd.f32 0.0, %v993
    %v995 = vpop.f32.mrb[0].mxu0
    %v996 = vadd.f32 0.0, %v995
    %v997 = vpop.f32.mrb[0].mxu0
    %v998 = vadd.f32 0.0, %v997
    %999 = vmatprep.mubr.bf16.mxu0 0
    %1000 = vmatmul.mubr.bf16.gmra.mrb[0].mxu0 %v949
    %v1001 = vpop.f32.mrb[0].mxu0
    %v1002 = vadd.f32 0.0, %v1001
    %v1003 = vpop.f32.mrb[0].mxu0
    %v1004 = vadd.f32 0.0, %v1003
    %v1005 = vpop.f32.mrb[0].mxu0
    %v1006 = vadd.f32 0.0, %v1005
    %v1007 = vpop.f32.mrb[0].mxu0
    %v1008 = vadd.f32 0.0, %v1007
    %1009 = vmatprep.mubr.bf16.mxu0 0
    %1010 = vmatmul.mubr.bf16.gmra.mrb[0].mxu0 %v952
    %v1011 = vpop.f32.mrb[0].mxu0
    %v1012 = vadd.f32 0.0, %v1011
    %v1013 = vpop.f32.mrb[0].mxu0
    %v1014 = vadd.f32 0.0, %v1013
    %v1015 = vpop.f32.mrb[0].mxu0
    %v1016 = vadd.f32 0.0, %v1015
    %v1017 = vpop.f32.mrb[0].mxu0
    %v1018 = vadd.f32 0.0, %v1017
    %1019 = vmatprep.mubr.bf16.mxu0 0
    %1020 = vmatmul.mubr.bf16.gmra.mrb[0].mxu0 %v955
    %v1021 = vpop.f32.mrb[0].mxu0
    %v1022 = vadd.f32 0.0, %v1021
    %v1023 = vpop.f32.mrb[0].mxu0
    %v1024 = vadd.f32 0.0, %v1023
    %v1025 = vpop.f32.mrb[0].mxu0
    %v1026 = vadd.f32 0.0, %v1025
    %v1027 = vpop.f32.mrb[0].mxu0
    %v1028 = vadd.f32 0.0, %v1027
    %1029 = vdwg.mxu0
    %v1030 = vpack.c.bf16 %v996, %v992
    %v1031 = vpack.c.bf16 %v1006, %v1002
    %v1032 = vpack.c.bf16 %v1016, %v1012
    %v1033 = vpack.c.bf16 %v1026, %v1022
    %v1034 = vld [vmem:[#allocation5] sm:$0x1]
    %v1036 = vlaneseq
    %v1037 = vshrl.u32 %v1036, 7
    %v1038 = vsub.s32 0, %v1037
    %v1039 = vrot.slane %v1034, %v1038
    %1040 = vrot.lane.b32.xlu0 %v1039, 64
    %v1041 = vpop.permute.xlu0 %1040
    %v1043 = vadd.f32 %v992, %v1041
    %v1044 = vadd.f32 %v996, %v1041
    %v1045 = vadd.f32 %v1002, %v1041
    %v1046 = vadd.f32 %v1006, %v1041
    %v1047 = vadd.f32 %v1012, %v1041
    %v1048 = vadd.f32 %v1016, %v1041
    %v1049 = vadd.f32 %v1022, %v1041
    %v1050 = vadd.f32 %v1026, %v1041
    %v1051 = vpack.c.bf16 %v998, %v994
    %v1052 = vpack.c.bf16 %v1008, %v1004
    %v1053 = vpack.c.bf16 %v1018, %v1014
    %v1054 = vpack.c.bf16 %v1028, %v1024
    %1055 = vmatprep.subr.bf16.mxu0 0
    %1056 = vmatpush1.bf16.msra.mxu0 %v1051
    %1057 = vmatprep.subr.bf16.mxu0 0
    %1058 = vmatpush1.bf16.msra.mxu0 %v1052
    %1059 = vmatprep.subr.bf16.mxu0 0
    %1060 = vmatpush1.bf16.msra.mxu0 %v1053
    %1061 = vmatprep.subr.bf16.mxu0 0
    %1062 = vmatpush1.bf16.msra.mxu0 %v1054
    %1063 = vmatprep.subr.bf16.mxu0 0
    %1064 = vmatpush1.bf16.msra.mxu0 0
    %1065 = vmatprep.subr.bf16.mxu0 0
    %1066 = vmatpush1.bf16.msra.mxu0 0
    %1067 = vmatprep.subr.bf16.mxu0 0
    %1068 = vmatpush1.bf16.msra.mxu0 0
    %1069 = vmatprep.subr.bf16.mxu0 0
    %1070 = vmatpush1.bf16.msra.mxu0 0
    %1071 = vmatprep.subr.bf16.mxu0 0
    %1072 = vmatpush1.bf16.msra.mxu0 0
    %1073 = vmatprep.subr.bf16.mxu0 0
    %1074 = vmatpush1.bf16.msra.mxu0 0
    %1075 = vmatprep.subr.bf16.mxu0 0
    %1076 = vmatpush1.bf16.msra.mxu0 0
    %1077 = vmatprep.subr.bf16.mxu0 0
    %1078 = vmatpush1.bf16.msra.mxu0 0
    %1079 = vmatprep.subr.bf16.mxu0 0
    %1080 = vmatpush1.bf16.msra.mxu0 0
    %1081 = vmatprep.subr.bf16.mxu0 0
    %1082 = vmatpush1.bf16.msra.mxu0 0
    %1083 = vmatprep.subr.bf16.mxu0 0
    %1084 = vmatpush1.bf16.msra.mxu0 0
    %1085 = vmatprep.subr.bf16.mxu0 0
    %1086 = vmatpush1.bf16.msra.mxu0 0
    %1087 = vmatprep.mubr.bf16.mxu0 0
    %1088 = vmatmul.mubr.bf16.gmra.mrb[0].mxu0 %v308
    %v1089 = vpop.f32.mrb[0].mxu0
    %v1090 = vadd.f32 0.0, %v1089
    %v1091 = vpop.f32.mrb[0].mxu0
    %v1092 = vpop.f32.mrb[0].mxu0
    %v1093 = vadd.f32 0.0, %v1092
    %v1094 = vpop.f32.mrb[0].mxu0
    %1095 = vmatprep.mubr.bf16.mxu0 0
    %1096 = vmatmul.mubr.bf16.gmra.mrb[0].mxu0 %v311
    %v1097 = vpop.f32.mrb[0].mxu0
    %v1098 = vadd.f32 0.0, %v1097
    %v1099 = vpop.f32.mrb[0].mxu0
    %v1100 = vpop.f32.mrb[0].mxu0
    %v1101 = vadd.f32 0.0, %v1100
    %v1102 = vpop.f32.mrb[0].mxu0
    %1103 = vmatprep.mubr.bf16.mxu0 0
    %1104 = vmatmul.mubr.bf16.gmra.mrb[0].mxu0 %v314
    %v1105 = vpop.f32.mrb[0].mxu0
    %v1106 = vadd.f32 0.0, %v1105
    %v1107 = vpop.f32.mrb[0].mxu0
    %v1108 = vpop.f32.mrb[0].mxu0
    %v1109 = vadd.f32 0.0, %v1108
    %v1110 = vpop.f32.mrb[0].mxu0
    %1111 = vmatprep.mubr.bf16.mxu0 0
    %1112 = vmatmul.mubr.bf16.gmra.mrb[0].mxu0 %v317
    %v1113 = vpop.f32.mrb[0].mxu0
    %v1114 = vadd.f32 0.0, %v1113
    %v1115 = vpop.f32.mrb[0].mxu0
    %v1116 = vpop.f32.mrb[0].mxu0
    %v1117 = vadd.f32 0.0, %v1116
    %v1118 = vpop.f32.mrb[0].mxu0
    %1119 = vdwg.mxu0
    %1120 = vmatprep.subr.bf16.mxu0 0
    %1121 = vmatpush1.bf16.msra.mxu0 %v1030
    %1122 = vmatprep.subr.bf16.mxu0 0
    %1123 = vmatpush1.bf16.msra.mxu0 %v1031
    %1124 = vmatprep.subr.bf16.mxu0 0
    %1125 = vmatpush1.bf16.msra.mxu0 %v1032
    %1126 = vmatprep.subr.bf16.mxu0 0
    %1127 = vmatpush1.bf16.msra.mxu0 %v1033
    %1128 = vmatprep.subr.bf16.mxu0 0
    %1129 = vmatpush1.bf16.msra.mxu0 0
    %1130 = vmatprep.subr.bf16.mxu0 0
    %1131 = vmatpush1.bf16.msra.mxu0 0
    %1132 = vmatprep.subr.bf16.mxu0 0
    %1133 = vmatpush1.bf16.msra.mxu0 0
    %1134 = vmatprep.subr.bf16.mxu0 0
    %1135 = vmatpush1.bf16.msra.mxu0 0
    %1136 = vmatprep.subr.bf16.mxu0 0
    %1137 = vmatpush1.bf16.msra.mxu0 0
    %1138 = vmatprep.subr.bf16.mxu0 0
    %1139 = vmatpush1.bf16.msra.mxu0 0
    %1140 = vmatprep.subr.bf16.mxu0 0
    %1141 = vmatpush1.bf16.msra.mxu0 0
    %1142 = vmatprep.subr.bf16.mxu0 0
    %1143 = vmatpush1.bf16.msra.mxu0 0
    %1144 = vmatprep.subr.bf16.mxu0 0
    %1145 = vmatpush1.bf16.msra.mxu0 0
    %1146 = vmatprep.subr.bf16.mxu0 0
    %1147 = vmatpush1.bf16.msra.mxu0 0
    %1148 = vmatprep.subr.bf16.mxu0 0
    %1149 = vmatpush1.bf16.msra.mxu0 0
    %1150 = vmatprep.subr.bf16.mxu0 0
    %1151 = vmatpush1.bf16.msra.mxu0 0
    %1152 = vmatprep.mubr.bf16.mxu0 0
    %1153 = vmatmul.mubr.bf16.gmra.mrb[0].mxu0 %v405
    %v1154 = vpop.f32.mrb[0].mxu0
    %v1155 = vadd.f32 %v1090, %v1154
    %v1156 = vpop.f32.mrb[0].mxu0
    %v1157 = vpop.f32.mrb[0].mxu0
    %v1158 = vadd.f32 %v1093, %v1157
    %v1159 = vpop.f32.mrb[0].mxu0
    %1160 = vmatprep.mubr.bf16.mxu0 0
    %1161 = vmatmul.mubr.bf16.gmra.mrb[0].mxu0 %v408
    %v1162 = vpop.f32.mrb[0].mxu0
    %v1163 = vadd.f32 %v1098, %v1162
    %v1164 = vpop.f32.mrb[0].mxu0
    %v1165 = vpop.f32.mrb[0].mxu0
    %v1166 = vadd.f32 %v1101, %v1165
    %v1167 = vpop.f32.mrb[0].mxu0
    %1168 = vmatprep.mubr.bf16.mxu0 0
    %1169 = vmatmul.mubr.bf16.gmra.mrb[0].mxu0 %v411
    %v1170 = vpop.f32.mrb[0].mxu0
    %v1171 = vadd.f32 %v1106, %v1170
    %v1172 = vpop.f32.mrb[0].mxu0
    %v1173 = vpop.f32.mrb[0].mxu0
    %v1174 = vadd.f32 %v1109, %v1173
    %v1175 = vpop.f32.mrb[0].mxu0
    %1176 = vmatprep.mubr.bf16.mxu0 0
    %1177 = vmatmul.mubr.bf16.gmra.mrb[0].mxu0 %v414
    %v1178 = vpop.f32.mrb[0].mxu0
    %v1179 = vadd.f32 %v1114, %v1178
    %v1180 = vpop.f32.mrb[0].mxu0
    %v1181 = vpop.f32.mrb[0].mxu0
    %v1182 = vadd.f32 %v1117, %v1181
    %v1183 = vpop.f32.mrb[0].mxu0
    %1184 = vdwg.mxu0
    %1193 = vrot.lane.b32.xlu0 %v1155, 64
    %v1194 = vpop.permute.xlu0 %1193
    %1195 = vrot.lane.b32.xlu0 %v1158, 64
    %v1196 = vpop.permute.xlu0 %1195
    %1197 = vrot.lane.b32.xlu0 %v1163, 64
    %v1198 = vpop.permute.xlu0 %1197
    %1199 = vrot.lane.b32.xlu0 %v1166, 64
    %v1200 = vpop.permute.xlu0 %1199
    %1201 = vrot.lane.b32.xlu0 %v1171, 64
    %v1202 = vpop.permute.xlu0 %1201
    %1203 = vrot.lane.b32.xlu0 %v1174, 64
    %v1204 = vpop.permute.xlu0 %1203
    %1205 = vrot.lane.b32.xlu0 %v1179, 64
    %v1206 = vpop.permute.xlu0 %1205
    %1207 = vrot.lane.b32.xlu0 %v1182, 64
    %v1208 = vpop.permute.xlu0 %1207
    %v1217 = vadd.f32 %v1043, %v1194
    %v1218 = vadd.f32 %v1044, %v1196
    %v1219 = vadd.f32 %v1045, %v1198
    %v1220 = vadd.f32 %v1046, %v1200
    %v1221 = vadd.f32 %v1047, %v1202
    %v1222 = vadd.f32 %v1048, %v1204
    %v1223 = vadd.f32 %v1049, %v1206
    %v1224 = vadd.f32 %v1050, %v1208
    %v1225 = vmax.f32 %v1217, 0.0
    %v1226 = vmax.f32 %v1218, 0.0
    %v1227 = vmax.f32 %v1219, 0.0
    %v1228 = vmax.f32 %v1220, 0.0
    %v1229 = vmax.f32 %v1221, 0.0
    %v1230 = vmax.f32 %v1222, 0.0
    %v1231 = vmax.f32 %v1223, 0.0
    %v1232 = vmax.f32 %v1224, 0.0
    %v1233 = vpack.c.bf16 %v1226, %v1225
    %v1234 = vpack.c.bf16 %v1228, %v1227
    %v1235 = vpack.c.bf16 %v1230, %v1229
    %v1236 = vpack.c.bf16 %v1232, %v1231
    %v1237 = vadd.f32 %v225, %v642
    %v1238 = vadd.f32 %v229, %v646
    %v1239 = vadd.f32 %v235, %v652
    %v1240 = vadd.f32 %v239, %v656
    %v1241 = vadd.f32 %v245, %v662
    %v1242 = vadd.f32 %v249, %v666
    %v1243 = vadd.f32 %v255, %v672
    %v1244 = vadd.f32 %v259, %v676
    %v1245 = vadd.f32 %v1237, %v994
    %v1246 = vadd.f32 %v1238, %v998
    %v1247 = vadd.f32 %v1239, %v1004
    %v1248 = vadd.f32 %v1240, %v1008
    %v1249 = vadd.f32 %v1241, %v1014
    %v1250 = vadd.f32 %v1242, %v1018
    %v1251 = vadd.f32 %v1243, %v1024
    %v1252 = vadd.f32 %v1244, %v1028
    %v1253 = vld [vmem:[#allocation7] sm:$0xf]
    %v1254 = vld [vmem:[#allocation7 + $0x4] sm:$0xf]
    %v1255 = vld [vmem:[#allocation7 + $0x8] sm:$0xf]
    %v1256 = vld [vmem:[#allocation7 + $0xc] sm:$0xf]
    %v1257 = vld [vmem:[#allocation7 + $0x10] sm:$0xf]
    %v1258 = vld [vmem:[#allocation7 + $0x14] sm:$0xf]
    %v1259 = vld [vmem:[#allocation7 + $0x18] sm:$0xf]
    %v1260 = vld [vmem:[#allocation7 + $0x1c] sm:$0xf]
    %1265 = vrot.lane.b32.xlu0 %v1233, 64
    %v1266 = vpop.permute.xlu0 %1265
    %1267 = vrot.lane.b32.xlu0 %v1234, 64
    %v1268 = vpop.permute.xlu0 %1267
    %1269 = vrot.lane.b32.xlu0 %v1235, 64
    %v1270 = vpop.permute.xlu0 %1269
    %1271 = vrot.lane.b32.xlu0 %v1236, 64
    %v1272 = vpop.permute.xlu0 %1271
    %v1281 = vunpack.c.l.b16 %v1253
    %v1282 = vunpack.c.l.b16 %v1254
    %v1283 = vunpack.c.l.b16 %v1255
    %v1284 = vunpack.c.l.b16 %v1256
    %v1285 = vunpack.c.l.b16 %v1257
    %v1286 = vunpack.c.l.b16 %v1258
    %v1287 = vunpack.c.l.b16 %v1259
    %v1288 = vunpack.c.l.b16 %v1260
    %v1289 = vpack.c.b16 %v1282, %v1281
    %v1290 = vpack.c.b16 %v1284, %v1283
    %v1291 = vpack.c.b16 %v1286, %v1285
    %v1292 = vpack.c.b16 %v1288, %v1287
    %v1298 = vsel %vm306, %v1266, 0
    %v1301 = vsel %vm306, %v1268, 0
    %v1304 = vsel %vm306, %v1270, 0
    %v1307 = vsel %vm306, %v1272, 0
    %1309 = vmatprep.subr.bf16.mxu0 0
    %1310 = vmatpush1.bf16.msra.mxu0 %v1289
    %1311 = vmatprep.subr.bf16.mxu0 0
    %1312 = vmatpush1.bf16.msra.mxu0 %v1290
    %1313 = vmatprep.subr.bf16.mxu0 0
    %1314 = vmatpush1.bf16.msra.mxu0 %v1291
    %1315 = vmatprep.subr.bf16.mxu0 0
    %1316 = vmatpush1.bf16.msra.mxu0 %v1292
    %1317 = vmatprep.subr.bf16.mxu0 0
    %1318 = vmatpush1.bf16.msra.mxu0 0
    %1319 = vmatprep.subr.bf16.mxu0 0
    %1320 = vmatpush1.bf16.msra.mxu0 0
    %1321 = vmatprep.subr.bf16.mxu0 0
    %1322 = vmatpush1.bf16.msra.mxu0 0
    %1323 = vmatprep.subr.bf16.mxu0 0
    %1324 = vmatpush1.bf16.msra.mxu0 0
    %1325 = vmatprep.subr.bf16.mxu0 0
    %1326 = vmatpush1.bf16.msra.mxu0 0
    %1327 = vmatprep.subr.bf16.mxu0 0
    %1328 = vmatpush1.bf16.msra.mxu0 0
    %1329 = vmatprep.subr.bf16.mxu0 0
    %1330 = vmatpush1.bf16.msra.mxu0 0
    %1331 = vmatprep.subr.bf16.mxu0 0
    %1332 = vmatpush1.bf16.msra.mxu0 0
    %1333 = vmatprep.subr.bf16.mxu0 0
    %1334 = vmatpush1.bf16.msra.mxu0 0
    %1335 = vmatprep.subr.bf16.mxu0 0
    %1336 = vmatpush1.bf16.msra.mxu0 0
    %1337 = vmatprep.subr.bf16.mxu0 0
    %1338 = vmatpush1.bf16.msra.mxu0 0
    %1339 = vmatprep.subr.bf16.mxu0 0
    %1340 = vmatpush1.bf16.msra.mxu0 0
    %1341 = vmatprep.mubr.bf16.mxu0 0
    %1342 = vmatmul.mubr.bf16.gmra.mrb[0].mxu0 %v1298
    %v1343 = vpop.f32.mrb[0].mxu0
    %v1344 = vadd.f32 0.0, %v1343
    %v1345 = vpop.f32.mrb[0].mxu0
    %v1346 = vpop.f32.mrb[0].mxu0
    %v1347 = vadd.f32 0.0, %v1346
    %v1348 = vpop.f32.mrb[0].mxu0
    %1349 = vmatprep.mubr.bf16.mxu0 0
    %1350 = vmatmul.mubr.bf16.gmra.mrb[0].mxu0 %v1301
    %v1351 = vpop.f32.mrb[0].mxu0
    %v1352 = vadd.f32 0.0, %v1351
    %v1353 = vpop.f32.mrb[0].mxu0
    %v1354 = vpop.f32.mrb[0].mxu0
    %v1355 = vadd.f32 0.0, %v1354
    %v1356 = vpop.f32.mrb[0].mxu0
    %1357 = vmatprep.mubr.bf16.mxu0 0
    %1358 = vmatmul.mubr.bf16.gmra.mrb[0].mxu0 %v1304
    %v1359 = vpop.f32.mrb[0].mxu0
    %v1360 = vadd.f32 0.0, %v1359
    %v1361 = vpop.f32.mrb[0].mxu0
    %v1362 = vpop.f32.mrb[0].mxu0
    %v1363 = vadd.f32 0.0, %v1362
    %v1364 = vpop.f32.mrb[0].mxu0
    %1365 = vmatprep.mubr.bf16.mxu0 0
    %1366 = vmatmul.mubr.bf16.gmra.mrb[0].mxu0 %v1307
    %v1367 = vpop.f32.mrb[0].mxu0
    %v1368 = vadd.f32 0.0, %v1367
    %v1369 = vpop.f32.mrb[0].mxu0
    %v1370 = vpop.f32.mrb[0].mxu0
    %v1371 = vadd.f32 0.0, %v1370
    %v1372 = vpop.f32.mrb[0].mxu0
    %1373 = vdwg.mxu0
    %1382 = vrot.lane.b32.xlu0 %v1344, 64
    %v1383 = vpop.permute.xlu0 %1382
    %1384 = vrot.lane.b32.xlu0 %v1347, 64
    %v1385 = vpop.permute.xlu0 %1384
    %1386 = vrot.lane.b32.xlu0 %v1352, 64
    %v1387 = vpop.permute.xlu0 %1386
    %1388 = vrot.lane.b32.xlu0 %v1355, 64
    %v1389 = vpop.permute.xlu0 %1388
    %1390 = vrot.lane.b32.xlu0 %v1360, 64
    %v1391 = vpop.permute.xlu0 %1390
    %1392 = vrot.lane.b32.xlu0 %v1363, 64
    %v1393 = vpop.permute.xlu0 %1392
    %1394 = vrot.lane.b32.xlu0 %v1368, 64
    %v1395 = vpop.permute.xlu0 %1394
    %1396 = vrot.lane.b32.xlu0 %v1371, 64
    %v1397 = vpop.permute.xlu0 %1396
    %v1406 = vadd.f32 %v1245, %v1383
    %v1407 = vadd.f32 %v1246, %v1385
    %v1408 = vadd.f32 %v1247, %v1387
    %v1409 = vadd.f32 %v1248, %v1389
    %v1410 = vadd.f32 %v1249, %v1391
    %v1411 = vadd.f32 %v1250, %v1393
    %v1412 = vadd.f32 %v1251, %v1395
    %v1413 = vadd.f32 %v1252, %v1397
    %v1414 = vld [vmem:[#allocation8] sm:$0x1]
    %v1416 = vlaneseq
    %v1417 = vshrl.u32 %v1416, 7
    %v1418 = vsub.s32 0, %v1417
    %v1419 = vrot.slane %v1414, %v1418
    %1420 = vrot.lane.b32.xlu0 %v1419, 64
    %v1421 = vpop.permute.xlu0 %1420
    %v1423 = vadd.f32 %v1406, %v1421
    %v1424 = vadd.f32 %v1407, %v1421
    %v1425 = vadd.f32 %v1408, %v1421
    %v1426 = vadd.f32 %v1409, %v1421
    %v1427 = vadd.f32 %v1410, %v1421
    %v1428 = vadd.f32 %v1411, %v1421
    %v1429 = vadd.f32 %v1412, %v1421
    %v1430 = vadd.f32 %v1413, %v1421
    %v1431 = vpack.c.bf16 %v1424, %v1423
    %v1432 = vpack.c.bf16 %v1426, %v1425
    %v1433 = vpack.c.bf16 %v1428, %v1427
    %v1434 = vpack.c.bf16 %v1430, %v1429
    %1437 = vrot.lane.b32.xlu0 %v1431, 64
    %v1438 = vpop.permute.xlu0 %1437
    %1439 = vrot.lane.b32.xlu0 %v1432, 64
    %v1440 = vpop.permute.xlu0 %1439
    %1443 = vrot.lane.b32.xlu0 %v1433, 64
    %v1444 = vpop.permute.xlu0 %1443
    %1445 = vrot.lane.b32.xlu0 %v1434, 64
    %v1446 = vpop.permute.xlu0 %1445
    %v1448 = vsel %vm306, %v1438, 0
    %v1451 = vsel %vm306, %v1440, 0
    %v1454 = vsel %vm306, %v1444, 0
    %v1457 = vsel %vm306, %v1446, 0
    %1459 = vmatprep.subr.bf16.mxu0 0
    %1460 = vmatpush1.bf16.xpose.msra.mxu0 %v1454
    %1461 = vmatprep.subr.bf16.mxu0 0
    %1462 = vmatpush1.bf16.xpose.msra.mxu0 %v1457
    %1463 = vmatprep.subr.bf16.mxu0 0
    %1464 = vmatpush1.bf16.xpose.msra.mxu0 0
    %1465 = vmatprep.subr.bf16.mxu0 0
    %1466 = vmatpush1.bf16.xpose.msra.mxu0 0
    %1467 = vmatprep.subr.bf16.mxu0 0
    %1468 = vmatpush1.bf16.xpose.msra.mxu0 0
    %1469 = vmatprep.subr.bf16.mxu0 0
    %1470 = vmatpush1.bf16.xpose.msra.mxu0 0
    %1471 = vmatprep.subr.bf16.mxu0 0
    %1472 = vmatpush1.bf16.xpose.msra.mxu0 0
    %1473 = vmatprep.subr.bf16.mxu0 0
    %1474 = vmatpush1.bf16.xpose.msra.mxu0 0
    %1475 = vmatprep.subr.bf16.mxu0 0
    %1476 = vmatpush1.bf16.xpose.msra.mxu0 0
    %1477 = vmatprep.subr.bf16.mxu0 0
    %1478 = vmatpush1.bf16.xpose.msra.mxu0 0
    %1479 = vmatprep.subr.bf16.mxu0 0
    %1480 = vmatpush1.bf16.xpose.msra.mxu0 0
    %1481 = vmatprep.subr.bf16.mxu0 0
    %1482 = vmatpush1.bf16.xpose.msra.mxu0 0
    %1483 = vmatprep.subr.bf16.mxu0 0
    %1484 = vmatpush1.bf16.xpose.msra.mxu0 0
    %1485 = vmatprep.subr.bf16.mxu0 0
    %1486 = vmatpush1.bf16.xpose.msra.mxu0 0
    %1487 = vmatprep.subr.bf16.mxu0 0
    %1488 = vmatpush1.bf16.xpose.msra.mxu0 0
    %1489 = vmatprep.subr.bf16.mxu0 0
    %1490 = vmatpush1.bf16.xpose.msra.mxu0 0
    %1491 = vmatprep.mubr.bf16.mxu0 0
    %1492 = vmatmul.mubr.bf16.gmra.mrb[0].mxu0 %v1448
    %v1493 = vpop.f32.mrb[0].mxu0
    %v1494 = vadd.f32 0.0, %v1493
    %v1495 = vpop.f32.mrb[0].mxu0
    %v1496 = vpop.f32.mrb[0].mxu0
    %v1497 = vadd.f32 0.0, %v1496
    %v1498 = vpop.f32.mrb[0].mxu0
    %1499 = vmatprep.mubr.bf16.mxu0 0
    %1500 = vmatmul.mubr.bf16.gmra.mrb[0].mxu0 %v1451
    %v1501 = vpop.f32.mrb[0].mxu0
    %v1502 = vadd.f32 0.0, %v1501
    %v1503 = vpop.f32.mrb[0].mxu0
    %v1504 = vpop.f32.mrb[0].mxu0
    %v1505 = vadd.f32 0.0, %v1504
    %v1506 = vpop.f32.mrb[0].mxu0
    %1507 = vdwg.mxu0
    %v1508 = vlaneseq
    %v1509 = vshrl.u32 %v1508, 7
    %v1510 = vsub.s32 0, %v1509
    %v1511 = vrot.slane %v1494, %v1510
    %1513 = vbcast.lane.b32.xlu0 %v1511, 256
    %v1514 = vpop.permute.xlu0 %1513
    %s1516 = sor.u32 256, 8
    %1517 = vbcast.lane.b32.xlu0 %v1511, %s1516
    %v1518 = vpop.permute.xlu0 %1517
    %s1520 = sor.u32 256, 16
    %1521 = vbcast.lane.b32.xlu0 %v1511, %s1520
    %v1522 = vpop.permute.xlu0 %1521
    %s1524 = sor.u32 256, 24
    %1525 = vbcast.lane.b32.xlu0 %v1511, %s1524
    %v1526 = vpop.permute.xlu0 %1525
    %v1527 = vlaneseq
    %v1528 = vshrl.u32 %v1527, 7
    %v1529 = vsub.s32 1, %v1528
    %v1530 = vrot.slane %v1494, %v1529
    %1532 = vbcast.lane.b32.xlu0 %v1530, 256
    %v1533 = vpop.permute.xlu0 %1532
    %s1535 = sor.u32 256, 8
    %1536 = vbcast.lane.b32.xlu0 %v1530, %s1535
    %v1537 = vpop.permute.xlu0 %1536
    %s1539 = sor.u32 256, 16
    %1540 = vbcast.lane.b32.xlu0 %v1530, %s1539
    %v1541 = vpop.permute.xlu0 %1540
    %s1543 = sor.u32 256, 24
    %1544 = vbcast.lane.b32.xlu0 %v1530, %s1543
    %v1545 = vpop.permute.xlu0 %1544
    %v1546 = vlaneseq
    %v1547 = vshrl.u32 %v1546, 7
    %v1548 = vsub.s32 2, %v1547
    %v1549 = vrot.slane %v1494, %v1548
    %1551 = vbcast.lane.b32.xlu0 %v1549, 256
    %v1552 = vpop.permute.xlu0 %1551
    %s1554 = sor.u32 256, 8
    %1555 = vbcast.lane.b32.xlu0 %v1549, %s1554
    %v1556 = vpop.permute.xlu0 %1555
    %s1558 = sor.u32 256, 16
    %1559 = vbcast.lane.b32.xlu0 %v1549, %s1558
    %v1560 = vpop.permute.xlu0 %1559
    %s1562 = sor.u32 256, 24
    %1563 = vbcast.lane.b32.xlu0 %v1549, %s1562
    %v1564 = vpop.permute.xlu0 %1563
    %v1565 = vlaneseq
    %v1566 = vshrl.u32 %v1565, 7
    %v1567 = vsub.s32 3, %v1566
    %v1568 = vrot.slane %v1494, %v1567
    %1570 = vbcast.lane.b32.xlu0 %v1568, 256
    %v1571 = vpop.permute.xlu0 %1570
    %s1573 = sor.u32 256, 8
    %1574 = vbcast.lane.b32.xlu0 %v1568, %s1573
    %v1575 = vpop.permute.xlu0 %1574
    %s1577 = sor.u32 256, 16
    %1578 = vbcast.lane.b32.xlu0 %v1568, %s1577
    %v1579 = vpop.permute.xlu0 %1578
    %s1581 = sor.u32 256, 24
    %1582 = vbcast.lane.b32.xlu0 %v1568, %s1581
    %v1583 = vpop.permute.xlu0 %1582
    %v1584 = vlaneseq
    %v1585 = vshrl.u32 %v1584, 7
    %v1586 = vsub.s32 4, %v1585
    %v1587 = vrot.slane %v1494, %v1586
    %1589 = vbcast.lane.b32.xlu0 %v1587, 256
    %v1590 = vpop.permute.xlu0 %1589
    %s1592 = sor.u32 256, 8
    %1593 = vbcast.lane.b32.xlu0 %v1587, %s1592
    %v1594 = vpop.permute.xlu0 %1593
    %s1596 = sor.u32 256, 16
    %1597 = vbcast.lane.b32.xlu0 %v1587, %s1596
    %v1598 = vpop.permute.xlu0 %1597
    %s1600 = sor.u32 256, 24
    %1601 = vbcast.lane.b32.xlu0 %v1587, %s1600
    %v1602 = vpop.permute.xlu0 %1601
    %v1603 = vlaneseq
    %v1604 = vshrl.u32 %v1603, 7
    %v1605 = vsub.s32 5, %v1604
    %v1606 = vrot.slane %v1494, %v1605
    %1608 = vbcast.lane.b32.xlu0 %v1606, 256
    %v1609 = vpop.permute.xlu0 %1608
    %s1611 = sor.u32 256, 8
    %1612 = vbcast.lane.b32.xlu0 %v1606, %s1611
    %v1613 = vpop.permute.xlu0 %1612
    %s1615 = sor.u32 256, 16
    %1616 = vbcast.lane.b32.xlu0 %v1606, %s1615
    %v1617 = vpop.permute.xlu0 %1616
    %s1619 = sor.u32 256, 24
    %1620 = vbcast.lane.b32.xlu0 %v1606, %s1619
    %v1621 = vpop.permute.xlu0 %1620
    %v1622 = vlaneseq
    %v1623 = vshrl.u32 %v1622, 7
    %v1624 = vsub.s32 6, %v1623
    %v1625 = vrot.slane %v1494, %v1624
    %1627 = vbcast.lane.b32.xlu0 %v1625, 256
    %v1628 = vpop.permute.xlu0 %1627
    %s1630 = sor.u32 256, 8
    %1631 = vbcast.lane.b32.xlu0 %v1625, %s1630
    %v1632 = vpop.permute.xlu0 %1631
    %s1634 = sor.u32 256, 16
    %1635 = vbcast.lane.b32.xlu0 %v1625, %s1634
    %v1636 = vpop.permute.xlu0 %1635
    %s1638 = sor.u32 256, 24
    %1639 = vbcast.lane.b32.xlu0 %v1625, %s1638
    %v1640 = vpop.permute.xlu0 %1639
    %v1641 = vlaneseq
    %v1642 = vshrl.u32 %v1641, 7
    %v1643 = vsub.s32 7, %v1642
    %v1644 = vrot.slane %v1494, %v1643
    %1646 = vbcast.lane.b32.xlu0 %v1644, 256
    %v1647 = vpop.permute.xlu0 %1646
    %s1649 = sor.u32 256, 8
    %1650 = vbcast.lane.b32.xlu0 %v1644, %s1649
    %v1651 = vpop.permute.xlu0 %1650
    %s1653 = sor.u32 256, 16
    %1654 = vbcast.lane.b32.xlu0 %v1644, %s1653
    %v1655 = vpop.permute.xlu0 %1654
    %s1657 = sor.u32 256, 24
    %1658 = vbcast.lane.b32.xlu0 %v1644, %s1657
    %v1659 = vpop.permute.xlu0 %1658
    %v1660 = vlaneseq
    %v1661 = vshrl.u32 %v1660, 7
    %v1662 = vsub.s32 0, %v1661
    %v1663 = vrot.slane %v1497, %v1662
    %1665 = vbcast.lane.b32.xlu0 %v1663, 256
    %v1666 = vpop.permute.xlu0 %1665
    %s1668 = sor.u32 256, 8
    %1669 = vbcast.lane.b32.xlu0 %v1663, %s1668
    %v1670 = vpop.permute.xlu0 %1669
    %s1672 = sor.u32 256, 16
    %1673 = vbcast.lane.b32.xlu0 %v1663, %s1672
    %v1674 = vpop.permute.xlu0 %1673
    %s1676 = sor.u32 256, 24
    %1677 = vbcast.lane.b32.xlu0 %v1663, %s1676
    %v1678 = vpop.permute.xlu0 %1677
    %v1679 = vlaneseq
    %v1680 = vshrl.u32 %v1679, 7
    %v1681 = vsub.s32 1, %v1680
    %v1682 = vrot.slane %v1497, %v1681
    %1684 = vbcast.lane.b32.xlu0 %v1682, 256
    %v1685 = vpop.permute.xlu0 %1684
    %s1687 = sor.u32 256, 8
    %1688 = vbcast.lane.b32.xlu0 %v1682, %s1687
    %v1689 = vpop.permute.xlu0 %1688
    %s1691 = sor.u32 256, 16
    %1692 = vbcast.lane.b32.xlu0 %v1682, %s1691
    %v1693 = vpop.permute.xlu0 %1692
    %s1695 = sor.u32 256, 24
    %1696 = vbcast.lane.b32.xlu0 %v1682, %s1695
    %v1697 = vpop.permute.xlu0 %1696
    %v1698 = vlaneseq
    %v1699 = vshrl.u32 %v1698, 7
    %v1700 = vsub.s32 2, %v1699
    %v1701 = vrot.slane %v1497, %v1700
    %1703 = vbcast.lane.b32.xlu0 %v1701, 256
    %v1704 = vpop.permute.xlu0 %1703
    %s1706 = sor.u32 256, 8
    %1707 = vbcast.lane.b32.xlu0 %v1701, %s1706
    %v1708 = vpop.permute.xlu0 %1707
    %s1710 = sor.u32 256, 16
    %1711 = vbcast.lane.b32.xlu0 %v1701, %s1710
    %v1712 = vpop.permute.xlu0 %1711
    %s1714 = sor.u32 256, 24
    %1715 = vbcast.lane.b32.xlu0 %v1701, %s1714
    %v1716 = vpop.permute.xlu0 %1715
    %v1717 = vlaneseq
    %v1718 = vshrl.u32 %v1717, 7
    %v1719 = vsub.s32 3, %v1718
    %v1720 = vrot.slane %v1497, %v1719
    %1722 = vbcast.lane.b32.xlu0 %v1720, 256
    %v1723 = vpop.permute.xlu0 %1722
    %s1725 = sor.u32 256, 8
    %1726 = vbcast.lane.b32.xlu0 %v1720, %s1725
    %v1727 = vpop.permute.xlu0 %1726
    %s1729 = sor.u32 256, 16
    %1730 = vbcast.lane.b32.xlu0 %v1720, %s1729
    %v1731 = vpop.permute.xlu0 %1730
    %s1733 = sor.u32 256, 24
    %1734 = vbcast.lane.b32.xlu0 %v1720, %s1733
    %v1735 = vpop.permute.xlu0 %1734
    %v1736 = vlaneseq
    %v1737 = vshrl.u32 %v1736, 7
    %v1738 = vsub.s32 4, %v1737
    %v1739 = vrot.slane %v1497, %v1738
    %1741 = vbcast.lane.b32.xlu0 %v1739, 256
    %v1742 = vpop.permute.xlu0 %1741
    %s1744 = sor.u32 256, 8
    %1745 = vbcast.lane.b32.xlu0 %v1739, %s1744
    %v1746 = vpop.permute.xlu0 %1745
    %s1748 = sor.u32 256, 16
    %1749 = vbcast.lane.b32.xlu0 %v1739, %s1748
    %v1750 = vpop.permute.xlu0 %1749
    %s1752 = sor.u32 256, 24
    %1753 = vbcast.lane.b32.xlu0 %v1739, %s1752
    %v1754 = vpop.permute.xlu0 %1753
    %v1755 = vlaneseq
    %v1756 = vshrl.u32 %v1755, 7
    %v1757 = vsub.s32 5, %v1756
    %v1758 = vrot.slane %v1497, %v1757
    %1760 = vbcast.lane.b32.xlu0 %v1758, 256
    %v1761 = vpop.permute.xlu0 %1760
    %s1763 = sor.u32 256, 8
    %1764 = vbcast.lane.b32.xlu0 %v1758, %s1763
    %v1765 = vpop.permute.xlu0 %1764
    %s1767 = sor.u32 256, 16
    %1768 = vbcast.lane.b32.xlu0 %v1758, %s1767
    %v1769 = vpop.permute.xlu0 %1768
    %s1771 = sor.u32 256, 24
    %1772 = vbcast.lane.b32.xlu0 %v1758, %s1771
    %v1773 = vpop.permute.xlu0 %1772
    %v1774 = vlaneseq
    %v1775 = vshrl.u32 %v1774, 7
    %v1776 = vsub.s32 6, %v1775
    %v1777 = vrot.slane %v1497, %v1776
    %1779 = vbcast.lane.b32.xlu0 %v1777, 256
    %v1780 = vpop.permute.xlu0 %1779
    %s1782 = sor.u32 256, 8
    %1783 = vbcast.lane.b32.xlu0 %v1777, %s1782
    %v1784 = vpop.permute.xlu0 %1783
    %s1786 = sor.u32 256, 16
    %1787 = vbcast.lane.b32.xlu0 %v1777, %s1786
    %v1788 = vpop.permute.xlu0 %1787
    %s1790 = sor.u32 256, 24
    %1791 = vbcast.lane.b32.xlu0 %v1777, %s1790
    %v1792 = vpop.permute.xlu0 %1791
    %v1793 = vlaneseq
    %v1794 = vshrl.u32 %v1793, 7
    %v1795 = vsub.s32 7, %v1794
    %v1796 = vrot.slane %v1497, %v1795
    %1798 = vbcast.lane.b32.xlu0 %v1796, 256
    %v1799 = vpop.permute.xlu0 %1798
    %s1801 = sor.u32 256, 8
    %1802 = vbcast.lane.b32.xlu0 %v1796, %s1801
    %v1803 = vpop.permute.xlu0 %1802
    %s1805 = sor.u32 256, 16
    %1806 = vbcast.lane.b32.xlu0 %v1796, %s1805
    %v1807 = vpop.permute.xlu0 %1806
    %s1809 = sor.u32 256, 24
    %1810 = vbcast.lane.b32.xlu0 %v1796, %s1809
    %v1811 = vpop.permute.xlu0 %1810
    %v1812 = vlaneseq
    %v1813 = vshrl.u32 %v1812, 7
    %v1814 = vsub.s32 0, %v1813
    %v1815 = vrot.slane %v1502, %v1814
    %1817 = vbcast.lane.b32.xlu0 %v1815, 256
    %v1818 = vpop.permute.xlu0 %1817
    %s1820 = sor.u32 256, 8
    %1821 = vbcast.lane.b32.xlu0 %v1815, %s1820
    %v1822 = vpop.permute.xlu0 %1821
    %s1824 = sor.u32 256, 16
    %1825 = vbcast.lane.b32.xlu0 %v1815, %s1824
    %v1826 = vpop.permute.xlu0 %1825
    %s1828 = sor.u32 256, 24
    %1829 = vbcast.lane.b32.xlu0 %v1815, %s1828
    %v1830 = vpop.permute.xlu0 %1829
    %v1831 = vlaneseq
    %v1832 = vshrl.u32 %v1831, 7
    %v1833 = vsub.s32 1, %v1832
    %v1834 = vrot.slane %v1502, %v1833
    %1836 = vbcast.lane.b32.xlu0 %v1834, 256
    %v1837 = vpop.permute.xlu0 %1836
    %s1839 = sor.u32 256, 8
    %1840 = vbcast.lane.b32.xlu0 %v1834, %s1839
    %v1841 = vpop.permute.xlu0 %1840
    %s1843 = sor.u32 256, 16
    %1844 = vbcast.lane.b32.xlu0 %v1834, %s1843
    %v1845 = vpop.permute.xlu0 %1844
    %s1847 = sor.u32 256, 24
    %1848 = vbcast.lane.b32.xlu0 %v1834, %s1847
    %v1849 = vpop.permute.xlu0 %1848
    %v1850 = vlaneseq
    %v1851 = vshrl.u32 %v1850, 7
    %v1852 = vsub.s32 2, %v1851
    %v1853 = vrot.slane %v1502, %v1852
    %1855 = vbcast.lane.b32.xlu0 %v1853, 256
    %v1856 = vpop.permute.xlu0 %1855
    %s1858 = sor.u32 256, 8
    %1859 = vbcast.lane.b32.xlu0 %v1853, %s1858
    %v1860 = vpop.permute.xlu0 %1859
    %s1862 = sor.u32 256, 16
    %1863 = vbcast.lane.b32.xlu0 %v1853, %s1862
    %v1864 = vpop.permute.xlu0 %1863
    %s1866 = sor.u32 256, 24
    %1867 = vbcast.lane.b32.xlu0 %v1853, %s1866
    %v1868 = vpop.permute.xlu0 %1867
    %v1869 = vlaneseq
    %v1870 = vshrl.u32 %v1869, 7
    %v1871 = vsub.s32 3, %v1870
    %v1872 = vrot.slane %v1502, %v1871
    %1874 = vbcast.lane.b32.xlu0 %v1872, 256
    %v1875 = vpop.permute.xlu0 %1874
    %s1877 = sor.u32 256, 8
    %1878 = vbcast.lane.b32.xlu0 %v1872, %s1877
    %v1879 = vpop.permute.xlu0 %1878
    %s1881 = sor.u32 256, 16
    %1882 = vbcast.lane.b32.xlu0 %v1872, %s1881
    %v1883 = vpop.permute.xlu0 %1882
    %s1885 = sor.u32 256, 24
    %1886 = vbcast.lane.b32.xlu0 %v1872, %s1885
    %v1887 = vpop.permute.xlu0 %1886
    %v1888 = vlaneseq
    %v1889 = vshrl.u32 %v1888, 7
    %v1890 = vsub.s32 4, %v1889
    %v1891 = vrot.slane %v1502, %v1890
    %1893 = vbcast.lane.b32.xlu0 %v1891, 256
    %v1894 = vpop.permute.xlu0 %1893
    %s1896 = sor.u32 256, 8
    %1897 = vbcast.lane.b32.xlu0 %v1891, %s1896
    %v1898 = vpop.permute.xlu0 %1897
    %s1900 = sor.u32 256, 16
    %1901 = vbcast.lane.b32.xlu0 %v1891, %s1900
    %v1902 = vpop.permute.xlu0 %1901
    %s1904 = sor.u32 256, 24
    %1905 = vbcast.lane.b32.xlu0 %v1891, %s1904
    %v1906 = vpop.permute.xlu0 %1905
    %v1907 = vlaneseq
    %v1908 = vshrl.u32 %v1907, 7
    %v1909 = vsub.s32 5, %v1908
    %v1910 = vrot.slane %v1502, %v1909
    %1912 = vbcast.lane.b32.xlu0 %v1910, 256
    %v1913 = vpop.permute.xlu0 %1912
    %s1915 = sor.u32 256, 8
    %1916 = vbcast.lane.b32.xlu0 %v1910, %s1915
    %v1917 = vpop.permute.xlu0 %1916
    %s1919 = sor.u32 256, 16
    %1920 = vbcast.lane.b32.xlu0 %v1910, %s1919
    %v1921 = vpop.permute.xlu0 %1920
    %s1923 = sor.u32 256, 24
    %1924 = vbcast.lane.b32.xlu0 %v1910, %s1923
    %v1925 = vpop.permute.xlu0 %1924
    %v1926 = vlaneseq
    %v1927 = vshrl.u32 %v1926, 7
    %v1928 = vsub.s32 6, %v1927
    %v1929 = vrot.slane %v1502, %v1928
    %1931 = vbcast.lane.b32.xlu0 %v1929, 256
    %v1932 = vpop.permute.xlu0 %1931
    %s1934 = sor.u32 256, 8
    %1935 = vbcast.lane.b32.xlu0 %v1929, %s1934
    %v1936 = vpop.permute.xlu0 %1935
    %s1938 = sor.u32 256, 16
    %1939 = vbcast.lane.b32.xlu0 %v1929, %s1938
    %v1940 = vpop.permute.xlu0 %1939
    %s1942 = sor.u32 256, 24
    %1943 = vbcast.lane.b32.xlu0 %v1929, %s1942
    %v1944 = vpop.permute.xlu0 %1943
    %v1945 = vlaneseq
    %v1946 = vshrl.u32 %v1945, 7
    %v1947 = vsub.s32 7, %v1946
    %v1948 = vrot.slane %v1502, %v1947
    %1950 = vbcast.lane.b32.xlu0 %v1948, 256
    %v1951 = vpop.permute.xlu0 %1950
    %s1953 = sor.u32 256, 8
    %1954 = vbcast.lane.b32.xlu0 %v1948, %s1953
    %v1955 = vpop.permute.xlu0 %1954
    %s1957 = sor.u32 256, 16
    %1958 = vbcast.lane.b32.xlu0 %v1948, %s1957
    %v1959 = vpop.permute.xlu0 %1958
    %s1961 = sor.u32 256, 24
    %1962 = vbcast.lane.b32.xlu0 %v1948, %s1961
    %v1963 = vpop.permute.xlu0 %1962
    %v1964 = vlaneseq
    %v1965 = vshrl.u32 %v1964, 7
    %v1966 = vsub.s32 0, %v1965
    %v1967 = vrot.slane %v1505, %v1966
    %1969 = vbcast.lane.b32.xlu0 %v1967, 256
    %v1970 = vpop.permute.xlu0 %1969
    %s1972 = sor.u32 256, 8
    %1973 = vbcast.lane.b32.xlu0 %v1967, %s1972
    %v1974 = vpop.permute.xlu0 %1973
    %s1976 = sor.u32 256, 16
    %1977 = vbcast.lane.b32.xlu0 %v1967, %s1976
    %v1978 = vpop.permute.xlu0 %1977
    %s1980 = sor.u32 256, 24
    %1981 = vbcast.lane.b32.xlu0 %v1967, %s1980
    %v1982 = vpop.permute.xlu0 %1981
    %v1983 = vlaneseq
    %v1984 = vshrl.u32 %v1983, 7
    %v1985 = vsub.s32 1, %v1984
    %v1986 = vrot.slane %v1505, %v1985
    %1988 = vbcast.lane.b32.xlu0 %v1986, 256
    %v1989 = vpop.permute.xlu0 %1988
    %s1991 = sor.u32 256, 8
    %1992 = vbcast.lane.b32.xlu0 %v1986, %s1991
    %v1993 = vpop.permute.xlu0 %1992
    %s1995 = sor.u32 256, 16
    %1996 = vbcast.lane.b32.xlu0 %v1986, %s1995
    %v1997 = vpop.permute.xlu0 %1996
    %s1999 = sor.u32 256, 24
    %2000 = vbcast.lane.b32.xlu0 %v1986, %s1999
    %v2001 = vpop.permute.xlu0 %2000
    %v2002 = vlaneseq
    %v2003 = vshrl.u32 %v2002, 7
    %v2004 = vsub.s32 2, %v2003
    %v2005 = vrot.slane %v1505, %v2004
    %2007 = vbcast.lane.b32.xlu0 %v2005, 256
    %v2008 = vpop.permute.xlu0 %2007
    %s2010 = sor.u32 256, 8
    %2011 = vbcast.lane.b32.xlu0 %v2005, %s2010
    %v2012 = vpop.permute.xlu0 %2011
    %s2014 = sor.u32 256, 16
    %2015 = vbcast.lane.b32.xlu0 %v2005, %s2014
    %v2016 = vpop.permute.xlu0 %2015
    %s2018 = sor.u32 256, 24
    %2019 = vbcast.lane.b32.xlu0 %v2005, %s2018
    %v2020 = vpop.permute.xlu0 %2019
    %v2021 = vlaneseq
    %v2022 = vshrl.u32 %v2021, 7
    %v2023 = vsub.s32 3, %v2022
    %v2024 = vrot.slane %v1505, %v2023
    %2026 = vbcast.lane.b32.xlu0 %v2024, 256
    %v2027 = vpop.permute.xlu0 %2026
    %s2029 = sor.u32 256, 8
    %2030 = vbcast.lane.b32.xlu0 %v2024, %s2029
    %v2031 = vpop.permute.xlu0 %2030
    %s2033 = sor.u32 256, 16
    %2034 = vbcast.lane.b32.xlu0 %v2024, %s2033
    %v2035 = vpop.permute.xlu0 %2034
    %s2037 = sor.u32 256, 24
    %2038 = vbcast.lane.b32.xlu0 %v2024, %s2037
    %v2039 = vpop.permute.xlu0 %2038
    %v2040 = vlaneseq
    %v2041 = vshrl.u32 %v2040, 7
    %v2042 = vsub.s32 4, %v2041
    %v2043 = vrot.slane %v1505, %v2042
    %2045 = vbcast.lane.b32.xlu0 %v2043, 256
    %v2046 = vpop.permute.xlu0 %2045
    %s2048 = sor.u32 256, 8
    %2049 = vbcast.lane.b32.xlu0 %v2043, %s2048
    %v2050 = vpop.permute.xlu0 %2049
    %s2052 = sor.u32 256, 16
    %2053 = vbcast.lane.b32.xlu0 %v2043, %s2052
    %v2054 = vpop.permute.xlu0 %2053
    %s2056 = sor.u32 256, 24
    %2057 = vbcast.lane.b32.xlu0 %v2043, %s2056
    %v2058 = vpop.permute.xlu0 %2057
    %v2059 = vlaneseq
    %v2060 = vshrl.u32 %v2059, 7
    %v2061 = vsub.s32 5, %v2060
    %v2062 = vrot.slane %v1505, %v2061
    %2064 = vbcast.lane.b32.xlu0 %v2062, 256
    %v2065 = vpop.permute.xlu0 %2064
    %s2067 = sor.u32 256, 8
    %2068 = vbcast.lane.b32.xlu0 %v2062, %s2067
    %v2069 = vpop.permute.xlu0 %2068
    %s2071 = sor.u32 256, 16
    %2072 = vbcast.lane.b32.xlu0 %v2062, %s2071
    %v2073 = vpop.permute.xlu0 %2072
    %s2075 = sor.u32 256, 24
    %2076 = vbcast.lane.b32.xlu0 %v2062, %s2075
    %v2077 = vpop.permute.xlu0 %2076
    %v2078 = vlaneseq
    %v2079 = vshrl.u32 %v2078, 7
    %v2080 = vsub.s32 6, %v2079
    %v2081 = vrot.slane %v1505, %v2080
    %2083 = vbcast.lane.b32.xlu0 %v2081, 256
    %v2084 = vpop.permute.xlu0 %2083
    %s2086 = sor.u32 256, 8
    %2087 = vbcast.lane.b32.xlu0 %v2081, %s2086
    %v2088 = vpop.permute.xlu0 %2087
    %s2090 = sor.u32 256, 16
    %2091 = vbcast.lane.b32.xlu0 %v2081, %s2090
    %v2092 = vpop.permute.xlu0 %2091
    %s2094 = sor.u32 256, 24
    %2095 = vbcast.lane.b32.xlu0 %v2081, %s2094
    %v2096 = vpop.permute.xlu0 %2095
    %v2097 = vlaneseq
    %v2098 = vshrl.u32 %v2097, 7
    %v2099 = vsub.s32 7, %v2098
    %v2100 = vrot.slane %v1505, %v2099
    %2102 = vbcast.lane.b32.xlu0 %v2100, 256
    %v2103 = vpop.permute.xlu0 %2102
    %s2105 = sor.u32 256, 8
    %2106 = vbcast.lane.b32.xlu0 %v2100, %s2105
    %v2107 = vpop.permute.xlu0 %2106
    %s2109 = sor.u32 256, 16
    %2110 = vbcast.lane.b32.xlu0 %v2100, %s2109
    %v2111 = vpop.permute.xlu0 %2110
    %s2113 = sor.u32 256, 24
    %2114 = vbcast.lane.b32.xlu0 %v2100, %s2113
    %v2115 = vpop.permute.xlu0 %2114
    %v2120 = vcombine.high %v1494, %v1494
    %v2122 = vunpack.c.l.s4 1966171168
    %v2123 = vunpack.c.0.s8 %v2122
    %v2124 = vlaneseq
    %v2125 = vshrl.u32 %v2124, 7
    %v2126 = vsub.s32 %v2123, %v2125
    %v2127 = vrot.slane %v1494, %v2126
    %v2129 = vunpack.c.l.s4 1966171168
    %v2130 = vunpack.c.0.s8 %v2129
    %v2131 = vlaneseq
    %v2132 = vshrl.u32 %v2131, 7
    %v2133 = vsub.s32 %v2130, %v2132
    %v2134 = vrot.slane %v2120, %v2133
    %v2135 = vcombine.high %v2127, %v2127
    %v2136 = vcombine.high %v2134, %v2134
    %v2138 = vunpack.c.l.s4 1966171168
    %v2139 = vunpack.c.0.s8 %v2138
    %v2140 = vlaneseq
    %v2141 = vshrl.u32 %v2140, 7
    %v2142 = vsub.s32 %v2139, %v2141
    %v2143 = vrot.slane %v2127, %v2142
    %v2145 = vunpack.c.l.s4 1966171168
    %v2146 = vunpack.c.0.s8 %v2145
    %v2147 = vlaneseq
    %v2148 = vshrl.u32 %v2147, 7
    %v2149 = vsub.s32 %v2146, %v2148
    %v2150 = vrot.slane %v2134, %v2149
    %v2152 = vunpack.c.l.s4 1966171168
    %v2153 = vunpack.c.0.s8 %v2152
    %v2154 = vlaneseq
    %v2155 = vshrl.u32 %v2154, 7
    %v2156 = vsub.s32 %v2153, %v2155
    %v2157 = vrot.slane %v2135, %v2156
    %v2159 = vunpack.c.l.s4 1966171168
    %v2160 = vunpack.c.0.s8 %v2159
    %v2161 = vlaneseq
    %v2162 = vshrl.u32 %v2161, 7
    %v2163 = vsub.s32 %v2160, %v2162
    %v2164 = vrot.slane %v2136, %v2163
    %v2165 = vcombine.high %v2143, %v2143
    %v2166 = vcombine.high %v2150, %v2150
    %v2167 = vcombine.high %v2157, %v2157
    %v2168 = vcombine.high %v2164, %v2164
    %v2169 = vcombine.high %v1497, %v1497
    %v2171 = vunpack.c.l.s4 1966171168
    %v2172 = vunpack.c.0.s8 %v2171
    %v2173 = vlaneseq
    %v2174 = vshrl.u32 %v2173, 7
    %v2175 = vsub.s32 %v2172, %v2174
    %v2176 = vrot.slane %v1497, %v2175
    %v2178 = vunpack.c.l.s4 1966171168
    %v2179 = vunpack.c.0.s8 %v2178
    %v2180 = vlaneseq
    %v2181 = vshrl.u32 %v2180, 7
    %v2182 = vsub.s32 %v2179, %v2181
    %v2183 = vrot.slane %v2169, %v2182
    %v2184 = vcombine.high %v2176, %v2176
    %v2185 = vcombine.high %v2183, %v2183
    %v2187 = vunpack.c.l.s4 1966171168
    %v2188 = vunpack.c.0.s8 %v2187
    %v2189 = vlaneseq
    %v2190 = vshrl.u32 %v2189, 7
    %v2191 = vsub.s32 %v2188, %v2190
    %v2192 = vrot.slane %v2176, %v2191
    %v2194 = vunpack.c.l.s4 1966171168
    %v2195 = vunpack.c.0.s8 %v2194
    %v2196 = vlaneseq
    %v2197 = vshrl.u32 %v2196, 7
    %v2198 = vsub.s32 %v2195, %v2197
    %v2199 = vrot.slane %v2183, %v2198
    %v2201 = vunpack.c.l.s4 1966171168
    %v2202 = vunpack.c.0.s8 %v2201
    %v2203 = vlaneseq
    %v2204 = vshrl.u32 %v2203, 7
    %v2205 = vsub.s32 %v2202, %v2204
    %v2206 = vrot.slane %v2184, %v2205
    %v2208 = vunpack.c.l.s4 1966171168
    %v2209 = vunpack.c.0.s8 %v2208
    %v2210 = vlaneseq
    %v2211 = vshrl.u32 %v2210, 7
    %v2212 = vsub.s32 %v2209, %v2211
    %v2213 = vrot.slane %v2185, %v2212
    %v2214 = vcombine.high %v2192, %v2192
    %v2215 = vcombine.high %v2199, %v2199
    %v2216 = vcombine.high %v2206, %v2206
    %v2217 = vcombine.high %v2213, %v2213
    %v2218 = vcombine.high %v1502, %v1502
    %v2220 = vunpack.c.l.s4 1966171168
    %v2221 = vunpack.c.0.s8 %v2220
    %v2222 = vlaneseq
    %v2223 = vshrl.u32 %v2222, 7
    %v2224 = vsub.s32 %v2221, %v2223
    %v2225 = vrot.slane %v1502, %v2224
    %v2227 = vunpack.c.l.s4 1966171168
    %v2228 = vunpack.c.0.s8 %v2227
    %v2229 = vlaneseq
    %v2230 = vshrl.u32 %v2229, 7
    %v2231 = vsub.s32 %v2228, %v2230
    %v2232 = vrot.slane %v2218, %v2231
    %v2233 = vcombine.high %v2225, %v2225
    %v2234 = vcombine.high %v2232, %v2232
    %v2236 = vunpack.c.l.s4 1966171168
    %v2237 = vunpack.c.0.s8 %v2236
    %v2238 = vlaneseq
    %v2239 = vshrl.u32 %v2238, 7
    %v2240 = vsub.s32 %v2237, %v2239
    %v2241 = vrot.slane %v2225, %v2240
    %v2243 = vunpack.c.l.s4 1966171168
    %v2244 = vunpack.c.0.s8 %v2243
    %v2245 = vlaneseq
    %v2246 = vshrl.u32 %v2245, 7
    %v2247 = vsub.s32 %v2244, %v2246
    %v2248 = vrot.slane %v2232, %v2247
    %v2250 = vunpack.c.l.s4 1966171168
    %v2251 = vunpack.c.0.s8 %v2250
    %v2252 = vlaneseq
    %v2253 = vshrl.u32 %v2252, 7
    %v2254 = vsub.s32 %v2251, %v2253
    %v2255 = vrot.slane %v2233, %v2254
    %v2257 = vunpack.c.l.s4 1966171168
    %v2258 = vunpack.c.0.s8 %v2257
    %v2259 = vlaneseq
    %v2260 = vshrl.u32 %v2259, 7
    %v2261 = vsub.s32 %v2258, %v2260
    %v2262 = vrot.slane %v2234, %v2261
    %v2263 = vcombine.high %v2241, %v2241
    %v2264 = vcombine.high %v2248, %v2248
    %v2265 = vcombine.high %v2255, %v2255
    %v2266 = vcombine.high %v2262, %v2262
    %v2267 = vcombine.high %v1505, %v1505
    %v2269 = vunpack.c.l.s4 1966171168
    %v2270 = vunpack.c.0.s8 %v2269
    %v2271 = vlaneseq
    %v2272 = vshrl.u32 %v2271, 7
    %v2273 = vsub.s32 %v2270, %v2272
    %v2274 = vrot.slane %v1505, %v2273
    %v2276 = vunpack.c.l.s4 1966171168
    %v2277 = vunpack.c.0.s8 %v2276
    %v2278 = vlaneseq
    %v2279 = vshrl.u32 %v2278, 7
    %v2280 = vsub.s32 %v2277, %v2279
    %v2281 = vrot.slane %v2267, %v2280
    %v2282 = vcombine.high %v2274, %v2274
    %v2283 = vcombine.high %v2281, %v2281
    %v2285 = vunpack.c.l.s4 1966171168
    %v2286 = vunpack.c.0.s8 %v2285
    %v2287 = vlaneseq
    %v2288 = vshrl.u32 %v2287, 7
    %v2289 = vsub.s32 %v2286, %v2288
    %v2290 = vrot.slane %v2274, %v2289
    %v2292 = vunpack.c.l.s4 1966171168
    %v2293 = vunpack.c.0.s8 %v2292
    %v2294 = vlaneseq
    %v2295 = vshrl.u32 %v2294, 7
    %v2296 = vsub.s32 %v2293, %v2295
    %v2297 = vrot.slane %v2281, %v2296
    %v2299 = vunpack.c.l.s4 1966171168
    %v2300 = vunpack.c.0.s8 %v2299
    %v2301 = vlaneseq
    %v2302 = vshrl.u32 %v2301, 7
    %v2303 = vsub.s32 %v2300, %v2302
    %v2304 = vrot.slane %v2282, %v2303
    %v2306 = vunpack.c.l.s4 1966171168
    %v2307 = vunpack.c.0.s8 %v2306
    %v2308 = vlaneseq
    %v2309 = vshrl.u32 %v2308, 7
    %v2310 = vsub.s32 %v2307, %v2309
    %v2311 = vrot.slane %v2283, %v2310
    %v2312 = vcombine.high %v2290, %v2290
    %v2313 = vcombine.high %v2297, %v2297
    %v2314 = vcombine.high %v2304, %v2304
    %v2315 = vcombine.high %v2311, %v2311
    %v2316 = vlaneseq
    %v2317 = vshrl.u32 %v2316, 7
    %v2318 = vadd.s32 %v2317, 8
    %v2319 = vadd.s32 %v2317, 16
    %v2320 = vadd.s32 %v2317, 24
    %v2321 = vlaneseq
    %v2322 = vand.u32 %v2321, 127
    %vm2323 = vcmp.lt.s32.totalorder %v2322, %v2317
    %vm2324 = vcmp.lt.s32.totalorder %v2322, %v2318
    %vm2325 = vcmp.lt.s32.totalorder %v2322, %v2319
    %vm2326 = vcmp.lt.s32.totalorder %v2322, %v2320
    %v2327 = vlaneseq
    %v2328 = vshrl.u32 %v2327, 7
    %v2329 = vsub.s32 0, %v2328
    %v2330 = vrot.slane %v2143, %v2329
    %v2331 = vlaneseq
    %v2332 = vshrl.u32 %v2331, 7
    %v2333 = vsub.s32 0, %v2332
    %v2334 = vrot.slane %v2157, %v2333
    %v2335 = vlaneseq
    %v2336 = vshrl.u32 %v2335, 7
    %v2337 = vsub.s32 0, %v2336
    %v2338 = vrot.slane %v2165, %v2337
    %v2339 = vlaneseq
    %v2340 = vshrl.u32 %v2339, 7
    %v2341 = vsub.s32 0, %v2340
    %v2342 = vrot.slane %v2167, %v2341
    %v2343 = vlaneseq
    %v2344 = vshrl.u32 %v2343, 7
    %v2345 = vsub.s32 0, %v2344
    %v2346 = vrot.slane %v2150, %v2345
    %v2347 = vlaneseq
    %v2348 = vshrl.u32 %v2347, 7
    %v2349 = vsub.s32 0, %v2348
    %v2350 = vrot.slane %v2164, %v2349
    %v2351 = vlaneseq
    %v2352 = vshrl.u32 %v2351, 7
    %v2353 = vsub.s32 0, %v2352
    %v2354 = vrot.slane %v2166, %v2353
    %v2355 = vlaneseq
    %v2356 = vshrl.u32 %v2355, 7
    %v2357 = vsub.s32 0, %v2356
    %v2358 = vrot.slane %v2168, %v2357
    %v2359 = vlaneseq
    %v2360 = vshrl.u32 %v2359, 7
    %v2361 = vsub.s32 0, %v2360
    %v2362 = vrot.slane %v2192, %v2361
    %v2363 = vlaneseq
    %v2364 = vshrl.u32 %v2363, 7
    %v2365 = vsub.s32 0, %v2364
    %v2366 = vrot.slane %v2206, %v2365
    %v2367 = vlaneseq
    %v2368 = vshrl.u32 %v2367, 7
    %v2369 = vsub.s32 0, %v2368
    %v2370 = vrot.slane %v2214, %v2369
    %v2371 = vlaneseq
    %v2372 = vshrl.u32 %v2371, 7
    %v2373 = vsub.s32 0, %v2372
    %v2374 = vrot.slane %v2216, %v2373
    %v2375 = vlaneseq
    %v2376 = vshrl.u32 %v2375, 7
    %v2377 = vsub.s32 0, %v2376
    %v2378 = vrot.slane %v2199, %v2377
    %v2379 = vlaneseq
    %v2380 = vshrl.u32 %v2379, 7
    %v2381 = vsub.s32 0, %v2380
    %v2382 = vrot.slane %v2213, %v2381
    %v2383 = vlaneseq
    %v2384 = vshrl.u32 %v2383, 7
    %v2385 = vsub.s32 0, %v2384
    %v2386 = vrot.slane %v2215, %v2385
    %v2387 = vlaneseq
    %v2388 = vshrl.u32 %v2387, 7
    %v2389 = vsub.s32 0, %v2388
    %v2390 = vrot.slane %v2217, %v2389
    %v2391 = vlaneseq
    %v2392 = vshrl.u32 %v2391, 7
    %v2393 = vsub.s32 0, %v2392
    %v2394 = vrot.slane %v2241, %v2393
    %v2395 = vlaneseq
    %v2396 = vshrl.u32 %v2395, 7
    %v2397 = vsub.s32 0, %v2396
    %v2398 = vrot.slane %v2255, %v2397
    %v2399 = vlaneseq
    %v2400 = vshrl.u32 %v2399, 7
    %v2401 = vsub.s32 0, %v2400
    %v2402 = vrot.slane %v2263, %v2401
    %v2403 = vlaneseq
    %v2404 = vshrl.u32 %v2403, 7
    %v2405 = vsub.s32 0, %v2404
    %v2406 = vrot.slane %v2265, %v2405
    %v2407 = vlaneseq
    %v2408 = vshrl.u32 %v2407, 7
    %v2409 = vsub.s32 0, %v2408
    %v2410 = vrot.slane %v2248, %v2409
    %v2411 = vlaneseq
    %v2412 = vshrl.u32 %v2411, 7
    %v2413 = vsub.s32 0, %v2412
    %v2414 = vrot.slane %v2262, %v2413
    %v2415 = vlaneseq
    %v2416 = vshrl.u32 %v2415, 7
    %v2417 = vsub.s32 0, %v2416
    %v2418 = vrot.slane %v2264, %v2417
    %v2419 = vlaneseq
    %v2420 = vshrl.u32 %v2419, 7
    %v2421 = vsub.s32 0, %v2420
    %v2422 = vrot.slane %v2266, %v2421
    %v2423 = vlaneseq
    %v2424 = vshrl.u32 %v2423, 7
    %v2425 = vsub.s32 0, %v2424
    %v2426 = vrot.slane %v2290, %v2425
    %v2427 = vlaneseq
    %v2428 = vshrl.u32 %v2427, 7
    %v2429 = vsub.s32 0, %v2428
    %v2430 = vrot.slane %v2304, %v2429
    %v2431 = vlaneseq
    %v2432 = vshrl.u32 %v2431, 7
    %v2433 = vsub.s32 0, %v2432
    %v2434 = vrot.slane %v2312, %v2433
    %v2435 = vlaneseq
    %v2436 = vshrl.u32 %v2435, 7
    %v2437 = vsub.s32 0, %v2436
    %v2438 = vrot.slane %v2314, %v2437
    %v2439 = vlaneseq
    %v2440 = vshrl.u32 %v2439, 7
    %v2441 = vsub.s32 0, %v2440
    %v2442 = vrot.slane %v2297, %v2441
    %v2443 = vlaneseq
    %v2444 = vshrl.u32 %v2443, 7
    %v2445 = vsub.s32 0, %v2444
    %v2446 = vrot.slane %v2311, %v2445
    %v2447 = vlaneseq
    %v2448 = vshrl.u32 %v2447, 7
    %v2449 = vsub.s32 0, %v2448
    %v2450 = vrot.slane %v2313, %v2449
    %v2451 = vlaneseq
    %v2452 = vshrl.u32 %v2451, 7
    %v2453 = vsub.s32 0, %v2452
    %v2454 = vrot.slane %v2315, %v2453
    %vm2487 = vcmp.gt.f32.partialorder %v2330, %v1514
    %vm2488 = vcmp.gt.f32.partialorder %v2330, %v1518
    %vm2489 = vcmp.gt.f32.partialorder %v2330, %v1522
    %vm2490 = vcmp.gt.f32.partialorder %v2330, %v1526
    %vm2491 = vcmp.gt.f32.partialorder %v2334, %v1533
    %vm2492 = vcmp.gt.f32.partialorder %v2334, %v1537
    %vm2493 = vcmp.gt.f32.partialorder %v2334, %v1541
    %vm2494 = vcmp.gt.f32.partialorder %v2334, %v1545
    %vm2495 = vcmp.gt.f32.partialorder %v2338, %v1552
    %vm2496 = vcmp.gt.f32.partialorder %v2338, %v1556
    %vm2497 = vcmp.gt.f32.partialorder %v2338, %v1560
    %vm2498 = vcmp.gt.f32.partialorder %v2338, %v1564
    %vm2499 = vcmp.gt.f32.partialorder %v2342, %v1571
    %vm2500 = vcmp.gt.f32.partialorder %v2342, %v1575
    %vm2501 = vcmp.gt.f32.partialorder %v2342, %v1579
    %vm2502 = vcmp.gt.f32.partialorder %v2342, %v1583
    %vm2503 = vcmp.gt.f32.partialorder %v2346, %v1590
    %vm2504 = vcmp.gt.f32.partialorder %v2346, %v1594
    %vm2505 = vcmp.gt.f32.partialorder %v2346, %v1598
    %vm2506 = vcmp.gt.f32.partialorder %v2346, %v1602
    %vm2507 = vcmp.gt.f32.partialorder %v2350, %v1609
    %vm2508 = vcmp.gt.f32.partialorder %v2350, %v1613
    %vm2509 = vcmp.gt.f32.partialorder %v2350, %v1617
    %vm2510 = vcmp.gt.f32.partialorder %v2350, %v1621
    %vm2511 = vcmp.gt.f32.partialorder %v2354, %v1628
    %vm2512 = vcmp.gt.f32.partialorder %v2354, %v1632
    %vm2513 = vcmp.gt.f32.partialorder %v2354, %v1636
    %vm2514 = vcmp.gt.f32.partialorder %v2354, %v1640
    %vm2515 = vcmp.gt.f32.partialorder %v2358, %v1647
    %vm2516 = vcmp.gt.f32.partialorder %v2358, %v1651
    %vm2517 = vcmp.gt.f32.partialorder %v2358, %v1655
    %vm2518 = vcmp.gt.f32.partialorder %v2358, %v1659
    %vm2519 = vcmp.gt.f32.partialorder %v2362, %v1666
    %vm2520 = vcmp.gt.f32.partialorder %v2362, %v1670
    %vm2521 = vcmp.gt.f32.partialorder %v2362, %v1674
    %vm2522 = vcmp.gt.f32.partialorder %v2362, %v1678
    %vm2523 = vcmp.gt.f32.partialorder %v2366, %v1685
    %vm2524 = vcmp.gt.f32.partialorder %v2366, %v1689
    %vm2525 = vcmp.gt.f32.partialorder %v2366, %v1693
    %vm2526 = vcmp.gt.f32.partialorder %v2366, %v1697
    %vm2527 = vcmp.gt.f32.partialorder %v2370, %v1704
    %vm2528 = vcmp.gt.f32.partialorder %v2370, %v1708
    %vm2529 = vcmp.gt.f32.partialorder %v2370, %v1712
    %vm2530 = vcmp.gt.f32.partialorder %v2370, %v1716
    %vm2531 = vcmp.gt.f32.partialorder %v2374, %v1723
    %vm2532 = vcmp.gt.f32.partialorder %v2374, %v1727
    %vm2533 = vcmp.gt.f32.partialorder %v2374, %v1731
    %vm2534 = vcmp.gt.f32.partialorder %v2374, %v1735
    %vm2535 = vcmp.gt.f32.partialorder %v2378, %v1742
    %vm2536 = vcmp.gt.f32.partialorder %v2378, %v1746
    %vm2537 = vcmp.gt.f32.partialorder %v2378, %v1750
    %vm2538 = vcmp.gt.f32.partialorder %v2378, %v1754
    %vm2539 = vcmp.gt.f32.partialorder %v2382, %v1761
    %vm2540 = vcmp.gt.f32.partialorder %v2382, %v1765
    %vm2541 = vcmp.gt.f32.partialorder %v2382, %v1769
    %vm2542 = vcmp.gt.f32.partialorder %v2382, %v1773
    %vm2543 = vcmp.gt.f32.partialorder %v2386, %v1780
    %vm2544 = vcmp.gt.f32.partialorder %v2386, %v1784
    %vm2545 = vcmp.gt.f32.partialorder %v2386, %v1788
    %vm2546 = vcmp.gt.f32.partialorder %v2386, %v1792
    %vm2547 = vcmp.gt.f32.partialorder %v2390, %v1799
    %vm2548 = vcmp.gt.f32.partialorder %v2390, %v1803
    %vm2549 = vcmp.gt.f32.partialorder %v2390, %v1807
    %vm2550 = vcmp.gt.f32.partialorder %v2390, %v1811
    %vm2551 = vcmp.gt.f32.partialorder %v2394, %v1818
    %vm2552 = vcmp.gt.f32.partialorder %v2394, %v1822
    %vm2553 = vcmp.gt.f32.partialorder %v2394, %v1826
    %vm2554 = vcmp.gt.f32.partialorder %v2394, %v1830
    %vm2555 = vcmp.gt.f32.partialorder %v2398, %v1837
    %vm2556 = vcmp.gt.f32.partialorder %v2398, %v1841
    %vm2557 = vcmp.gt.f32.partialorder %v2398, %v1845
    %vm2558 = vcmp.gt.f32.partialorder %v2398, %v1849
    %vm2559 = vcmp.gt.f32.partialorder %v2402, %v1856
    %vm2560 = vcmp.gt.f32.partialorder %v2402, %v1860
    %vm2561 = vcmp.gt.f32.partialorder %v2402, %v1864
    %vm2562 = vcmp.gt.f32.partialorder %v2402, %v1868
    %vm2563 = vcmp.gt.f32.partialorder %v2406, %v1875
    %vm2564 = vcmp.gt.f32.partialorder %v2406, %v1879
    %vm2565 = vcmp.gt.f32.partialorder %v2406, %v1883
    %vm2566 = vcmp.gt.f32.partialorder %v2406, %v1887
    %vm2567 = vcmp.gt.f32.partialorder %v2410, %v1894
    %vm2568 = vcmp.gt.f32.partialorder %v2410, %v1898
    %vm2569 = vcmp.gt.f32.partialorder %v2410, %v1902
    %vm2570 = vcmp.gt.f32.partialorder %v2410, %v1906
    %vm2571 = vcmp.gt.f32.partialorder %v2414, %v1913
    %vm2572 = vcmp.gt.f32.partialorder %v2414, %v1917
    %vm2573 = vcmp.gt.f32.partialorder %v2414, %v1921
    %vm2574 = vcmp.gt.f32.partialorder %v2414, %v1925
    %vm2575 = vcmp.gt.f32.partialorder %v2418, %v1932
    %vm2576 = vcmp.gt.f32.partialorder %v2418, %v1936
    %vm2577 = vcmp.gt.f32.partialorder %v2418, %v1940
    %vm2578 = vcmp.gt.f32.partialorder %v2418, %v1944
    %vm2579 = vcmp.gt.f32.partialorder %v2422, %v1951
    %vm2580 = vcmp.gt.f32.partialorder %v2422, %v1955
    %vm2581 = vcmp.gt.f32.partialorder %v2422, %v1959
    %vm2582 = vcmp.gt.f32.partialorder %v2422, %v1963
    %vm2583 = vcmp.gt.f32.partialorder %v2426, %v1970
    %vm2584 = vcmp.gt.f32.partialorder %v2426, %v1974
    %vm2585 = vcmp.gt.f32.partialorder %v2426, %v1978
    %vm2586 = vcmp.gt.f32.partialorder %v2426, %v1982
    %vm2587 = vcmp.gt.f32.partialorder %v2430, %v1989
    %vm2588 = vcmp.gt.f32.partialorder %v2430, %v1993
    %vm2589 = vcmp.gt.f32.partialorder %v2430, %v1997
    %vm2590 = vcmp.gt.f32.partialorder %v2430, %v2001
    %vm2591 = vcmp.gt.f32.partialorder %v2434, %v2008
    %vm2592 = vcmp.gt.f32.partialorder %v2434, %v2012
    %vm2593 = vcmp.gt.f32.partialorder %v2434, %v2016
    %vm2594 = vcmp.gt.f32.partialorder %v2434, %v2020
    %vm2595 = vcmp.gt.f32.partialorder %v2438, %v2027
    %vm2596 = vcmp.gt.f32.partialorder %v2438, %v2031
    %vm2597 = vcmp.gt.f32.partialorder %v2438, %v2035
    %vm2598 = vcmp.gt.f32.partialorder %v2438, %v2039
    %vm2599 = vcmp.gt.f32.partialorder %v2442, %v2046
    %vm2600 = vcmp.gt.f32.partialorder %v2442, %v2050
    %vm2601 = vcmp.gt.f32.partialorder %v2442, %v2054
    %vm2602 = vcmp.gt.f32.partialorder %v2442, %v2058
    %vm2603 = vcmp.gt.f32.partialorder %v2446, %v2065
    %vm2604 = vcmp.gt.f32.partialorder %v2446, %v2069
    %vm2605 = vcmp.gt.f32.partialorder %v2446, %v2073
    %vm2606 = vcmp.gt.f32.partialorder %v2446, %v2077
    %vm2607 = vcmp.gt.f32.partialorder %v2450, %v2084
    %vm2608 = vcmp.gt.f32.partialorder %v2450, %v2088
    %vm2609 = vcmp.gt.f32.partialorder %v2450, %v2092
    %vm2610 = vcmp.gt.f32.partialorder %v2450, %v2096
    %vm2611 = vcmp.gt.f32.partialorder %v2454, %v2103
    %vm2612 = vcmp.gt.f32.partialorder %v2454, %v2107
    %vm2613 = vcmp.gt.f32.partialorder %v2454, %v2111
    %vm2614 = vcmp.gt.f32.partialorder %v2454, %v2115
    %vm2615 = vcmp.eq.f32.partialorder %v2330, %v1514
    %vm2616 = vcmp.eq.f32.partialorder %v2330, %v1518
    %vm2617 = vcmp.eq.f32.partialorder %v2330, %v1522
    %vm2618 = vcmp.eq.f32.partialorder %v2330, %v1526
    %vm2619 = vcmp.eq.f32.partialorder %v2334, %v1533
    %vm2620 = vcmp.eq.f32.partialorder %v2334, %v1537
    %vm2621 = vcmp.eq.f32.partialorder %v2334, %v1541
    %vm2622 = vcmp.eq.f32.partialorder %v2334, %v1545
    %vm2623 = vcmp.eq.f32.partialorder %v2338, %v1552
    %vm2624 = vcmp.eq.f32.partialorder %v2338, %v1556
    %vm2625 = vcmp.eq.f32.partialorder %v2338, %v1560
    %vm2626 = vcmp.eq.f32.partialorder %v2338, %v1564
    %vm2627 = vcmp.eq.f32.partialorder %v2342, %v1571
    %vm2628 = vcmp.eq.f32.partialorder %v2342, %v1575
    %vm2629 = vcmp.eq.f32.partialorder %v2342, %v1579
    %vm2630 = vcmp.eq.f32.partialorder %v2342, %v1583
    %vm2631 = vcmp.eq.f32.partialorder %v2346, %v1590
    %vm2632 = vcmp.eq.f32.partialorder %v2346, %v1594
    %vm2633 = vcmp.eq.f32.partialorder %v2346, %v1598
    %vm2634 = vcmp.eq.f32.partialorder %v2346, %v1602
    %vm2635 = vcmp.eq.f32.partialorder %v2350, %v1609
    %vm2636 = vcmp.eq.f32.partialorder %v2350, %v1613
    %vm2637 = vcmp.eq.f32.partialorder %v2350, %v1617
    %vm2638 = vcmp.eq.f32.partialorder %v2350, %v1621
    %vm2639 = vcmp.eq.f32.partialorder %v2354, %v1628
    %vm2640 = vcmp.eq.f32.partialorder %v2354, %v1632
    %vm2641 = vcmp.eq.f32.partialorder %v2354, %v1636
    %vm2642 = vcmp.eq.f32.partialorder %v2354, %v1640
    %vm2643 = vcmp.eq.f32.partialorder %v2358, %v1647
    %vm2644 = vcmp.eq.f32.partialorder %v2358, %v1651
    %vm2645 = vcmp.eq.f32.partialorder %v2358, %v1655
    %vm2646 = vcmp.eq.f32.partialorder %v2358, %v1659
    %vm2647 = vcmp.eq.f32.partialorder %v2362, %v1666
    %vm2648 = vcmp.eq.f32.partialorder %v2362, %v1670
    %vm2649 = vcmp.eq.f32.partialorder %v2362, %v1674
    %vm2650 = vcmp.eq.f32.partialorder %v2362, %v1678
    %vm2651 = vcmp.eq.f32.partialorder %v2366, %v1685
    %vm2652 = vcmp.eq.f32.partialorder %v2366, %v1689
    %vm2653 = vcmp.eq.f32.partialorder %v2366, %v1693
    %vm2654 = vcmp.eq.f32.partialorder %v2366, %v1697
    %vm2655 = vcmp.eq.f32.partialorder %v2370, %v1704
    %vm2656 = vcmp.eq.f32.partialorder %v2370, %v1708
    %vm2657 = vcmp.eq.f32.partialorder %v2370, %v1712
    %vm2658 = vcmp.eq.f32.partialorder %v2370, %v1716
    %vm2659 = vcmp.eq.f32.partialorder %v2374, %v1723
    %vm2660 = vcmp.eq.f32.partialorder %v2374, %v1727
    %vm2661 = vcmp.eq.f32.partialorder %v2374, %v1731
    %vm2662 = vcmp.eq.f32.partialorder %v2374, %v1735
    %vm2663 = vcmp.eq.f32.partialorder %v2378, %v1742
    %vm2664 = vcmp.eq.f32.partialorder %v2378, %v1746
    %vm2665 = vcmp.eq.f32.partialorder %v2378, %v1750
    %vm2666 = vcmp.eq.f32.partialorder %v2378, %v1754
    %vm2667 = vcmp.eq.f32.partialorder %v2382, %v1761
    %vm2668 = vcmp.eq.f32.partialorder %v2382, %v1765
    %vm2669 = vcmp.eq.f32.partialorder %v2382, %v1769
    %vm2670 = vcmp.eq.f32.partialorder %v2382, %v1773
    %vm2671 = vcmp.eq.f32.partialorder %v2386, %v1780
    %vm2672 = vcmp.eq.f32.partialorder %v2386, %v1784
    %vm2673 = vcmp.eq.f32.partialorder %v2386, %v1788
    %vm2674 = vcmp.eq.f32.partialorder %v2386, %v1792
    %vm2675 = vcmp.eq.f32.partialorder %v2390, %v1799
    %vm2676 = vcmp.eq.f32.partialorder %v2390, %v1803
    %vm2677 = vcmp.eq.f32.partialorder %v2390, %v1807
    %vm2678 = vcmp.eq.f32.partialorder %v2390, %v1811
    %vm2679 = vcmp.eq.f32.partialorder %v2394, %v1818
    %vm2680 = vcmp.eq.f32.partialorder %v2394, %v1822
    %vm2681 = vcmp.eq.f32.partialorder %v2394, %v1826
    %vm2682 = vcmp.eq.f32.partialorder %v2394, %v1830
    %vm2683 = vcmp.eq.f32.partialorder %v2398, %v1837
    %vm2684 = vcmp.eq.f32.partialorder %v2398, %v1841
    %vm2685 = vcmp.eq.f32.partialorder %v2398, %v1845
    %vm2686 = vcmp.eq.f32.partialorder %v2398, %v1849
    %vm2687 = vcmp.eq.f32.partialorder %v2402, %v1856
    %vm2688 = vcmp.eq.f32.partialorder %v2402, %v1860
    %vm2689 = vcmp.eq.f32.partialorder %v2402, %v1864
    %vm2690 = vcmp.eq.f32.partialorder %v2402, %v1868
    %vm2691 = vcmp.eq.f32.partialorder %v2406, %v1875
    %vm2692 = vcmp.eq.f32.partialorder %v2406, %v1879
    %vm2693 = vcmp.eq.f32.partialorder %v2406, %v1883
    %vm2694 = vcmp.eq.f32.partialorder %v2406, %v1887
    %vm2695 = vcmp.eq.f32.partialorder %v2410, %v1894
    %vm2696 = vcmp.eq.f32.partialorder %v2410, %v1898
    %vm2697 = vcmp.eq.f32.partialorder %v2410, %v1902
    %vm2698 = vcmp.eq.f32.partialorder %v2410, %v1906
    %vm2699 = vcmp.eq.f32.partialorder %v2414, %v1913
    %vm2700 = vcmp.eq.f32.partialorder %v2414, %v1917
    %vm2701 = vcmp.eq.f32.partialorder %v2414, %v1921
    %vm2702 = vcmp.eq.f32.partialorder %v2414, %v1925
    %vm2703 = vcmp.eq.f32.partialorder %v2418, %v1932
    %vm2704 = vcmp.eq.f32.partialorder %v2418, %v1936
    %vm2705 = vcmp.eq.f32.partialorder %v2418, %v1940
    %vm2706 = vcmp.eq.f32.partialorder %v2418, %v1944
    %vm2707 = vcmp.eq.f32.partialorder %v2422, %v1951
    %vm2708 = vcmp.eq.f32.partialorder %v2422, %v1955
    %vm2709 = vcmp.eq.f32.partialorder %v2422, %v1959
    %vm2710 = vcmp.eq.f32.partialorder %v2422, %v1963
    %vm2711 = vcmp.eq.f32.partialorder %v2426, %v1970
    %vm2712 = vcmp.eq.f32.partialorder %v2426, %v1974
    %vm2713 = vcmp.eq.f32.partialorder %v2426, %v1978
    %vm2714 = vcmp.eq.f32.partialorder %v2426, %v1982
    %vm2715 = vcmp.eq.f32.partialorder %v2430, %v1989
    %vm2716 = vcmp.eq.f32.partialorder %v2430, %v1993
    %vm2717 = vcmp.eq.f32.partialorder %v2430, %v1997
    %vm2718 = vcmp.eq.f32.partialorder %v2430, %v2001
    %vm2719 = vcmp.eq.f32.partialorder %v2434, %v2008
    %vm2720 = vcmp.eq.f32.partialorder %v2434, %v2012
    %vm2721 = vcmp.eq.f32.partialorder %v2434, %v2016
    %vm2722 = vcmp.eq.f32.partialorder %v2434, %v2020
    %vm2723 = vcmp.eq.f32.partialorder %v2438, %v2027
    %vm2724 = vcmp.eq.f32.partialorder %v2438, %v2031
    %vm2725 = vcmp.eq.f32.partialorder %v2438, %v2035
    %vm2726 = vcmp.eq.f32.partialorder %v2438, %v2039
    %vm2727 = vcmp.eq.f32.partialorder %v2442, %v2046
    %vm2728 = vcmp.eq.f32.partialorder %v2442, %v2050
    %vm2729 = vcmp.eq.f32.partialorder %v2442, %v2054
    %vm2730 = vcmp.eq.f32.partialorder %v2442, %v2058
    %vm2731 = vcmp.eq.f32.partialorder %v2446, %v2065
    %vm2732 = vcmp.eq.f32.partialorder %v2446, %v2069
    %vm2733 = vcmp.eq.f32.partialorder %v2446, %v2073
    %vm2734 = vcmp.eq.f32.partialorder %v2446, %v2077
    %vm2735 = vcmp.eq.f32.partialorder %v2450, %v2084
    %vm2736 = vcmp.eq.f32.partialorder %v2450, %v2088
    %vm2737 = vcmp.eq.f32.partialorder %v2450, %v2092
    %vm2738 = vcmp.eq.f32.partialorder %v2450, %v2096
    %vm2739 = vcmp.eq.f32.partialorder %v2454, %v2103
    %vm2740 = vcmp.eq.f32.partialorder %v2454, %v2107
    %vm2741 = vcmp.eq.f32.partialorder %v2454, %v2111
    %vm2742 = vcmp.eq.f32.partialorder %v2454, %v2115
    %v2743 = vsel %vm2323, 1, 0
    %v2744 = vsel %vm2324, 1, 0
    %v2745 = vsel %vm2325, 1, 0
    %v2746 = vsel %vm2326, 1, 0
    %vm2747 = vcmp.eq.s32.totalorder %v2743, 1
    %vm2748 = vcmp.eq.s32.totalorder %v2744, 1
    %vm2749 = vcmp.eq.s32.totalorder %v2745, 1
    %vm2750 = vcmp.eq.s32.totalorder %v2746, 1
    %vm2751 = vmand %vm2615, %vm2747
    %vm2752 = vmand %vm2616, %vm2748
    %vm2753 = vmand %vm2617, %vm2749
    %vm2754 = vmand %vm2618, %vm2750
    %vm2755 = vmand %vm2619, %vm2747
    %vm2756 = vmand %vm2620, %vm2748
    %vm2757 = vmand %vm2621, %vm2749
    %vm2758 = vmand %vm2622, %vm2750
    %vm2759 = vmand %vm2623, %vm2747
    %vm2760 = vmand %vm2624, %vm2748
    %vm2761 = vmand %vm2625, %vm2749
    %vm2762 = vmand %vm2626, %vm2750
    %vm2763 = vmand %vm2627, %vm2747
    %vm2764 = vmand %vm2628, %vm2748
    %vm2765 = vmand %vm2629, %vm2749
    %vm2766 = vmand %vm2630, %vm2750
    %vm2767 = vmand %vm2631, %vm2747
    %vm2768 = vmand %vm2632, %vm2748
    %vm2769 = vmand %vm2633, %vm2749
    %vm2770 = vmand %vm2634, %vm2750
    %vm2771 = vmand %vm2635, %vm2747
    %vm2772 = vmand %vm2636, %vm2748
    %vm2773 = vmand %vm2637, %vm2749
    %vm2774 = vmand %vm2638, %vm2750
    %vm2775 = vmand %vm2639, %vm2747
    %vm2776 = vmand %vm2640, %vm2748
    %vm2777 = vmand %vm2641, %vm2749
    %vm2778 = vmand %vm2642, %vm2750
    %vm2779 = vmand %vm2643, %vm2747
    %vm2780 = vmand %vm2644, %vm2748
    %vm2781 = vmand %vm2645, %vm2749
    %vm2782 = vmand %vm2646, %vm2750
    %vm2783 = vmand %vm2647, %vm2747
    %vm2784 = vmand %vm2648, %vm2748
    %vm2785 = vmand %vm2649, %vm2749
    %vm2786 = vmand %vm2650, %vm2750
    %vm2787 = vmand %vm2651, %vm2747
    %vm2788 = vmand %vm2652, %vm2748
    %vm2789 = vmand %vm2653, %vm2749
    %vm2790 = vmand %vm2654, %vm2750
    %vm2791 = vmand %vm2655, %vm2747
    %vm2792 = vmand %vm2656, %vm2748
    %vm2793 = vmand %vm2657, %vm2749
    %vm2794 = vmand %vm2658, %vm2750
    %vm2795 = vmand %vm2659, %vm2747
    %vm2796 = vmand %vm2660, %vm2748
    %vm2797 = vmand %vm2661, %vm2749
    %vm2798 = vmand %vm2662, %vm2750
    %vm2799 = vmand %vm2663, %vm2747
    %vm2800 = vmand %vm2664, %vm2748
    %vm2801 = vmand %vm2665, %vm2749
    %vm2802 = vmand %vm2666, %vm2750
    %vm2803 = vmand %vm2667, %vm2747
    %vm2804 = vmand %vm2668, %vm2748
    %vm2805 = vmand %vm2669, %vm2749
    %vm2806 = vmand %vm2670, %vm2750
    %vm2807 = vmand %vm2671, %vm2747
    %vm2808 = vmand %vm2672, %vm2748
    %vm2809 = vmand %vm2673, %vm2749
    %vm2810 = vmand %vm2674, %vm2750
    %vm2811 = vmand %vm2675, %vm2747
    %vm2812 = vmand %vm2676, %vm2748
    %vm2813 = vmand %vm2677, %vm2749
    %vm2814 = vmand %vm2678, %vm2750
    %vm2815 = vmand %vm2679, %vm2747
    %vm2816 = vmand %vm2680, %vm2748
    %vm2817 = vmand %vm2681, %vm2749
    %vm2818 = vmand %vm2682, %vm2750
    %vm2819 = vmand %vm2683, %vm2747
    %vm2820 = vmand %vm2684, %vm2748
    %vm2821 = vmand %vm2685, %vm2749
    %vm2822 = vmand %vm2686, %vm2750
    %vm2823 = vmand %vm2687, %vm2747
    %vm2824 = vmand %vm2688, %vm2748
    %vm2825 = vmand %vm2689, %vm2749
    %vm2826 = vmand %vm2690, %vm2750
    %vm2827 = vmand %vm2691, %vm2747
    %vm2828 = vmand %vm2692, %vm2748
    %vm2829 = vmand %vm2693, %vm2749
    %vm2830 = vmand %vm2694, %vm2750
    %vm2831 = vmand %vm2695, %vm2747
    %vm2832 = vmand %vm2696, %vm2748
    %vm2833 = vmand %vm2697, %vm2749
    %vm2834 = vmand %vm2698, %vm2750
    %vm2835 = vmand %vm2699, %vm2747
    %vm2836 = vmand %vm2700, %vm2748
    %vm2837 = vmand %vm2701, %vm2749
    %vm2838 = vmand %vm2702, %vm2750
    %vm2839 = vmand %vm2703, %vm2747
    %vm2840 = vmand %vm2704, %vm2748
    %vm2841 = vmand %vm2705, %vm2749
    %vm2842 = vmand %vm2706, %vm2750
    %vm2843 = vmand %vm2707, %vm2747
    %vm2844 = vmand %vm2708, %vm2748
    %vm2845 = vmand %vm2709, %vm2749
    %vm2846 = vmand %vm2710, %vm2750
    %vm2847 = vmand %vm2711, %vm2747
    %vm2848 = vmand %vm2712, %vm2748
    %vm2849 = vmand %vm2713, %vm2749
    %vm2850 = vmand %vm2714, %vm2750
    %vm2851 = vmand %vm2715, %vm2747
    %vm2852 = vmand %vm2716, %vm2748
    %vm2853 = vmand %vm2717, %vm2749
    %vm2854 = vmand %vm2718, %vm2750
    %vm2855 = vmand %vm2719, %vm2747
    %vm2856 = vmand %vm2720, %vm2748
    %vm2857 = vmand %vm2721, %vm2749
    %vm2858 = vmand %vm2722, %vm2750
    %vm2859 = vmand %vm2723, %vm2747
    %vm2860 = vmand %vm2724, %vm2748
    %vm2861 = vmand %vm2725, %vm2749
    %vm2862 = vmand %vm2726, %vm2750
    %vm2863 = vmand %vm2727, %vm2747
    %vm2864 = vmand %vm2728, %vm2748
    %vm2865 = vmand %vm2729, %vm2749
    %vm2866 = vmand %vm2730, %vm2750
    %vm2867 = vmand %vm2731, %vm2747
    %vm2868 = vmand %vm2732, %vm2748
    %vm2869 = vmand %vm2733, %vm2749
    %vm2870 = vmand %vm2734, %vm2750
    %vm2871 = vmand %vm2735, %vm2747
    %vm2872 = vmand %vm2736, %vm2748
    %vm2873 = vmand %vm2737, %vm2749
    %vm2874 = vmand %vm2738, %vm2750
    %vm2875 = vmand %vm2739, %vm2747
    %vm2876 = vmand %vm2740, %vm2748
    %vm2877 = vmand %vm2741, %vm2749
    %vm2878 = vmand %vm2742, %vm2750
    %vm2879 = vmor %vm2487, %vm2751
    %vm2880 = vmor %vm2488, %vm2752
    %vm2881 = vmor %vm2489, %vm2753
    %vm2882 = vmor %vm2490, %vm2754
    %vm2883 = vmor %vm2491, %vm2755
    %vm2884 = vmor %vm2492, %vm2756
    %vm2885 = vmor %vm2493, %vm2757
    %vm2886 = vmor %vm2494, %vm2758
    %vm2887 = vmor %vm2495, %vm2759
    %vm2888 = vmor %vm2496, %vm2760
    %vm2889 = vmor %vm2497, %vm2761
    %vm2890 = vmor %vm2498, %vm2762
    %vm2891 = vmor %vm2499, %vm2763
    %vm2892 = vmor %vm2500, %vm2764
    %vm2893 = vmor %vm2501, %vm2765
    %vm2894 = vmor %vm2502, %vm2766
    %vm2895 = vmor %vm2503, %vm2767
    %vm2896 = vmor %vm2504, %vm2768
    %vm2897 = vmor %vm2505, %vm2769
    %vm2898 = vmor %vm2506, %vm2770
    %vm2899 = vmor %vm2507, %vm2771
    %vm2900 = vmor %vm2508, %vm2772
    %vm2901 = vmor %vm2509, %vm2773
    %vm2902 = vmor %vm2510, %vm2774
    %vm2903 = vmor %vm2511, %vm2775
    %vm2904 = vmor %vm2512, %vm2776
    %vm2905 = vmor %vm2513, %vm2777
    %vm2906 = vmor %vm2514, %vm2778
    %vm2907 = vmor %vm2515, %vm2779
    %vm2908 = vmor %vm2516, %vm2780
    %vm2909 = vmor %vm2517, %vm2781
    %vm2910 = vmor %vm2518, %vm2782
    %vm2911 = vmor %vm2519, %vm2783
    %vm2912 = vmor %vm2520, %vm2784
    %vm2913 = vmor %vm2521, %vm2785
    %vm2914 = vmor %vm2522, %vm2786
    %vm2915 = vmor %vm2523, %vm2787
    %vm2916 = vmor %vm2524, %vm2788
    %vm2917 = vmor %vm2525, %vm2789
    %vm2918 = vmor %vm2526, %vm2790
    %vm2919 = vmor %vm2527, %vm2791
    %vm2920 = vmor %vm2528, %vm2792
    %vm2921 = vmor %vm2529, %vm2793
    %vm2922 = vmor %vm2530, %vm2794
    %vm2923 = vmor %vm2531, %vm2795
    %vm2924 = vmor %vm2532, %vm2796
    %vm2925 = vmor %vm2533, %vm2797
    %vm2926 = vmor %vm2534, %vm2798
    %vm2927 = vmor %vm2535, %vm2799
    %vm2928 = vmor %vm2536, %vm2800
    %vm2929 = vmor %vm2537, %vm2801
    %vm2930 = vmor %vm2538, %vm2802
    %vm2931 = vmor %vm2539, %vm2803
    %vm2932 = vmor %vm2540, %vm2804
    %vm2933 = vmor %vm2541, %vm2805
    %vm2934 = vmor %vm2542, %vm2806
    %vm2935 = vmor %vm2543, %vm2807
    %vm2936 = vmor %vm2544, %vm2808
    %vm2937 = vmor %vm2545, %vm2809
    %vm2938 = vmor %vm2546, %vm2810
    %vm2939 = vmor %vm2547, %vm2811
    %vm2940 = vmor %vm2548, %vm2812
    %vm2941 = vmor %vm2549, %vm2813
    %vm2942 = vmor %vm2550, %vm2814
    %vm2943 = vmor %vm2551, %vm2815
    %vm2944 = vmor %vm2552, %vm2816
    %vm2945 = vmor %vm2553, %vm2817
    %vm2946 = vmor %vm2554, %vm2818
    %vm2947 = vmor %vm2555, %vm2819
    %vm2948 = vmor %vm2556, %vm2820
    %vm2949 = vmor %vm2557, %vm2821
    %vm2950 = vmor %vm2558, %vm2822
    %vm2951 = vmor %vm2559, %vm2823
    %vm2952 = vmor %vm2560, %vm2824
    %vm2953 = vmor %vm2561, %vm2825
    %vm2954 = vmor %vm2562, %vm2826
    %vm2955 = vmor %vm2563, %vm2827
    %vm2956 = vmor %vm2564, %vm2828
    %vm2957 = vmor %vm2565, %vm2829
    %vm2958 = vmor %vm2566, %vm2830
    %vm2959 = vmor %vm2567, %vm2831
    %vm2960 = vmor %vm2568, %vm2832
    %vm2961 = vmor %vm2569, %vm2833
    %vm2962 = vmor %vm2570, %vm2834
    %vm2963 = vmor %vm2571, %vm2835
    %vm2964 = vmor %vm2572, %vm2836
    %vm2965 = vmor %vm2573, %vm2837
    %vm2966 = vmor %vm2574, %vm2838
    %vm2967 = vmor %vm2575, %vm2839
    %vm2968 = vmor %vm2576, %vm2840
    %vm2969 = vmor %vm2577, %vm2841
    %vm2970 = vmor %vm2578, %vm2842
    %vm2971 = vmor %vm2579, %vm2843
    %vm2972 = vmor %vm2580, %vm2844
    %vm2973 = vmor %vm2581, %vm2845
    %vm2974 = vmor %vm2582, %vm2846
    %vm2975 = vmor %vm2583, %vm2847
    %vm2976 = vmor %vm2584, %vm2848
    %vm2977 = vmor %vm2585, %vm2849
    %vm2978 = vmor %vm2586, %vm2850
    %vm2979 = vmor %vm2587, %vm2851
    %vm2980 = vmor %vm2588, %vm2852
    %vm2981 = vmor %vm2589, %vm2853
    %vm2982 = vmor %vm2590, %vm2854
    %vm2983 = vmor %vm2591, %vm2855
    %vm2984 = vmor %vm2592, %vm2856
    %vm2985 = vmor %vm2593, %vm2857
    %vm2986 = vmor %vm2594, %vm2858
    %vm2987 = vmor %vm2595, %vm2859
    %vm2988 = vmor %vm2596, %vm2860
    %vm2989 = vmor %vm2597, %vm2861
    %vm2990 = vmor %vm2598, %vm2862
    %vm2991 = vmor %vm2599, %vm2863
    %vm2992 = vmor %vm2600, %vm2864
    %vm2993 = vmor %vm2601, %vm2865
    %vm2994 = vmor %vm2602, %vm2866
    %vm2995 = vmor %vm2603, %vm2867
    %vm2996 = vmor %vm2604, %vm2868
    %vm2997 = vmor %vm2605, %vm2869
    %vm2998 = vmor %vm2606, %vm2870
    %vm2999 = vmor %vm2607, %vm2871
    %vm3000 = vmor %vm2608, %vm2872
    %vm3001 = vmor %vm2609, %vm2873
    %vm3002 = vmor %vm2610, %vm2874
    %vm3003 = vmor %vm2611, %vm2875
    %vm3004 = vmor %vm2612, %vm2876
    %vm3005 = vmor %vm2613, %vm2877
    %vm3006 = vmor %vm2614, %vm2878
    %v3007 = vsel %vm2879, 1.0, 0.0
    %v3008 = vsel %vm2880, 1.0, 0.0
    %v3009 = vsel %vm2881, 1.0, 0.0
    %v3010 = vsel %vm2882, 1.0, 0.0
    %v3011 = vsel %vm2883, 1.0, 0.0
    %v3012 = vsel %vm2884, 1.0, 0.0
    %v3013 = vsel %vm2885, 1.0, 0.0
    %v3014 = vsel %vm2886, 1.0, 0.0
    %v3015 = vsel %vm2887, 1.0, 0.0
    %v3016 = vsel %vm2888, 1.0, 0.0
    %v3017 = vsel %vm2889, 1.0, 0.0
    %v3018 = vsel %vm2890, 1.0, 0.0
    %v3019 = vsel %vm2891, 1.0, 0.0
    %v3020 = vsel %vm2892, 1.0, 0.0
    %v3021 = vsel %vm2893, 1.0, 0.0
    %v3022 = vsel %vm2894, 1.0, 0.0
    %v3023 = vsel %vm2895, 1.0, 0.0
    %v3024 = vsel %vm2896, 1.0, 0.0
    %v3025 = vsel %vm2897, 1.0, 0.0
    %v3026 = vsel %vm2898, 1.0, 0.0
    %v3027 = vsel %vm2899, 1.0, 0.0
    %v3028 = vsel %vm2900, 1.0, 0.0
    %v3029 = vsel %vm2901, 1.0, 0.0
    %v3030 = vsel %vm2902, 1.0, 0.0
    %v3031 = vsel %vm2903, 1.0, 0.0
    %v3032 = vsel %vm2904, 1.0, 0.0
    %v3033 = vsel %vm2905, 1.0, 0.0
    %v3034 = vsel %vm2906, 1.0, 0.0
    %v3035 = vsel %vm2907, 1.0, 0.0
    %v3036 = vsel %vm2908, 1.0, 0.0
    %v3037 = vsel %vm2909, 1.0, 0.0
    %v3038 = vsel %vm2910, 1.0, 0.0
    %v3039 = vsel %vm2911, 1.0, 0.0
    %v3040 = vsel %vm2912, 1.0, 0.0
    %v3041 = vsel %vm2913, 1.0, 0.0
    %v3042 = vsel %vm2914, 1.0, 0.0
    %v3043 = vsel %vm2915, 1.0, 0.0
    %v3044 = vsel %vm2916, 1.0, 0.0
    %v3045 = vsel %vm2917, 1.0, 0.0
    %v3046 = vsel %vm2918, 1.0, 0.0
    %v3047 = vsel %vm2919, 1.0, 0.0
    %v3048 = vsel %vm2920, 1.0, 0.0
    %v3049 = vsel %vm2921, 1.0, 0.0
    %v3050 = vsel %vm2922, 1.0, 0.0
    %v3051 = vsel %vm2923, 1.0, 0.0
    %v3052 = vsel %vm2924, 1.0, 0.0
    %v3053 = vsel %vm2925, 1.0, 0.0
    %v3054 = vsel %vm2926, 1.0, 0.0
    %v3055 = vsel %vm2927, 1.0, 0.0
    %v3056 = vsel %vm2928, 1.0, 0.0
    %v3057 = vsel %vm2929, 1.0, 0.0
    %v3058 = vsel %vm2930, 1.0, 0.0
    %v3059 = vsel %vm2931, 1.0, 0.0
    %v3060 = vsel %vm2932, 1.0, 0.0
    %v3061 = vsel %vm2933, 1.0, 0.0
    %v3062 = vsel %vm2934, 1.0, 0.0
    %v3063 = vsel %vm2935, 1.0, 0.0
    %v3064 = vsel %vm2936, 1.0, 0.0
    %v3065 = vsel %vm2937, 1.0, 0.0
    %v3066 = vsel %vm2938, 1.0, 0.0
    %v3067 = vsel %vm2939, 1.0, 0.0
    %v3068 = vsel %vm2940, 1.0, 0.0
    %v3069 = vsel %vm2941, 1.0, 0.0
    %v3070 = vsel %vm2942, 1.0, 0.0
    %v3071 = vsel %vm2943, 1.0, 0.0
    %v3072 = vsel %vm2944, 1.0, 0.0
    %v3073 = vsel %vm2945, 1.0, 0.0
    %v3074 = vsel %vm2946, 1.0, 0.0
    %v3075 = vsel %vm2947, 1.0, 0.0
    %v3076 = vsel %vm2948, 1.0, 0.0
    %v3077 = vsel %vm2949, 1.0, 0.0
    %v3078 = vsel %vm2950, 1.0, 0.0
    %v3079 = vsel %vm2951, 1.0, 0.0
    %v3080 = vsel %vm2952, 1.0, 0.0
    %v3081 = vsel %vm2953, 1.0, 0.0
    %v3082 = vsel %vm2954, 1.0, 0.0
    %v3083 = vsel %vm2955, 1.0, 0.0
    %v3084 = vsel %vm2956, 1.0, 0.0
    %v3085 = vsel %vm2957, 1.0, 0.0
    %v3086 = vsel %vm2958, 1.0, 0.0
    %v3087 = vsel %vm2959, 1.0, 0.0
    %v3088 = vsel %vm2960, 1.0, 0.0
    %v3089 = vsel %vm2961, 1.0, 0.0
    %v3090 = vsel %vm2962, 1.0, 0.0
    %v3091 = vsel %vm2963, 1.0, 0.0
    %v3092 = vsel %vm2964, 1.0, 0.0
    %v3093 = vsel %vm2965, 1.0, 0.0
    %v3094 = vsel %vm2966, 1.0, 0.0
    %v3095 = vsel %vm2967, 1.0, 0.0
    %v3096 = vsel %vm2968, 1.0, 0.0
    %v3097 = vsel %vm2969, 1.0, 0.0
    %v3098 = vsel %vm2970, 1.0, 0.0
    %v3099 = vsel %vm2971, 1.0, 0.0
    %v3100 = vsel %vm2972, 1.0, 0.0
    %v3101 = vsel %vm2973, 1.0, 0.0
    %v3102 = vsel %vm2974, 1.0, 0.0
    %v3103 = vsel %vm2975, 1.0, 0.0
    %v3104 = vsel %vm2976, 1.0, 0.0
    %v3105 = vsel %vm2977, 1.0, 0.0
    %v3106 = vsel %vm2978, 1.0, 0.0
    %v3107 = vsel %vm2979, 1.0, 0.0
    %v3108 = vsel %vm2980, 1.0, 0.0
    %v3109 = vsel %vm2981, 1.0, 0.0
    %v3110 = vsel %vm2982, 1.0, 0.0
    %v3111 = vsel %vm2983, 1.0, 0.0
    %v3112 = vsel %vm2984, 1.0, 0.0
    %v3113 = vsel %vm2985, 1.0, 0.0
    %v3114 = vsel %vm2986, 1.0, 0.0
    %v3115 = vsel %vm2987, 1.0, 0.0
    %v3116 = vsel %vm2988, 1.0, 0.0
    %v3117 = vsel %vm2989, 1.0, 0.0
    %v3118 = vsel %vm2990, 1.0, 0.0
    %v3119 = vsel %vm2991, 1.0, 0.0
    %v3120 = vsel %vm2992, 1.0, 0.0
    %v3121 = vsel %vm2993, 1.0, 0.0
    %v3122 = vsel %vm2994, 1.0, 0.0
    %v3123 = vsel %vm2995, 1.0, 0.0
    %v3124 = vsel %vm2996, 1.0, 0.0
    %v3125 = vsel %vm2997, 1.0, 0.0
    %v3126 = vsel %vm2998, 1.0, 0.0
    %v3127 = vsel %vm2999, 1.0, 0.0
    %v3128 = vsel %vm3000, 1.0, 0.0
    %v3129 = vsel %vm3001, 1.0, 0.0
    %v3130 = vsel %vm3002, 1.0, 0.0
    %v3131 = vsel %vm3003, 1.0, 0.0
    %v3132 = vsel %vm3004, 1.0, 0.0
    %v3133 = vsel %vm3005, 1.0, 0.0
    %v3134 = vsel %vm3006, 1.0, 0.0
    %v3135 = vsel %vm175, %v3007, 0.0
    %3136 = vadd.xlane.f32.xlu0 %v3135
    %v3137 = vpop.xlane.xlu0 %3136
    %v3138 = vsel %vm175, %v3008, 0.0
    %3139 = vadd.xlane.f32.xlu0 %v3138
    %v3140 = vpop.xlane.xlu0 %3139
    %v3141 = vsel %vm175, %v3009, 0.0
    %3142 = vadd.xlane.f32.xlu0 %v3141
    %v3143 = vpop.xlane.xlu0 %3142
    %v3144 = vsel %vm175, %v3010, 0.0
    %3145 = vadd.xlane.f32.xlu0 %v3144
    %v3146 = vpop.xlane.xlu0 %3145
    %v3147 = vsel %vm175, %v3011, 0.0
    %3148 = vadd.xlane.f32.xlu0 %v3147
    %v3149 = vpop.xlane.xlu0 %3148
    %v3150 = vsel %vm175, %v3012, 0.0
    %3151 = vadd.xlane.f32.xlu0 %v3150
    %v3152 = vpop.xlane.xlu0 %3151
    %v3153 = vsel %vm175, %v3013, 0.0
    %3154 = vadd.xlane.f32.xlu0 %v3153
    %v3155 = vpop.xlane.xlu0 %3154
    %v3156 = vsel %vm175, %v3014, 0.0
    %3157 = vadd.xlane.f32.xlu0 %v3156
    %v3158 = vpop.xlane.xlu0 %3157
    %v3159 = vsel %vm175, %v3015, 0.0
    %3160 = vadd.xlane.f32.xlu0 %v3159
    %v3161 = vpop.xlane.xlu0 %3160
    %v3162 = vsel %vm175, %v3016, 0.0
    %3163 = vadd.xlane.f32.xlu0 %v3162
    %v3164 = vpop.xlane.xlu0 %3163
    %v3165 = vsel %vm175, %v3017, 0.0
    %3166 = vadd.xlane.f32.xlu0 %v3165
    %v3167 = vpop.xlane.xlu0 %3166
    %v3168 = vsel %vm175, %v3018, 0.0
    %3169 = vadd.xlane.f32.xlu0 %v3168
    %v3170 = vpop.xlane.xlu0 %3169
    %v3171 = vsel %vm175, %v3019, 0.0
    %3172 = vadd.xlane.f32.xlu0 %v3171
    %v3173 = vpop.xlane.xlu0 %3172
    %v3174 = vsel %vm175, %v3020, 0.0
    %3175 = vadd.xlane.f32.xlu0 %v3174
    %v3176 = vpop.xlane.xlu0 %3175
    %v3177 = vsel %vm175, %v3021, 0.0
    %3178 = vadd.xlane.f32.xlu0 %v3177
    %v3179 = vpop.xlane.xlu0 %3178
    %v3180 = vsel %vm175, %v3022, 0.0
    %3181 = vadd.xlane.f32.xlu0 %v3180
    %v3182 = vpop.xlane.xlu0 %3181
    %v3183 = vsel %vm175, %v3023, 0.0
    %3184 = vadd.xlane.f32.xlu0 %v3183
    %v3185 = vpop.xlane.xlu0 %3184
    %v3186 = vsel %vm175, %v3024, 0.0
    %3187 = vadd.xlane.f32.xlu0 %v3186
    %v3188 = vpop.xlane.xlu0 %3187
    %v3189 = vsel %vm175, %v3025, 0.0
    %3190 = vadd.xlane.f32.xlu0 %v3189
    %v3191 = vpop.xlane.xlu0 %3190
    %v3192 = vsel %vm175, %v3026, 0.0
    %3193 = vadd.xlane.f32.xlu0 %v3192
    %v3194 = vpop.xlane.xlu0 %3193
    %v3195 = vsel %vm175, %v3027, 0.0
    %3196 = vadd.xlane.f32.xlu0 %v3195
    %v3197 = vpop.xlane.xlu0 %3196
    %v3198 = vsel %vm175, %v3028, 0.0
    %3199 = vadd.xlane.f32.xlu0 %v3198
    %v3200 = vpop.xlane.xlu0 %3199
    %v3201 = vsel %vm175, %v3029, 0.0
    %3202 = vadd.xlane.f32.xlu0 %v3201
    %v3203 = vpop.xlane.xlu0 %3202
    %v3204 = vsel %vm175, %v3030, 0.0
    %3205 = vadd.xlane.f32.xlu0 %v3204
    %v3206 = vpop.xlane.xlu0 %3205
    %v3207 = vsel %vm175, %v3031, 0.0
    %3208 = vadd.xlane.f32.xlu0 %v3207
    %v3209 = vpop.xlane.xlu0 %3208
    %v3210 = vsel %vm175, %v3032, 0.0
    %3211 = vadd.xlane.f32.xlu0 %v3210
    %v3212 = vpop.xlane.xlu0 %3211
    %v3213 = vsel %vm175, %v3033, 0.0
    %3214 = vadd.xlane.f32.xlu0 %v3213
    %v3215 = vpop.xlane.xlu0 %3214
    %v3216 = vsel %vm175, %v3034, 0.0
    %3217 = vadd.xlane.f32.xlu0 %v3216
    %v3218 = vpop.xlane.xlu0 %3217
    %v3219 = vsel %vm175, %v3035, 0.0
    %3220 = vadd.xlane.f32.xlu0 %v3219
    %v3221 = vpop.xlane.xlu0 %3220
    %v3222 = vsel %vm175, %v3036, 0.0
    %3223 = vadd.xlane.f32.xlu0 %v3222
    %v3224 = vpop.xlane.xlu0 %3223
    %v3225 = vsel %vm175, %v3037, 0.0
    %3226 = vadd.xlane.f32.xlu0 %v3225
    %v3227 = vpop.xlane.xlu0 %3226
    %v3228 = vsel %vm175, %v3038, 0.0
    %3229 = vadd.xlane.f32.xlu0 %v3228
    %v3230 = vpop.xlane.xlu0 %3229
    %v3231 = vsel %vm175, %v3039, 0.0
    %3232 = vadd.xlane.f32.xlu0 %v3231
    %v3233 = vpop.xlane.xlu0 %3232
    %v3234 = vsel %vm175, %v3040, 0.0
    %3235 = vadd.xlane.f32.xlu0 %v3234
    %v3236 = vpop.xlane.xlu0 %3235
    %v3237 = vsel %vm175, %v3041, 0.0
    %3238 = vadd.xlane.f32.xlu0 %v3237
    %v3239 = vpop.xlane.xlu0 %3238
    %v3240 = vsel %vm175, %v3042, 0.0
    %3241 = vadd.xlane.f32.xlu0 %v3240
    %v3242 = vpop.xlane.xlu0 %3241
    %v3243 = vsel %vm175, %v3043, 0.0
    %3244 = vadd.xlane.f32.xlu0 %v3243
    %v3245 = vpop.xlane.xlu0 %3244
    %v3246 = vsel %vm175, %v3044, 0.0
    %3247 = vadd.xlane.f32.xlu0 %v3246
    %v3248 = vpop.xlane.xlu0 %3247
    %v3249 = vsel %vm175, %v3045, 0.0
    %3250 = vadd.xlane.f32.xlu0 %v3249
    %v3251 = vpop.xlane.xlu0 %3250
    %v3252 = vsel %vm175, %v3046, 0.0
    %3253 = vadd.xlane.f32.xlu0 %v3252
    %v3254 = vpop.xlane.xlu0 %3253
    %v3255 = vsel %vm175, %v3047, 0.0
    %3256 = vadd.xlane.f32.xlu0 %v3255
    %v3257 = vpop.xlane.xlu0 %3256
    %v3258 = vsel %vm175, %v3048, 0.0
    %3259 = vadd.xlane.f32.xlu0 %v3258
    %v3260 = vpop.xlane.xlu0 %3259
    %v3261 = vsel %vm175, %v3049, 0.0
    %3262 = vadd.xlane.f32.xlu0 %v3261
    %v3263 = vpop.xlane.xlu0 %3262
    %v3264 = vsel %vm175, %v3050, 0.0
    %3265 = vadd.xlane.f32.xlu0 %v3264
    %v3266 = vpop.xlane.xlu0 %3265
    %v3267 = vsel %vm175, %v3051, 0.0
    %3268 = vadd.xlane.f32.xlu0 %v3267
    %v3269 = vpop.xlane.xlu0 %3268
    %v3270 = vsel %vm175, %v3052, 0.0
    %3271 = vadd.xlane.f32.xlu0 %v3270
    %v3272 = vpop.xlane.xlu0 %3271
    %v3273 = vsel %vm175, %v3053, 0.0
    %3274 = vadd.xlane.f32.xlu0 %v3273
    %v3275 = vpop.xlane.xlu0 %3274
    %v3276 = vsel %vm175, %v3054, 0.0
    %3277 = vadd.xlane.f32.xlu0 %v3276
    %v3278 = vpop.xlane.xlu0 %3277
    %v3279 = vsel %vm175, %v3055, 0.0
    %3280 = vadd.xlane.f32.xlu0 %v3279
    %v3281 = vpop.xlane.xlu0 %3280
    %v3282 = vsel %vm175, %v3056, 0.0
    %3283 = vadd.xlane.f32.xlu0 %v3282
    %v3284 = vpop.xlane.xlu0 %3283
    %v3285 = vsel %vm175, %v3057, 0.0
    %3286 = vadd.xlane.f32.xlu0 %v3285
    %v3287 = vpop.xlane.xlu0 %3286
    %v3288 = vsel %vm175, %v3058, 0.0
    %3289 = vadd.xlane.f32.xlu0 %v3288
    %v3290 = vpop.xlane.xlu0 %3289
    %v3291 = vsel %vm175, %v3059, 0.0
    %3292 = vadd.xlane.f32.xlu0 %v3291
    %v3293 = vpop.xlane.xlu0 %3292
    %v3294 = vsel %vm175, %v3060, 0.0
    %3295 = vadd.xlane.f32.xlu0 %v3294
    %v3296 = vpop.xlane.xlu0 %3295
    %v3297 = vsel %vm175, %v3061, 0.0
    %3298 = vadd.xlane.f32.xlu0 %v3297
    %v3299 = vpop.xlane.xlu0 %3298
    %v3300 = vsel %vm175, %v3062, 0.0
    %3301 = vadd.xlane.f32.xlu0 %v3300
    %v3302 = vpop.xlane.xlu0 %3301
    %v3303 = vsel %vm175, %v3063, 0.0
    %3304 = vadd.xlane.f32.xlu0 %v3303
    %v3305 = vpop.xlane.xlu0 %3304
    %v3306 = vsel %vm175, %v3064, 0.0
    %3307 = vadd.xlane.f32.xlu0 %v3306
    %v3308 = vpop.xlane.xlu0 %3307
    %v3309 = vsel %vm175, %v3065, 0.0
    %3310 = vadd.xlane.f32.xlu0 %v3309
    %v3311 = vpop.xlane.xlu0 %3310
    %v3312 = vsel %vm175, %v3066, 0.0
    %3313 = vadd.xlane.f32.xlu0 %v3312
    %v3314 = vpop.xlane.xlu0 %3313
    %v3315 = vsel %vm175, %v3067, 0.0
    %3316 = vadd.xlane.f32.xlu0 %v3315
    %v3317 = vpop.xlane.xlu0 %3316
    %v3318 = vsel %vm175, %v3068, 0.0
    %3319 = vadd.xlane.f32.xlu0 %v3318
    %v3320 = vpop.xlane.xlu0 %3319
    %v3321 = vsel %vm175, %v3069, 0.0
    %3322 = vadd.xlane.f32.xlu0 %v3321
    %v3323 = vpop.xlane.xlu0 %3322
    %v3324 = vsel %vm175, %v3070, 0.0
    %3325 = vadd.xlane.f32.xlu0 %v3324
    %v3326 = vpop.xlane.xlu0 %3325
    %v3327 = vsel %vm175, %v3071, 0.0
    %3328 = vadd.xlane.f32.xlu0 %v3327
    %v3329 = vpop.xlane.xlu0 %3328
    %v3330 = vsel %vm175, %v3072, 0.0
    %3331 = vadd.xlane.f32.xlu0 %v3330
    %v3332 = vpop.xlane.xlu0 %3331
    %v3333 = vsel %vm175, %v3073, 0.0
    %3334 = vadd.xlane.f32.xlu0 %v3333
    %v3335 = vpop.xlane.xlu0 %3334
    %v3336 = vsel %vm175, %v3074, 0.0
    %3337 = vadd.xlane.f32.xlu0 %v3336
    %v3338 = vpop.xlane.xlu0 %3337
    %v3339 = vsel %vm175, %v3075, 0.0
    %3340 = vadd.xlane.f32.xlu0 %v3339
    %v3341 = vpop.xlane.xlu0 %3340
    %v3342 = vsel %vm175, %v3076, 0.0
    %3343 = vadd.xlane.f32.xlu0 %v3342
    %v3344 = vpop.xlane.xlu0 %3343
    %v3345 = vsel %vm175, %v3077, 0.0
    %3346 = vadd.xlane.f32.xlu0 %v3345
    %v3347 = vpop.xlane.xlu0 %3346
    %v3348 = vsel %vm175, %v3078, 0.0
    %3349 = vadd.xlane.f32.xlu0 %v3348
    %v3350 = vpop.xlane.xlu0 %3349
    %v3351 = vsel %vm175, %v3079, 0.0
    %3352 = vadd.xlane.f32.xlu0 %v3351
    %v3353 = vpop.xlane.xlu0 %3352
    %v3354 = vsel %vm175, %v3080, 0.0
    %3355 = vadd.xlane.f32.xlu0 %v3354
    %v3356 = vpop.xlane.xlu0 %3355
    %v3357 = vsel %vm175, %v3081, 0.0
    %3358 = vadd.xlane.f32.xlu0 %v3357
    %v3359 = vpop.xlane.xlu0 %3358
    %v3360 = vsel %vm175, %v3082, 0.0
    %3361 = vadd.xlane.f32.xlu0 %v3360
    %v3362 = vpop.xlane.xlu0 %3361
    %v3363 = vsel %vm175, %v3083, 0.0
    %3364 = vadd.xlane.f32.xlu0 %v3363
    %v3365 = vpop.xlane.xlu0 %3364
    %v3366 = vsel %vm175, %v3084, 0.0
    %3367 = vadd.xlane.f32.xlu0 %v3366
    %v3368 = vpop.xlane.xlu0 %3367
    %v3369 = vsel %vm175, %v3085, 0.0
    %3370 = vadd.xlane.f32.xlu0 %v3369
    %v3371 = vpop.xlane.xlu0 %3370
    %v3372 = vsel %vm175, %v3086, 0.0
    %3373 = vadd.xlane.f32.xlu0 %v3372
    %v3374 = vpop.xlane.xlu0 %3373
    %v3375 = vsel %vm175, %v3087, 0.0
    %3376 = vadd.xlane.f32.xlu0 %v3375
    %v3377 = vpop.xlane.xlu0 %3376
    %v3378 = vsel %vm175, %v3088, 0.0
    %3379 = vadd.xlane.f32.xlu0 %v3378
    %v3380 = vpop.xlane.xlu0 %3379
    %v3381 = vsel %vm175, %v3089, 0.0
    %3382 = vadd.xlane.f32.xlu0 %v3381
    %v3383 = vpop.xlane.xlu0 %3382
    %v3384 = vsel %vm175, %v3090, 0.0
    %3385 = vadd.xlane.f32.xlu0 %v3384
    %v3386 = vpop.xlane.xlu0 %3385
    %v3387 = vsel %vm175, %v3091, 0.0
    %3388 = vadd.xlane.f32.xlu0 %v3387
    %v3389 = vpop.xlane.xlu0 %3388
    %v3390 = vsel %vm175, %v3092, 0.0
    %3391 = vadd.xlane.f32.xlu0 %v3390
    %v3392 = vpop.xlane.xlu0 %3391
    %v3393 = vsel %vm175, %v3093, 0.0
    %3394 = vadd.xlane.f32.xlu0 %v3393
    %v3395 = vpop.xlane.xlu0 %3394
    %v3396 = vsel %vm175, %v3094, 0.0
    %3397 = vadd.xlane.f32.xlu0 %v3396
    %v3398 = vpop.xlane.xlu0 %3397
    %v3399 = vsel %vm175, %v3095, 0.0
    %3400 = vadd.xlane.f32.xlu0 %v3399
    %v3401 = vpop.xlane.xlu0 %3400
    %v3402 = vsel %vm175, %v3096, 0.0
    %3403 = vadd.xlane.f32.xlu0 %v3402
    %v3404 = vpop.xlane.xlu0 %3403
    %v3405 = vsel %vm175, %v3097, 0.0
    %3406 = vadd.xlane.f32.xlu0 %v3405
    %v3407 = vpop.xlane.xlu0 %3406
    %v3408 = vsel %vm175, %v3098, 0.0
    %3409 = vadd.xlane.f32.xlu0 %v3408
    %v3410 = vpop.xlane.xlu0 %3409
    %v3411 = vsel %vm175, %v3099, 0.0
    %3412 = vadd.xlane.f32.xlu0 %v3411
    %v3413 = vpop.xlane.xlu0 %3412
    %v3414 = vsel %vm175, %v3100, 0.0
    %3415 = vadd.xlane.f32.xlu0 %v3414
    %v3416 = vpop.xlane.xlu0 %3415
    %v3417 = vsel %vm175, %v3101, 0.0
    %3418 = vadd.xlane.f32.xlu0 %v3417
    %v3419 = vpop.xlane.xlu0 %3418
    %v3420 = vsel %vm175, %v3102, 0.0
    %3421 = vadd.xlane.f32.xlu0 %v3420
    %v3422 = vpop.xlane.xlu0 %3421
    %v3423 = vsel %vm175, %v3103, 0.0
    %3424 = vadd.xlane.f32.xlu0 %v3423
    %v3425 = vpop.xlane.xlu0 %3424
    %v3426 = vsel %vm175, %v3104, 0.0
    %3427 = vadd.xlane.f32.xlu0 %v3426
    %v3428 = vpop.xlane.xlu0 %3427
    %v3429 = vsel %vm175, %v3105, 0.0
    %3430 = vadd.xlane.f32.xlu0 %v3429
    %v3431 = vpop.xlane.xlu0 %3430
    %v3432 = vsel %vm175, %v3106, 0.0
    %3433 = vadd.xlane.f32.xlu0 %v3432
    %v3434 = vpop.xlane.xlu0 %3433
    %v3435 = vsel %vm175, %v3107, 0.0
    %3436 = vadd.xlane.f32.xlu0 %v3435
    %v3437 = vpop.xlane.xlu0 %3436
    %v3438 = vsel %vm175, %v3108, 0.0
    %3439 = vadd.xlane.f32.xlu0 %v3438
    %v3440 = vpop.xlane.xlu0 %3439
    %v3441 = vsel %vm175, %v3109, 0.0
    %3442 = vadd.xlane.f32.xlu0 %v3441
    %v3443 = vpop.xlane.xlu0 %3442
    %v3444 = vsel %vm175, %v3110, 0.0
    %3445 = vadd.xlane.f32.xlu0 %v3444
    %v3446 = vpop.xlane.xlu0 %3445
    %v3447 = vsel %vm175, %v3111, 0.0
    %3448 = vadd.xlane.f32.xlu0 %v3447
    %v3449 = vpop.xlane.xlu0 %3448
    %v3450 = vsel %vm175, %v3112, 0.0
    %3451 = vadd.xlane.f32.xlu0 %v3450
    %v3452 = vpop.xlane.xlu0 %3451
    %v3453 = vsel %vm175, %v3113, 0.0
    %3454 = vadd.xlane.f32.xlu0 %v3453
    %v3455 = vpop.xlane.xlu0 %3454
    %v3456 = vsel %vm175, %v3114, 0.0
    %3457 = vadd.xlane.f32.xlu0 %v3456
    %v3458 = vpop.xlane.xlu0 %3457
    %v3459 = vsel %vm175, %v3115, 0.0
    %3460 = vadd.xlane.f32.xlu0 %v3459
    %v3461 = vpop.xlane.xlu0 %3460
    %v3462 = vsel %vm175, %v3116, 0.0
    %3463 = vadd.xlane.f32.xlu0 %v3462
    %v3464 = vpop.xlane.xlu0 %3463
    %v3465 = vsel %vm175, %v3117, 0.0
    %3466 = vadd.xlane.f32.xlu0 %v3465
    %v3467 = vpop.xlane.xlu0 %3466
    %v3468 = vsel %vm175, %v3118, 0.0
    %3469 = vadd.xlane.f32.xlu0 %v3468
    %v3470 = vpop.xlane.xlu0 %3469
    %v3471 = vsel %vm175, %v3119, 0.0
    %3472 = vadd.xlane.f32.xlu0 %v3471
    %v3473 = vpop.xlane.xlu0 %3472
    %v3474 = vsel %vm175, %v3120, 0.0
    %3475 = vadd.xlane.f32.xlu0 %v3474
    %v3476 = vpop.xlane.xlu0 %3475
    %v3477 = vsel %vm175, %v3121, 0.0
    %3478 = vadd.xlane.f32.xlu0 %v3477
    %v3479 = vpop.xlane.xlu0 %3478
    %v3480 = vsel %vm175, %v3122, 0.0
    %3481 = vadd.xlane.f32.xlu0 %v3480
    %v3482 = vpop.xlane.xlu0 %3481
    %v3483 = vsel %vm175, %v3123, 0.0
    %3484 = vadd.xlane.f32.xlu0 %v3483
    %v3485 = vpop.xlane.xlu0 %3484
    %v3486 = vsel %vm175, %v3124, 0.0
    %3487 = vadd.xlane.f32.xlu0 %v3486
    %v3488 = vpop.xlane.xlu0 %3487
    %v3489 = vsel %vm175, %v3125, 0.0
    %3490 = vadd.xlane.f32.xlu0 %v3489
    %v3491 = vpop.xlane.xlu0 %3490
    %v3492 = vsel %vm175, %v3126, 0.0
    %3493 = vadd.xlane.f32.xlu0 %v3492
    %v3494 = vpop.xlane.xlu0 %3493
    %v3495 = vsel %vm175, %v3127, 0.0
    %3496 = vadd.xlane.f32.xlu0 %v3495
    %v3497 = vpop.xlane.xlu0 %3496
    %v3498 = vsel %vm175, %v3128, 0.0
    %3499 = vadd.xlane.f32.xlu0 %v3498
    %v3500 = vpop.xlane.xlu0 %3499
    %v3501 = vsel %vm175, %v3129, 0.0
    %3502 = vadd.xlane.f32.xlu0 %v3501
    %v3503 = vpop.xlane.xlu0 %3502
    %v3504 = vsel %vm175, %v3130, 0.0
    %3505 = vadd.xlane.f32.xlu0 %v3504
    %v3506 = vpop.xlane.xlu0 %3505
    %v3507 = vsel %vm175, %v3131, 0.0
    %3508 = vadd.xlane.f32.xlu0 %v3507
    %v3509 = vpop.xlane.xlu0 %3508
    %v3510 = vsel %vm175, %v3132, 0.0
    %3511 = vadd.xlane.f32.xlu0 %v3510
    %v3512 = vpop.xlane.xlu0 %3511
    %v3513 = vsel %vm175, %v3133, 0.0
    %3514 = vadd.xlane.f32.xlu0 %v3513
    %v3515 = vpop.xlane.xlu0 %3514
    %v3516 = vsel %vm175, %v3134, 0.0
    %3517 = vadd.xlane.f32.xlu0 %v3516
    %v3518 = vpop.xlane.xlu0 %3517
    %vm3519 = vcmp.lt.f32.partialorder %v3137, 25.0
    %vm3520 = vcmp.lt.f32.partialorder %v3140, 25.0
    %vm3521 = vcmp.lt.f32.partialorder %v3143, 25.0
    %vm3522 = vcmp.lt.f32.partialorder %v3146, 25.0
    %vm3523 = vcmp.lt.f32.partialorder %v3149, 25.0
    %vm3524 = vcmp.lt.f32.partialorder %v3152, 25.0
    %vm3525 = vcmp.lt.f32.partialorder %v3155, 25.0
    %vm3526 = vcmp.lt.f32.partialorder %v3158, 25.0
    %vm3527 = vcmp.lt.f32.partialorder %v3161, 25.0
    %vm3528 = vcmp.lt.f32.partialorder %v3164, 25.0
    %vm3529 = vcmp.lt.f32.partialorder %v3167, 25.0
    %vm3530 = vcmp.lt.f32.partialorder %v3170, 25.0
    %vm3531 = vcmp.lt.f32.partialorder %v3173, 25.0
    %vm3532 = vcmp.lt.f32.partialorder %v3176, 25.0
    %vm3533 = vcmp.lt.f32.partialorder %v3179, 25.0
    %vm3534 = vcmp.lt.f32.partialorder %v3182, 25.0
    %vm3535 = vcmp.lt.f32.partialorder %v3185, 25.0
    %vm3536 = vcmp.lt.f32.partialorder %v3188, 25.0
    %vm3537 = vcmp.lt.f32.partialorder %v3191, 25.0
    %vm3538 = vcmp.lt.f32.partialorder %v3194, 25.0
    %vm3539 = vcmp.lt.f32.partialorder %v3197, 25.0
    %vm3540 = vcmp.lt.f32.partialorder %v3200, 25.0
    %vm3541 = vcmp.lt.f32.partialorder %v3203, 25.0
    %vm3542 = vcmp.lt.f32.partialorder %v3206, 25.0
    %vm3543 = vcmp.lt.f32.partialorder %v3209, 25.0
    %vm3544 = vcmp.lt.f32.partialorder %v3212, 25.0
    %vm3545 = vcmp.lt.f32.partialorder %v3215, 25.0
    %vm3546 = vcmp.lt.f32.partialorder %v3218, 25.0
    %vm3547 = vcmp.lt.f32.partialorder %v3221, 25.0
    %vm3548 = vcmp.lt.f32.partialorder %v3224, 25.0
    %vm3549 = vcmp.lt.f32.partialorder %v3227, 25.0
    %vm3550 = vcmp.lt.f32.partialorder %v3230, 25.0
    %vm3551 = vcmp.lt.f32.partialorder %v3233, 25.0
    %vm3552 = vcmp.lt.f32.partialorder %v3236, 25.0
    %vm3553 = vcmp.lt.f32.partialorder %v3239, 25.0
    %vm3554 = vcmp.lt.f32.partialorder %v3242, 25.0
    %vm3555 = vcmp.lt.f32.partialorder %v3245, 25.0
    %vm3556 = vcmp.lt.f32.partialorder %v3248, 25.0
    %vm3557 = vcmp.lt.f32.partialorder %v3251, 25.0
    %vm3558 = vcmp.lt.f32.partialorder %v3254, 25.0
    %vm3559 = vcmp.lt.f32.partialorder %v3257, 25.0
    %vm3560 = vcmp.lt.f32.partialorder %v3260, 25.0
    %vm3561 = vcmp.lt.f32.partialorder %v3263, 25.0
    %vm3562 = vcmp.lt.f32.partialorder %v3266, 25.0
    %vm3563 = vcmp.lt.f32.partialorder %v3269, 25.0
    %vm3564 = vcmp.lt.f32.partialorder %v3272, 25.0
    %vm3565 = vcmp.lt.f32.partialorder %v3275, 25.0
    %vm3566 = vcmp.lt.f32.partialorder %v3278, 25.0
    %vm3567 = vcmp.lt.f32.partialorder %v3281, 25.0
    %vm3568 = vcmp.lt.f32.partialorder %v3284, 25.0
    %vm3569 = vcmp.lt.f32.partialorder %v3287, 25.0
    %vm3570 = vcmp.lt.f32.partialorder %v3290, 25.0
    %vm3571 = vcmp.lt.f32.partialorder %v3293, 25.0
    %vm3572 = vcmp.lt.f32.partialorder %v3296, 25.0
    %vm3573 = vcmp.lt.f32.partialorder %v3299, 25.0
    %vm3574 = vcmp.lt.f32.partialorder %v3302, 25.0
    %vm3575 = vcmp.lt.f32.partialorder %v3305, 25.0
    %vm3576 = vcmp.lt.f32.partialorder %v3308, 25.0
    %vm3577 = vcmp.lt.f32.partialorder %v3311, 25.0
    %vm3578 = vcmp.lt.f32.partialorder %v3314, 25.0
    %vm3579 = vcmp.lt.f32.partialorder %v3317, 25.0
    %vm3580 = vcmp.lt.f32.partialorder %v3320, 25.0
    %vm3581 = vcmp.lt.f32.partialorder %v3323, 25.0
    %vm3582 = vcmp.lt.f32.partialorder %v3326, 25.0
    %vm3583 = vcmp.lt.f32.partialorder %v3329, 25.0
    %vm3584 = vcmp.lt.f32.partialorder %v3332, 25.0
    %vm3585 = vcmp.lt.f32.partialorder %v3335, 25.0
    %vm3586 = vcmp.lt.f32.partialorder %v3338, 25.0
    %vm3587 = vcmp.lt.f32.partialorder %v3341, 25.0
    %vm3588 = vcmp.lt.f32.partialorder %v3344, 25.0
    %vm3589 = vcmp.lt.f32.partialorder %v3347, 25.0
    %vm3590 = vcmp.lt.f32.partialorder %v3350, 25.0
    %vm3591 = vcmp.lt.f32.partialorder %v3353, 25.0
    %vm3592 = vcmp.lt.f32.partialorder %v3356, 25.0
    %vm3593 = vcmp.lt.f32.partialorder %v3359, 25.0
    %vm3594 = vcmp.lt.f32.partialorder %v3362, 25.0
    %vm3595 = vcmp.lt.f32.partialorder %v3365, 25.0
    %vm3596 = vcmp.lt.f32.partialorder %v3368, 25.0
    %vm3597 = vcmp.lt.f32.partialorder %v3371, 25.0
    %vm3598 = vcmp.lt.f32.partialorder %v3374, 25.0
    %vm3599 = vcmp.lt.f32.partialorder %v3377, 25.0
    %vm3600 = vcmp.lt.f32.partialorder %v3380, 25.0
    %vm3601 = vcmp.lt.f32.partialorder %v3383, 25.0
    %vm3602 = vcmp.lt.f32.partialorder %v3386, 25.0
    %vm3603 = vcmp.lt.f32.partialorder %v3389, 25.0
    %vm3604 = vcmp.lt.f32.partialorder %v3392, 25.0
    %vm3605 = vcmp.lt.f32.partialorder %v3395, 25.0
    %vm3606 = vcmp.lt.f32.partialorder %v3398, 25.0
    %vm3607 = vcmp.lt.f32.partialorder %v3401, 25.0
    %vm3608 = vcmp.lt.f32.partialorder %v3404, 25.0
    %vm3609 = vcmp.lt.f32.partialorder %v3407, 25.0
    %vm3610 = vcmp.lt.f32.partialorder %v3410, 25.0
    %vm3611 = vcmp.lt.f32.partialorder %v3413, 25.0
    %vm3612 = vcmp.lt.f32.partialorder %v3416, 25.0
    %vm3613 = vcmp.lt.f32.partialorder %v3419, 25.0
    %vm3614 = vcmp.lt.f32.partialorder %v3422, 25.0
    %vm3615 = vcmp.lt.f32.partialorder %v3425, 25.0
    %vm3616 = vcmp.lt.f32.partialorder %v3428, 25.0
    %vm3617 = vcmp.lt.f32.partialorder %v3431, 25.0
    %vm3618 = vcmp.lt.f32.partialorder %v3434, 25.0
    %vm3619 = vcmp.lt.f32.partialorder %v3437, 25.0
    %vm3620 = vcmp.lt.f32.partialorder %v3440, 25.0
    %vm3621 = vcmp.lt.f32.partialorder %v3443, 25.0
    %vm3622 = vcmp.lt.f32.partialorder %v3446, 25.0
    %vm3623 = vcmp.lt.f32.partialorder %v3449, 25.0
    %vm3624 = vcmp.lt.f32.partialorder %v3452, 25.0
    %vm3625 = vcmp.lt.f32.partialorder %v3455, 25.0
    %vm3626 = vcmp.lt.f32.partialorder %v3458, 25.0
    %vm3627 = vcmp.lt.f32.partialorder %v3461, 25.0
    %vm3628 = vcmp.lt.f32.partialorder %v3464, 25.0
    %vm3629 = vcmp.lt.f32.partialorder %v3467, 25.0
    %vm3630 = vcmp.lt.f32.partialorder %v3470, 25.0
    %vm3631 = vcmp.lt.f32.partialorder %v3473, 25.0
    %vm3632 = vcmp.lt.f32.partialorder %v3476, 25.0
    %vm3633 = vcmp.lt.f32.partialorder %v3479, 25.0
    %vm3634 = vcmp.lt.f32.partialorder %v3482, 25.0
    %vm3635 = vcmp.lt.f32.partialorder %v3485, 25.0
    %vm3636 = vcmp.lt.f32.partialorder %v3488, 25.0
    %vm3637 = vcmp.lt.f32.partialorder %v3491, 25.0
    %vm3638 = vcmp.lt.f32.partialorder %v3494, 25.0
    %vm3639 = vcmp.lt.f32.partialorder %v3497, 25.0
    %vm3640 = vcmp.lt.f32.partialorder %v3500, 25.0
    %vm3641 = vcmp.lt.f32.partialorder %v3503, 25.0
    %vm3642 = vcmp.lt.f32.partialorder %v3506, 25.0
    %vm3643 = vcmp.lt.f32.partialorder %v3509, 25.0
    %vm3644 = vcmp.lt.f32.partialorder %v3512, 25.0
    %vm3645 = vcmp.lt.f32.partialorder %v3515, 25.0
    %vm3646 = vcmp.lt.f32.partialorder %v3518, 25.0
    %v3647 = vsel %vm3519, 1, 0
    %v3648 = vsel %vm3520, 1, 0
    %v3649 = vsel %vm3521, 1, 0
    %v3650 = vsel %vm3522, 1, 0
    %v3651 = vsel %vm3523, 1, 0
    %v3652 = vsel %vm3524, 1, 0
    %v3653 = vsel %vm3525, 1, 0
    %v3654 = vsel %vm3526, 1, 0
    %v3655 = vsel %vm3527, 1, 0
    %v3656 = vsel %vm3528, 1, 0
    %v3657 = vsel %vm3529, 1, 0
    %v3658 = vsel %vm3530, 1, 0
    %v3659 = vsel %vm3531, 1, 0
    %v3660 = vsel %vm3532, 1, 0
    %v3661 = vsel %vm3533, 1, 0
    %v3662 = vsel %vm3534, 1, 0
    %v3663 = vsel %vm3535, 1, 0
    %v3664 = vsel %vm3536, 1, 0
    %v3665 = vsel %vm3537, 1, 0
    %v3666 = vsel %vm3538, 1, 0
    %v3667 = vsel %vm3539, 1, 0
    %v3668 = vsel %vm3540, 1, 0
    %v3669 = vsel %vm3541, 1, 0
    %v3670 = vsel %vm3542, 1, 0
    %v3671 = vsel %vm3543, 1, 0
    %v3672 = vsel %vm3544, 1, 0
    %v3673 = vsel %vm3545, 1, 0
    %v3674 = vsel %vm3546, 1, 0
    %v3675 = vsel %vm3547, 1, 0
    %v3676 = vsel %vm3548, 1, 0
    %v3677 = vsel %vm3549, 1, 0
    %v3678 = vsel %vm3550, 1, 0
    %v3679 = vsel %vm3551, 1, 0
    %v3680 = vsel %vm3552, 1, 0
    %v3681 = vsel %vm3553, 1, 0
    %v3682 = vsel %vm3554, 1, 0
    %v3683 = vsel %vm3555, 1, 0
    %v3684 = vsel %vm3556, 1, 0
    %v3685 = vsel %vm3557, 1, 0
    %v3686 = vsel %vm3558, 1, 0
    %v3687 = vsel %vm3559, 1, 0
    %v3688 = vsel %vm3560, 1, 0
    %v3689 = vsel %vm3561, 1, 0
    %v3690 = vsel %vm3562, 1, 0
    %v3691 = vsel %vm3563, 1, 0
    %v3692 = vsel %vm3564, 1, 0
    %v3693 = vsel %vm3565, 1, 0
    %v3694 = vsel %vm3566, 1, 0
    %v3695 = vsel %vm3567, 1, 0
    %v3696 = vsel %vm3568, 1, 0
    %v3697 = vsel %vm3569, 1, 0
    %v3698 = vsel %vm3570, 1, 0
    %v3699 = vsel %vm3571, 1, 0
    %v3700 = vsel %vm3572, 1, 0
    %v3701 = vsel %vm3573, 1, 0
    %v3702 = vsel %vm3574, 1, 0
    %v3703 = vsel %vm3575, 1, 0
    %v3704 = vsel %vm3576, 1, 0
    %v3705 = vsel %vm3577, 1, 0
    %v3706 = vsel %vm3578, 1, 0
    %v3707 = vsel %vm3579, 1, 0
    %v3708 = vsel %vm3580, 1, 0
    %v3709 = vsel %vm3581, 1, 0
    %v3710 = vsel %vm3582, 1, 0
    %v3711 = vsel %vm3583, 1, 0
    %v3712 = vsel %vm3584, 1, 0
    %v3713 = vsel %vm3585, 1, 0
    %v3714 = vsel %vm3586, 1, 0
    %v3715 = vsel %vm3587, 1, 0
    %v3716 = vsel %vm3588, 1, 0
    %v3717 = vsel %vm3589, 1, 0
    %v3718 = vsel %vm3590, 1, 0
    %v3719 = vsel %vm3591, 1, 0
    %v3720 = vsel %vm3592, 1, 0
    %v3721 = vsel %vm3593, 1, 0
    %v3722 = vsel %vm3594, 1, 0
    %v3723 = vsel %vm3595, 1, 0
    %v3724 = vsel %vm3596, 1, 0
    %v3725 = vsel %vm3597, 1, 0
    %v3726 = vsel %vm3598, 1, 0
    %v3727 = vsel %vm3599, 1, 0
    %v3728 = vsel %vm3600, 1, 0
    %v3729 = vsel %vm3601, 1, 0
    %v3730 = vsel %vm3602, 1, 0
    %v3731 = vsel %vm3603, 1, 0
    %v3732 = vsel %vm3604, 1, 0
    %v3733 = vsel %vm3605, 1, 0
    %v3734 = vsel %vm3606, 1, 0
    %v3735 = vsel %vm3607, 1, 0
    %v3736 = vsel %vm3608, 1, 0
    %v3737 = vsel %vm3609, 1, 0
    %v3738 = vsel %vm3610, 1, 0
    %v3739 = vsel %vm3611, 1, 0
    %v3740 = vsel %vm3612, 1, 0
    %v3741 = vsel %vm3613, 1, 0
    %v3742 = vsel %vm3614, 1, 0
    %v3743 = vsel %vm3615, 1, 0
    %v3744 = vsel %vm3616, 1, 0
    %v3745 = vsel %vm3617, 1, 0
    %v3746 = vsel %vm3618, 1, 0
    %v3747 = vsel %vm3619, 1, 0
    %v3748 = vsel %vm3620, 1, 0
    %v3749 = vsel %vm3621, 1, 0
    %v3750 = vsel %vm3622, 1, 0
    %v3751 = vsel %vm3623, 1, 0
    %v3752 = vsel %vm3624, 1, 0
    %v3753 = vsel %vm3625, 1, 0
    %v3754 = vsel %vm3626, 1, 0
    %v3755 = vsel %vm3627, 1, 0
    %v3756 = vsel %vm3628, 1, 0
    %v3757 = vsel %vm3629, 1, 0
    %v3758 = vsel %vm3630, 1, 0
    %v3759 = vsel %vm3631, 1, 0
    %v3760 = vsel %vm3632, 1, 0
    %v3761 = vsel %vm3633, 1, 0
    %v3762 = vsel %vm3634, 1, 0
    %v3763 = vsel %vm3635, 1, 0
    %v3764 = vsel %vm3636, 1, 0
    %v3765 = vsel %vm3637, 1, 0
    %v3766 = vsel %vm3638, 1, 0
    %v3767 = vsel %vm3639, 1, 0
    %v3768 = vsel %vm3640, 1, 0
    %v3769 = vsel %vm3641, 1, 0
    %v3770 = vsel %vm3642, 1, 0
    %v3771 = vsel %vm3643, 1, 0
    %v3772 = vsel %vm3644, 1, 0
    %v3773 = vsel %vm3645, 1, 0
    %v3774 = vsel %vm3646, 1, 0
    %v3775 = vcvt.s32.f32 %v3647
    %v3776 = vcvt.s32.f32 %v3648
    %v3777 = vcvt.s32.f32 %v3649
    %v3778 = vcvt.s32.f32 %v3650
    %v3779 = vcvt.s32.f32 %v3651
    %v3780 = vcvt.s32.f32 %v3652
    %v3781 = vcvt.s32.f32 %v3653
    %v3782 = vcvt.s32.f32 %v3654
    %v3783 = vcvt.s32.f32 %v3655
    %v3784 = vcvt.s32.f32 %v3656
    %v3785 = vcvt.s32.f32 %v3657
    %v3786 = vcvt.s32.f32 %v3658
    %v3787 = vcvt.s32.f32 %v3659
    %v3788 = vcvt.s32.f32 %v3660
    %v3789 = vcvt.s32.f32 %v3661
    %v3790 = vcvt.s32.f32 %v3662
    %v3791 = vcvt.s32.f32 %v3663
    %v3792 = vcvt.s32.f32 %v3664
    %v3793 = vcvt.s32.f32 %v3665
    %v3794 = vcvt.s32.f32 %v3666
    %v3795 = vcvt.s32.f32 %v3667
    %v3796 = vcvt.s32.f32 %v3668
    %v3797 = vcvt.s32.f32 %v3669
    %v3798 = vcvt.s32.f32 %v3670
    %v3799 = vcvt.s32.f32 %v3671
    %v3800 = vcvt.s32.f32 %v3672
    %v3801 = vcvt.s32.f32 %v3673
    %v3802 = vcvt.s32.f32 %v3674
    %v3803 = vcvt.s32.f32 %v3675
    %v3804 = vcvt.s32.f32 %v3676
    %v3805 = vcvt.s32.f32 %v3677
    %v3806 = vcvt.s32.f32 %v3678
    %v3807 = vcvt.s32.f32 %v3679
    %v3808 = vcvt.s32.f32 %v3680
    %v3809 = vcvt.s32.f32 %v3681
    %v3810 = vcvt.s32.f32 %v3682
    %v3811 = vcvt.s32.f32 %v3683
    %v3812 = vcvt.s32.f32 %v3684
    %v3813 = vcvt.s32.f32 %v3685
    %v3814 = vcvt.s32.f32 %v3686
    %v3815 = vcvt.s32.f32 %v3687
    %v3816 = vcvt.s32.f32 %v3688
    %v3817 = vcvt.s32.f32 %v3689
    %v3818 = vcvt.s32.f32 %v3690
    %v3819 = vcvt.s32.f32 %v3691
    %v3820 = vcvt.s32.f32 %v3692
    %v3821 = vcvt.s32.f32 %v3693
    %v3822 = vcvt.s32.f32 %v3694
    %v3823 = vcvt.s32.f32 %v3695
    %v3824 = vcvt.s32.f32 %v3696
    %v3825 = vcvt.s32.f32 %v3697
    %v3826 = vcvt.s32.f32 %v3698
    %v3827 = vcvt.s32.f32 %v3699
    %v3828 = vcvt.s32.f32 %v3700
    %v3829 = vcvt.s32.f32 %v3701
    %v3830 = vcvt.s32.f32 %v3702
    %v3831 = vcvt.s32.f32 %v3703
    %v3832 = vcvt.s32.f32 %v3704
    %v3833 = vcvt.s32.f32 %v3705
    %v3834 = vcvt.s32.f32 %v3706
    %v3835 = vcvt.s32.f32 %v3707
    %v3836 = vcvt.s32.f32 %v3708
    %v3837 = vcvt.s32.f32 %v3709
    %v3838 = vcvt.s32.f32 %v3710
    %v3839 = vcvt.s32.f32 %v3711
    %v3840 = vcvt.s32.f32 %v3712
    %v3841 = vcvt.s32.f32 %v3713
    %v3842 = vcvt.s32.f32 %v3714
    %v3843 = vcvt.s32.f32 %v3715
    %v3844 = vcvt.s32.f32 %v3716
    %v3845 = vcvt.s32.f32 %v3717
    %v3846 = vcvt.s32.f32 %v3718
    %v3847 = vcvt.s32.f32 %v3719
    %v3848 = vcvt.s32.f32 %v3720
    %v3849 = vcvt.s32.f32 %v3721
    %v3850 = vcvt.s32.f32 %v3722
    %v3851 = vcvt.s32.f32 %v3723
    %v3852 = vcvt.s32.f32 %v3724
    %v3853 = vcvt.s32.f32 %v3725
    %v3854 = vcvt.s32.f32 %v3726
    %v3855 = vcvt.s32.f32 %v3727
    %v3856 = vcvt.s32.f32 %v3728
    %v3857 = vcvt.s32.f32 %v3729
    %v3858 = vcvt.s32.f32 %v3730
    %v3859 = vcvt.s32.f32 %v3731
    %v3860 = vcvt.s32.f32 %v3732
    %v3861 = vcvt.s32.f32 %v3733
    %v3862 = vcvt.s32.f32 %v3734
    %v3863 = vcvt.s32.f32 %v3735
    %v3864 = vcvt.s32.f32 %v3736
    %v3865 = vcvt.s32.f32 %v3737
    %v3866 = vcvt.s32.f32 %v3738
    %v3867 = vcvt.s32.f32 %v3739
    %v3868 = vcvt.s32.f32 %v3740
    %v3869 = vcvt.s32.f32 %v3741
    %v3870 = vcvt.s32.f32 %v3742
    %v3871 = vcvt.s32.f32 %v3743
    %v3872 = vcvt.s32.f32 %v3744
    %v3873 = vcvt.s32.f32 %v3745
    %v3874 = vcvt.s32.f32 %v3746
    %v3875 = vcvt.s32.f32 %v3747
    %v3876 = vcvt.s32.f32 %v3748
    %v3877 = vcvt.s32.f32 %v3749
    %v3878 = vcvt.s32.f32 %v3750
    %v3879 = vcvt.s32.f32 %v3751
    %v3880 = vcvt.s32.f32 %v3752
    %v3881 = vcvt.s32.f32 %v3753
    %v3882 = vcvt.s32.f32 %v3754
    %v3883 = vcvt.s32.f32 %v3755
    %v3884 = vcvt.s32.f32 %v3756
    %v3885 = vcvt.s32.f32 %v3757
    %v3886 = vcvt.s32.f32 %v3758
    %v3887 = vcvt.s32.f32 %v3759
    %v3888 = vcvt.s32.f32 %v3760
    %v3889 = vcvt.s32.f32 %v3761
    %v3890 = vcvt.s32.f32 %v3762
    %v3891 = vcvt.s32.f32 %v3763
    %v3892 = vcvt.s32.f32 %v3764
    %v3893 = vcvt.s32.f32 %v3765
    %v3894 = vcvt.s32.f32 %v3766
    %v3895 = vcvt.s32.f32 %v3767
    %v3896 = vcvt.s32.f32 %v3768
    %v3897 = vcvt.s32.f32 %v3769
    %v3898 = vcvt.s32.f32 %v3770
    %v3899 = vcvt.s32.f32 %v3771
    %v3900 = vcvt.s32.f32 %v3772
    %v3901 = vcvt.s32.f32 %v3773
    %v3902 = vcvt.s32.f32 %v3774
    %vm3903 = vcmp.eq.f32.partialorder %v3137, 24.0
    %vm3904 = vcmp.eq.f32.partialorder %v3140, 24.0
    %vm3905 = vcmp.eq.f32.partialorder %v3143, 24.0
    %vm3906 = vcmp.eq.f32.partialorder %v3146, 24.0
    %vm3907 = vcmp.eq.f32.partialorder %v3149, 24.0
    %vm3908 = vcmp.eq.f32.partialorder %v3152, 24.0
    %vm3909 = vcmp.eq.f32.partialorder %v3155, 24.0
    %vm3910 = vcmp.eq.f32.partialorder %v3158, 24.0
    %vm3911 = vcmp.eq.f32.partialorder %v3161, 24.0
    %vm3912 = vcmp.eq.f32.partialorder %v3164, 24.0
    %vm3913 = vcmp.eq.f32.partialorder %v3167, 24.0
    %vm3914 = vcmp.eq.f32.partialorder %v3170, 24.0
    %vm3915 = vcmp.eq.f32.partialorder %v3173, 24.0
    %vm3916 = vcmp.eq.f32.partialorder %v3176, 24.0
    %vm3917 = vcmp.eq.f32.partialorder %v3179, 24.0
    %vm3918 = vcmp.eq.f32.partialorder %v3182, 24.0
    %vm3919 = vcmp.eq.f32.partialorder %v3185, 24.0
    %vm3920 = vcmp.eq.f32.partialorder %v3188, 24.0
    %vm3921 = vcmp.eq.f32.partialorder %v3191, 24.0
    %vm3922 = vcmp.eq.f32.partialorder %v3194, 24.0
    %vm3923 = vcmp.eq.f32.partialorder %v3197, 24.0
    %vm3924 = vcmp.eq.f32.partialorder %v3200, 24.0
    %vm3925 = vcmp.eq.f32.partialorder %v3203, 24.0
    %vm3926 = vcmp.eq.f32.partialorder %v3206, 24.0
    %vm3927 = vcmp.eq.f32.partialorder %v3209, 24.0
    %vm3928 = vcmp.eq.f32.partialorder %v3212, 24.0
    %vm3929 = vcmp.eq.f32.partialorder %v3215, 24.0
    %vm3930 = vcmp.eq.f32.partialorder %v3218, 24.0
    %vm3931 = vcmp.eq.f32.partialorder %v3221, 24.0
    %vm3932 = vcmp.eq.f32.partialorder %v3224, 24.0
    %vm3933 = vcmp.eq.f32.partialorder %v3227, 24.0
    %vm3934 = vcmp.eq.f32.partialorder %v3230, 24.0
    %vm3935 = vcmp.eq.f32.partialorder %v3233, 24.0
    %vm3936 = vcmp.eq.f32.partialorder %v3236, 24.0
    %vm3937 = vcmp.eq.f32.partialorder %v3239, 24.0
    %vm3938 = vcmp.eq.f32.partialorder %v3242, 24.0
    %vm3939 = vcmp.eq.f32.partialorder %v3245, 24.0
    %vm3940 = vcmp.eq.f32.partialorder %v3248, 24.0
    %vm3941 = vcmp.eq.f32.partialorder %v3251, 24.0
    %vm3942 = vcmp.eq.f32.partialorder %v3254, 24.0
    %vm3943 = vcmp.eq.f32.partialorder %v3257, 24.0
    %vm3944 = vcmp.eq.f32.partialorder %v3260, 24.0
    %vm3945 = vcmp.eq.f32.partialorder %v3263, 24.0
    %vm3946 = vcmp.eq.f32.partialorder %v3266, 24.0
    %vm3947 = vcmp.eq.f32.partialorder %v3269, 24.0
    %vm3948 = vcmp.eq.f32.partialorder %v3272, 24.0
    %vm3949 = vcmp.eq.f32.partialorder %v3275, 24.0
    %vm3950 = vcmp.eq.f32.partialorder %v3278, 24.0
    %vm3951 = vcmp.eq.f32.partialorder %v3281, 24.0
    %vm3952 = vcmp.eq.f32.partialorder %v3284, 24.0
    %vm3953 = vcmp.eq.f32.partialorder %v3287, 24.0
    %vm3954 = vcmp.eq.f32.partialorder %v3290, 24.0
    %vm3955 = vcmp.eq.f32.partialorder %v3293, 24.0
    %vm3956 = vcmp.eq.f32.partialorder %v3296, 24.0
    %vm3957 = vcmp.eq.f32.partialorder %v3299, 24.0
    %vm3958 = vcmp.eq.f32.partialorder %v3302, 24.0
    %vm3959 = vcmp.eq.f32.partialorder %v3305, 24.0
    %vm3960 = vcmp.eq.f32.partialorder %v3308, 24.0
    %vm3961 = vcmp.eq.f32.partialorder %v3311, 24.0
    %vm3962 = vcmp.eq.f32.partialorder %v3314, 24.0
    %vm3963 = vcmp.eq.f32.partialorder %v3317, 24.0
    %vm3964 = vcmp.eq.f32.partialorder %v3320, 24.0
    %vm3965 = vcmp.eq.f32.partialorder %v3323, 24.0
    %vm3966 = vcmp.eq.f32.partialorder %v3326, 24.0
    %vm3967 = vcmp.eq.f32.partialorder %v3329, 24.0
    %vm3968 = vcmp.eq.f32.partialorder %v3332, 24.0
    %vm3969 = vcmp.eq.f32.partialorder %v3335, 24.0
    %vm3970 = vcmp.eq.f32.partialorder %v3338, 24.0
    %vm3971 = vcmp.eq.f32.partialorder %v3341, 24.0
    %vm3972 = vcmp.eq.f32.partialorder %v3344, 24.0
    %vm3973 = vcmp.eq.f32.partialorder %v3347, 24.0
    %vm3974 = vcmp.eq.f32.partialorder %v3350, 24.0
    %vm3975 = vcmp.eq.f32.partialorder %v3353, 24.0
    %vm3976 = vcmp.eq.f32.partialorder %v3356, 24.0
    %vm3977 = vcmp.eq.f32.partialorder %v3359, 24.0
    %vm3978 = vcmp.eq.f32.partialorder %v3362, 24.0
    %vm3979 = vcmp.eq.f32.partialorder %v3365, 24.0
    %vm3980 = vcmp.eq.f32.partialorder %v3368, 24.0
    %vm3981 = vcmp.eq.f32.partialorder %v3371, 24.0
    %vm3982 = vcmp.eq.f32.partialorder %v3374, 24.0
    %vm3983 = vcmp.eq.f32.partialorder %v3377, 24.0
    %vm3984 = vcmp.eq.f32.partialorder %v3380, 24.0
    %vm3985 = vcmp.eq.f32.partialorder %v3383, 24.0
    %vm3986 = vcmp.eq.f32.partialorder %v3386, 24.0
    %vm3987 = vcmp.eq.f32.partialorder %v3389, 24.0
    %vm3988 = vcmp.eq.f32.partialorder %v3392, 24.0
    %vm3989 = vcmp.eq.f32.partialorder %v3395, 24.0
    %vm3990 = vcmp.eq.f32.partialorder %v3398, 24.0
    %vm3991 = vcmp.eq.f32.partialorder %v3401, 24.0
    %vm3992 = vcmp.eq.f32.partialorder %v3404, 24.0
    %vm3993 = vcmp.eq.f32.partialorder %v3407, 24.0
    %vm3994 = vcmp.eq.f32.partialorder %v3410, 24.0
    %vm3995 = vcmp.eq.f32.partialorder %v3413, 24.0
    %vm3996 = vcmp.eq.f32.partialorder %v3416, 24.0
    %vm3997 = vcmp.eq.f32.partialorder %v3419, 24.0
    %vm3998 = vcmp.eq.f32.partialorder %v3422, 24.0
    %vm3999 = vcmp.eq.f32.partialorder %v3425, 24.0
    %vm4000 = vcmp.eq.f32.partialorder %v3428, 24.0
    %vm4001 = vcmp.eq.f32.partialorder %v3431, 24.0
    %vm4002 = vcmp.eq.f32.partialorder %v3434, 24.0
    %vm4003 = vcmp.eq.f32.partialorder %v3437, 24.0
    %vm4004 = vcmp.eq.f32.partialorder %v3440, 24.0
    %vm4005 = vcmp.eq.f32.partialorder %v3443, 24.0
    %vm4006 = vcmp.eq.f32.partialorder %v3446, 24.0
    %vm4007 = vcmp.eq.f32.partialorder %v3449, 24.0
    %vm4008 = vcmp.eq.f32.partialorder %v3452, 24.0
    %vm4009 = vcmp.eq.f32.partialorder %v3455, 24.0
    %vm4010 = vcmp.eq.f32.partialorder %v3458, 24.0
    %vm4011 = vcmp.eq.f32.partialorder %v3461, 24.0
    %vm4012 = vcmp.eq.f32.partialorder %v3464, 24.0
    %vm4013 = vcmp.eq.f32.partialorder %v3467, 24.0
    %vm4014 = vcmp.eq.f32.partialorder %v3470, 24.0
    %vm4015 = vcmp.eq.f32.partialorder %v3473, 24.0
    %vm4016 = vcmp.eq.f32.partialorder %v3476, 24.0
    %vm4017 = vcmp.eq.f32.partialorder %v3479, 24.0
    %vm4018 = vcmp.eq.f32.partialorder %v3482, 24.0
    %vm4019 = vcmp.eq.f32.partialorder %v3485, 24.0
    %vm4020 = vcmp.eq.f32.partialorder %v3488, 24.0
    %vm4021 = vcmp.eq.f32.partialorder %v3491, 24.0
    %vm4022 = vcmp.eq.f32.partialorder %v3494, 24.0
    %vm4023 = vcmp.eq.f32.partialorder %v3497, 24.0
    %vm4024 = vcmp.eq.f32.partialorder %v3500, 24.0
    %vm4025 = vcmp.eq.f32.partialorder %v3503, 24.0
    %vm4026 = vcmp.eq.f32.partialorder %v3506, 24.0
    %vm4027 = vcmp.eq.f32.partialorder %v3509, 24.0
    %vm4028 = vcmp.eq.f32.partialorder %v3512, 24.0
    %vm4029 = vcmp.eq.f32.partialorder %v3515, 24.0
    %vm4030 = vcmp.eq.f32.partialorder %v3518, 24.0
    %v4031 = vsel %vm3903, 1, 0
    %v4032 = vsel %vm3904, 1, 0
    %v4033 = vsel %vm3905, 1, 0
    %v4034 = vsel %vm3906, 1, 0
    %v4035 = vsel %vm3907, 1, 0
    %v4036 = vsel %vm3908, 1, 0
    %v4037 = vsel %vm3909, 1, 0
    %v4038 = vsel %vm3910, 1, 0
    %v4039 = vsel %vm3911, 1, 0
    %v4040 = vsel %vm3912, 1, 0
    %v4041 = vsel %vm3913, 1, 0
    %v4042 = vsel %vm3914, 1, 0
    %v4043 = vsel %vm3915, 1, 0
    %v4044 = vsel %vm3916, 1, 0
    %v4045 = vsel %vm3917, 1, 0
    %v4046 = vsel %vm3918, 1, 0
    %v4047 = vsel %vm3919, 1, 0
    %v4048 = vsel %vm3920, 1, 0
    %v4049 = vsel %vm3921, 1, 0
    %v4050 = vsel %vm3922, 1, 0
    %v4051 = vsel %vm3923, 1, 0
    %v4052 = vsel %vm3924, 1, 0
    %v4053 = vsel %vm3925, 1, 0
    %v4054 = vsel %vm3926, 1, 0
    %v4055 = vsel %vm3927, 1, 0
    %v4056 = vsel %vm3928, 1, 0
    %v4057 = vsel %vm3929, 1, 0
    %v4058 = vsel %vm3930, 1, 0
    %v4059 = vsel %vm3931, 1, 0
    %v4060 = vsel %vm3932, 1, 0
    %v4061 = vsel %vm3933, 1, 0
    %v4062 = vsel %vm3934, 1, 0
    %v4063 = vsel %vm3935, 1, 0
    %v4064 = vsel %vm3936, 1, 0
    %v4065 = vsel %vm3937, 1, 0
    %v4066 = vsel %vm3938, 1, 0
    %v4067 = vsel %vm3939, 1, 0
    %v4068 = vsel %vm3940, 1, 0
    %v4069 = vsel %vm3941, 1, 0
    %v4070 = vsel %vm3942, 1, 0
    %v4071 = vsel %vm3943, 1, 0
    %v4072 = vsel %vm3944, 1, 0
    %v4073 = vsel %vm3945, 1, 0
    %v4074 = vsel %vm3946, 1, 0
    %v4075 = vsel %vm3947, 1, 0
    %v4076 = vsel %vm3948, 1, 0
    %v4077 = vsel %vm3949, 1, 0
    %v4078 = vsel %vm3950, 1, 0
    %v4079 = vsel %vm3951, 1, 0
    %v4080 = vsel %vm3952, 1, 0
    %v4081 = vsel %vm3953, 1, 0
    %v4082 = vsel %vm3954, 1, 0
    %v4083 = vsel %vm3955, 1, 0
    %v4084 = vsel %vm3956, 1, 0
    %v4085 = vsel %vm3957, 1, 0
    %v4086 = vsel %vm3958, 1, 0
    %v4087 = vsel %vm3959, 1, 0
    %v4088 = vsel %vm3960, 1, 0
    %v4089 = vsel %vm3961, 1, 0
    %v4090 = vsel %vm3962, 1, 0
    %v4091 = vsel %vm3963, 1, 0
    %v4092 = vsel %vm3964, 1, 0
    %v4093 = vsel %vm3965, 1, 0
    %v4094 = vsel %vm3966, 1, 0
    %v4095 = vsel %vm3967, 1, 0
    %v4096 = vsel %vm3968, 1, 0
    %v4097 = vsel %vm3969, 1, 0
    %v4098 = vsel %vm3970, 1, 0
    %v4099 = vsel %vm3971, 1, 0
    %v4100 = vsel %vm3972, 1, 0
    %v4101 = vsel %vm3973, 1, 0
    %v4102 = vsel %vm3974, 1, 0
    %v4103 = vsel %vm3975, 1, 0
    %v4104 = vsel %vm3976, 1, 0
    %v4105 = vsel %vm3977, 1, 0
    %v4106 = vsel %vm3978, 1, 0
    %v4107 = vsel %vm3979, 1, 0
    %v4108 = vsel %vm3980, 1, 0
    %v4109 = vsel %vm3981, 1, 0
    %v4110 = vsel %vm3982, 1, 0
    %v4111 = vsel %vm3983, 1, 0
    %v4112 = vsel %vm3984, 1, 0
    %v4113 = vsel %vm3985, 1, 0
    %v4114 = vsel %vm3986, 1, 0
    %v4115 = vsel %vm3987, 1, 0
    %v4116 = vsel %vm3988, 1, 0
    %v4117 = vsel %vm3989, 1, 0
    %v4118 = vsel %vm3990, 1, 0
    %v4119 = vsel %vm3991, 1, 0
    %v4120 = vsel %vm3992, 1, 0
    %v4121 = vsel %vm3993, 1, 0
    %v4122 = vsel %vm3994, 1, 0
    %v4123 = vsel %vm3995, 1, 0
    %v4124 = vsel %vm3996, 1, 0
    %v4125 = vsel %vm3997, 1, 0
    %v4126 = vsel %vm3998, 1, 0
    %v4127 = vsel %vm3999, 1, 0
    %v4128 = vsel %vm4000, 1, 0
    %v4129 = vsel %vm4001, 1, 0
    %v4130 = vsel %vm4002, 1, 0
    %v4131 = vsel %vm4003, 1, 0
    %v4132 = vsel %vm4004, 1, 0
    %v4133 = vsel %vm4005, 1, 0
    %v4134 = vsel %vm4006, 1, 0
    %v4135 = vsel %vm4007, 1, 0
    %v4136 = vsel %vm4008, 1, 0
    %v4137 = vsel %vm4009, 1, 0
    %v4138 = vsel %vm4010, 1, 0
    %v4139 = vsel %vm4011, 1, 0
    %v4140 = vsel %vm4012, 1, 0
    %v4141 = vsel %vm4013, 1, 0
    %v4142 = vsel %vm4014, 1, 0
    %v4143 = vsel %vm4015, 1, 0
    %v4144 = vsel %vm4016, 1, 0
    %v4145 = vsel %vm4017, 1, 0
    %v4146 = vsel %vm4018, 1, 0
    %v4147 = vsel %vm4019, 1, 0
    %v4148 = vsel %vm4020, 1, 0
    %v4149 = vsel %vm4021, 1, 0
    %v4150 = vsel %vm4022, 1, 0
    %v4151 = vsel %vm4023, 1, 0
    %v4152 = vsel %vm4024, 1, 0
    %v4153 = vsel %vm4025, 1, 0
    %v4154 = vsel %vm4026, 1, 0
    %v4155 = vsel %vm4027, 1, 0
    %v4156 = vsel %vm4028, 1, 0
    %v4157 = vsel %vm4029, 1, 0
    %v4158 = vsel %vm4030, 1, 0
    %v4159 = vcvt.s32.f32 %v4031
    %v4160 = vcvt.s32.f32 %v4032
    %v4161 = vcvt.s32.f32 %v4033
    %v4162 = vcvt.s32.f32 %v4034
    %v4163 = vcvt.s32.f32 %v4035
    %v4164 = vcvt.s32.f32 %v4036
    %v4165 = vcvt.s32.f32 %v4037
    %v4166 = vcvt.s32.f32 %v4038
    %v4167 = vcvt.s32.f32 %v4039
    %v4168 = vcvt.s32.f32 %v4040
    %v4169 = vcvt.s32.f32 %v4041
    %v4170 = vcvt.s32.f32 %v4042
    %v4171 = vcvt.s32.f32 %v4043
    %v4172 = vcvt.s32.f32 %v4044
    %v4173 = vcvt.s32.f32 %v4045
    %v4174 = vcvt.s32.f32 %v4046
    %v4175 = vcvt.s32.f32 %v4047
    %v4176 = vcvt.s32.f32 %v4048
    %v4177 = vcvt.s32.f32 %v4049
    %v4178 = vcvt.s32.f32 %v4050
    %v4179 = vcvt.s32.f32 %v4051
    %v4180 = vcvt.s32.f32 %v4052
    %v4181 = vcvt.s32.f32 %v4053
    %v4182 = vcvt.s32.f32 %v4054
    %v4183 = vcvt.s32.f32 %v4055
    %v4184 = vcvt.s32.f32 %v4056
    %v4185 = vcvt.s32.f32 %v4057
    %v4186 = vcvt.s32.f32 %v4058
    %v4187 = vcvt.s32.f32 %v4059
    %v4188 = vcvt.s32.f32 %v4060
    %v4189 = vcvt.s32.f32 %v4061
    %v4190 = vcvt.s32.f32 %v4062
    %v4191 = vcvt.s32.f32 %v4063
    %v4192 = vcvt.s32.f32 %v4064
    %v4193 = vcvt.s32.f32 %v4065
    %v4194 = vcvt.s32.f32 %v4066
    %v4195 = vcvt.s32.f32 %v4067
    %v4196 = vcvt.s32.f32 %v4068
    %v4197 = vcvt.s32.f32 %v4069
    %v4198 = vcvt.s32.f32 %v4070
    %v4199 = vcvt.s32.f32 %v4071
    %v4200 = vcvt.s32.f32 %v4072
    %v4201 = vcvt.s32.f32 %v4073
    %v4202 = vcvt.s32.f32 %v4074
    %v4203 = vcvt.s32.f32 %v4075
    %v4204 = vcvt.s32.f32 %v4076
    %v4205 = vcvt.s32.f32 %v4077
    %v4206 = vcvt.s32.f32 %v4078
    %v4207 = vcvt.s32.f32 %v4079
    %v4208 = vcvt.s32.f32 %v4080
    %v4209 = vcvt.s32.f32 %v4081
    %v4210 = vcvt.s32.f32 %v4082
    %v4211 = vcvt.s32.f32 %v4083
    %v4212 = vcvt.s32.f32 %v4084
    %v4213 = vcvt.s32.f32 %v4085
    %v4214 = vcvt.s32.f32 %v4086
    %v4215 = vcvt.s32.f32 %v4087
    %v4216 = vcvt.s32.f32 %v4088
    %v4217 = vcvt.s32.f32 %v4089
    %v4218 = vcvt.s32.f32 %v4090
    %v4219 = vcvt.s32.f32 %v4091
    %v4220 = vcvt.s32.f32 %v4092
    %v4221 = vcvt.s32.f32 %v4093
    %v4222 = vcvt.s32.f32 %v4094
    %v4223 = vcvt.s32.f32 %v4095
    %v4224 = vcvt.s32.f32 %v4096
    %v4225 = vcvt.s32.f32 %v4097
    %v4226 = vcvt.s32.f32 %v4098
    %v4227 = vcvt.s32.f32 %v4099
    %v4228 = vcvt.s32.f32 %v4100
    %v4229 = vcvt.s32.f32 %v4101
    %v4230 = vcvt.s32.f32 %v4102
    %v4231 = vcvt.s32.f32 %v4103
    %v4232 = vcvt.s32.f32 %v4104
    %v4233 = vcvt.s32.f32 %v4105
    %v4234 = vcvt.s32.f32 %v4106
    %v4235 = vcvt.s32.f32 %v4107
    %v4236 = vcvt.s32.f32 %v4108
    %v4237 = vcvt.s32.f32 %v4109
    %v4238 = vcvt.s32.f32 %v4110
    %v4239 = vcvt.s32.f32 %v4111
    %v4240 = vcvt.s32.f32 %v4112
    %v4241 = vcvt.s32.f32 %v4113
    %v4242 = vcvt.s32.f32 %v4114
    %v4243 = vcvt.s32.f32 %v4115
    %v4244 = vcvt.s32.f32 %v4116
    %v4245 = vcvt.s32.f32 %v4117
    %v4246 = vcvt.s32.f32 %v4118
    %v4247 = vcvt.s32.f32 %v4119
    %v4248 = vcvt.s32.f32 %v4120
    %v4249 = vcvt.s32.f32 %v4121
    %v4250 = vcvt.s32.f32 %v4122
    %v4251 = vcvt.s32.f32 %v4123
    %v4252 = vcvt.s32.f32 %v4124
    %v4253 = vcvt.s32.f32 %v4125
    %v4254 = vcvt.s32.f32 %v4126
    %v4255 = vcvt.s32.f32 %v4127
    %v4256 = vcvt.s32.f32 %v4128
    %v4257 = vcvt.s32.f32 %v4129
    %v4258 = vcvt.s32.f32 %v4130
    %v4259 = vcvt.s32.f32 %v4131
    %v4260 = vcvt.s32.f32 %v4132
    %v4261 = vcvt.s32.f32 %v4133
    %v4262 = vcvt.s32.f32 %v4134
    %v4263 = vcvt.s32.f32 %v4135
    %v4264 = vcvt.s32.f32 %v4136
    %v4265 = vcvt.s32.f32 %v4137
    %v4266 = vcvt.s32.f32 %v4138
    %v4267 = vcvt.s32.f32 %v4139
    %v4268 = vcvt.s32.f32 %v4140
    %v4269 = vcvt.s32.f32 %v4141
    %v4270 = vcvt.s32.f32 %v4142
    %v4271 = vcvt.s32.f32 %v4143
    %v4272 = vcvt.s32.f32 %v4144
    %v4273 = vcvt.s32.f32 %v4145
    %v4274 = vcvt.s32.f32 %v4146
    %v4275 = vcvt.s32.f32 %v4147
    %v4276 = vcvt.s32.f32 %v4148
    %v4277 = vcvt.s32.f32 %v4149
    %v4278 = vcvt.s32.f32 %v4150
    %v4279 = vcvt.s32.f32 %v4151
    %v4280 = vcvt.s32.f32 %v4152
    %v4281 = vcvt.s32.f32 %v4153
    %v4282 = vcvt.s32.f32 %v4154
    %v4283 = vcvt.s32.f32 %v4155
    %v4284 = vcvt.s32.f32 %v4156
    %v4285 = vcvt.s32.f32 %v4157
    %v4286 = vcvt.s32.f32 %v4158
    %v4287 = vld [vmem:[#allocation10] sm:$0xff]
    %v4288 = vld [vmem:[#allocation10 + $0x8] sm:$0xff]
    %v4289 = vld [vmem:[#allocation10 + $0x10] sm:$0xff]
    %v4290 = vld [vmem:[#allocation10 + $0x18] sm:$0xff]
    %v4291 = vsub.f32 1.0, %v3775
    %v4292 = vsub.f32 1.0, %v3776
    %v4293 = vsub.f32 1.0, %v3777
    %v4294 = vsub.f32 1.0, %v3778
    %v4295 = vsub.f32 1.0, %v3779
    %v4296 = vsub.f32 1.0, %v3780
    %v4297 = vsub.f32 1.0, %v3781
    %v4298 = vsub.f32 1.0, %v3782
    %v4299 = vsub.f32 1.0, %v3783
    %v4300 = vsub.f32 1.0, %v3784
    %v4301 = vsub.f32 1.0, %v3785
    %v4302 = vsub.f32 1.0, %v3786
    %v4303 = vsub.f32 1.0, %v3787
    %v4304 = vsub.f32 1.0, %v3788
    %v4305 = vsub.f32 1.0, %v3789
    %v4306 = vsub.f32 1.0, %v3790
    %v4307 = vsub.f32 1.0, %v3791
    %v4308 = vsub.f32 1.0, %v3792
    %v4309 = vsub.f32 1.0, %v3793
    %v4310 = vsub.f32 1.0, %v3794
    %v4311 = vsub.f32 1.0, %v3795
    %v4312 = vsub.f32 1.0, %v3796
    %v4313 = vsub.f32 1.0, %v3797
    %v4314 = vsub.f32 1.0, %v3798
    %v4315 = vsub.f32 1.0, %v3799
    %v4316 = vsub.f32 1.0, %v3800
    %v4317 = vsub.f32 1.0, %v3801
    %v4318 = vsub.f32 1.0, %v3802
    %v4319 = vsub.f32 1.0, %v3803
    %v4320 = vsub.f32 1.0, %v3804
    %v4321 = vsub.f32 1.0, %v3805
    %v4322 = vsub.f32 1.0, %v3806
    %v4323 = vsub.f32 1.0, %v3807
    %v4324 = vsub.f32 1.0, %v3808
    %v4325 = vsub.f32 1.0, %v3809
    %v4326 = vsub.f32 1.0, %v3810
    %v4327 = vsub.f32 1.0, %v3811
    %v4328 = vsub.f32 1.0, %v3812
    %v4329 = vsub.f32 1.0, %v3813
    %v4330 = vsub.f32 1.0, %v3814
    %v4331 = vsub.f32 1.0, %v3815
    %v4332 = vsub.f32 1.0, %v3816
    %v4333 = vsub.f32 1.0, %v3817
    %v4334 = vsub.f32 1.0, %v3818
    %v4335 = vsub.f32 1.0, %v3819
    %v4336 = vsub.f32 1.0, %v3820
    %v4337 = vsub.f32 1.0, %v3821
    %v4338 = vsub.f32 1.0, %v3822
    %v4339 = vsub.f32 1.0, %v3823
    %v4340 = vsub.f32 1.0, %v3824
    %v4341 = vsub.f32 1.0, %v3825
    %v4342 = vsub.f32 1.0, %v3826
    %v4343 = vsub.f32 1.0, %v3827
    %v4344 = vsub.f32 1.0, %v3828
    %v4345 = vsub.f32 1.0, %v3829
    %v4346 = vsub.f32 1.0, %v3830
    %v4347 = vsub.f32 1.0, %v3831
    %v4348 = vsub.f32 1.0, %v3832
    %v4349 = vsub.f32 1.0, %v3833
    %v4350 = vsub.f32 1.0, %v3834
    %v4351 = vsub.f32 1.0, %v3835
    %v4352 = vsub.f32 1.0, %v3836
    %v4353 = vsub.f32 1.0, %v3837
    %v4354 = vsub.f32 1.0, %v3838
    %v4355 = vsub.f32 1.0, %v3839
    %v4356 = vsub.f32 1.0, %v3840
    %v4357 = vsub.f32 1.0, %v3841
    %v4358 = vsub.f32 1.0, %v3842
    %v4359 = vsub.f32 1.0, %v3843
    %v4360 = vsub.f32 1.0, %v3844
    %v4361 = vsub.f32 1.0, %v3845
    %v4362 = vsub.f32 1.0, %v3846
    %v4363 = vsub.f32 1.0, %v3847
    %v4364 = vsub.f32 1.0, %v3848
    %v4365 = vsub.f32 1.0, %v3849
    %v4366 = vsub.f32 1.0, %v3850
    %v4367 = vsub.f32 1.0, %v3851
    %v4368 = vsub.f32 1.0, %v3852
    %v4369 = vsub.f32 1.0, %v3853
    %v4370 = vsub.f32 1.0, %v3854
    %v4371 = vsub.f32 1.0, %v3855
    %v4372 = vsub.f32 1.0, %v3856
    %v4373 = vsub.f32 1.0, %v3857
    %v4374 = vsub.f32 1.0, %v3858
    %v4375 = vsub.f32 1.0, %v3859
    %v4376 = vsub.f32 1.0, %v3860
    %v4377 = vsub.f32 1.0, %v3861
    %v4378 = vsub.f32 1.0, %v3862
    %v4379 = vsub.f32 1.0, %v3863
    %v4380 = vsub.f32 1.0, %v3864
    %v4381 = vsub.f32 1.0, %v3865
    %v4382 = vsub.f32 1.0, %v3866
    %v4383 = vsub.f32 1.0, %v3867
    %v4384 = vsub.f32 1.0, %v3868
    %v4385 = vsub.f32 1.0, %v3869
    %v4386 = vsub.f32 1.0, %v3870
    %v4387 = vsub.f32 1.0, %v3871
    %v4388 = vsub.f32 1.0, %v3872
    %v4389 = vsub.f32 1.0, %v3873
    %v4390 = vsub.f32 1.0, %v3874
    %v4391 = vsub.f32 1.0, %v3875
    %v4392 = vsub.f32 1.0, %v3876
    %v4393 = vsub.f32 1.0, %v3877
    %v4394 = vsub.f32 1.0, %v3878
    %v4395 = vsub.f32 1.0, %v3879
    %v4396 = vsub.f32 1.0, %v3880
    %v4397 = vsub.f32 1.0, %v3881
    %v4398 = vsub.f32 1.0, %v3882
    %v4399 = vsub.f32 1.0, %v3883
    %v4400 = vsub.f32 1.0, %v3884
    %v4401 = vsub.f32 1.0, %v3885
    %v4402 = vsub.f32 1.0, %v3886
    %v4403 = vsub.f32 1.0, %v3887
    %v4404 = vsub.f32 1.0, %v3888
    %v4405 = vsub.f32 1.0, %v3889
    %v4406 = vsub.f32 1.0, %v3890
    %v4407 = vsub.f32 1.0, %v3891
    %v4408 = vsub.f32 1.0, %v3892
    %v4409 = vsub.f32 1.0, %v3893
    %v4410 = vsub.f32 1.0, %v3894
    %v4411 = vsub.f32 1.0, %v3895
    %v4412 = vsub.f32 1.0, %v3896
    %v4413 = vsub.f32 1.0, %v3897
    %v4414 = vsub.f32 1.0, %v3898
    %v4415 = vsub.f32 1.0, %v3899
    %v4416 = vsub.f32 1.0, %v3900
    %v4417 = vsub.f32 1.0, %v3901
    %v4418 = vsub.f32 1.0, %v3902
    %v4547 = vlaneseq
    %v4548 = vshrl.u32 %v4547, 7
    %v4549 = vsub.s32 %v2322, %v4548
    %v4550 = vrot.slane %v4291, %v4549
    %v4551 = vadd.s32 %v2322, 4294967288
    %v4552 = vlaneseq
    %v4553 = vshrl.u32 %v4552, 7
    %v4554 = vsub.s32 %v4551, %v4553
    %v4555 = vrot.slane %v4292, %v4554
    %vm4556 = vcmask 130112
    %v4557 = vsel %vm4556, %v4555, %v4550
    %v4558 = vadd.s32 %v2322, 4294967280
    %v4559 = vlaneseq
    %v4560 = vshrl.u32 %v4559, 7
    %v4561 = vsub.s32 %v4558, %v4560
    %v4562 = vrot.slane %v4293, %v4561
    %vm4563 = vcmask 195712
    %v4564 = vsel %vm4563, %v4562, %v4557
    %v4565 = vadd.s32 %v2322, 4294967272
    %v4566 = vlaneseq
    %v4567 = vshrl.u32 %v4566, 7
    %v4568 = vsub.s32 %v4565, %v4567
    %v4569 = vrot.slane %v4294, %v4568
    %vm4570 = vcmask 261312
    %v4571 = vsel %vm4570, %v4569, %v4564
    %v4572 = vlaneseq
    %v4573 = vshrl.u32 %v4572, 7
    %v4574 = vsub.s32 %v2322, %v4573
    %v4575 = vrot.slane %v4295, %v4574
    %v4576 = vlaneseq
    %v4577 = vshrl.u32 %v4576, 7
    %v4578 = vsub.s32 %v4551, %v4577
    %v4579 = vrot.slane %v4296, %v4578
    %v4580 = vsel %vm4556, %v4579, %v4575
    %v4581 = vlaneseq
    %v4582 = vshrl.u32 %v4581, 7
    %v4583 = vsub.s32 %v4558, %v4582
    %v4584 = vrot.slane %v4297, %v4583
    %v4585 = vsel %vm4563, %v4584, %v4580
    %v4586 = vlaneseq
    %v4587 = vshrl.u32 %v4586, 7
    %v4588 = vsub.s32 %v4565, %v4587
    %v4589 = vrot.slane %v4298, %v4588
    %v4590 = vsel %vm4570, %v4589, %v4585
    %v4591 = vlaneseq
    %v4592 = vshrl.u32 %v4591, 7
    %v4593 = vsub.s32 %v2322, %v4592
    %v4594 = vrot.slane %v4299, %v4593
    %v4595 = vlaneseq
    %v4596 = vshrl.u32 %v4595, 7
    %v4597 = vsub.s32 %v4551, %v4596
    %v4598 = vrot.slane %v4300, %v4597
    %v4599 = vsel %vm4556, %v4598, %v4594
    %v4600 = vlaneseq
    %v4601 = vshrl.u32 %v4600, 7
    %v4602 = vsub.s32 %v4558, %v4601
    %v4603 = vrot.slane %v4301, %v4602
    %v4604 = vsel %vm4563, %v4603, %v4599
    %v4605 = vlaneseq
    %v4606 = vshrl.u32 %v4605, 7
    %v4607 = vsub.s32 %v4565, %v4606
    %v4608 = vrot.slane %v4302, %v4607
    %v4609 = vsel %vm4570, %v4608, %v4604
    %v4610 = vlaneseq
    %v4611 = vshrl.u32 %v4610, 7
    %v4612 = vsub.s32 %v2322, %v4611
    %v4613 = vrot.slane %v4303, %v4612
    %v4614 = vlaneseq
    %v4615 = vshrl.u32 %v4614, 7
    %v4616 = vsub.s32 %v4551, %v4615
    %v4617 = vrot.slane %v4304, %v4616
    %v4618 = vsel %vm4556, %v4617, %v4613
    %v4619 = vlaneseq
    %v4620 = vshrl.u32 %v4619, 7
    %v4621 = vsub.s32 %v4558, %v4620
    %v4622 = vrot.slane %v4305, %v4621
    %v4623 = vsel %vm4563, %v4622, %v4618
    %v4624 = vlaneseq
    %v4625 = vshrl.u32 %v4624, 7
    %v4626 = vsub.s32 %v4565, %v4625
    %v4627 = vrot.slane %v4306, %v4626
    %v4628 = vsel %vm4570, %v4627, %v4623
    %v4629 = vlaneseq
    %v4630 = vshrl.u32 %v4629, 7
    %v4631 = vsub.s32 %v2322, %v4630
    %v4632 = vrot.slane %v4307, %v4631
    %v4633 = vlaneseq
    %v4634 = vshrl.u32 %v4633, 7
    %v4635 = vsub.s32 %v4551, %v4634
    %v4636 = vrot.slane %v4308, %v4635
    %v4637 = vsel %vm4556, %v4636, %v4632
    %v4638 = vlaneseq
    %v4639 = vshrl.u32 %v4638, 7
    %v4640 = vsub.s32 %v4558, %v4639
    %v4641 = vrot.slane %v4309, %v4640
    %v4642 = vsel %vm4563, %v4641, %v4637
    %v4643 = vlaneseq
    %v4644 = vshrl.u32 %v4643, 7
    %v4645 = vsub.s32 %v4565, %v4644
    %v4646 = vrot.slane %v4310, %v4645
    %v4647 = vsel %vm4570, %v4646, %v4642
    %v4648 = vlaneseq
    %v4649 = vshrl.u32 %v4648, 7
    %v4650 = vsub.s32 %v2322, %v4649
    %v4651 = vrot.slane %v4311, %v4650
    %v4652 = vlaneseq
    %v4653 = vshrl.u32 %v4652, 7
    %v4654 = vsub.s32 %v4551, %v4653
    %v4655 = vrot.slane %v4312, %v4654
    %v4656 = vsel %vm4556, %v4655, %v4651
    %v4657 = vlaneseq
    %v4658 = vshrl.u32 %v4657, 7
    %v4659 = vsub.s32 %v4558, %v4658
    %v4660 = vrot.slane %v4313, %v4659
    %v4661 = vsel %vm4563, %v4660, %v4656
    %v4662 = vlaneseq
    %v4663 = vshrl.u32 %v4662, 7
    %v4664 = vsub.s32 %v4565, %v4663
    %v4665 = vrot.slane %v4314, %v4664
    %v4666 = vsel %vm4570, %v4665, %v4661
    %v4667 = vlaneseq
    %v4668 = vshrl.u32 %v4667, 7
    %v4669 = vsub.s32 %v2322, %v4668
    %v4670 = vrot.slane %v4315, %v4669
    %v4671 = vlaneseq
    %v4672 = vshrl.u32 %v4671, 7
    %v4673 = vsub.s32 %v4551, %v4672
    %v4674 = vrot.slane %v4316, %v4673
    %v4675 = vsel %vm4556, %v4674, %v4670
    %v4676 = vlaneseq
    %v4677 = vshrl.u32 %v4676, 7
    %v4678 = vsub.s32 %v4558, %v4677
    %v4679 = vrot.slane %v4317, %v4678
    %v4680 = vsel %vm4563, %v4679, %v4675
    %v4681 = vlaneseq
    %v4682 = vshrl.u32 %v4681, 7
    %v4683 = vsub.s32 %v4565, %v4682
    %v4684 = vrot.slane %v4318, %v4683
    %v4685 = vsel %vm4570, %v4684, %v4680
    %v4686 = vlaneseq
    %v4687 = vshrl.u32 %v4686, 7
    %v4688 = vsub.s32 %v2322, %v4687
    %v4689 = vrot.slane %v4319, %v4688
    %v4690 = vlaneseq
    %v4691 = vshrl.u32 %v4690, 7
    %v4692 = vsub.s32 %v4551, %v4691
    %v4693 = vrot.slane %v4320, %v4692
    %v4694 = vsel %vm4556, %v4693, %v4689
    %v4695 = vlaneseq
    %v4696 = vshrl.u32 %v4695, 7
    %v4697 = vsub.s32 %v4558, %v4696
    %v4698 = vrot.slane %v4321, %v4697
    %v4699 = vsel %vm4563, %v4698, %v4694
    %v4700 = vlaneseq
    %v4701 = vshrl.u32 %v4700, 7
    %v4702 = vsub.s32 %v4565, %v4701
    %v4703 = vrot.slane %v4322, %v4702
    %v4704 = vsel %vm4570, %v4703, %v4699
    %v4705 = vlaneseq
    %v4706 = vshrl.u32 %v4705, 7
    %v4707 = vsub.s32 %v2322, %v4706
    %v4708 = vrot.slane %v4323, %v4707
    %v4709 = vlaneseq
    %v4710 = vshrl.u32 %v4709, 7
    %v4711 = vsub.s32 %v4551, %v4710
    %v4712 = vrot.slane %v4324, %v4711
    %v4713 = vsel %vm4556, %v4712, %v4708
    %v4714 = vlaneseq
    %v4715 = vshrl.u32 %v4714, 7
    %v4716 = vsub.s32 %v4558, %v4715
    %v4717 = vrot.slane %v4325, %v4716
    %v4718 = vsel %vm4563, %v4717, %v4713
    %v4719 = vlaneseq
    %v4720 = vshrl.u32 %v4719, 7
    %v4721 = vsub.s32 %v4565, %v4720
    %v4722 = vrot.slane %v4326, %v4721
    %v4723 = vsel %vm4570, %v4722, %v4718
    %v4724 = vlaneseq
    %v4725 = vshrl.u32 %v4724, 7
    %v4726 = vsub.s32 %v2322, %v4725
    %v4727 = vrot.slane %v4327, %v4726
    %v4728 = vlaneseq
    %v4729 = vshrl.u32 %v4728, 7
    %v4730 = vsub.s32 %v4551, %v4729
    %v4731 = vrot.slane %v4328, %v4730
    %v4732 = vsel %vm4556, %v4731, %v4727
    %v4733 = vlaneseq
    %v4734 = vshrl.u32 %v4733, 7
    %v4735 = vsub.s32 %v4558, %v4734
    %v4736 = vrot.slane %v4329, %v4735
    %v4737 = vsel %vm4563, %v4736, %v4732
    %v4738 = vlaneseq
    %v4739 = vshrl.u32 %v4738, 7
    %v4740 = vsub.s32 %v4565, %v4739
    %v4741 = vrot.slane %v4330, %v4740
    %v4742 = vsel %vm4570, %v4741, %v4737
    %v4743 = vlaneseq
    %v4744 = vshrl.u32 %v4743, 7
    %v4745 = vsub.s32 %v2322, %v4744
    %v4746 = vrot.slane %v4331, %v4745
    %v4747 = vlaneseq
    %v4748 = vshrl.u32 %v4747, 7
    %v4749 = vsub.s32 %v4551, %v4748
    %v4750 = vrot.slane %v4332, %v4749
    %v4751 = vsel %vm4556, %v4750, %v4746
    %v4752 = vlaneseq
    %v4753 = vshrl.u32 %v4752, 7
    %v4754 = vsub.s32 %v4558, %v4753
    %v4755 = vrot.slane %v4333, %v4754
    %v4756 = vsel %vm4563, %v4755, %v4751
    %v4757 = vlaneseq
    %v4758 = vshrl.u32 %v4757, 7
    %v4759 = vsub.s32 %v4565, %v4758
    %v4760 = vrot.slane %v4334, %v4759
    %v4761 = vsel %vm4570, %v4760, %v4756
    %v4762 = vlaneseq
    %v4763 = vshrl.u32 %v4762, 7
    %v4764 = vsub.s32 %v2322, %v4763
    %v4765 = vrot.slane %v4335, %v4764
    %v4766 = vlaneseq
    %v4767 = vshrl.u32 %v4766, 7
    %v4768 = vsub.s32 %v4551, %v4767
    %v4769 = vrot.slane %v4336, %v4768
    %v4770 = vsel %vm4556, %v4769, %v4765
    %v4771 = vlaneseq
    %v4772 = vshrl.u32 %v4771, 7
    %v4773 = vsub.s32 %v4558, %v4772
    %v4774 = vrot.slane %v4337, %v4773
    %v4775 = vsel %vm4563, %v4774, %v4770
    %v4776 = vlaneseq
    %v4777 = vshrl.u32 %v4776, 7
    %v4778 = vsub.s32 %v4565, %v4777
    %v4779 = vrot.slane %v4338, %v4778
    %v4780 = vsel %vm4570, %v4779, %v4775
    %v4781 = vlaneseq
    %v4782 = vshrl.u32 %v4781, 7
    %v4783 = vsub.s32 %v2322, %v4782
    %v4784 = vrot.slane %v4339, %v4783
    %v4785 = vlaneseq
    %v4786 = vshrl.u32 %v4785, 7
    %v4787 = vsub.s32 %v4551, %v4786
    %v4788 = vrot.slane %v4340, %v4787
    %v4789 = vsel %vm4556, %v4788, %v4784
    %v4790 = vlaneseq
    %v4791 = vshrl.u32 %v4790, 7
    %v4792 = vsub.s32 %v4558, %v4791
    %v4793 = vrot.slane %v4341, %v4792
    %v4794 = vsel %vm4563, %v4793, %v4789
    %v4795 = vlaneseq
    %v4796 = vshrl.u32 %v4795, 7
    %v4797 = vsub.s32 %v4565, %v4796
    %v4798 = vrot.slane %v4342, %v4797
    %v4799 = vsel %vm4570, %v4798, %v4794
    %v4800 = vlaneseq
    %v4801 = vshrl.u32 %v4800, 7
    %v4802 = vsub.s32 %v2322, %v4801
    %v4803 = vrot.slane %v4343, %v4802
    %v4804 = vlaneseq
    %v4805 = vshrl.u32 %v4804, 7
    %v4806 = vsub.s32 %v4551, %v4805
    %v4807 = vrot.slane %v4344, %v4806
    %v4808 = vsel %vm4556, %v4807, %v4803
    %v4809 = vlaneseq
    %v4810 = vshrl.u32 %v4809, 7
    %v4811 = vsub.s32 %v4558, %v4810
    %v4812 = vrot.slane %v4345, %v4811
    %v4813 = vsel %vm4563, %v4812, %v4808
    %v4814 = vlaneseq
    %v4815 = vshrl.u32 %v4814, 7
    %v4816 = vsub.s32 %v4565, %v4815
    %v4817 = vrot.slane %v4346, %v4816
    %v4818 = vsel %vm4570, %v4817, %v4813
    %v4819 = vlaneseq
    %v4820 = vshrl.u32 %v4819, 7
    %v4821 = vsub.s32 %v2322, %v4820
    %v4822 = vrot.slane %v4347, %v4821
    %v4823 = vlaneseq
    %v4824 = vshrl.u32 %v4823, 7
    %v4825 = vsub.s32 %v4551, %v4824
    %v4826 = vrot.slane %v4348, %v4825
    %v4827 = vsel %vm4556, %v4826, %v4822
    %v4828 = vlaneseq
    %v4829 = vshrl.u32 %v4828, 7
    %v4830 = vsub.s32 %v4558, %v4829
    %v4831 = vrot.slane %v4349, %v4830
    %v4832 = vsel %vm4563, %v4831, %v4827
    %v4833 = vlaneseq
    %v4834 = vshrl.u32 %v4833, 7
    %v4835 = vsub.s32 %v4565, %v4834
    %v4836 = vrot.slane %v4350, %v4835
    %v4837 = vsel %vm4570, %v4836, %v4832
    %v4838 = vlaneseq
    %v4839 = vshrl.u32 %v4838, 7
    %v4840 = vsub.s32 %v2322, %v4839
    %v4841 = vrot.slane %v4351, %v4840
    %v4842 = vlaneseq
    %v4843 = vshrl.u32 %v4842, 7
    %v4844 = vsub.s32 %v4551, %v4843
    %v4845 = vrot.slane %v4352, %v4844
    %v4846 = vsel %vm4556, %v4845, %v4841
    %v4847 = vlaneseq
    %v4848 = vshrl.u32 %v4847, 7
    %v4849 = vsub.s32 %v4558, %v4848
    %v4850 = vrot.slane %v4353, %v4849
    %v4851 = vsel %vm4563, %v4850, %v4846
    %v4852 = vlaneseq
    %v4853 = vshrl.u32 %v4852, 7
    %v4854 = vsub.s32 %v4565, %v4853
    %v4855 = vrot.slane %v4354, %v4854
    %v4856 = vsel %vm4570, %v4855, %v4851
    %v4857 = vlaneseq
    %v4858 = vshrl.u32 %v4857, 7
    %v4859 = vsub.s32 %v2322, %v4858
    %v4860 = vrot.slane %v4355, %v4859
    %v4861 = vlaneseq
    %v4862 = vshrl.u32 %v4861, 7
    %v4863 = vsub.s32 %v4551, %v4862
    %v4864 = vrot.slane %v4356, %v4863
    %v4865 = vsel %vm4556, %v4864, %v4860
    %v4866 = vlaneseq
    %v4867 = vshrl.u32 %v4866, 7
    %v4868 = vsub.s32 %v4558, %v4867
    %v4869 = vrot.slane %v4357, %v4868
    %v4870 = vsel %vm4563, %v4869, %v4865
    %v4871 = vlaneseq
    %v4872 = vshrl.u32 %v4871, 7
    %v4873 = vsub.s32 %v4565, %v4872
    %v4874 = vrot.slane %v4358, %v4873
    %v4875 = vsel %vm4570, %v4874, %v4870
    %v4876 = vlaneseq
    %v4877 = vshrl.u32 %v4876, 7
    %v4878 = vsub.s32 %v2322, %v4877
    %v4879 = vrot.slane %v4359, %v4878
    %v4880 = vlaneseq
    %v4881 = vshrl.u32 %v4880, 7
    %v4882 = vsub.s32 %v4551, %v4881
    %v4883 = vrot.slane %v4360, %v4882
    %v4884 = vsel %vm4556, %v4883, %v4879
    %v4885 = vlaneseq
    %v4886 = vshrl.u32 %v4885, 7
    %v4887 = vsub.s32 %v4558, %v4886
    %v4888 = vrot.slane %v4361, %v4887
    %v4889 = vsel %vm4563, %v4888, %v4884
    %v4890 = vlaneseq
    %v4891 = vshrl.u32 %v4890, 7
    %v4892 = vsub.s32 %v4565, %v4891
    %v4893 = vrot.slane %v4362, %v4892
    %v4894 = vsel %vm4570, %v4893, %v4889
    %v4895 = vlaneseq
    %v4896 = vshrl.u32 %v4895, 7
    %v4897 = vsub.s32 %v2322, %v4896
    %v4898 = vrot.slane %v4363, %v4897
    %v4899 = vlaneseq
    %v4900 = vshrl.u32 %v4899, 7
    %v4901 = vsub.s32 %v4551, %v4900
    %v4902 = vrot.slane %v4364, %v4901
    %v4903 = vsel %vm4556, %v4902, %v4898
    %v4904 = vlaneseq
    %v4905 = vshrl.u32 %v4904, 7
    %v4906 = vsub.s32 %v4558, %v4905
    %v4907 = vrot.slane %v4365, %v4906
    %v4908 = vsel %vm4563, %v4907, %v4903
    %v4909 = vlaneseq
    %v4910 = vshrl.u32 %v4909, 7
    %v4911 = vsub.s32 %v4565, %v4910
    %v4912 = vrot.slane %v4366, %v4911
    %v4913 = vsel %vm4570, %v4912, %v4908
    %v4914 = vlaneseq
    %v4915 = vshrl.u32 %v4914, 7
    %v4916 = vsub.s32 %v2322, %v4915
    %v4917 = vrot.slane %v4367, %v4916
    %v4918 = vlaneseq
    %v4919 = vshrl.u32 %v4918, 7
    %v4920 = vsub.s32 %v4551, %v4919
    %v4921 = vrot.slane %v4368, %v4920
    %v4922 = vsel %vm4556, %v4921, %v4917
    %v4923 = vlaneseq
    %v4924 = vshrl.u32 %v4923, 7
    %v4925 = vsub.s32 %v4558, %v4924
    %v4926 = vrot.slane %v4369, %v4925
    %v4927 = vsel %vm4563, %v4926, %v4922
    %v4928 = vlaneseq
    %v4929 = vshrl.u32 %v4928, 7
    %v4930 = vsub.s32 %v4565, %v4929
    %v4931 = vrot.slane %v4370, %v4930
    %v4932 = vsel %vm4570, %v4931, %v4927
    %v4933 = vlaneseq
    %v4934 = vshrl.u32 %v4933, 7
    %v4935 = vsub.s32 %v2322, %v4934
    %v4936 = vrot.slane %v4371, %v4935
    %v4937 = vlaneseq
    %v4938 = vshrl.u32 %v4937, 7
    %v4939 = vsub.s32 %v4551, %v4938
    %v4940 = vrot.slane %v4372, %v4939
    %v4941 = vsel %vm4556, %v4940, %v4936
    %v4942 = vlaneseq
    %v4943 = vshrl.u32 %v4942, 7
    %v4944 = vsub.s32 %v4558, %v4943
    %v4945 = vrot.slane %v4373, %v4944
    %v4946 = vsel %vm4563, %v4945, %v4941
    %v4947 = vlaneseq
    %v4948 = vshrl.u32 %v4947, 7
    %v4949 = vsub.s32 %v4565, %v4948
    %v4950 = vrot.slane %v4374, %v4949
    %v4951 = vsel %vm4570, %v4950, %v4946
    %v4952 = vlaneseq
    %v4953 = vshrl.u32 %v4952, 7
    %v4954 = vsub.s32 %v2322, %v4953
    %v4955 = vrot.slane %v4375, %v4954
    %v4956 = vlaneseq
    %v4957 = vshrl.u32 %v4956, 7
    %v4958 = vsub.s32 %v4551, %v4957
    %v4959 = vrot.slane %v4376, %v4958
    %v4960 = vsel %vm4556, %v4959, %v4955
    %v4961 = vlaneseq
    %v4962 = vshrl.u32 %v4961, 7
    %v4963 = vsub.s32 %v4558, %v4962
    %v4964 = vrot.slane %v4377, %v4963
    %v4965 = vsel %vm4563, %v4964, %v4960
    %v4966 = vlaneseq
    %v4967 = vshrl.u32 %v4966, 7
    %v4968 = vsub.s32 %v4565, %v4967
    %v4969 = vrot.slane %v4378, %v4968
    %v4970 = vsel %vm4570, %v4969, %v4965
    %v4971 = vlaneseq
    %v4972 = vshrl.u32 %v4971, 7
    %v4973 = vsub.s32 %v2322, %v4972
    %v4974 = vrot.slane %v4379, %v4973
    %v4975 = vlaneseq
    %v4976 = vshrl.u32 %v4975, 7
    %v4977 = vsub.s32 %v4551, %v4976
    %v4978 = vrot.slane %v4380, %v4977
    %v4979 = vsel %vm4556, %v4978, %v4974
    %v4980 = vlaneseq
    %v4981 = vshrl.u32 %v4980, 7
    %v4982 = vsub.s32 %v4558, %v4981
    %v4983 = vrot.slane %v4381, %v4982
    %v4984 = vsel %vm4563, %v4983, %v4979
    %v4985 = vlaneseq
    %v4986 = vshrl.u32 %v4985, 7
    %v4987 = vsub.s32 %v4565, %v4986
    %v4988 = vrot.slane %v4382, %v4987
    %v4989 = vsel %vm4570, %v4988, %v4984
    %v4990 = vlaneseq
    %v4991 = vshrl.u32 %v4990, 7
    %v4992 = vsub.s32 %v2322, %v4991
    %v4993 = vrot.slane %v4383, %v4992
    %v4994 = vlaneseq
    %v4995 = vshrl.u32 %v4994, 7
    %v4996 = vsub.s32 %v4551, %v4995
    %v4997 = vrot.slane %v4384, %v4996
    %v4998 = vsel %vm4556, %v4997, %v4993
    %v4999 = vlaneseq
    %v5000 = vshrl.u32 %v4999, 7
    %v5001 = vsub.s32 %v4558, %v5000
    %v5002 = vrot.slane %v4385, %v5001
    %v5003 = vsel %vm4563, %v5002, %v4998
    %v5004 = vlaneseq
    %v5005 = vshrl.u32 %v5004, 7
    %v5006 = vsub.s32 %v4565, %v5005
    %v5007 = vrot.slane %v4386, %v5006
    %v5008 = vsel %vm4570, %v5007, %v5003
    %v5009 = vlaneseq
    %v5010 = vshrl.u32 %v5009, 7
    %v5011 = vsub.s32 %v2322, %v5010
    %v5012 = vrot.slane %v4387, %v5011
    %v5013 = vlaneseq
    %v5014 = vshrl.u32 %v5013, 7
    %v5015 = vsub.s32 %v4551, %v5014
    %v5016 = vrot.slane %v4388, %v5015
    %v5017 = vsel %vm4556, %v5016, %v5012
    %v5018 = vlaneseq
    %v5019 = vshrl.u32 %v5018, 7
    %v5020 = vsub.s32 %v4558, %v5019
    %v5021 = vrot.slane %v4389, %v5020
    %v5022 = vsel %vm4563, %v5021, %v5017
    %v5023 = vlaneseq
    %v5024 = vshrl.u32 %v5023, 7
    %v5025 = vsub.s32 %v4565, %v5024
    %v5026 = vrot.slane %v4390, %v5025
    %v5027 = vsel %vm4570, %v5026, %v5022
    %v5028 = vlaneseq
    %v5029 = vshrl.u32 %v5028, 7
    %v5030 = vsub.s32 %v2322, %v5029
    %v5031 = vrot.slane %v4391, %v5030
    %v5032 = vlaneseq
    %v5033 = vshrl.u32 %v5032, 7
    %v5034 = vsub.s32 %v4551, %v5033
    %v5035 = vrot.slane %v4392, %v5034
    %v5036 = vsel %vm4556, %v5035, %v5031
    %v5037 = vlaneseq
    %v5038 = vshrl.u32 %v5037, 7
    %v5039 = vsub.s32 %v4558, %v5038
    %v5040 = vrot.slane %v4393, %v5039
    %v5041 = vsel %vm4563, %v5040, %v5036
    %v5042 = vlaneseq
    %v5043 = vshrl.u32 %v5042, 7
    %v5044 = vsub.s32 %v4565, %v5043
    %v5045 = vrot.slane %v4394, %v5044
    %v5046 = vsel %vm4570, %v5045, %v5041
    %v5047 = vlaneseq
    %v5048 = vshrl.u32 %v5047, 7
    %v5049 = vsub.s32 %v2322, %v5048
    %v5050 = vrot.slane %v4395, %v5049
    %v5051 = vlaneseq
    %v5052 = vshrl.u32 %v5051, 7
    %v5053 = vsub.s32 %v4551, %v5052
    %v5054 = vrot.slane %v4396, %v5053
    %v5055 = vsel %vm4556, %v5054, %v5050
    %v5056 = vlaneseq
    %v5057 = vshrl.u32 %v5056, 7
    %v5058 = vsub.s32 %v4558, %v5057
    %v5059 = vrot.slane %v4397, %v5058
    %v5060 = vsel %vm4563, %v5059, %v5055
    %v5061 = vlaneseq
    %v5062 = vshrl.u32 %v5061, 7
    %v5063 = vsub.s32 %v4565, %v5062
    %v5064 = vrot.slane %v4398, %v5063
    %v5065 = vsel %vm4570, %v5064, %v5060
    %v5066 = vlaneseq
    %v5067 = vshrl.u32 %v5066, 7
    %v5068 = vsub.s32 %v2322, %v5067
    %v5069 = vrot.slane %v4399, %v5068
    %v5070 = vlaneseq
    %v5071 = vshrl.u32 %v5070, 7
    %v5072 = vsub.s32 %v4551, %v5071
    %v5073 = vrot.slane %v4400, %v5072
    %v5074 = vsel %vm4556, %v5073, %v5069
    %v5075 = vlaneseq
    %v5076 = vshrl.u32 %v5075, 7
    %v5077 = vsub.s32 %v4558, %v5076
    %v5078 = vrot.slane %v4401, %v5077
    %v5079 = vsel %vm4563, %v5078, %v5074
    %v5080 = vlaneseq
    %v5081 = vshrl.u32 %v5080, 7
    %v5082 = vsub.s32 %v4565, %v5081
    %v5083 = vrot.slane %v4402, %v5082
    %v5084 = vsel %vm4570, %v5083, %v5079
    %v5085 = vlaneseq
    %v5086 = vshrl.u32 %v5085, 7
    %v5087 = vsub.s32 %v2322, %v5086
    %v5088 = vrot.slane %v4403, %v5087
    %v5089 = vlaneseq
    %v5090 = vshrl.u32 %v5089, 7
    %v5091 = vsub.s32 %v4551, %v5090
    %v5092 = vrot.slane %v4404, %v5091
    %v5093 = vsel %vm4556, %v5092, %v5088
    %v5094 = vlaneseq
    %v5095 = vshrl.u32 %v5094, 7
    %v5096 = vsub.s32 %v4558, %v5095
    %v5097 = vrot.slane %v4405, %v5096
    %v5098 = vsel %vm4563, %v5097, %v5093
    %v5099 = vlaneseq
    %v5100 = vshrl.u32 %v5099, 7
    %v5101 = vsub.s32 %v4565, %v5100
    %v5102 = vrot.slane %v4406, %v5101
    %v5103 = vsel %vm4570, %v5102, %v5098
    %v5104 = vlaneseq
    %v5105 = vshrl.u32 %v5104, 7
    %v5106 = vsub.s32 %v2322, %v5105
    %v5107 = vrot.slane %v4407, %v5106
    %v5108 = vlaneseq
    %v5109 = vshrl.u32 %v5108, 7
    %v5110 = vsub.s32 %v4551, %v5109
    %v5111 = vrot.slane %v4408, %v5110
    %v5112 = vsel %vm4556, %v5111, %v5107
    %v5113 = vlaneseq
    %v5114 = vshrl.u32 %v5113, 7
    %v5115 = vsub.s32 %v4558, %v5114
    %v5116 = vrot.slane %v4409, %v5115
    %v5117 = vsel %vm4563, %v5116, %v5112
    %v5118 = vlaneseq
    %v5119 = vshrl.u32 %v5118, 7
    %v5120 = vsub.s32 %v4565, %v5119
    %v5121 = vrot.slane %v4410, %v5120
    %v5122 = vsel %vm4570, %v5121, %v5117
    %v5123 = vlaneseq
    %v5124 = vshrl.u32 %v5123, 7
    %v5125 = vsub.s32 %v2322, %v5124
    %v5126 = vrot.slane %v4411, %v5125
    %v5127 = vlaneseq
    %v5128 = vshrl.u32 %v5127, 7
    %v5129 = vsub.s32 %v4551, %v5128
    %v5130 = vrot.slane %v4412, %v5129
    %v5131 = vsel %vm4556, %v5130, %v5126
    %v5132 = vlaneseq
    %v5133 = vshrl.u32 %v5132, 7
    %v5134 = vsub.s32 %v4558, %v5133
    %v5135 = vrot.slane %v4413, %v5134
    %v5136 = vsel %vm4563, %v5135, %v5131
    %v5137 = vlaneseq
    %v5138 = vshrl.u32 %v5137, 7
    %v5139 = vsub.s32 %v4565, %v5138
    %v5140 = vrot.slane %v4414, %v5139
    %v5141 = vsel %vm4570, %v5140, %v5136
    %v5142 = vlaneseq
    %v5143 = vshrl.u32 %v5142, 7
    %v5144 = vsub.s32 %v2322, %v5143
    %v5145 = vrot.slane %v4415, %v5144
    %v5146 = vlaneseq
    %v5147 = vshrl.u32 %v5146, 7
    %v5148 = vsub.s32 %v4551, %v5147
    %v5149 = vrot.slane %v4416, %v5148
    %v5150 = vsel %vm4556, %v5149, %v5145
    %v5151 = vlaneseq
    %v5152 = vshrl.u32 %v5151, 7
    %v5153 = vsub.s32 %v4558, %v5152
    %v5154 = vrot.slane %v4417, %v5153
    %v5155 = vsel %vm4563, %v5154, %v5150
    %v5156 = vlaneseq
    %v5157 = vshrl.u32 %v5156, 7
    %v5158 = vsub.s32 %v4565, %v5157
    %v5159 = vrot.slane %v4418, %v5158
    %v5160 = vsel %vm4570, %v5159, %v5155
    %vm5161 = vcmask 1041409
    %v5162 = vsel %vm5161, %v4590, %v4571
    %vm5163 = vcmask 1042434
    %v5164 = vsel %vm5163, %v4609, %v5162
    %vm5165 = vcmask 1043459
    %v5166 = vsel %vm5165, %v4628, %v5164
    %vm5167 = vcmask 1044484
    %v5168 = vsel %vm5167, %v4647, %v5166
    %vm5169 = vcmask 1045509
    %v5170 = vsel %vm5169, %v4666, %v5168
    %vm5171 = vcmask 1046534
    %v5172 = vsel %vm5171, %v4685, %v5170
    %vm5173 = vcmask 1047559
    %v5174 = vsel %vm5173, %v4704, %v5172
    %v5175 = vsel %vm5161, %v4742, %v4723
    %v5176 = vsel %vm5163, %v4761, %v5175
    %v5177 = vsel %vm5165, %v4780, %v5176
    %v5178 = vsel %vm5167, %v4799, %v5177
    %v5179 = vsel %vm5169, %v4818, %v5178
    %v5180 = vsel %vm5171, %v4837, %v5179
    %v5181 = vsel %vm5173, %v4856, %v5180
    %v5182 = vsel %vm5161, %v4894, %v4875
    %v5183 = vsel %vm5163, %v4913, %v5182
    %v5184 = vsel %vm5165, %v4932, %v5183
    %v5185 = vsel %vm5167, %v4951, %v5184
    %v5186 = vsel %vm5169, %v4970, %v5185
    %v5187 = vsel %vm5171, %v4989, %v5186
    %v5188 = vsel %vm5173, %v5008, %v5187
    %v5189 = vsel %vm5161, %v5046, %v5027
    %v5190 = vsel %vm5163, %v5065, %v5189
    %v5191 = vsel %vm5165, %v5084, %v5190
    %v5192 = vsel %vm5167, %v5103, %v5191
    %v5193 = vsel %vm5169, %v5122, %v5192
    %v5194 = vsel %vm5171, %v5141, %v5193
    %v5195 = vsel %vm5173, %v5160, %v5194
    %v5200 = vmul.f32 %v4287, %v5174
    %v5201 = vmul.f32 %v4288, %v5181
    %v5202 = vmul.f32 %v4289, %v5188
    %v5203 = vmul.f32 %v4290, %v5195
    %v5204 = vsel %vm175, %v5200, -inf
    %5205 = vmax.xlane.f32.xlu0 %v5204
    %v5206 = vpop.xlane.xlu0 %5205
    %v5207 = vsel %vm175, %v5201, -inf
    %5208 = vmax.xlane.f32.xlu0 %v5207
    %v5209 = vpop.xlane.xlu0 %5208
    %v5210 = vsel %vm175, %v5202, -inf
    %5211 = vmax.xlane.f32.xlu0 %v5210
    %v5212 = vpop.xlane.xlu0 %5211
    %v5213 = vsel %vm175, %v5203, -inf
    %5214 = vmax.xlane.f32.xlu0 %v5213
    %v5215 = vpop.xlane.xlu0 %5214
    %vm5216 = vcmp.gt.f32.partialorder %v5206, 0.0
    %vm5217 = vcmp.gt.f32.partialorder %v5209, 0.0
    %vm5218 = vcmp.gt.f32.partialorder %v5212, 0.0
    %vm5219 = vcmp.gt.f32.partialorder %v5215, 0.0
    %vm5220 = vcmp.gt.f32.partialorder %v4159, 0.0
    %vm5221 = vcmp.gt.f32.partialorder %v4160, 0.0
    %vm5222 = vcmp.gt.f32.partialorder %v4161, 0.0
    %vm5223 = vcmp.gt.f32.partialorder %v4162, 0.0
    %vm5224 = vcmp.gt.f32.partialorder %v4163, 0.0
    %vm5225 = vcmp.gt.f32.partialorder %v4164, 0.0
    %vm5226 = vcmp.gt.f32.partialorder %v4165, 0.0
    %vm5227 = vcmp.gt.f32.partialorder %v4166, 0.0
    %vm5228 = vcmp.gt.f32.partialorder %v4167, 0.0
    %vm5229 = vcmp.gt.f32.partialorder %v4168, 0.0
    %vm5230 = vcmp.gt.f32.partialorder %v4169, 0.0
    %vm5231 = vcmp.gt.f32.partialorder %v4170, 0.0
    %vm5232 = vcmp.gt.f32.partialorder %v4171, 0.0
    %vm5233 = vcmp.gt.f32.partialorder %v4172, 0.0
    %vm5234 = vcmp.gt.f32.partialorder %v4173, 0.0
    %vm5235 = vcmp.gt.f32.partialorder %v4174, 0.0
    %vm5236 = vcmp.gt.f32.partialorder %v4175, 0.0
    %vm5237 = vcmp.gt.f32.partialorder %v4176, 0.0
    %vm5238 = vcmp.gt.f32.partialorder %v4177, 0.0
    %vm5239 = vcmp.gt.f32.partialorder %v4178, 0.0
    %vm5240 = vcmp.gt.f32.partialorder %v4179, 0.0
    %vm5241 = vcmp.gt.f32.partialorder %v4180, 0.0
    %vm5242 = vcmp.gt.f32.partialorder %v4181, 0.0
    %vm5243 = vcmp.gt.f32.partialorder %v4182, 0.0
    %vm5244 = vcmp.gt.f32.partialorder %v4183, 0.0
    %vm5245 = vcmp.gt.f32.partialorder %v4184, 0.0
    %vm5246 = vcmp.gt.f32.partialorder %v4185, 0.0
    %vm5247 = vcmp.gt.f32.partialorder %v4186, 0.0
    %vm5248 = vcmp.gt.f32.partialorder %v4187, 0.0
    %vm5249 = vcmp.gt.f32.partialorder %v4188, 0.0
    %vm5250 = vcmp.gt.f32.partialorder %v4189, 0.0
    %vm5251 = vcmp.gt.f32.partialorder %v4190, 0.0
    %vm5252 = vcmp.gt.f32.partialorder %v4191, 0.0
    %vm5253 = vcmp.gt.f32.partialorder %v4192, 0.0
    %vm5254 = vcmp.gt.f32.partialorder %v4193, 0.0
    %vm5255 = vcmp.gt.f32.partialorder %v4194, 0.0
    %vm5256 = vcmp.gt.f32.partialorder %v4195, 0.0
    %vm5257 = vcmp.gt.f32.partialorder %v4196, 0.0
    %vm5258 = vcmp.gt.f32.partialorder %v4197, 0.0
    %vm5259 = vcmp.gt.f32.partialorder %v4198, 0.0
    %vm5260 = vcmp.gt.f32.partialorder %v4199, 0.0
    %vm5261 = vcmp.gt.f32.partialorder %v4200, 0.0
    %vm5262 = vcmp.gt.f32.partialorder %v4201, 0.0
    %vm5263 = vcmp.gt.f32.partialorder %v4202, 0.0
    %vm5264 = vcmp.gt.f32.partialorder %v4203, 0.0
    %vm5265 = vcmp.gt.f32.partialorder %v4204, 0.0
    %vm5266 = vcmp.gt.f32.partialorder %v4205, 0.0
    %vm5267 = vcmp.gt.f32.partialorder %v4206, 0.0
    %vm5268 = vcmp.gt.f32.partialorder %v4207, 0.0
    %vm5269 = vcmp.gt.f32.partialorder %v4208, 0.0
    %vm5270 = vcmp.gt.f32.partialorder %v4209, 0.0
    %vm5271 = vcmp.gt.f32.partialorder %v4210, 0.0
    %vm5272 = vcmp.gt.f32.partialorder %v4211, 0.0
    %vm5273 = vcmp.gt.f32.partialorder %v4212, 0.0
    %vm5274 = vcmp.gt.f32.partialorder %v4213, 0.0
    %vm5275 = vcmp.gt.f32.partialorder %v4214, 0.0
    %vm5276 = vcmp.gt.f32.partialorder %v4215, 0.0
    %vm5277 = vcmp.gt.f32.partialorder %v4216, 0.0
    %vm5278 = vcmp.gt.f32.partialorder %v4217, 0.0
    %vm5279 = vcmp.gt.f32.partialorder %v4218, 0.0
    %vm5280 = vcmp.gt.f32.partialorder %v4219, 0.0
    %vm5281 = vcmp.gt.f32.partialorder %v4220, 0.0
    %vm5282 = vcmp.gt.f32.partialorder %v4221, 0.0
    %vm5283 = vcmp.gt.f32.partialorder %v4222, 0.0
    %vm5284 = vcmp.gt.f32.partialorder %v4223, 0.0
    %vm5285 = vcmp.gt.f32.partialorder %v4224, 0.0
    %vm5286 = vcmp.gt.f32.partialorder %v4225, 0.0
    %vm5287 = vcmp.gt.f32.partialorder %v4226, 0.0
    %vm5288 = vcmp.gt.f32.partialorder %v4227, 0.0
    %vm5289 = vcmp.gt.f32.partialorder %v4228, 0.0
    %vm5290 = vcmp.gt.f32.partialorder %v4229, 0.0
    %vm5291 = vcmp.gt.f32.partialorder %v4230, 0.0
    %vm5292 = vcmp.gt.f32.partialorder %v4231, 0.0
    %vm5293 = vcmp.gt.f32.partialorder %v4232, 0.0
    %vm5294 = vcmp.gt.f32.partialorder %v4233, 0.0
    %vm5295 = vcmp.gt.f32.partialorder %v4234, 0.0
    %vm5296 = vcmp.gt.f32.partialorder %v4235, 0.0
    %vm5297 = vcmp.gt.f32.partialorder %v4236, 0.0
    %vm5298 = vcmp.gt.f32.partialorder %v4237, 0.0
    %vm5299 = vcmp.gt.f32.partialorder %v4238, 0.0
    %vm5300 = vcmp.gt.f32.partialorder %v4239, 0.0
    %vm5301 = vcmp.gt.f32.partialorder %v4240, 0.0
    %vm5302 = vcmp.gt.f32.partialorder %v4241, 0.0
    %vm5303 = vcmp.gt.f32.partialorder %v4242, 0.0
    %vm5304 = vcmp.gt.f32.partialorder %v4243, 0.0
    %vm5305 = vcmp.gt.f32.partialorder %v4244, 0.0
    %vm5306 = vcmp.gt.f32.partialorder %v4245, 0.0
    %vm5307 = vcmp.gt.f32.partialorder %v4246, 0.0
    %vm5308 = vcmp.gt.f32.partialorder %v4247, 0.0
    %vm5309 = vcmp.gt.f32.partialorder %v4248, 0.0
    %vm5310 = vcmp.gt.f32.partialorder %v4249, 0.0
    %vm5311 = vcmp.gt.f32.partialorder %v4250, 0.0
    %vm5312 = vcmp.gt.f32.partialorder %v4251, 0.0
    %vm5313 = vcmp.gt.f32.partialorder %v4252, 0.0
    %vm5314 = vcmp.gt.f32.partialorder %v4253, 0.0
    %vm5315 = vcmp.gt.f32.partialorder %v4254, 0.0
    %vm5316 = vcmp.gt.f32.partialorder %v4255, 0.0
    %vm5317 = vcmp.gt.f32.partialorder %v4256, 0.0
    %vm5318 = vcmp.gt.f32.partialorder %v4257, 0.0
    %vm5319 = vcmp.gt.f32.partialorder %v4258, 0.0
    %vm5320 = vcmp.gt.f32.partialorder %v4259, 0.0
    %vm5321 = vcmp.gt.f32.partialorder %v4260, 0.0
    %vm5322 = vcmp.gt.f32.partialorder %v4261, 0.0
    %vm5323 = vcmp.gt.f32.partialorder %v4262, 0.0
    %vm5324 = vcmp.gt.f32.partialorder %v4263, 0.0
    %vm5325 = vcmp.gt.f32.partialorder %v4264, 0.0
    %vm5326 = vcmp.gt.f32.partialorder %v4265, 0.0
    %vm5327 = vcmp.gt.f32.partialorder %v4266, 0.0
    %vm5328 = vcmp.gt.f32.partialorder %v4267, 0.0
    %vm5329 = vcmp.gt.f32.partialorder %v4268, 0.0
    %vm5330 = vcmp.gt.f32.partialorder %v4269, 0.0
    %vm5331 = vcmp.gt.f32.partialorder %v4270, 0.0
    %vm5332 = vcmp.gt.f32.partialorder %v4271, 0.0
    %vm5333 = vcmp.gt.f32.partialorder %v4272, 0.0
    %vm5334 = vcmp.gt.f32.partialorder %v4273, 0.0
    %vm5335 = vcmp.gt.f32.partialorder %v4274, 0.0
    %vm5336 = vcmp.gt.f32.partialorder %v4275, 0.0
    %vm5337 = vcmp.gt.f32.partialorder %v4276, 0.0
    %vm5338 = vcmp.gt.f32.partialorder %v4277, 0.0
    %vm5339 = vcmp.gt.f32.partialorder %v4278, 0.0
    %vm5340 = vcmp.gt.f32.partialorder %v4279, 0.0
    %vm5341 = vcmp.gt.f32.partialorder %v4280, 0.0
    %vm5342 = vcmp.gt.f32.partialorder %v4281, 0.0
    %vm5343 = vcmp.gt.f32.partialorder %v4282, 0.0
    %vm5344 = vcmp.gt.f32.partialorder %v4283, 0.0
    %vm5345 = vcmp.gt.f32.partialorder %v4284, 0.0
    %vm5346 = vcmp.gt.f32.partialorder %v4285, 0.0
    %vm5347 = vcmp.gt.f32.partialorder %v4286, 0.0
    %v5348 = vsel %vm5216, 1, 0
    %v5349 = vsel %vm5217, 1, 0
    %v5350 = vsel %vm5218, 1, 0
    %v5351 = vsel %vm5219, 1, 0
    %vm5352 = vcmp.eq.s32.totalorder %v5348, 1
    %vm5353 = vcmp.eq.s32.totalorder %v5349, 1
    %vm5354 = vcmp.eq.s32.totalorder %v5350, 1
    %vm5355 = vcmp.eq.s32.totalorder %v5351, 1
    %v5356 = vsel %vm5220, 1, 0
    %v5357 = vsel %vm5221, 1, 0
    %v5358 = vsel %vm5222, 1, 0
    %v5359 = vsel %vm5223, 1, 0
    %v5360 = vsel %vm5224, 1, 0
    %v5361 = vsel %vm5225, 1, 0
    %v5362 = vsel %vm5226, 1, 0
    %v5363 = vsel %vm5227, 1, 0
    %v5364 = vsel %vm5228, 1, 0
    %v5365 = vsel %vm5229, 1, 0
    %v5366 = vsel %vm5230, 1, 0
    %v5367 = vsel %vm5231, 1, 0
    %v5368 = vsel %vm5232, 1, 0
    %v5369 = vsel %vm5233, 1, 0
    %v5370 = vsel %vm5234, 1, 0
    %v5371 = vsel %vm5235, 1, 0
    %v5372 = vsel %vm5236, 1, 0
    %v5373 = vsel %vm5237, 1, 0
    %v5374 = vsel %vm5238, 1, 0
    %v5375 = vsel %vm5239, 1, 0
    %v5376 = vsel %vm5240, 1, 0
    %v5377 = vsel %vm5241, 1, 0
    %v5378 = vsel %vm5242, 1, 0
    %v5379 = vsel %vm5243, 1, 0
    %v5380 = vsel %vm5244, 1, 0
    %v5381 = vsel %vm5245, 1, 0
    %v5382 = vsel %vm5246, 1, 0
    %v5383 = vsel %vm5247, 1, 0
    %v5384 = vsel %vm5248, 1, 0
    %v5385 = vsel %vm5249, 1, 0
    %v5386 = vsel %vm5250, 1, 0
    %v5387 = vsel %vm5251, 1, 0
    %v5388 = vsel %vm5252, 1, 0
    %v5389 = vsel %vm5253, 1, 0
    %v5390 = vsel %vm5254, 1, 0
    %v5391 = vsel %vm5255, 1, 0
    %v5392 = vsel %vm5256, 1, 0
    %v5393 = vsel %vm5257, 1, 0
    %v5394 = vsel %vm5258, 1, 0
    %v5395 = vsel %vm5259, 1, 0
    %v5396 = vsel %vm5260, 1, 0
    %v5397 = vsel %vm5261, 1, 0
    %v5398 = vsel %vm5262, 1, 0
    %v5399 = vsel %vm5263, 1, 0
    %v5400 = vsel %vm5264, 1, 0
    %v5401 = vsel %vm5265, 1, 0
    %v5402 = vsel %vm5266, 1, 0
    %v5403 = vsel %vm5267, 1, 0
    %v5404 = vsel %vm5268, 1, 0
    %v5405 = vsel %vm5269, 1, 0
    %v5406 = vsel %vm5270, 1, 0
    %v5407 = vsel %vm5271, 1, 0
    %v5408 = vsel %vm5272, 1, 0
    %v5409 = vsel %vm5273, 1, 0
    %v5410 = vsel %vm5274, 1, 0
    %v5411 = vsel %vm5275, 1, 0
    %v5412 = vsel %vm5276, 1, 0
    %v5413 = vsel %vm5277, 1, 0
    %v5414 = vsel %vm5278, 1, 0
    %v5415 = vsel %vm5279, 1, 0
    %v5416 = vsel %vm5280, 1, 0
    %v5417 = vsel %vm5281, 1, 0
    %v5418 = vsel %vm5282, 1, 0
    %v5419 = vsel %vm5283, 1, 0
    %v5420 = vsel %vm5284, 1, 0
    %v5421 = vsel %vm5285, 1, 0
    %v5422 = vsel %vm5286, 1, 0
    %v5423 = vsel %vm5287, 1, 0
    %v5424 = vsel %vm5288, 1, 0
    %v5425 = vsel %vm5289, 1, 0
    %v5426 = vsel %vm5290, 1, 0
    %v5427 = vsel %vm5291, 1, 0
    %v5428 = vsel %vm5292, 1, 0
    %v5429 = vsel %vm5293, 1, 0
    %v5430 = vsel %vm5294, 1, 0
    %v5431 = vsel %vm5295, 1, 0
    %v5432 = vsel %vm5296, 1, 0
    %v5433 = vsel %vm5297, 1, 0
    %v5434 = vsel %vm5298, 1, 0
    %v5435 = vsel %vm5299, 1, 0
    %v5436 = vsel %vm5300, 1, 0
    %v5437 = vsel %vm5301, 1, 0
    %v5438 = vsel %vm5302, 1, 0
    %v5439 = vsel %vm5303, 1, 0
    %v5440 = vsel %vm5304, 1, 0
    %v5441 = vsel %vm5305, 1, 0
    %v5442 = vsel %vm5306, 1, 0
    %v5443 = vsel %vm5307, 1, 0
    %v5444 = vsel %vm5308, 1, 0
    %v5445 = vsel %vm5309, 1, 0
    %v5446 = vsel %vm5310, 1, 0
    %v5447 = vsel %vm5311, 1, 0
    %v5448 = vsel %vm5312, 1, 0
    %v5449 = vsel %vm5313, 1, 0
    %v5450 = vsel %vm5314, 1, 0
    %v5451 = vsel %vm5315, 1, 0
    %v5452 = vsel %vm5316, 1, 0
    %v5453 = vsel %vm5317, 1, 0
    %v5454 = vsel %vm5318, 1, 0
    %v5455 = vsel %vm5319, 1, 0
    %v5456 = vsel %vm5320, 1, 0
    %v5457 = vsel %vm5321, 1, 0
    %v5458 = vsel %vm5322, 1, 0
    %v5459 = vsel %vm5323, 1, 0
    %v5460 = vsel %vm5324, 1, 0
    %v5461 = vsel %vm5325, 1, 0
    %v5462 = vsel %vm5326, 1, 0
    %v5463 = vsel %vm5327, 1, 0
    %v5464 = vsel %vm5328, 1, 0
    %v5465 = vsel %vm5329, 1, 0
    %v5466 = vsel %vm5330, 1, 0
    %v5467 = vsel %vm5331, 1, 0
    %v5468 = vsel %vm5332, 1, 0
    %v5469 = vsel %vm5333, 1, 0
    %v5470 = vsel %vm5334, 1, 0
    %v5471 = vsel %vm5335, 1, 0
    %v5472 = vsel %vm5336, 1, 0
    %v5473 = vsel %vm5337, 1, 0
    %v5474 = vsel %vm5338, 1, 0
    %v5475 = vsel %vm5339, 1, 0
    %v5476 = vsel %vm5340, 1, 0
    %v5477 = vsel %vm5341, 1, 0
    %v5478 = vsel %vm5342, 1, 0
    %v5479 = vsel %vm5343, 1, 0
    %v5480 = vsel %vm5344, 1, 0
    %v5481 = vsel %vm5345, 1, 0
    %v5482 = vsel %vm5346, 1, 0
    %v5483 = vsel %vm5347, 1, 0
    %v5484 = vlaneseq
    %v5485 = vshrl.u32 %v5484, 7
    %v5486 = vsub.s32 %v2322, %v5485
    %v5487 = vrot.slane %v5356, %v5486
    %v5488 = vlaneseq
    %v5489 = vshrl.u32 %v5488, 7
    %v5490 = vsub.s32 %v4551, %v5489
    %v5491 = vrot.slane %v5357, %v5490
    %v5492 = vsel %vm4556, %v5491, %v5487
    %v5493 = vlaneseq
    %v5494 = vshrl.u32 %v5493, 7
    %v5495 = vsub.s32 %v4558, %v5494
    %v5496 = vrot.slane %v5358, %v5495
    %v5497 = vsel %vm4563, %v5496, %v5492
    %v5498 = vlaneseq
    %v5499 = vshrl.u32 %v5498, 7
    %v5500 = vsub.s32 %v4565, %v5499
    %v5501 = vrot.slane %v5359, %v5500
    %v5502 = vsel %vm4570, %v5501, %v5497
    %v5503 = vlaneseq
    %v5504 = vshrl.u32 %v5503, 7
    %v5505 = vsub.s32 %v2322, %v5504
    %v5506 = vrot.slane %v5360, %v5505
    %v5507 = vlaneseq
    %v5508 = vshrl.u32 %v5507, 7
    %v5509 = vsub.s32 %v4551, %v5508
    %v5510 = vrot.slane %v5361, %v5509
    %v5511 = vsel %vm4556, %v5510, %v5506
    %v5512 = vlaneseq
    %v5513 = vshrl.u32 %v5512, 7
    %v5514 = vsub.s32 %v4558, %v5513
    %v5515 = vrot.slane %v5362, %v5514
    %v5516 = vsel %vm4563, %v5515, %v5511
    %v5517 = vlaneseq
    %v5518 = vshrl.u32 %v5517, 7
    %v5519 = vsub.s32 %v4565, %v5518
    %v5520 = vrot.slane %v5363, %v5519
    %v5521 = vsel %vm4570, %v5520, %v5516
    %v5522 = vlaneseq
    %v5523 = vshrl.u32 %v5522, 7
    %v5524 = vsub.s32 %v2322, %v5523
    %v5525 = vrot.slane %v5364, %v5524
    %v5526 = vlaneseq
    %v5527 = vshrl.u32 %v5526, 7
    %v5528 = vsub.s32 %v4551, %v5527
    %v5529 = vrot.slane %v5365, %v5528
    %v5530 = vsel %vm4556, %v5529, %v5525
    %v5531 = vlaneseq
    %v5532 = vshrl.u32 %v5531, 7
    %v5533 = vsub.s32 %v4558, %v5532
    %v5534 = vrot.slane %v5366, %v5533
    %v5535 = vsel %vm4563, %v5534, %v5530
    %v5536 = vlaneseq
    %v5537 = vshrl.u32 %v5536, 7
    %v5538 = vsub.s32 %v4565, %v5537
    %v5539 = vrot.slane %v5367, %v5538
    %v5540 = vsel %vm4570, %v5539, %v5535
    %v5541 = vlaneseq
    %v5542 = vshrl.u32 %v5541, 7
    %v5543 = vsub.s32 %v2322, %v5542
    %v5544 = vrot.slane %v5368, %v5543
    %v5545 = vlaneseq
    %v5546 = vshrl.u32 %v5545, 7
    %v5547 = vsub.s32 %v4551, %v5546
    %v5548 = vrot.slane %v5369, %v5547
    %v5549 = vsel %vm4556, %v5548, %v5544
    %v5550 = vlaneseq
    %v5551 = vshrl.u32 %v5550, 7
    %v5552 = vsub.s32 %v4558, %v5551
    %v5553 = vrot.slane %v5370, %v5552
    %v5554 = vsel %vm4563, %v5553, %v5549
    %v5555 = vlaneseq
    %v5556 = vshrl.u32 %v5555, 7
    %v5557 = vsub.s32 %v4565, %v5556
    %v5558 = vrot.slane %v5371, %v5557
    %v5559 = vsel %vm4570, %v5558, %v5554
    %v5560 = vlaneseq
    %v5561 = vshrl.u32 %v5560, 7
    %v5562 = vsub.s32 %v2322, %v5561
    %v5563 = vrot.slane %v5372, %v5562
    %v5564 = vlaneseq
    %v5565 = vshrl.u32 %v5564, 7
    %v5566 = vsub.s32 %v4551, %v5565
    %v5567 = vrot.slane %v5373, %v5566
    %v5568 = vsel %vm4556, %v5567, %v5563
    %v5569 = vlaneseq
    %v5570 = vshrl.u32 %v5569, 7
    %v5571 = vsub.s32 %v4558, %v5570
    %v5572 = vrot.slane %v5374, %v5571
    %v5573 = vsel %vm4563, %v5572, %v5568
    %v5574 = vlaneseq
    %v5575 = vshrl.u32 %v5574, 7
    %v5576 = vsub.s32 %v4565, %v5575
    %v5577 = vrot.slane %v5375, %v5576
    %v5578 = vsel %vm4570, %v5577, %v5573
    %v5579 = vlaneseq
    %v5580 = vshrl.u32 %v5579, 7
    %v5581 = vsub.s32 %v2322, %v5580
    %v5582 = vrot.slane %v5376, %v5581
    %v5583 = vlaneseq
    %v5584 = vshrl.u32 %v5583, 7
    %v5585 = vsub.s32 %v4551, %v5584
    %v5586 = vrot.slane %v5377, %v5585
    %v5587 = vsel %vm4556, %v5586, %v5582
    %v5588 = vlaneseq
    %v5589 = vshrl.u32 %v5588, 7
    %v5590 = vsub.s32 %v4558, %v5589
    %v5591 = vrot.slane %v5378, %v5590
    %v5592 = vsel %vm4563, %v5591, %v5587
    %v5593 = vlaneseq
    %v5594 = vshrl.u32 %v5593, 7
    %v5595 = vsub.s32 %v4565, %v5594
    %v5596 = vrot.slane %v5379, %v5595
    %v5597 = vsel %vm4570, %v5596, %v5592
    %v5598 = vlaneseq
    %v5599 = vshrl.u32 %v5598, 7
    %v5600 = vsub.s32 %v2322, %v5599
    %v5601 = vrot.slane %v5380, %v5600
    %v5602 = vlaneseq
    %v5603 = vshrl.u32 %v5602, 7
    %v5604 = vsub.s32 %v4551, %v5603
    %v5605 = vrot.slane %v5381, %v5604
    %v5606 = vsel %vm4556, %v5605, %v5601
    %v5607 = vlaneseq
    %v5608 = vshrl.u32 %v5607, 7
    %v5609 = vsub.s32 %v4558, %v5608
    %v5610 = vrot.slane %v5382, %v5609
    %v5611 = vsel %vm4563, %v5610, %v5606
    %v5612 = vlaneseq
    %v5613 = vshrl.u32 %v5612, 7
    %v5614 = vsub.s32 %v4565, %v5613
    %v5615 = vrot.slane %v5383, %v5614
    %v5616 = vsel %vm4570, %v5615, %v5611
    %v5617 = vlaneseq
    %v5618 = vshrl.u32 %v5617, 7
    %v5619 = vsub.s32 %v2322, %v5618
    %v5620 = vrot.slane %v5384, %v5619
    %v5621 = vlaneseq
    %v5622 = vshrl.u32 %v5621, 7
    %v5623 = vsub.s32 %v4551, %v5622
    %v5624 = vrot.slane %v5385, %v5623
    %v5625 = vsel %vm4556, %v5624, %v5620
    %v5626 = vlaneseq
    %v5627 = vshrl.u32 %v5626, 7
    %v5628 = vsub.s32 %v4558, %v5627
    %v5629 = vrot.slane %v5386, %v5628
    %v5630 = vsel %vm4563, %v5629, %v5625
    %v5631 = vlaneseq
    %v5632 = vshrl.u32 %v5631, 7
    %v5633 = vsub.s32 %v4565, %v5632
    %v5634 = vrot.slane %v5387, %v5633
    %v5635 = vsel %vm4570, %v5634, %v5630
    %v5636 = vlaneseq
    %v5637 = vshrl.u32 %v5636, 7
    %v5638 = vsub.s32 %v2322, %v5637
    %v5639 = vrot.slane %v5388, %v5638
    %v5640 = vlaneseq
    %v5641 = vshrl.u32 %v5640, 7
    %v5642 = vsub.s32 %v4551, %v5641
    %v5643 = vrot.slane %v5389, %v5642
    %v5644 = vsel %vm4556, %v5643, %v5639
    %v5645 = vlaneseq
    %v5646 = vshrl.u32 %v5645, 7
    %v5647 = vsub.s32 %v4558, %v5646
    %v5648 = vrot.slane %v5390, %v5647
    %v5649 = vsel %vm4563, %v5648, %v5644
    %v5650 = vlaneseq
    %v5651 = vshrl.u32 %v5650, 7
    %v5652 = vsub.s32 %v4565, %v5651
    %v5653 = vrot.slane %v5391, %v5652
    %v5654 = vsel %vm4570, %v5653, %v5649
    %v5655 = vlaneseq
    %v5656 = vshrl.u32 %v5655, 7
    %v5657 = vsub.s32 %v2322, %v5656
    %v5658 = vrot.slane %v5392, %v5657
    %v5659 = vlaneseq
    %v5660 = vshrl.u32 %v5659, 7
    %v5661 = vsub.s32 %v4551, %v5660
    %v5662 = vrot.slane %v5393, %v5661
    %v5663 = vsel %vm4556, %v5662, %v5658
    %v5664 = vlaneseq
    %v5665 = vshrl.u32 %v5664, 7
    %v5666 = vsub.s32 %v4558, %v5665
    %v5667 = vrot.slane %v5394, %v5666
    %v5668 = vsel %vm4563, %v5667, %v5663
    %v5669 = vlaneseq
    %v5670 = vshrl.u32 %v5669, 7
    %v5671 = vsub.s32 %v4565, %v5670
    %v5672 = vrot.slane %v5395, %v5671
    %v5673 = vsel %vm4570, %v5672, %v5668
    %v5674 = vlaneseq
    %v5675 = vshrl.u32 %v5674, 7
    %v5676 = vsub.s32 %v2322, %v5675
    %v5677 = vrot.slane %v5396, %v5676
    %v5678 = vlaneseq
    %v5679 = vshrl.u32 %v5678, 7
    %v5680 = vsub.s32 %v4551, %v5679
    %v5681 = vrot.slane %v5397, %v5680
    %v5682 = vsel %vm4556, %v5681, %v5677
    %v5683 = vlaneseq
    %v5684 = vshrl.u32 %v5683, 7
    %v5685 = vsub.s32 %v4558, %v5684
    %v5686 = vrot.slane %v5398, %v5685
    %v5687 = vsel %vm4563, %v5686, %v5682
    %v5688 = vlaneseq
    %v5689 = vshrl.u32 %v5688, 7
    %v5690 = vsub.s32 %v4565, %v5689
    %v5691 = vrot.slane %v5399, %v5690
    %v5692 = vsel %vm4570, %v5691, %v5687
    %v5693 = vlaneseq
    %v5694 = vshrl.u32 %v5693, 7
    %v5695 = vsub.s32 %v2322, %v5694
    %v5696 = vrot.slane %v5400, %v5695
    %v5697 = vlaneseq
    %v5698 = vshrl.u32 %v5697, 7
    %v5699 = vsub.s32 %v4551, %v5698
    %v5700 = vrot.slane %v5401, %v5699
    %v5701 = vsel %vm4556, %v5700, %v5696
    %v5702 = vlaneseq
    %v5703 = vshrl.u32 %v5702, 7
    %v5704 = vsub.s32 %v4558, %v5703
    %v5705 = vrot.slane %v5402, %v5704
    %v5706 = vsel %vm4563, %v5705, %v5701
    %v5707 = vlaneseq
    %v5708 = vshrl.u32 %v5707, 7
    %v5709 = vsub.s32 %v4565, %v5708
    %v5710 = vrot.slane %v5403, %v5709
    %v5711 = vsel %vm4570, %v5710, %v5706
    %v5712 = vlaneseq
    %v5713 = vshrl.u32 %v5712, 7
    %v5714 = vsub.s32 %v2322, %v5713
    %v5715 = vrot.slane %v5404, %v5714
    %v5716 = vlaneseq
    %v5717 = vshrl.u32 %v5716, 7
    %v5718 = vsub.s32 %v4551, %v5717
    %v5719 = vrot.slane %v5405, %v5718
    %v5720 = vsel %vm4556, %v5719, %v5715
    %v5721 = vlaneseq
    %v5722 = vshrl.u32 %v5721, 7
    %v5723 = vsub.s32 %v4558, %v5722
    %v5724 = vrot.slane %v5406, %v5723
    %v5725 = vsel %vm4563, %v5724, %v5720
    %v5726 = vlaneseq
    %v5727 = vshrl.u32 %v5726, 7
    %v5728 = vsub.s32 %v4565, %v5727
    %v5729 = vrot.slane %v5407, %v5728
    %v5730 = vsel %vm4570, %v5729, %v5725
    %v5731 = vlaneseq
    %v5732 = vshrl.u32 %v5731, 7
    %v5733 = vsub.s32 %v2322, %v5732
    %v5734 = vrot.slane %v5408, %v5733
    %v5735 = vlaneseq
    %v5736 = vshrl.u32 %v5735, 7
    %v5737 = vsub.s32 %v4551, %v5736
    %v5738 = vrot.slane %v5409, %v5737
    %v5739 = vsel %vm4556, %v5738, %v5734
    %v5740 = vlaneseq
    %v5741 = vshrl.u32 %v5740, 7
    %v5742 = vsub.s32 %v4558, %v5741
    %v5743 = vrot.slane %v5410, %v5742
    %v5744 = vsel %vm4563, %v5743, %v5739
    %v5745 = vlaneseq
    %v5746 = vshrl.u32 %v5745, 7
    %v5747 = vsub.s32 %v4565, %v5746
    %v5748 = vrot.slane %v5411, %v5747
    %v5749 = vsel %vm4570, %v5748, %v5744
    %v5750 = vlaneseq
    %v5751 = vshrl.u32 %v5750, 7
    %v5752 = vsub.s32 %v2322, %v5751
    %v5753 = vrot.slane %v5412, %v5752
    %v5754 = vlaneseq
    %v5755 = vshrl.u32 %v5754, 7
    %v5756 = vsub.s32 %v4551, %v5755
    %v5757 = vrot.slane %v5413, %v5756
    %v5758 = vsel %vm4556, %v5757, %v5753
    %v5759 = vlaneseq
    %v5760 = vshrl.u32 %v5759, 7
    %v5761 = vsub.s32 %v4558, %v5760
    %v5762 = vrot.slane %v5414, %v5761
    %v5763 = vsel %vm4563, %v5762, %v5758
    %v5764 = vlaneseq
    %v5765 = vshrl.u32 %v5764, 7
    %v5766 = vsub.s32 %v4565, %v5765
    %v5767 = vrot.slane %v5415, %v5766
    %v5768 = vsel %vm4570, %v5767, %v5763
    %v5769 = vlaneseq
    %v5770 = vshrl.u32 %v5769, 7
    %v5771 = vsub.s32 %v2322, %v5770
    %v5772 = vrot.slane %v5416, %v5771
    %v5773 = vlaneseq
    %v5774 = vshrl.u32 %v5773, 7
    %v5775 = vsub.s32 %v4551, %v5774
    %v5776 = vrot.slane %v5417, %v5775
    %v5777 = vsel %vm4556, %v5776, %v5772
    %v5778 = vlaneseq
    %v5779 = vshrl.u32 %v5778, 7
    %v5780 = vsub.s32 %v4558, %v5779
    %v5781 = vrot.slane %v5418, %v5780
    %v5782 = vsel %vm4563, %v5781, %v5777
    %v5783 = vlaneseq
    %v5784 = vshrl.u32 %v5783, 7
    %v5785 = vsub.s32 %v4565, %v5784
    %v5786 = vrot.slane %v5419, %v5785
    %v5787 = vsel %vm4570, %v5786, %v5782
    %v5788 = vlaneseq
    %v5789 = vshrl.u32 %v5788, 7
    %v5790 = vsub.s32 %v2322, %v5789
    %v5791 = vrot.slane %v5420, %v5790
    %v5792 = vlaneseq
    %v5793 = vshrl.u32 %v5792, 7
    %v5794 = vsub.s32 %v4551, %v5793
    %v5795 = vrot.slane %v5421, %v5794
    %v5796 = vsel %vm4556, %v5795, %v5791
    %v5797 = vlaneseq
    %v5798 = vshrl.u32 %v5797, 7
    %v5799 = vsub.s32 %v4558, %v5798
    %v5800 = vrot.slane %v5422, %v5799
    %v5801 = vsel %vm4563, %v5800, %v5796
    %v5802 = vlaneseq
    %v5803 = vshrl.u32 %v5802, 7
    %v5804 = vsub.s32 %v4565, %v5803
    %v5805 = vrot.slane %v5423, %v5804
    %v5806 = vsel %vm4570, %v5805, %v5801
    %v5807 = vlaneseq
    %v5808 = vshrl.u32 %v5807, 7
    %v5809 = vsub.s32 %v2322, %v5808
    %v5810 = vrot.slane %v5424, %v5809
    %v5811 = vlaneseq
    %v5812 = vshrl.u32 %v5811, 7
    %v5813 = vsub.s32 %v4551, %v5812
    %v5814 = vrot.slane %v5425, %v5813
    %v5815 = vsel %vm4556, %v5814, %v5810
    %v5816 = vlaneseq
    %v5817 = vshrl.u32 %v5816, 7
    %v5818 = vsub.s32 %v4558, %v5817
    %v5819 = vrot.slane %v5426, %v5818
    %v5820 = vsel %vm4563, %v5819, %v5815
    %v5821 = vlaneseq
    %v5822 = vshrl.u32 %v5821, 7
    %v5823 = vsub.s32 %v4565, %v5822
    %v5824 = vrot.slane %v5427, %v5823
    %v5825 = vsel %vm4570, %v5824, %v5820
    %v5826 = vlaneseq
    %v5827 = vshrl.u32 %v5826, 7
    %v5828 = vsub.s32 %v2322, %v5827
    %v5829 = vrot.slane %v5428, %v5828
    %v5830 = vlaneseq
    %v5831 = vshrl.u32 %v5830, 7
    %v5832 = vsub.s32 %v4551, %v5831
    %v5833 = vrot.slane %v5429, %v5832
    %v5834 = vsel %vm4556, %v5833, %v5829
    %v5835 = vlaneseq
    %v5836 = vshrl.u32 %v5835, 7
    %v5837 = vsub.s32 %v4558, %v5836
    %v5838 = vrot.slane %v5430, %v5837
    %v5839 = vsel %vm4563, %v5838, %v5834
    %v5840 = vlaneseq
    %v5841 = vshrl.u32 %v5840, 7
    %v5842 = vsub.s32 %v4565, %v5841
    %v5843 = vrot.slane %v5431, %v5842
    %v5844 = vsel %vm4570, %v5843, %v5839
    %v5845 = vlaneseq
    %v5846 = vshrl.u32 %v5845, 7
    %v5847 = vsub.s32 %v2322, %v5846
    %v5848 = vrot.slane %v5432, %v5847
    %v5849 = vlaneseq
    %v5850 = vshrl.u32 %v5849, 7
    %v5851 = vsub.s32 %v4551, %v5850
    %v5852 = vrot.slane %v5433, %v5851
    %v5853 = vsel %vm4556, %v5852, %v5848
    %v5854 = vlaneseq
    %v5855 = vshrl.u32 %v5854, 7
    %v5856 = vsub.s32 %v4558, %v5855
    %v5857 = vrot.slane %v5434, %v5856
    %v5858 = vsel %vm4563, %v5857, %v5853
    %v5859 = vlaneseq
    %v5860 = vshrl.u32 %v5859, 7
    %v5861 = vsub.s32 %v4565, %v5860
    %v5862 = vrot.slane %v5435, %v5861
    %v5863 = vsel %vm4570, %v5862, %v5858
    %v5864 = vlaneseq
    %v5865 = vshrl.u32 %v5864, 7
    %v5866 = vsub.s32 %v2322, %v5865
    %v5867 = vrot.slane %v5436, %v5866
    %v5868 = vlaneseq
    %v5869 = vshrl.u32 %v5868, 7
    %v5870 = vsub.s32 %v4551, %v5869
    %v5871 = vrot.slane %v5437, %v5870
    %v5872 = vsel %vm4556, %v5871, %v5867
    %v5873 = vlaneseq
    %v5874 = vshrl.u32 %v5873, 7
    %v5875 = vsub.s32 %v4558, %v5874
    %v5876 = vrot.slane %v5438, %v5875
    %v5877 = vsel %vm4563, %v5876, %v5872
    %v5878 = vlaneseq
    %v5879 = vshrl.u32 %v5878, 7
    %v5880 = vsub.s32 %v4565, %v5879
    %v5881 = vrot.slane %v5439, %v5880
    %v5882 = vsel %vm4570, %v5881, %v5877
    %v5883 = vlaneseq
    %v5884 = vshrl.u32 %v5883, 7
    %v5885 = vsub.s32 %v2322, %v5884
    %v5886 = vrot.slane %v5440, %v5885
    %v5887 = vlaneseq
    %v5888 = vshrl.u32 %v5887, 7
    %v5889 = vsub.s32 %v4551, %v5888
    %v5890 = vrot.slane %v5441, %v5889
    %v5891 = vsel %vm4556, %v5890, %v5886
    %v5892 = vlaneseq
    %v5893 = vshrl.u32 %v5892, 7
    %v5894 = vsub.s32 %v4558, %v5893
    %v5895 = vrot.slane %v5442, %v5894
    %v5896 = vsel %vm4563, %v5895, %v5891
    %v5897 = vlaneseq
    %v5898 = vshrl.u32 %v5897, 7
    %v5899 = vsub.s32 %v4565, %v5898
    %v5900 = vrot.slane %v5443, %v5899
    %v5901 = vsel %vm4570, %v5900, %v5896
    %v5902 = vlaneseq
    %v5903 = vshrl.u32 %v5902, 7
    %v5904 = vsub.s32 %v2322, %v5903
    %v5905 = vrot.slane %v5444, %v5904
    %v5906 = vlaneseq
    %v5907 = vshrl.u32 %v5906, 7
    %v5908 = vsub.s32 %v4551, %v5907
    %v5909 = vrot.slane %v5445, %v5908
    %v5910 = vsel %vm4556, %v5909, %v5905
    %v5911 = vlaneseq
    %v5912 = vshrl.u32 %v5911, 7
    %v5913 = vsub.s32 %v4558, %v5912
    %v5914 = vrot.slane %v5446, %v5913
    %v5915 = vsel %vm4563, %v5914, %v5910
    %v5916 = vlaneseq
    %v5917 = vshrl.u32 %v5916, 7
    %v5918 = vsub.s32 %v4565, %v5917
    %v5919 = vrot.slane %v5447, %v5918
    %v5920 = vsel %vm4570, %v5919, %v5915
    %v5921 = vlaneseq
    %v5922 = vshrl.u32 %v5921, 7
    %v5923 = vsub.s32 %v2322, %v5922
    %v5924 = vrot.slane %v5448, %v5923
    %v5925 = vlaneseq
    %v5926 = vshrl.u32 %v5925, 7
    %v5927 = vsub.s32 %v4551, %v5926
    %v5928 = vrot.slane %v5449, %v5927
    %v5929 = vsel %vm4556, %v5928, %v5924
    %v5930 = vlaneseq
    %v5931 = vshrl.u32 %v5930, 7
    %v5932 = vsub.s32 %v4558, %v5931
    %v5933 = vrot.slane %v5450, %v5932
    %v5934 = vsel %vm4563, %v5933, %v5929
    %v5935 = vlaneseq
    %v5936 = vshrl.u32 %v5935, 7
    %v5937 = vsub.s32 %v4565, %v5936
    %v5938 = vrot.slane %v5451, %v5937
    %v5939 = vsel %vm4570, %v5938, %v5934
    %v5940 = vlaneseq
    %v5941 = vshrl.u32 %v5940, 7
    %v5942 = vsub.s32 %v2322, %v5941
    %v5943 = vrot.slane %v5452, %v5942
    %v5944 = vlaneseq
    %v5945 = vshrl.u32 %v5944, 7
    %v5946 = vsub.s32 %v4551, %v5945
    %v5947 = vrot.slane %v5453, %v5946
    %v5948 = vsel %vm4556, %v5947, %v5943
    %v5949 = vlaneseq
    %v5950 = vshrl.u32 %v5949, 7
    %v5951 = vsub.s32 %v4558, %v5950
    %v5952 = vrot.slane %v5454, %v5951
    %v5953 = vsel %vm4563, %v5952, %v5948
    %v5954 = vlaneseq
    %v5955 = vshrl.u32 %v5954, 7
    %v5956 = vsub.s32 %v4565, %v5955
    %v5957 = vrot.slane %v5455, %v5956
    %v5958 = vsel %vm4570, %v5957, %v5953
    %v5959 = vlaneseq
    %v5960 = vshrl.u32 %v5959, 7
    %v5961 = vsub.s32 %v2322, %v5960
    %v5962 = vrot.slane %v5456, %v5961
    %v5963 = vlaneseq
    %v5964 = vshrl.u32 %v5963, 7
    %v5965 = vsub.s32 %v4551, %v5964
    %v5966 = vrot.slane %v5457, %v5965
    %v5967 = vsel %vm4556, %v5966, %v5962
    %v5968 = vlaneseq
    %v5969 = vshrl.u32 %v5968, 7
    %v5970 = vsub.s32 %v4558, %v5969
    %v5971 = vrot.slane %v5458, %v5970
    %v5972 = vsel %vm4563, %v5971, %v5967
    %v5973 = vlaneseq
    %v5974 = vshrl.u32 %v5973, 7
    %v5975 = vsub.s32 %v4565, %v5974
    %v5976 = vrot.slane %v5459, %v5975
    %v5977 = vsel %vm4570, %v5976, %v5972
    %v5978 = vlaneseq
    %v5979 = vshrl.u32 %v5978, 7
    %v5980 = vsub.s32 %v2322, %v5979
    %v5981 = vrot.slane %v5460, %v5980
    %v5982 = vlaneseq
    %v5983 = vshrl.u32 %v5982, 7
    %v5984 = vsub.s32 %v4551, %v5983
    %v5985 = vrot.slane %v5461, %v5984
    %v5986 = vsel %vm4556, %v5985, %v5981
    %v5987 = vlaneseq
    %v5988 = vshrl.u32 %v5987, 7
    %v5989 = vsub.s32 %v4558, %v5988
    %v5990 = vrot.slane %v5462, %v5989
    %v5991 = vsel %vm4563, %v5990, %v5986
    %v5992 = vlaneseq
    %v5993 = vshrl.u32 %v5992, 7
    %v5994 = vsub.s32 %v4565, %v5993
    %v5995 = vrot.slane %v5463, %v5994
    %v5996 = vsel %vm4570, %v5995, %v5991
    %v5997 = vlaneseq
    %v5998 = vshrl.u32 %v5997, 7
    %v5999 = vsub.s32 %v2322, %v5998
    %v6000 = vrot.slane %v5464, %v5999
    %v6001 = vlaneseq
    %v6002 = vshrl.u32 %v6001, 7
    %v6003 = vsub.s32 %v4551, %v6002
    %v6004 = vrot.slane %v5465, %v6003
    %v6005 = vsel %vm4556, %v6004, %v6000
    %v6006 = vlaneseq
    %v6007 = vshrl.u32 %v6006, 7
    %v6008 = vsub.s32 %v4558, %v6007
    %v6009 = vrot.slane %v5466, %v6008
    %v6010 = vsel %vm4563, %v6009, %v6005
    %v6011 = vlaneseq
    %v6012 = vshrl.u32 %v6011, 7
    %v6013 = vsub.s32 %v4565, %v6012
    %v6014 = vrot.slane %v5467, %v6013
    %v6015 = vsel %vm4570, %v6014, %v6010
    %v6016 = vlaneseq
    %v6017 = vshrl.u32 %v6016, 7
    %v6018 = vsub.s32 %v2322, %v6017
    %v6019 = vrot.slane %v5468, %v6018
    %v6020 = vlaneseq
    %v6021 = vshrl.u32 %v6020, 7
    %v6022 = vsub.s32 %v4551, %v6021
    %v6023 = vrot.slane %v5469, %v6022
    %v6024 = vsel %vm4556, %v6023, %v6019
    %v6025 = vlaneseq
    %v6026 = vshrl.u32 %v6025, 7
    %v6027 = vsub.s32 %v4558, %v6026
    %v6028 = vrot.slane %v5470, %v6027
    %v6029 = vsel %vm4563, %v6028, %v6024
    %v6030 = vlaneseq
    %v6031 = vshrl.u32 %v6030, 7
    %v6032 = vsub.s32 %v4565, %v6031
    %v6033 = vrot.slane %v5471, %v6032
    %v6034 = vsel %vm4570, %v6033, %v6029
    %v6035 = vlaneseq
    %v6036 = vshrl.u32 %v6035, 7
    %v6037 = vsub.s32 %v2322, %v6036
    %v6038 = vrot.slane %v5472, %v6037
    %v6039 = vlaneseq
    %v6040 = vshrl.u32 %v6039, 7
    %v6041 = vsub.s32 %v4551, %v6040
    %v6042 = vrot.slane %v5473, %v6041
    %v6043 = vsel %vm4556, %v6042, %v6038
    %v6044 = vlaneseq
    %v6045 = vshrl.u32 %v6044, 7
    %v6046 = vsub.s32 %v4558, %v6045
    %v6047 = vrot.slane %v5474, %v6046
    %v6048 = vsel %vm4563, %v6047, %v6043
    %v6049 = vlaneseq
    %v6050 = vshrl.u32 %v6049, 7
    %v6051 = vsub.s32 %v4565, %v6050
    %v6052 = vrot.slane %v5475, %v6051
    %v6053 = vsel %vm4570, %v6052, %v6048
    %v6054 = vlaneseq
    %v6055 = vshrl.u32 %v6054, 7
    %v6056 = vsub.s32 %v2322, %v6055
    %v6057 = vrot.slane %v5476, %v6056
    %v6058 = vlaneseq
    %v6059 = vshrl.u32 %v6058, 7
    %v6060 = vsub.s32 %v4551, %v6059
    %v6061 = vrot.slane %v5477, %v6060
    %v6062 = vsel %vm4556, %v6061, %v6057
    %v6063 = vlaneseq
    %v6064 = vshrl.u32 %v6063, 7
    %v6065 = vsub.s32 %v4558, %v6064
    %v6066 = vrot.slane %v5478, %v6065
    %v6067 = vsel %vm4563, %v6066, %v6062
    %v6068 = vlaneseq
    %v6069 = vshrl.u32 %v6068, 7
    %v6070 = vsub.s32 %v4565, %v6069
    %v6071 = vrot.slane %v5479, %v6070
    %v6072 = vsel %vm4570, %v6071, %v6067
    %v6073 = vlaneseq
    %v6074 = vshrl.u32 %v6073, 7
    %v6075 = vsub.s32 %v2322, %v6074
    %v6076 = vrot.slane %v5480, %v6075
    %v6077 = vlaneseq
    %v6078 = vshrl.u32 %v6077, 7
    %v6079 = vsub.s32 %v4551, %v6078
    %v6080 = vrot.slane %v5481, %v6079
    %v6081 = vsel %vm4556, %v6080, %v6076
    %v6082 = vlaneseq
    %v6083 = vshrl.u32 %v6082, 7
    %v6084 = vsub.s32 %v4558, %v6083
    %v6085 = vrot.slane %v5482, %v6084
    %v6086 = vsel %vm4563, %v6085, %v6081
    %v6087 = vlaneseq
    %v6088 = vshrl.u32 %v6087, 7
    %v6089 = vsub.s32 %v4565, %v6088
    %v6090 = vrot.slane %v5483, %v6089
    %v6091 = vsel %vm4570, %v6090, %v6086
    %v6092 = vsel %vm5161, %v5521, %v5502
    %v6093 = vsel %vm5163, %v5540, %v6092
    %v6094 = vsel %vm5165, %v5559, %v6093
    %v6095 = vsel %vm5167, %v5578, %v6094
    %v6096 = vsel %vm5169, %v5597, %v6095
    %v6097 = vsel %vm5171, %v5616, %v6096
    %v6098 = vsel %vm5173, %v5635, %v6097
    %v6099 = vsel %vm5161, %v5673, %v5654
    %v6100 = vsel %vm5163, %v5692, %v6099
    %v6101 = vsel %vm5165, %v5711, %v6100
    %v6102 = vsel %vm5167, %v5730, %v6101
    %v6103 = vsel %vm5169, %v5749, %v6102
    %v6104 = vsel %vm5171, %v5768, %v6103
    %v6105 = vsel %vm5173, %v5787, %v6104
    %v6106 = vsel %vm5161, %v5825, %v5806
    %v6107 = vsel %vm5163, %v5844, %v6106
    %v6108 = vsel %vm5165, %v5863, %v6107
    %v6109 = vsel %vm5167, %v5882, %v6108
    %v6110 = vsel %vm5169, %v5901, %v6109
    %v6111 = vsel %vm5171, %v5920, %v6110
    %v6112 = vsel %vm5173, %v5939, %v6111
    %v6113 = vsel %vm5161, %v5977, %v5958
    %v6114 = vsel %vm5163, %v5996, %v6113
    %v6115 = vsel %vm5165, %v6015, %v6114
    %v6116 = vsel %vm5167, %v6034, %v6115
    %v6117 = vsel %vm5169, %v6053, %v6116
    %v6118 = vsel %vm5171, %v6072, %v6117
    %v6119 = vsel %vm5173, %v6091, %v6118
    %vm6120 = vcmp.ne.s32.totalorder %v6098, 0
    %vm6121 = vcmp.ne.s32.totalorder %v6105, 0
    %vm6122 = vcmp.ne.s32.totalorder %v6112, 0
    %vm6123 = vcmp.ne.s32.totalorder %v6119, 0
    %vm6124 = vmand %vm5352, %vm6120
    %vm6125 = vmand %vm5353, %vm6121
    %vm6126 = vmand %vm5354, %vm6122
    %vm6127 = vmand %vm5355, %vm6123
    %v6256 = vlaneseq
    %v6257 = vshrl.u32 %v6256, 7
    %v6258 = vsub.s32 %v2322, %v6257
    %v6259 = vrot.slane %v3775, %v6258
    %v6260 = vlaneseq
    %v6261 = vshrl.u32 %v6260, 7
    %v6262 = vsub.s32 %v4551, %v6261
    %v6263 = vrot.slane %v3776, %v6262
    %v6264 = vsel %vm4556, %v6263, %v6259
    %v6265 = vlaneseq
    %v6266 = vshrl.u32 %v6265, 7
    %v6267 = vsub.s32 %v4558, %v6266
    %v6268 = vrot.slane %v3777, %v6267
    %v6269 = vsel %vm4563, %v6268, %v6264
    %v6270 = vlaneseq
    %v6271 = vshrl.u32 %v6270, 7
    %v6272 = vsub.s32 %v4565, %v6271
    %v6273 = vrot.slane %v3778, %v6272
    %v6274 = vsel %vm4570, %v6273, %v6269
    %v6275 = vlaneseq
    %v6276 = vshrl.u32 %v6275, 7
    %v6277 = vsub.s32 %v2322, %v6276
    %v6278 = vrot.slane %v3779, %v6277
    %v6279 = vlaneseq
    %v6280 = vshrl.u32 %v6279, 7
    %v6281 = vsub.s32 %v4551, %v6280
    %v6282 = vrot.slane %v3780, %v6281
    %v6283 = vsel %vm4556, %v6282, %v6278
    %v6284 = vlaneseq
    %v6285 = vshrl.u32 %v6284, 7
    %v6286 = vsub.s32 %v4558, %v6285
    %v6287 = vrot.slane %v3781, %v6286
    %v6288 = vsel %vm4563, %v6287, %v6283
    %v6289 = vlaneseq
    %v6290 = vshrl.u32 %v6289, 7
    %v6291 = vsub.s32 %v4565, %v6290
    %v6292 = vrot.slane %v3782, %v6291
    %v6293 = vsel %vm4570, %v6292, %v6288
    %v6294 = vlaneseq
    %v6295 = vshrl.u32 %v6294, 7
    %v6296 = vsub.s32 %v2322, %v6295
    %v6297 = vrot.slane %v3783, %v6296
    %v6298 = vlaneseq
    %v6299 = vshrl.u32 %v6298, 7
    %v6300 = vsub.s32 %v4551, %v6299
    %v6301 = vrot.slane %v3784, %v6300
    %v6302 = vsel %vm4556, %v6301, %v6297
    %v6303 = vlaneseq
    %v6304 = vshrl.u32 %v6303, 7
    %v6305 = vsub.s32 %v4558, %v6304
    %v6306 = vrot.slane %v3785, %v6305
    %v6307 = vsel %vm4563, %v6306, %v6302
    %v6308 = vlaneseq
    %v6309 = vshrl.u32 %v6308, 7
    %v6310 = vsub.s32 %v4565, %v6309
    %v6311 = vrot.slane %v3786, %v6310
    %v6312 = vsel %vm4570, %v6311, %v6307
    %v6313 = vlaneseq
    %v6314 = vshrl.u32 %v6313, 7
    %v6315 = vsub.s32 %v2322, %v6314
    %v6316 = vrot.slane %v3787, %v6315
    %v6317 = vlaneseq
    %v6318 = vshrl.u32 %v6317, 7
    %v6319 = vsub.s32 %v4551, %v6318
    %v6320 = vrot.slane %v3788, %v6319
    %v6321 = vsel %vm4556, %v6320, %v6316
    %v6322 = vlaneseq
    %v6323 = vshrl.u32 %v6322, 7
    %v6324 = vsub.s32 %v4558, %v6323
    %v6325 = vrot.slane %v3789, %v6324
    %v6326 = vsel %vm4563, %v6325, %v6321
    %v6327 = vlaneseq
    %v6328 = vshrl.u32 %v6327, 7
    %v6329 = vsub.s32 %v4565, %v6328
    %v6330 = vrot.slane %v3790, %v6329
    %v6331 = vsel %vm4570, %v6330, %v6326
    %v6332 = vlaneseq
    %v6333 = vshrl.u32 %v6332, 7
    %v6334 = vsub.s32 %v2322, %v6333
    %v6335 = vrot.slane %v3791, %v6334
    %v6336 = vlaneseq
    %v6337 = vshrl.u32 %v6336, 7
    %v6338 = vsub.s32 %v4551, %v6337
    %v6339 = vrot.slane %v3792, %v6338
    %v6340 = vsel %vm4556, %v6339, %v6335
    %v6341 = vlaneseq
    %v6342 = vshrl.u32 %v6341, 7
    %v6343 = vsub.s32 %v4558, %v6342
    %v6344 = vrot.slane %v3793, %v6343
    %v6345 = vsel %vm4563, %v6344, %v6340
    %v6346 = vlaneseq
    %v6347 = vshrl.u32 %v6346, 7
    %v6348 = vsub.s32 %v4565, %v6347
    %v6349 = vrot.slane %v3794, %v6348
    %v6350 = vsel %vm4570, %v6349, %v6345
    %v6351 = vlaneseq
    %v6352 = vshrl.u32 %v6351, 7
    %v6353 = vsub.s32 %v2322, %v6352
    %v6354 = vrot.slane %v3795, %v6353
    %v6355 = vlaneseq
    %v6356 = vshrl.u32 %v6355, 7
    %v6357 = vsub.s32 %v4551, %v6356
    %v6358 = vrot.slane %v3796, %v6357
    %v6359 = vsel %vm4556, %v6358, %v6354
    %v6360 = vlaneseq
    %v6361 = vshrl.u32 %v6360, 7
    %v6362 = vsub.s32 %v4558, %v6361
    %v6363 = vrot.slane %v3797, %v6362
    %v6364 = vsel %vm4563, %v6363, %v6359
    %v6365 = vlaneseq
    %v6366 = vshrl.u32 %v6365, 7
    %v6367 = vsub.s32 %v4565, %v6366
    %v6368 = vrot.slane %v3798, %v6367
    %v6369 = vsel %vm4570, %v6368, %v6364
    %v6370 = vlaneseq
    %v6371 = vshrl.u32 %v6370, 7
    %v6372 = vsub.s32 %v2322, %v6371
    %v6373 = vrot.slane %v3799, %v6372
    %v6374 = vlaneseq
    %v6375 = vshrl.u32 %v6374, 7
    %v6376 = vsub.s32 %v4551, %v6375
    %v6377 = vrot.slane %v3800, %v6376
    %v6378 = vsel %vm4556, %v6377, %v6373
    %v6379 = vlaneseq
    %v6380 = vshrl.u32 %v6379, 7
    %v6381 = vsub.s32 %v4558, %v6380
    %v6382 = vrot.slane %v3801, %v6381
    %v6383 = vsel %vm4563, %v6382, %v6378
    %v6384 = vlaneseq
    %v6385 = vshrl.u32 %v6384, 7
    %v6386 = vsub.s32 %v4565, %v6385
    %v6387 = vrot.slane %v3802, %v6386
    %v6388 = vsel %vm4570, %v6387, %v6383
    %v6389 = vlaneseq
    %v6390 = vshrl.u32 %v6389, 7
    %v6391 = vsub.s32 %v2322, %v6390
    %v6392 = vrot.slane %v3803, %v6391
    %v6393 = vlaneseq
    %v6394 = vshrl.u32 %v6393, 7
    %v6395 = vsub.s32 %v4551, %v6394
    %v6396 = vrot.slane %v3804, %v6395
    %v6397 = vsel %vm4556, %v6396, %v6392
    %v6398 = vlaneseq
    %v6399 = vshrl.u32 %v6398, 7
    %v6400 = vsub.s32 %v4558, %v6399
    %v6401 = vrot.slane %v3805, %v6400
    %v6402 = vsel %vm4563, %v6401, %v6397
    %v6403 = vlaneseq
    %v6404 = vshrl.u32 %v6403, 7
    %v6405 = vsub.s32 %v4565, %v6404
    %v6406 = vrot.slane %v3806, %v6405
    %v6407 = vsel %vm4570, %v6406, %v6402
    %v6408 = vlaneseq
    %v6409 = vshrl.u32 %v6408, 7
    %v6410 = vsub.s32 %v2322, %v6409
    %v6411 = vrot.slane %v3807, %v6410
    %v6412 = vlaneseq
    %v6413 = vshrl.u32 %v6412, 7
    %v6414 = vsub.s32 %v4551, %v6413
    %v6415 = vrot.slane %v3808, %v6414
    %v6416 = vsel %vm4556, %v6415, %v6411
    %v6417 = vlaneseq
    %v6418 = vshrl.u32 %v6417, 7
    %v6419 = vsub.s32 %v4558, %v6418
    %v6420 = vrot.slane %v3809, %v6419
    %v6421 = vsel %vm4563, %v6420, %v6416
    %v6422 = vlaneseq
    %v6423 = vshrl.u32 %v6422, 7
    %v6424 = vsub.s32 %v4565, %v6423
    %v6425 = vrot.slane %v3810, %v6424
    %v6426 = vsel %vm4570, %v6425, %v6421
    %v6427 = vlaneseq
    %v6428 = vshrl.u32 %v6427, 7
    %v6429 = vsub.s32 %v2322, %v6428
    %v6430 = vrot.slane %v3811, %v6429
    %v6431 = vlaneseq
    %v6432 = vshrl.u32 %v6431, 7
    %v6433 = vsub.s32 %v4551, %v6432
    %v6434 = vrot.slane %v3812, %v6433
    %v6435 = vsel %vm4556, %v6434, %v6430
    %v6436 = vlaneseq
    %v6437 = vshrl.u32 %v6436, 7
    %v6438 = vsub.s32 %v4558, %v6437
    %v6439 = vrot.slane %v3813, %v6438
    %v6440 = vsel %vm4563, %v6439, %v6435
    %v6441 = vlaneseq
    %v6442 = vshrl.u32 %v6441, 7
    %v6443 = vsub.s32 %v4565, %v6442
    %v6444 = vrot.slane %v3814, %v6443
    %v6445 = vsel %vm4570, %v6444, %v6440
    %v6446 = vlaneseq
    %v6447 = vshrl.u32 %v6446, 7
    %v6448 = vsub.s32 %v2322, %v6447
    %v6449 = vrot.slane %v3815, %v6448
    %v6450 = vlaneseq
    %v6451 = vshrl.u32 %v6450, 7
    %v6452 = vsub.s32 %v4551, %v6451
    %v6453 = vrot.slane %v3816, %v6452
    %v6454 = vsel %vm4556, %v6453, %v6449
    %v6455 = vlaneseq
    %v6456 = vshrl.u32 %v6455, 7
    %v6457 = vsub.s32 %v4558, %v6456
    %v6458 = vrot.slane %v3817, %v6457
    %v6459 = vsel %vm4563, %v6458, %v6454
    %v6460 = vlaneseq
    %v6461 = vshrl.u32 %v6460, 7
    %v6462 = vsub.s32 %v4565, %v6461
    %v6463 = vrot.slane %v3818, %v6462
    %v6464 = vsel %vm4570, %v6463, %v6459
    %v6465 = vlaneseq
    %v6466 = vshrl.u32 %v6465, 7
    %v6467 = vsub.s32 %v2322, %v6466
    %v6468 = vrot.slane %v3819, %v6467
    %v6469 = vlaneseq
    %v6470 = vshrl.u32 %v6469, 7
    %v6471 = vsub.s32 %v4551, %v6470
    %v6472 = vrot.slane %v3820, %v6471
    %v6473 = vsel %vm4556, %v6472, %v6468
    %v6474 = vlaneseq
    %v6475 = vshrl.u32 %v6474, 7
    %v6476 = vsub.s32 %v4558, %v6475
    %v6477 = vrot.slane %v3821, %v6476
    %v6478 = vsel %vm4563, %v6477, %v6473
    %v6479 = vlaneseq
    %v6480 = vshrl.u32 %v6479, 7
    %v6481 = vsub.s32 %v4565, %v6480
    %v6482 = vrot.slane %v3822, %v6481
    %v6483 = vsel %vm4570, %v6482, %v6478
    %v6484 = vlaneseq
    %v6485 = vshrl.u32 %v6484, 7
    %v6486 = vsub.s32 %v2322, %v6485
    %v6487 = vrot.slane %v3823, %v6486
    %v6488 = vlaneseq
    %v6489 = vshrl.u32 %v6488, 7
    %v6490 = vsub.s32 %v4551, %v6489
    %v6491 = vrot.slane %v3824, %v6490
    %v6492 = vsel %vm4556, %v6491, %v6487
    %v6493 = vlaneseq
    %v6494 = vshrl.u32 %v6493, 7
    %v6495 = vsub.s32 %v4558, %v6494
    %v6496 = vrot.slane %v3825, %v6495
    %v6497 = vsel %vm4563, %v6496, %v6492
    %v6498 = vlaneseq
    %v6499 = vshrl.u32 %v6498, 7
    %v6500 = vsub.s32 %v4565, %v6499
    %v6501 = vrot.slane %v3826, %v6500
    %v6502 = vsel %vm4570, %v6501, %v6497
    %v6503 = vlaneseq
    %v6504 = vshrl.u32 %v6503, 7
    %v6505 = vsub.s32 %v2322, %v6504
    %v6506 = vrot.slane %v3827, %v6505
    %v6507 = vlaneseq
    %v6508 = vshrl.u32 %v6507, 7
    %v6509 = vsub.s32 %v4551, %v6508
    %v6510 = vrot.slane %v3828, %v6509
    %v6511 = vsel %vm4556, %v6510, %v6506
    %v6512 = vlaneseq
    %v6513 = vshrl.u32 %v6512, 7
    %v6514 = vsub.s32 %v4558, %v6513
    %v6515 = vrot.slane %v3829, %v6514
    %v6516 = vsel %vm4563, %v6515, %v6511
    %v6517 = vlaneseq
    %v6518 = vshrl.u32 %v6517, 7
    %v6519 = vsub.s32 %v4565, %v6518
    %v6520 = vrot.slane %v3830, %v6519
    %v6521 = vsel %vm4570, %v6520, %v6516
    %v6522 = vlaneseq
    %v6523 = vshrl.u32 %v6522, 7
    %v6524 = vsub.s32 %v2322, %v6523
    %v6525 = vrot.slane %v3831, %v6524
    %v6526 = vlaneseq
    %v6527 = vshrl.u32 %v6526, 7
    %v6528 = vsub.s32 %v4551, %v6527
    %v6529 = vrot.slane %v3832, %v6528
    %v6530 = vsel %vm4556, %v6529, %v6525
    %v6531 = vlaneseq
    %v6532 = vshrl.u32 %v6531, 7
    %v6533 = vsub.s32 %v4558, %v6532
    %v6534 = vrot.slane %v3833, %v6533
    %v6535 = vsel %vm4563, %v6534, %v6530
    %v6536 = vlaneseq
    %v6537 = vshrl.u32 %v6536, 7
    %v6538 = vsub.s32 %v4565, %v6537
    %v6539 = vrot.slane %v3834, %v6538
    %v6540 = vsel %vm4570, %v6539, %v6535
    %v6541 = vlaneseq
    %v6542 = vshrl.u32 %v6541, 7
    %v6543 = vsub.s32 %v2322, %v6542
    %v6544 = vrot.slane %v3835, %v6543
    %v6545 = vlaneseq
    %v6546 = vshrl.u32 %v6545, 7
    %v6547 = vsub.s32 %v4551, %v6546
    %v6548 = vrot.slane %v3836, %v6547
    %v6549 = vsel %vm4556, %v6548, %v6544
    %v6550 = vlaneseq
    %v6551 = vshrl.u32 %v6550, 7
    %v6552 = vsub.s32 %v4558, %v6551
    %v6553 = vrot.slane %v3837, %v6552
    %v6554 = vsel %vm4563, %v6553, %v6549
    %v6555 = vlaneseq
    %v6556 = vshrl.u32 %v6555, 7
    %v6557 = vsub.s32 %v4565, %v6556
    %v6558 = vrot.slane %v3838, %v6557
    %v6559 = vsel %vm4570, %v6558, %v6554
    %v6560 = vlaneseq
    %v6561 = vshrl.u32 %v6560, 7
    %v6562 = vsub.s32 %v2322, %v6561
    %v6563 = vrot.slane %v3839, %v6562
    %v6564 = vlaneseq
    %v6565 = vshrl.u32 %v6564, 7
    %v6566 = vsub.s32 %v4551, %v6565
    %v6567 = vrot.slane %v3840, %v6566
    %v6568 = vsel %vm4556, %v6567, %v6563
    %v6569 = vlaneseq
    %v6570 = vshrl.u32 %v6569, 7
    %v6571 = vsub.s32 %v4558, %v6570
    %v6572 = vrot.slane %v3841, %v6571
    %v6573 = vsel %vm4563, %v6572, %v6568
    %v6574 = vlaneseq
    %v6575 = vshrl.u32 %v6574, 7
    %v6576 = vsub.s32 %v4565, %v6575
    %v6577 = vrot.slane %v3842, %v6576
    %v6578 = vsel %vm4570, %v6577, %v6573
    %v6579 = vlaneseq
    %v6580 = vshrl.u32 %v6579, 7
    %v6581 = vsub.s32 %v2322, %v6580
    %v6582 = vrot.slane %v3843, %v6581
    %v6583 = vlaneseq
    %v6584 = vshrl.u32 %v6583, 7
    %v6585 = vsub.s32 %v4551, %v6584
    %v6586 = vrot.slane %v3844, %v6585
    %v6587 = vsel %vm4556, %v6586, %v6582
    %v6588 = vlaneseq
    %v6589 = vshrl.u32 %v6588, 7
    %v6590 = vsub.s32 %v4558, %v6589
    %v6591 = vrot.slane %v3845, %v6590
    %v6592 = vsel %vm4563, %v6591, %v6587
    %v6593 = vlaneseq
    %v6594 = vshrl.u32 %v6593, 7
    %v6595 = vsub.s32 %v4565, %v6594
    %v6596 = vrot.slane %v3846, %v6595
    %v6597 = vsel %vm4570, %v6596, %v6592
    %v6598 = vlaneseq
    %v6599 = vshrl.u32 %v6598, 7
    %v6600 = vsub.s32 %v2322, %v6599
    %v6601 = vrot.slane %v3847, %v6600
    %v6602 = vlaneseq
    %v6603 = vshrl.u32 %v6602, 7
    %v6604 = vsub.s32 %v4551, %v6603
    %v6605 = vrot.slane %v3848, %v6604
    %v6606 = vsel %vm4556, %v6605, %v6601
    %v6607 = vlaneseq
    %v6608 = vshrl.u32 %v6607, 7
    %v6609 = vsub.s32 %v4558, %v6608
    %v6610 = vrot.slane %v3849, %v6609
    %v6611 = vsel %vm4563, %v6610, %v6606
    %v6612 = vlaneseq
    %v6613 = vshrl.u32 %v6612, 7
    %v6614 = vsub.s32 %v4565, %v6613
    %v6615 = vrot.slane %v3850, %v6614
    %v6616 = vsel %vm4570, %v6615, %v6611
    %v6617 = vlaneseq
    %v6618 = vshrl.u32 %v6617, 7
    %v6619 = vsub.s32 %v2322, %v6618
    %v6620 = vrot.slane %v3851, %v6619
    %v6621 = vlaneseq
    %v6622 = vshrl.u32 %v6621, 7
    %v6623 = vsub.s32 %v4551, %v6622
    %v6624 = vrot.slane %v3852, %v6623
    %v6625 = vsel %vm4556, %v6624, %v6620
    %v6626 = vlaneseq
    %v6627 = vshrl.u32 %v6626, 7
    %v6628 = vsub.s32 %v4558, %v6627
    %v6629 = vrot.slane %v3853, %v6628
    %v6630 = vsel %vm4563, %v6629, %v6625
    %v6631 = vlaneseq
    %v6632 = vshrl.u32 %v6631, 7
    %v6633 = vsub.s32 %v4565, %v6632
    %v6634 = vrot.slane %v3854, %v6633
    %v6635 = vsel %vm4570, %v6634, %v6630
    %v6636 = vlaneseq
    %v6637 = vshrl.u32 %v6636, 7
    %v6638 = vsub.s32 %v2322, %v6637
    %v6639 = vrot.slane %v3855, %v6638
    %v6640 = vlaneseq
    %v6641 = vshrl.u32 %v6640, 7
    %v6642 = vsub.s32 %v4551, %v6641
    %v6643 = vrot.slane %v3856, %v6642
    %v6644 = vsel %vm4556, %v6643, %v6639
    %v6645 = vlaneseq
    %v6646 = vshrl.u32 %v6645, 7
    %v6647 = vsub.s32 %v4558, %v6646
    %v6648 = vrot.slane %v3857, %v6647
    %v6649 = vsel %vm4563, %v6648, %v6644
    %v6650 = vlaneseq
    %v6651 = vshrl.u32 %v6650, 7
    %v6652 = vsub.s32 %v4565, %v6651
    %v6653 = vrot.slane %v3858, %v6652
    %v6654 = vsel %vm4570, %v6653, %v6649
    %v6655 = vlaneseq
    %v6656 = vshrl.u32 %v6655, 7
    %v6657 = vsub.s32 %v2322, %v6656
    %v6658 = vrot.slane %v3859, %v6657
    %v6659 = vlaneseq
    %v6660 = vshrl.u32 %v6659, 7
    %v6661 = vsub.s32 %v4551, %v6660
    %v6662 = vrot.slane %v3860, %v6661
    %v6663 = vsel %vm4556, %v6662, %v6658
    %v6664 = vlaneseq
    %v6665 = vshrl.u32 %v6664, 7
    %v6666 = vsub.s32 %v4558, %v6665
    %v6667 = vrot.slane %v3861, %v6666
    %v6668 = vsel %vm4563, %v6667, %v6663
    %v6669 = vlaneseq
    %v6670 = vshrl.u32 %v6669, 7
    %v6671 = vsub.s32 %v4565, %v6670
    %v6672 = vrot.slane %v3862, %v6671
    %v6673 = vsel %vm4570, %v6672, %v6668
    %v6674 = vlaneseq
    %v6675 = vshrl.u32 %v6674, 7
    %v6676 = vsub.s32 %v2322, %v6675
    %v6677 = vrot.slane %v3863, %v6676
    %v6678 = vlaneseq
    %v6679 = vshrl.u32 %v6678, 7
    %v6680 = vsub.s32 %v4551, %v6679
    %v6681 = vrot.slane %v3864, %v6680
    %v6682 = vsel %vm4556, %v6681, %v6677
    %v6683 = vlaneseq
    %v6684 = vshrl.u32 %v6683, 7
    %v6685 = vsub.s32 %v4558, %v6684
    %v6686 = vrot.slane %v3865, %v6685
    %v6687 = vsel %vm4563, %v6686, %v6682
    %v6688 = vlaneseq
    %v6689 = vshrl.u32 %v6688, 7
    %v6690 = vsub.s32 %v4565, %v6689
    %v6691 = vrot.slane %v3866, %v6690
    %v6692 = vsel %vm4570, %v6691, %v6687
    %v6693 = vlaneseq
    %v6694 = vshrl.u32 %v6693, 7
    %v6695 = vsub.s32 %v2322, %v6694
    %v6696 = vrot.slane %v3867, %v6695
    %v6697 = vlaneseq
    %v6698 = vshrl.u32 %v6697, 7
    %v6699 = vsub.s32 %v4551, %v6698
    %v6700 = vrot.slane %v3868, %v6699
    %v6701 = vsel %vm4556, %v6700, %v6696
    %v6702 = vlaneseq
    %v6703 = vshrl.u32 %v6702, 7
    %v6704 = vsub.s32 %v4558, %v6703
    %v6705 = vrot.slane %v3869, %v6704
    %v6706 = vsel %vm4563, %v6705, %v6701
    %v6707 = vlaneseq
    %v6708 = vshrl.u32 %v6707, 7
    %v6709 = vsub.s32 %v4565, %v6708
    %v6710 = vrot.slane %v3870, %v6709
    %v6711 = vsel %vm4570, %v6710, %v6706
    %v6712 = vlaneseq
    %v6713 = vshrl.u32 %v6712, 7
    %v6714 = vsub.s32 %v2322, %v6713
    %v6715 = vrot.slane %v3871, %v6714
    %v6716 = vlaneseq
    %v6717 = vshrl.u32 %v6716, 7
    %v6718 = vsub.s32 %v4551, %v6717
    %v6719 = vrot.slane %v3872, %v6718
    %v6720 = vsel %vm4556, %v6719, %v6715
    %v6721 = vlaneseq
    %v6722 = vshrl.u32 %v6721, 7
    %v6723 = vsub.s32 %v4558, %v6722
    %v6724 = vrot.slane %v3873, %v6723
    %v6725 = vsel %vm4563, %v6724, %v6720
    %v6726 = vlaneseq
    %v6727 = vshrl.u32 %v6726, 7
    %v6728 = vsub.s32 %v4565, %v6727
    %v6729 = vrot.slane %v3874, %v6728
    %v6730 = vsel %vm4570, %v6729, %v6725
    %v6731 = vlaneseq
    %v6732 = vshrl.u32 %v6731, 7
    %v6733 = vsub.s32 %v2322, %v6732
    %v6734 = vrot.slane %v3875, %v6733
    %v6735 = vlaneseq
    %v6736 = vshrl.u32 %v6735, 7
    %v6737 = vsub.s32 %v4551, %v6736
    %v6738 = vrot.slane %v3876, %v6737
    %v6739 = vsel %vm4556, %v6738, %v6734
    %v6740 = vlaneseq
    %v6741 = vshrl.u32 %v6740, 7
    %v6742 = vsub.s32 %v4558, %v6741
    %v6743 = vrot.slane %v3877, %v6742
    %v6744 = vsel %vm4563, %v6743, %v6739
    %v6745 = vlaneseq
    %v6746 = vshrl.u32 %v6745, 7
    %v6747 = vsub.s32 %v4565, %v6746
    %v6748 = vrot.slane %v3878, %v6747
    %v6749 = vsel %vm4570, %v6748, %v6744
    %v6750 = vlaneseq
    %v6751 = vshrl.u32 %v6750, 7
    %v6752 = vsub.s32 %v2322, %v6751
    %v6753 = vrot.slane %v3879, %v6752
    %v6754 = vlaneseq
    %v6755 = vshrl.u32 %v6754, 7
    %v6756 = vsub.s32 %v4551, %v6755
    %v6757 = vrot.slane %v3880, %v6756
    %v6758 = vsel %vm4556, %v6757, %v6753
    %v6759 = vlaneseq
    %v6760 = vshrl.u32 %v6759, 7
    %v6761 = vsub.s32 %v4558, %v6760
    %v6762 = vrot.slane %v3881, %v6761
    %v6763 = vsel %vm4563, %v6762, %v6758
    %v6764 = vlaneseq
    %v6765 = vshrl.u32 %v6764, 7
    %v6766 = vsub.s32 %v4565, %v6765
    %v6767 = vrot.slane %v3882, %v6766
    %v6768 = vsel %vm4570, %v6767, %v6763
    %v6769 = vlaneseq
    %v6770 = vshrl.u32 %v6769, 7
    %v6771 = vsub.s32 %v2322, %v6770
    %v6772 = vrot.slane %v3883, %v6771
    %v6773 = vlaneseq
    %v6774 = vshrl.u32 %v6773, 7
    %v6775 = vsub.s32 %v4551, %v6774
    %v6776 = vrot.slane %v3884, %v6775
    %v6777 = vsel %vm4556, %v6776, %v6772
    %v6778 = vlaneseq
    %v6779 = vshrl.u32 %v6778, 7
    %v6780 = vsub.s32 %v4558, %v6779
    %v6781 = vrot.slane %v3885, %v6780
    %v6782 = vsel %vm4563, %v6781, %v6777
    %v6783 = vlaneseq
    %v6784 = vshrl.u32 %v6783, 7
    %v6785 = vsub.s32 %v4565, %v6784
    %v6786 = vrot.slane %v3886, %v6785
    %v6787 = vsel %vm4570, %v6786, %v6782
    %v6788 = vlaneseq
    %v6789 = vshrl.u32 %v6788, 7
    %v6790 = vsub.s32 %v2322, %v6789
    %v6791 = vrot.slane %v3887, %v6790
    %v6792 = vlaneseq
    %v6793 = vshrl.u32 %v6792, 7
    %v6794 = vsub.s32 %v4551, %v6793
    %v6795 = vrot.slane %v3888, %v6794
    %v6796 = vsel %vm4556, %v6795, %v6791
    %v6797 = vlaneseq
    %v6798 = vshrl.u32 %v6797, 7
    %v6799 = vsub.s32 %v4558, %v6798
    %v6800 = vrot.slane %v3889, %v6799
    %v6801 = vsel %vm4563, %v6800, %v6796
    %v6802 = vlaneseq
    %v6803 = vshrl.u32 %v6802, 7
    %v6804 = vsub.s32 %v4565, %v6803
    %v6805 = vrot.slane %v3890, %v6804
    %v6806 = vsel %vm4570, %v6805, %v6801
    %v6807 = vlaneseq
    %v6808 = vshrl.u32 %v6807, 7
    %v6809 = vsub.s32 %v2322, %v6808
    %v6810 = vrot.slane %v3891, %v6809
    %v6811 = vlaneseq
    %v6812 = vshrl.u32 %v6811, 7
    %v6813 = vsub.s32 %v4551, %v6812
    %v6814 = vrot.slane %v3892, %v6813
    %v6815 = vsel %vm4556, %v6814, %v6810
    %v6816 = vlaneseq
    %v6817 = vshrl.u32 %v6816, 7
    %v6818 = vsub.s32 %v4558, %v6817
    %v6819 = vrot.slane %v3893, %v6818
    %v6820 = vsel %vm4563, %v6819, %v6815
    %v6821 = vlaneseq
    %v6822 = vshrl.u32 %v6821, 7
    %v6823 = vsub.s32 %v4565, %v6822
    %v6824 = vrot.slane %v3894, %v6823
    %v6825 = vsel %vm4570, %v6824, %v6820
    %v6826 = vlaneseq
    %v6827 = vshrl.u32 %v6826, 7
    %v6828 = vsub.s32 %v2322, %v6827
    %v6829 = vrot.slane %v3895, %v6828
    %v6830 = vlaneseq
    %v6831 = vshrl.u32 %v6830, 7
    %v6832 = vsub.s32 %v4551, %v6831
    %v6833 = vrot.slane %v3896, %v6832
    %v6834 = vsel %vm4556, %v6833, %v6829
    %v6835 = vlaneseq
    %v6836 = vshrl.u32 %v6835, 7
    %v6837 = vsub.s32 %v4558, %v6836
    %v6838 = vrot.slane %v3897, %v6837
    %v6839 = vsel %vm4563, %v6838, %v6834
    %v6840 = vlaneseq
    %v6841 = vshrl.u32 %v6840, 7
    %v6842 = vsub.s32 %v4565, %v6841
    %v6843 = vrot.slane %v3898, %v6842
    %v6844 = vsel %vm4570, %v6843, %v6839
    %v6845 = vlaneseq
    %v6846 = vshrl.u32 %v6845, 7
    %v6847 = vsub.s32 %v2322, %v6846
    %v6848 = vrot.slane %v3899, %v6847
    %v6849 = vlaneseq
    %v6850 = vshrl.u32 %v6849, 7
    %v6851 = vsub.s32 %v4551, %v6850
    %v6852 = vrot.slane %v3900, %v6851
    %v6853 = vsel %vm4556, %v6852, %v6848
    %v6854 = vlaneseq
    %v6855 = vshrl.u32 %v6854, 7
    %v6856 = vsub.s32 %v4558, %v6855
    %v6857 = vrot.slane %v3901, %v6856
    %v6858 = vsel %vm4563, %v6857, %v6853
    %v6859 = vlaneseq
    %v6860 = vshrl.u32 %v6859, 7
    %v6861 = vsub.s32 %v4565, %v6860
    %v6862 = vrot.slane %v3902, %v6861
    %v6863 = vsel %vm4570, %v6862, %v6858
    %v6864 = vsel %vm5161, %v6293, %v6274
    %v6865 = vsel %vm5163, %v6312, %v6864
    %v6866 = vsel %vm5165, %v6331, %v6865
    %v6867 = vsel %vm5167, %v6350, %v6866
    %v6868 = vsel %vm5169, %v6369, %v6867
    %v6869 = vsel %vm5171, %v6388, %v6868
    %v6870 = vsel %vm5173, %v6407, %v6869
    %v6871 = vsel %vm5161, %v6445, %v6426
    %v6872 = vsel %vm5163, %v6464, %v6871
    %v6873 = vsel %vm5165, %v6483, %v6872
    %v6874 = vsel %vm5167, %v6502, %v6873
    %v6875 = vsel %vm5169, %v6521, %v6874
    %v6876 = vsel %vm5171, %v6540, %v6875
    %v6877 = vsel %vm5173, %v6559, %v6876
    %v6878 = vsel %vm5161, %v6597, %v6578
    %v6879 = vsel %vm5163, %v6616, %v6878
    %v6880 = vsel %vm5165, %v6635, %v6879
    %v6881 = vsel %vm5167, %v6654, %v6880
    %v6882 = vsel %vm5169, %v6673, %v6881
    %v6883 = vsel %vm5171, %v6692, %v6882
    %v6884 = vsel %vm5173, %v6711, %v6883
    %v6885 = vsel %vm5161, %v6749, %v6730
    %v6886 = vsel %vm5163, %v6768, %v6885
    %v6887 = vsel %vm5165, %v6787, %v6886
    %v6888 = vsel %vm5167, %v6806, %v6887
    %v6889 = vsel %vm5169, %v6825, %v6888
    %v6890 = vsel %vm5171, %v6844, %v6889
    %v6891 = vsel %vm5173, %v6863, %v6890
    %v6896 = vsel %vm6124, 0.0, %v6870
    %v6897 = vsel %vm6125, 0.0, %v6877
    %v6898 = vsel %vm6126, 0.0, %v6884
    %v6899 = vsel %vm6127, 0.0, %v6891
    %v6900 = vmax.f32 %v6896, %v5200
    %v6901 = vmax.f32 %v6897, %v5201
    %v6902 = vmax.f32 %v6898, %v5202
    %v6903 = vmax.f32 %v6899, %v5203
    %vm6904 = vcmp.gt.f32.partialorder %v6900, 0.0
    %vm6905 = vcmp.gt.f32.partialorder %v6901, 0.0
    %vm6906 = vcmp.gt.f32.partialorder %v6902, 0.0
    %vm6907 = vcmp.gt.f32.partialorder %v6903, 0.0
    %v6908 = vsel %vm6904, %v1494, -1e+30
    %v6909 = vsel %vm6905, %v1497, -1e+30
    %v6910 = vsel %vm6906, %v1502, -1e+30
    %v6911 = vsel %vm6907, %v1505, -1e+30
    %v6912 = vsel %vm175, %v6908, -inf
    %6913 = vmax.xlane.f32.xlu0 %v6912
    %v6914 = vpop.xlane.xlu0 %6913
    %v6915 = vsel %vm175, %v6909, -inf
    %6916 = vmax.xlane.f32.xlu0 %v6915
    %v6917 = vpop.xlane.xlu0 %6916
    %v6918 = vsel %vm175, %v6910, -inf
    %6919 = vmax.xlane.f32.xlu0 %v6918
    %v6920 = vpop.xlane.xlu0 %6919
    %v6921 = vsel %vm175, %v6911, -inf
    %6922 = vmax.xlane.f32.xlu0 %v6921
    %v6923 = vpop.xlane.xlu0 %6922
    %v6924 = vsub.f32 %v6908, %v6914
    %v6925 = vsub.f32 %v6909, %v6917
    %v6926 = vsub.f32 %v6910, %v6920
    %v6927 = vsub.f32 %v6911, %v6923
    %v6928 = vmul.f32 %v6924, 1.442695
    %v6929 = vpow.pop %v6928
    %v6930 = vmul.f32 %v6925, 1.442695
    %v6931 = vpow.pop %v6930
    %v6932 = vmul.f32 %v6926, 1.442695
    %v6933 = vpow.pop %v6932
    %v6934 = vmul.f32 %v6927, 1.442695
    %v6935 = vpow.pop %v6934
    %v6936 = vmul.f32 %v6929, %v6900
    %v6937 = vmul.f32 %v6931, %v6901
    %v6938 = vmul.f32 %v6933, %v6902
    %v6939 = vmul.f32 %v6935, %v6903
    %v6940 = vsel %vm175, %v6936, 0.0
    %6941 = vadd.xlane.f32.xlu0 %v6940
    %v6942 = vpop.xlane.xlu0 %6941
    %v6943 = vsel %vm175, %v6937, 0.0
    %6944 = vadd.xlane.f32.xlu0 %v6943
    %v6945 = vpop.xlane.xlu0 %6944
    %v6946 = vsel %vm175, %v6938, 0.0
    %6947 = vadd.xlane.f32.xlu0 %v6946
    %v6948 = vpop.xlane.xlu0 %6947
    %v6949 = vsel %vm175, %v6939, 0.0
    %6950 = vadd.xlane.f32.xlu0 %v6949
    %v6951 = vpop.xlane.xlu0 %6950
    %v6952 = vrcp.pop %v6942
    %v6953 = vrcp.pop %v6945
    %v6954 = vrcp.pop %v6948
    %v6955 = vrcp.pop %v6951
    %v6956 = vmul.f32 %v6936, %v6952
    %v6957 = vmul.f32 %v6937, %v6953
    %v6958 = vmul.f32 %v6938, %v6954
    %v6959 = vmul.f32 %v6939, %v6955
    %6960 = vst.msk [vmem:[#allocation11] sm:$0xff] %vm175, %v6956
    %6961 = vst.msk [vmem:[#allocation11 + $0x8] sm:$0xff] %vm175, %v6957
    %6962 = vst.msk [vmem:[#allocation11 + $0x10] sm:$0xff] %vm175, %v6958
    %6963 = vst.msk [vmem:[#allocation11 + $0x18] sm:$0xff] %vm175, %v6959
    // Predicated region
    $region70: #{graph_model_forward.1} parent=1 // pred_check
      _
    $region71: #{graph_model_forward.1} parent=1 // pred_check_branch
      %6965 = sbr.rel (0) target = $region73
    $region72: #{graph_model_forward.1} parent=1 // pred_region
      %s6967 = ssub.s32 512, 512
      %6968 = vsyncadd [#allocation4], %s6967
      %s6969 = sshll.u32 [#allocation11], 4
      %s6970 = int_to_ptr.vmem [resolvable:$true] %s6969
      %6975 = dma.vmem_to_hbm [thread:$0]  %s6970, 512, %s12, [#allocation4], 128, 128, 8
    $region73: #{graph_model_forward.1} parent=1 // pred_fallthru
      _
    // Predicated region
    $region74: #{graph_model_forward.1} parent=1 // pred_check
      _
    $region75: #{graph_model_forward.1} parent=1 // pred_check_branch
      %6977 = sbr.rel (0) target = $region77
    $region76: #{graph_model_forward.1} parent=1 // pred_region
      %6978 = dma.done [#allocation4], 512
    $region77: #{graph_model_forward.1} parent=1 // pred_fallthru
      _
    %6979 = vsyncpa [#allocation3], 1
    %6980 = vsyncpa [#allocation6], 1
    %6981 = vsyncpa [#allocation9], 1
    %6982 = vsyncpa [#allocation4], 1

</llo_original>
